<compile_context>
chip_gen: v6e
topology: v6e:2x2x1
jax: 0.10.0
libtpu: 0.0.40
codegen_flags: <defaults>
</compile_context>

<pallas_src>
import numpy as np
import jax
import jax.numpy as jnp
from jax import lax
from jax.experimental import pallas as pl
from jax.experimental.pallas import tpu as pltpu

NEG_SLOPE = 0.1  # nn.LeakyReLU(negative_slope=0.1)


# ----------------------------- row-space layout --------------------------------
# Activations live in a zero-padded "row space": P leading zero rows followed by
# the (H+2)x(W+2) zero-padded image flattened row-major; channels on lanes.
# A 3x3 tap is then a CONSTANT row shift.  P is chosen so the span-store start
# (row of pixel (0,0)) is 8-aligned.

def _lead_pad(Wp):
    return (-(Wp + 1)) % 8


def _rows(H, W):
    Wp = W + 2
    return _lead_pad(Wp) + (H + 2) * Wp


def _span(H, W):
    return (H - 1) * (W + 2) + W


def _base(H, W):
    Wp = W + 2
    return _lead_pad(Wp) + Wp + 1          # row index of pixel (0, 0); multiple of 8


def _interior_mask(H, W):
    # 1.0 for real pixel rows inside the span, 0.0 for padding-column rows.
    Wp = W + 2
    Ms = _span(H, W)
    i = np.arange(Ms)
    wp = (i + 1) % Wp
    return jnp.asarray(((wp >= 1) & (wp <= W)).astype(np.float32).reshape(Ms, 1))


# ------------------------------ fused kernel -----------------------------------

def _build_encoder_kernel(meta):
    """meta: list of per-layer dicts with H, W, R, Ms, base, chans[(cin,cout)],
    pool, emit, needs_mask.  Whole encoder runs per grid step (one image)."""
    n_layers = len(meta)

    def kernel(*refs):
        it = iter(refs)
        x_ref = next(it)
        mask_refs = [next(it) if lm['needs_mask'] else None for lm in meta]
        wb = [[(next(it), next(it)) for _ in lm['chans']] for lm in meta]
        out_refs = [next(it) if lm['emit'] else None for lm in meta]
        conv_scr = []
        for li, lm in enumerate(meta):
            per = []
            for ci in range(len(lm['chans'])):
                last_global = (li == n_layers - 1) and (ci == len(lm['chans']) - 1)
                per.append(None if last_global else next(it))
            conv_scr.append(per)
        pool_scr = [None] + [next(it) for _ in range(n_layers - 1)]

        cur = x_ref                                  # padded row-space ref (R, Cin)
        for li, lm in enumerate(meta):
            H, W = lm['H'], lm['W']
            Wp = W + 2
            base, Ms, R = lm['base'], lm['Ms'], lm['R']
            nconv = len(lm['chans'])
            last_layer = (li == n_layers - 1)

            acc = None
            for ci, (cin, cout) in enumerate(lm['chans']):
                w_ref, b_ref = wb[li][ci]
                # fused im2col: 9 constant-row-shift slices, lane-concatenated,
                # then ONE bf16 (Ms, 9*Cin) x (9*Cin, Cout) MXU dot (f32 accum).
                taps = []
                for t in range(9):
                    dy, dx = divmod(t, 3)
                    start = base + (dy - 1) * Wp + (dx - 1)
                    taps.append(cur[start:start + Ms, :])
                x9 = jnp.concatenate(taps, axis=-1).astype(jnp.bfloat16)
                acc = jnp.dot(x9, w_ref[...], preferred_element_type=jnp.float32)
                acc = acc + b_ref[...]
                acc = jnp.where(acc >= 0.0, acc, NEG_SLOPE * acc)   # LeakyReLU(0.1)

                s = conv_scr[li][ci]
                if ci < nconv - 1:
                    # Output feeds another conv: padding-column rows and the
                    # lead/halo rows must be zero.  Zero ONLY the border rows
                    # (every iteration -> megacore-safe), then 8-aligned store.
                    acc = acc * mask_refs[li][...]
                    s[0:base, :] = jnp.zeros((base, cout), jnp.float32)
                    s[base + Ms:R, :] = jnp.zeros((R - base - Ms, cout), jnp.float32)
                    s[base:base + Ms, :] = acc
                    cur = s
                elif s is not None:
                    # Last conv of a non-final layer: only the 2x2 pool reads it,
                    # and the pool touches interior rows only -> no mask/zeroing.
                    s[base:base + Ms, :] = acc
                    cur = s

            if not last_layer:
                # 2x2 / stride-2 max pool, scattered directly into the NEXT
                # layer's padded row space via strided reads + row-slice stores.
                nxt = meta[li + 1]
                Ho, Wo = nxt['H'], nxt['W']
                Wpn, base_n = nxt['W'] + 2, nxt['base']
                p = pool_scr[li + 1]
                p[...] = jnp.zeros(p.shape, p.dtype)      # zero padding/halo rows
                pooled_rows = []
                for ho in range(Ho):
                    r = base + 2 * ho * Wp
                    p00 = cur[pl.ds(r, Wo, 2), :]
                    p01 = cur[pl.ds(r + 1, Wo, 2), :]
                    p10 = cur[pl.ds(r + Wp, Wo, 2), :]
                    p11 = cur[pl.ds(r + Wp + 1, Wo, 2), :]
                    row = jnp.maximum(jnp.maximum(p00, p01),
                                      jnp.maximum(p10, p11))          # (Wo, C)
                    p[base_n + ho * Wpn: base_n + ho * Wpn + Wo, :] = row
                    pooled_rows.append(row)
                cur = p
                if lm['emit']:
                    dense = jnp.concatenate(pooled_rows, axis=0)       # (Ho*Wo, C)
                    out_refs[li][...] = jnp.transpose(dense, (1, 0))   # (C, Ho*Wo)
            else:
                if lm['emit']:
                    dense = jnp.concatenate(
                        [acc[h * Wp:h * Wp + W, :] for h in range(H)], axis=0)
                    out_refs[li][...] = jnp.transpose(dense, (1, 0))   # (C, H*W)

    return kernel


# ------------------------------ NCHW -> row space -------------------------------

def _nchw_to_padded2d(x):
    N, C, H, W = x.shape
    Wp = W + 2
    xp = jnp.pad(jnp.transpose(x, (0, 2, 3, 1)), ((0, 0), (1, 1), (1, 1), (0, 0)))
    x2d = xp.reshape(N, (H + 2) * Wp, C)
    P = _lead_pad(Wp)
    if P:
        x2d = jnp.pad(x2d, ((0, 0), (P, 0), (0, 0)))
    return x2d


# ------------------------------ forward pass ------------------------------------

def denoiser_encoder_forward(x_nchw, params):
    """Matches DenoiserEncoder.forward: returns a list of NCHW tensors.
    The whole encoder runs as a single pallas_call."""
    n_layers = len(params)
    N, C0, H0, W0 = x_nchw.shape

    # static per-layer metadata
    meta = []
    H, W = H0, W0
    for i, convs in enumerate(params):
        chans = [(w.shape[0] // 9, w.shape[1]) for (w, _b) in convs]
        lm = dict(H=H, W=W, chans=chans, R=_rows(H, W), Ms=_span(H, W),
                  base=_base(H, W),
                  pool=(i != n_layers - 1), emit=(i != n_layers - 2),
                  needs_mask=(len(chans) > 1))
        meta.append(lm)
        if lm['pool']:
            H, W = H // 2, W // 2

    # kernel operands
    x2d = _nchw_to_padded2d(x_nchw)
    args = [x2d]
    in_specs = [pl.BlockSpec((None, meta[0]['R'], C0), lambda n: (n, 0, 0))]
    for lm in meta:
        if lm['needs_mask']:
            m = _interior_mask(lm['H'], lm['W'])
            args.append(m)
            in_specs.append(pl.BlockSpec(m.shape, lambda n: (0, 0)))
    for lm, convs in zip(meta, params):
        for (w_mat, b), (cin, cout) in zip(convs, lm['chans']):
            args.append(w_mat.astype(jnp.bfloat16))                 # bf16 MXU weights
            args.append(b.reshape(1, cout).astype(jnp.float32))
            in_specs.append(pl.BlockSpec((9 * cin, cout), lambda n: (0, 0)))
            in_specs.append(pl.BlockSpec((1, cout), lambda n: (0, 0)))

    # outputs: every layer the module appends, in lane-dense (N, C, H*W) layout
    out_shapes, out_specs, out_meta = [], [], []
    for lm in meta:
        if not lm['emit']:
            continue
        Ho = lm['H'] // 2 if lm['pool'] else lm['H']
        Wo = lm['W'] // 2 if lm['pool'] else lm['W']
        cout = lm['chans'][-1][1]
        out_shapes.append(jax.ShapeDtypeStruct((N, cout, Ho * Wo), jnp.float32))
        out_specs.append(pl.BlockSpec((None, cout, Ho * Wo), lambda n: (n, 0, 0)))
        out_meta.append((cout, Ho, Wo))

    # VMEM scratch: per-conv row-space buffers (except the very last conv) and
    # the pooled input buffer of each subsequent layer.
    scratch = []
    for li, lm in enumerate(meta):
        for ci, (_cin, cout) in enumerate(lm['chans']):
            if li == n_layers - 1 and ci == len(lm['chans']) - 1:
                continue
            scratch.append(pltpu.VMEM((lm['R'], cout), jnp.float32))
    for li in range(1, n_layers):
        scratch.append(pltpu.VMEM((meta[li]['R'], meta[li]['chans'][0][0]),
                                  jnp.float32))

    outs = pl.pallas_call(
        _build_encoder_kernel(meta),
        out_shape=tuple(out_shapes),
        grid=(N,),
        in_specs=in_specs,
        out_specs=tuple(out_specs),
        scratch_shapes=scratch,
        compiler_params=pltpu.CompilerParams(
            dimension_semantics=("parallel",)),      # batch shards across TCs
    )(*args)
    if not isinstance(outs, (tuple, list)):
        outs = (outs,)

    results = [x_nchw]
    for o, (cout, Ho, Wo) in zip(outs, out_meta):
        results.append(o.reshape(N, cout, Ho, Wo))   # free reshape: already NC(HW)
    return results


# --------------------------- parameters (synthetic) ------------------------------

def init_params(key, sizes_num_layers, layer_input_sizes):
    """Kaiming-normal-style init; weight slab (3,3,Cin,Cout) -> (9*Cin,Cout) bf16."""
    params = []
    for li, sizes in enumerate(sizes_num_layers):
        prev = layer_input_sizes[li]
        convs = []
        for ci, cout in enumerate(sizes):
            k = jax.random.fold_in(key, li * 100 + ci)
            kw, kb = jax.random.split(k)
            fan_in = prev * 9
            gain = (2.0 / (1.0 + NEG_SLOPE ** 2)) ** 0.5
            std = gain / (fan_in ** 0.5)
            w = std * jax.random.normal(kw, (3, 3, prev, cout), jnp.float32)
            w_mat = w.reshape(9 * prev, cout).astype(jnp.bfloat16)
            bound = 1.0 / (fan_in ** 0.5)
            b = jax.random.uniform(kb, (cout,), jnp.float32, -bound, bound)
            convs.append((w_mat, b))
            prev = cout
        params.append(convs)
    return params


# -------------------------------- reference --------------------------------------

def reference_forward(x_nchw, params):
    n_layers = len(params)
    cur = x_nchw
    outputs = [x_nchw]
    for i, convs in enumerate(params):
        for (w_mat, b) in convs:
            cin = w_mat.shape[0] // 9
            cout = w_mat.shape[1]
            w = w_mat.astype(jnp.float32).reshape(3, 3, cin, cout)   # (kh,kw,ci,co)
            w_oihw = jnp.transpose(w, (3, 2, 0, 1))
            y = lax.conv_general_dilated(
                cur, w_oihw, (1, 1), ((1, 1), (1, 1)),
                dimension_numbers=("NCHW", "OIHW", "NCHW"),
                precision=lax.Precision.HIGHEST)
            y = y + b.reshape(1, cout, 1, 1)
            cur = jnp.where(y >= 0, y, NEG_SLOPE * y)
        if i != n_layers - 1:
            cur = lax.reduce_window(cur, -jnp.inf, lax.max,
                                    (1, 1, 2, 2), (1, 1, 2, 2), "VALID")
        if i != n_layers - 2:
            outputs.append(cur)
    return outputs


# ----------------------------------- main -----------------------------------------

if __name__ == "__main__":
    key = jax.random.PRNGKey(0)
    sizes_num_layers = [[8, 8], [16, 16], [16]]
    layer_input_sizes = [4, 8, 16]

    params = init_params(jax.random.fold_in(key, 1), sizes_num_layers, layer_input_sizes)
    x = jax.random.normal(jax.random.fold_in(key, 2), (2, 4, 16, 16), jnp.float32)

    fwd = jax.jit(denoiser_encoder_forward)
    outs = fwd(x, params)
    outs = [jax.block_until_ready(o) for o in outs]

    refs = reference_forward(x, params)
    assert len(outs) == len(refs), (len(outs), len(refs))
    for o, r in zip(outs, refs):
        assert o.shape == r.shape, (o.shape, r.shape)
        err = float(jnp.max(jnp.abs(o - r)))
        # bf16 matmul inputs with f32 accumulation vs. f32 HIGHEST reference.
        assert jnp.allclose(o, r, rtol=3e-2, atol=3e-2), err

    print("KERNEL_OK")
</pallas_src>

<mosaic_0001>
module attributes {stable_mosaic.version = 11 : i64} {
  func.func @kernel(%arg0: i32, %arg1: memref<1x329x4xf32, #tpu.memory_space<vmem>>, %arg2: memref<286x1xf32, #tpu.memory_space<vmem>>, %arg3: memref<78x1xf32, #tpu.memory_space<vmem>>, %arg4: memref<36x8xbf16, #tpu.memory_space<vmem>>, %arg5: memref<1x8xf32, #tpu.memory_space<vmem>>, %arg6: memref<72x8xbf16, #tpu.memory_space<vmem>>, %arg7: memref<1x8xf32, #tpu.memory_space<vmem>>, %arg8: memref<72x16xbf16, #tpu.memory_space<vmem>>, %arg9: memref<1x16xf32, #tpu.memory_space<vmem>>, %arg10: memref<144x16xbf16, #tpu.memory_space<vmem>>, %arg11: memref<1x16xf32, #tpu.memory_space<vmem>>, %arg12: memref<144x16xbf16, #tpu.memory_space<vmem>>, %arg13: memref<1x16xf32, #tpu.memory_space<vmem>>, %arg14: memref<1x8x64xf32, #tpu.memory_space<vmem>>, %arg15: memref<1x16x16xf32, #tpu.memory_space<vmem>>, %arg16: memref<329x8xf32, #tpu.memory_space<vmem>>, %arg17: memref<329x8xf32, #tpu.memory_space<vmem>>, %arg18: memref<105x16xf32, #tpu.memory_space<vmem>>, %arg19: memref<105x16xf32, #tpu.memory_space<vmem>>, %arg20: memref<105x8xf32, #tpu.memory_space<vmem>>, %arg21: memref<37x16xf32, #tpu.memory_space<vmem>>) attributes {dimension_semantics = [#tpu.dimension_semantics<parallel>], iteration_bounds = array<i64: 2>, scalar_prefetch = 0 : i64, scratch_operands = 6 : i64, tpu.core_type = #tpu.core_type<tc>, window_params = [{transform_indices = @transform_0, window_bounds = array<i64: 1, 329, 4>}, {pipeline_mode = #tpu.pipeline_mode<synchronous>, transform_indices = @transform_1, window_bounds = array<i64: 286, 1>}, {pipeline_mode = #tpu.pipeline_mode<synchronous>, transform_indices = @transform_2, window_bounds = array<i64: 78, 1>}, {pipeline_mode = #tpu.pipeline_mode<synchronous>, transform_indices = @transform_3, window_bounds = array<i64: 36, 8>}, {pipeline_mode = #tpu.pipeline_mode<synchronous>, transform_indices = @transform_4, window_bounds = array<i64: 1, 8>}, {pipeline_mode = #tpu.pipeline_mode<synchronous>, transform_indices = @transform_5, window_bounds = array<i64: 72, 8>}, {pipeline_mode = #tpu.pipeline_mode<synchronous>, transform_indices = @transform_6, window_bounds = array<i64: 1, 8>}, {pipeline_mode = #tpu.pipeline_mode<synchronous>, transform_indices = @transform_7, window_bounds = array<i64: 72, 16>}, {pipeline_mode = #tpu.pipeline_mode<synchronous>, transform_indices = @transform_8, window_bounds = array<i64: 1, 16>}, {pipeline_mode = #tpu.pipeline_mode<synchronous>, transform_indices = @transform_9, window_bounds = array<i64: 144, 16>}, {pipeline_mode = #tpu.pipeline_mode<synchronous>, transform_indices = @transform_10, window_bounds = array<i64: 1, 16>}, {pipeline_mode = #tpu.pipeline_mode<synchronous>, transform_indices = @transform_11, window_bounds = array<i64: 144, 16>}, {pipeline_mode = #tpu.pipeline_mode<synchronous>, transform_indices = @transform_12, window_bounds = array<i64: 1, 16>}, {transform_indices = @transform_13, window_bounds = array<i64: 1, 8, 64>}, {transform_indices = @transform_14, window_bounds = array<i64: 1, 16, 16>}]} {
    %c0 = arith.constant 0 : index
    %c5 = arith.constant 5 : index
    %c0_0 = arith.constant 0 : index
    %0 = vector.load %arg1[%c0, %c5, %c0_0] : memref<1x329x4xf32, #tpu.memory_space<vmem>>, vector<1x286x4xf32>
    %1 = vector.shape_cast %0 : vector<1x286x4xf32> to vector<286x4xf32>
    %c0_1 = arith.constant 0 : index
    %c6 = arith.constant 6 : index
    %c0_2 = arith.constant 0 : index
    %2 = vector.load %arg1[%c0_1, %c6, %c0_2] : memref<1x329x4xf32, #tpu.memory_space<vmem>>, vector<1x286x4xf32>
    %3 = vector.shape_cast %2 : vector<1x286x4xf32> to vector<286x4xf32>
    %c0_3 = arith.constant 0 : index
    %c7 = arith.constant 7 : index
    %c0_4 = arith.constant 0 : index
    %4 = vector.load %arg1[%c0_3, %c7, %c0_4] : memref<1x329x4xf32, #tpu.memory_space<vmem>>, vector<1x286x4xf32>
    %5 = vector.shape_cast %4 : vector<1x286x4xf32> to vector<286x4xf32>
    %c0_5 = arith.constant 0 : index
    %c23 = arith.constant 23 : index
    %c0_6 = arith.constant 0 : index
    %6 = vector.load %arg1[%c0_5, %c23, %c0_6] : memref<1x329x4xf32, #tpu.memory_space<vmem>>, vector<1x286x4xf32>
    %7 = vector.shape_cast %6 : vector<1x286x4xf32> to vector<286x4xf32>
    %c0_7 = arith.constant 0 : index
    %c24 = arith.constant 24 : index
    %c0_8 = arith.constant 0 : index
    %8 = vector.load %arg1[%c0_7, %c24, %c0_8] : memref<1x329x4xf32, #tpu.memory_space<vmem>>, vector<1x286x4xf32>
    %9 = vector.shape_cast %8 : vector<1x286x4xf32> to vector<286x4xf32>
    %c0_9 = arith.constant 0 : index
    %c25 = arith.constant 25 : index
    %c0_10 = arith.constant 0 : index
    %10 = vector.load %arg1[%c0_9, %c25, %c0_10] : memref<1x329x4xf32, #tpu.memory_space<vmem>>, vector<1x286x4xf32>
    %11 = vector.shape_cast %10 : vector<1x286x4xf32> to vector<286x4xf32>
    %c0_11 = arith.constant 0 : index
    %c41 = arith.constant 41 : index
    %c0_12 = arith.constant 0 : index
    %12 = vector.load %arg1[%c0_11, %c41, %c0_12] : memref<1x329x4xf32, #tpu.memory_space<vmem>>, vector<1x286x4xf32>
    %13 = vector.shape_cast %12 : vector<1x286x4xf32> to vector<286x4xf32>
    %c0_13 = arith.constant 0 : index
    %c42 = arith.constant 42 : index
    %c0_14 = arith.constant 0 : index
    %14 = vector.load %arg1[%c0_13, %c42, %c0_14] : memref<1x329x4xf32, #tpu.memory_space<vmem>>, vector<1x286x4xf32>
    %15 = vector.shape_cast %14 : vector<1x286x4xf32> to vector<286x4xf32>
    %c0_15 = arith.constant 0 : index
    %c43 = arith.constant 43 : index
    %c0_16 = arith.constant 0 : index
    %16 = vector.load %arg1[%c0_15, %c43, %c0_16] : memref<1x329x4xf32, #tpu.memory_space<vmem>>, vector<1x286x4xf32>
    %17 = vector.shape_cast %16 : vector<1x286x4xf32> to vector<286x4xf32>
    %18 = tpu.concatenate %1, %3, %5, %7, %9, %11, %13, %15, %17 in 1 : vector<286x4xf32>, vector<286x4xf32>, vector<286x4xf32>, vector<286x4xf32>, vector<286x4xf32>, vector<286x4xf32>, vector<286x4xf32>, vector<286x4xf32>, vector<286x4xf32> -> vector<286x36xf32>
    %19 = arith.truncf %18 : vector<286x36xf32> to vector<286x36xbf16>
    %c0_17 = arith.constant 0 : index
    %c0_18 = arith.constant 0 : index
    %20 = vector.load %arg4[%c0_17, %c0_18] : memref<36x8xbf16, #tpu.memory_space<vmem>>, vector<36x8xbf16>
    %cst = arith.constant dense<0.000000e+00> : vector<286x8xf32>
    %21 = tpu.matmul %19, %20, %cst {dimension_numbers = #tpu.dot_dimension_numbers<[1], [0], [0], [1], [0, 0, 1, 1], [], []>} : vector<286x36xbf16>, vector<36x8xbf16>, vector<286x8xf32> -> vector<286x8xf32>
    %c0_19 = arith.constant 0 : index
    %c0_20 = arith.constant 0 : index
    %22 = vector.load %arg5[%c0_19, %c0_20] : memref<1x8xf32, #tpu.memory_space<vmem>>, vector<1x8xf32>
    %23 = vector.broadcast %22 : vector<1x8xf32> to vector<286x8xf32>
    %24 = arith.addf %21, %23 : vector<286x8xf32>
    %cst_21 = arith.constant 0.000000e+00 : f32
    %25 = vector.broadcast %cst_21 : f32 to vector<286x8xf32>
    %26 = arith.cmpf oge, %24, %25 : vector<286x8xf32>
    %cst_22 = arith.constant 1.000000e-01 : f32
    %27 = vector.broadcast %cst_22 : f32 to vector<286x8xf32>
    %28 = arith.mulf %27, %24 : vector<286x8xf32>
    %29 = arith.select %26, %24, %28 : vector<286x8xi1>, vector<286x8xf32>
    %c0_23 = arith.constant 0 : index
    %c0_24 = arith.constant 0 : index
    %30 = vector.load %arg2[%c0_23, %c0_24] : memref<286x1xf32, #tpu.memory_space<vmem>>, vector<286x1xf32>
    %31 = vector.broadcast %30 : vector<286x1xf32> to vector<286x8xf32>
    %32 = arith.mulf %29, %31 : vector<286x8xf32>
    %cst_25 = arith.constant 0.000000e+00 : f32
    %33 = vector.broadcast %cst_25 : f32 to vector<24x8xf32>
    %c0_26 = arith.constant 0 : index
    %c0_27 = arith.constant 0 : index
    %34 = vector.load %arg16[%c0_26, %c0_27] : memref<329x8xf32, #tpu.memory_space<vmem>>, vector<24x8xf32>
    tpu.vector_store %arg16[%c0_26, %c0_27], %33 {strides = array<i32>} : memref<329x8xf32, #tpu.memory_space<vmem>>, vector<24x8xf32>,
    %cst_28 = arith.constant 0.000000e+00 : f32
    %35 = vector.broadcast %cst_28 : f32 to vector<19x8xf32>
    %c310 = arith.constant 310 : index
    %c0_29 = arith.constant 0 : index
    %36 = vector.load %arg16[%c310, %c0_29] : memref<329x8xf32, #tpu.memory_space<vmem>>, vector<19x8xf32>
    tpu.vector_store %arg16[%c310, %c0_29], %35 {strides = array<i32>} : memref<329x8xf32, #tpu.memory_space<vmem>>, vector<19x8xf32>,
    %c24_30 = arith.constant 24 : index
    %c0_31 = arith.constant 0 : index
    %37 = vector.load %arg16[%c24_30, %c0_31] : memref<329x8xf32, #tpu.memory_space<vmem>>, vector<286x8xf32>
    tpu.vector_store %arg16[%c24_30, %c0_31], %32 {strides = array<i32>} : memref<329x8xf32, #tpu.memory_space<vmem>>, vector<286x8xf32>,
    %c5_32 = arith.constant 5 : index
    %c0_33 = arith.constant 0 : index
    %38 = vector.load %arg16[%c5_32, %c0_33] : memref<329x8xf32, #tpu.memory_space<vmem>>, vector<286x8xf32>
    %c6_34 = arith.constant 6 : index
    %c0_35 = arith.constant 0 : index
    %39 = vector.load %arg16[%c6_34, %c0_35] : memref<329x8xf32, #tpu.memory_space<vmem>>, vector<286x8xf32>
    %c7_36 = arith.constant 7 : index
    %c0_37 = arith.constant 0 : index
    %40 = vector.load %arg16[%c7_36, %c0_37] : memref<329x8xf32, #tpu.memory_space<vmem>>, vector<286x8xf32>
    %c23_38 = arith.constant 23 : index
    %c0_39 = arith.constant 0 : index
    %41 = vector.load %arg16[%c23_38, %c0_39] : memref<329x8xf32, #tpu.memory_space<vmem>>, vector<286x8xf32>
    %c24_40 = arith.constant 24 : index
    %c0_41 = arith.constant 0 : index
    %42 = vector.load %arg16[%c24_40, %c0_41] : memref<329x8xf32, #tpu.memory_space<vmem>>, vector<286x8xf32>
    %c25_42 = arith.constant 25 : index
    %c0_43 = arith.constant 0 : index
    %43 = vector.load %arg16[%c25_42, %c0_43] : memref<329x8xf32, #tpu.memory_space<vmem>>, vector<286x8xf32>
    %c41_44 = arith.constant 41 : index
    %c0_45 = arith.constant 0 : index
    %44 = vector.load %arg16[%c41_44, %c0_45] : memref<329x8xf32, #tpu.memory_space<vmem>>, vector<286x8xf32>
    %c42_46 = arith.constant 42 : index
    %c0_47 = arith.constant 0 : index
    %45 = vector.load %arg16[%c42_46, %c0_47] : memref<329x8xf32, #tpu.memory_space<vmem>>, vector<286x8xf32>
    %c43_48 = arith.constant 43 : index
    %c0_49 = arith.constant 0 : index
    %46 = vector.load %arg16[%c43_48, %c0_49] : memref<329x8xf32, #tpu.memory_space<vmem>>, vector<286x8xf32>
    %47 = tpu.concatenate %38, %39, %40, %41, %42, %43, %44, %45, %46 in 1 : vector<286x8xf32>, vector<286x8xf32>, vector<286x8xf32>, vector<286x8xf32>, vector<286x8xf32>, vector<286x8xf32>, vector<286x8xf32>, vector<286x8xf32>, vector<286x8xf32> -> vector<286x72xf32>
    %48 = arith.truncf %47 : vector<286x72xf32> to vector<286x72xbf16>
    %c0_50 = arith.constant 0 : index
    %c0_51 = arith.constant 0 : index
    %49 = vector.load %arg6[%c0_50, %c0_51] : memref<72x8xbf16, #tpu.memory_space<vmem>>, vector<72x8xbf16>
    %cst_52 = arith.constant dense<0.000000e+00> : vector<286x8xf32>
    %50 = tpu.matmul %48, %49, %cst_52 {dimension_numbers = #tpu.dot_dimension_numbers<[1], [0], [0], [1], [0, 0, 1, 1], [], []>} : vector<286x72xbf16>, vector<72x8xbf16>, vector<286x8xf32> -> vector<286x8xf32>
    %c0_53 = arith.constant 0 : index
    %c0_54 = arith.constant 0 : index
    %51 = vector.load %arg7[%c0_53, %c0_54] : memref<1x8xf32, #tpu.memory_space<vmem>>, vector<1x8xf32>
    %52 = vector.broadcast %51 : vector<1x8xf32> to vector<286x8xf32>
    %53 = arith.addf %50, %52 : vector<286x8xf32>
    %cst_55 = arith.constant 0.000000e+00 : f32
    %54 = vector.broadcast %cst_55 : f32 to vector<286x8xf32>
    %55 = arith.cmpf oge, %53, %54 : vector<286x8xf32>
    %cst_56 = arith.constant 1.000000e-01 : f32
    %56 = vector.broadcast %cst_56 : f32 to vector<286x8xf32>
    %57 = arith.mulf %56, %53 : vector<286x8xf32>
    %58 = arith.select %55, %53, %57 : vector<286x8xi1>, vector<286x8xf32>
    %c24_57 = arith.constant 24 : index
    %c0_58 = arith.constant 0 : index
    %59 = vector.load %arg17[%c24_57, %c0_58] : memref<329x8xf32, #tpu.memory_space<vmem>>, vector<286x8xf32>
    tpu.vector_store %arg17[%c24_57, %c0_58], %58 {strides = array<i32>} : memref<329x8xf32, #tpu.memory_space<vmem>>, vector<286x8xf32>,
    %cst_59 = arith.constant 0.000000e+00 : f32
    %60 = vector.broadcast %cst_59 : f32 to vector<105x8xf32>
    %c0_60 = arith.constant 0 : index
    %c0_61 = arith.constant 0 : index
    %61 = vector.load %arg20[%c0_60, %c0_61] : memref<105x8xf32, #tpu.memory_space<vmem>>, vector<105x8xf32>
    tpu.vector_store %arg20[%c0_60, %c0_61], %60 {strides = array<i32>} : memref<105x8xf32, #tpu.memory_space<vmem>>, vector<105x8xf32>,
    %c24_62 = arith.constant 24 : index
    %c0_63 = arith.constant 0 : index
    %62 = tpu.strided_load %arg17[%c24_62, %c0_63] {strides = array<i32: 2, 1>} : memref<329x8xf32, #tpu.memory_space<vmem>>, vector<8x8xf32>
    %c25_64 = arith.constant 25 : index
    %c0_65 = arith.constant 0 : index
    %63 = tpu.strided_load %arg17[%c25_64, %c0_65] {strides = array<i32: 2, 1>} : memref<329x8xf32, #tpu.memory_space<vmem>>, vector<8x8xf32>
    %c42_66 = arith.constant 42 : index
    %c0_67 = arith.constant 0 : index
    %64 = tpu.strided_load %arg17[%c42_66, %c0_67] {strides = array<i32: 2, 1>} : memref<329x8xf32, #tpu.memory_space<vmem>>, vector<8x8xf32>
    %c43_68 = arith.constant 43 : index
    %c0_69 = arith.constant 0 : index
    %65 = tpu.strided_load %arg17[%c43_68, %c0_69] {strides = array<i32: 2, 1>} : memref<329x8xf32, #tpu.memory_space<vmem>>, vector<8x8xf32>
    %66 = arith.maximumf %62, %63 : vector<8x8xf32>
    %67 = arith.maximumf %64, %65 : vector<8x8xf32>
    %68 = arith.maximumf %66, %67 : vector<8x8xf32>
    %c16 = arith.constant 16 : index
    %c0_70 = arith.constant 0 : index
    %69 = vector.load %arg20[%c16, %c0_70] : memref<105x8xf32, #tpu.memory_space<vmem>>, vector<8x8xf32>
    tpu.vector_store %arg20[%c16, %c0_70], %68 {strides = array<i32>} : memref<105x8xf32, #tpu.memory_space<vmem>>, vector<8x8xf32>,
    %c60 = arith.constant 60 : index
    %c0_71 = arith.constant 0 : index
    %70 = tpu.strided_load %arg17[%c60, %c0_71] {strides = array<i32: 2, 1>} : memref<329x8xf32, #tpu.memory_space<vmem>>, vector<8x8xf32>
    %c61 = arith.constant 61 : index
    %c0_72 = arith.constant 0 : index
    %71 = tpu.strided_load %arg17[%c61, %c0_72] {strides = array<i32: 2, 1>} : memref<329x8xf32, #tpu.memory_space<vmem>>, vector<8x8xf32>
    %c78 = arith.constant 78 : index
    %c0_73 = arith.constant 0 : index
    %72 = tpu.strided_load %arg17[%c78, %c0_73] {strides = array<i32: 2, 1>} : memref<329x8xf32, #tpu.memory_space<vmem>>, vector<8x8xf32>
    %c79 = arith.constant 79 : index
    %c0_74 = arith.constant 0 : index
    %73 = tpu.strided_load %arg17[%c79, %c0_74] {strides = array<i32: 2, 1>} : memref<329x8xf32, #tpu.memory_space<vmem>>, vector<8x8xf32>
    %74 = arith.maximumf %70, %71 : vector<8x8xf32>
    %75 = arith.maximumf %72, %73 : vector<8x8xf32>
    %76 = arith.maximumf %74, %75 : vector<8x8xf32>
    %c26 = arith.constant 26 : index
    %c0_75 = arith.constant 0 : index
    %77 = vector.load %arg20[%c26, %c0_75] : memref<105x8xf32, #tpu.memory_space<vmem>>, vector<8x8xf32>
    tpu.vector_store %arg20[%c26, %c0_75], %76 {strides = array<i32>} : memref<105x8xf32, #tpu.memory_space<vmem>>, vector<8x8xf32>,
    %c96 = arith.constant 96 : index
    %c0_76 = arith.constant 0 : index
    %78 = tpu.strided_load %arg17[%c96, %c0_76] {strides = array<i32: 2, 1>} : memref<329x8xf32, #tpu.memory_space<vmem>>, vector<8x8xf32>
    %c97 = arith.constant 97 : index
    %c0_77 = arith.constant 0 : index
    %79 = tpu.strided_load %arg17[%c97, %c0_77] {strides = array<i32: 2, 1>} : memref<329x8xf32, #tpu.memory_space<vmem>>, vector<8x8xf32>
    %c114 = arith.constant 114 : index
    %c0_78 = arith.constant 0 : index
    %80 = tpu.strided_load %arg17[%c114, %c0_78] {strides = array<i32: 2, 1>} : memref<329x8xf32, #tpu.memory_space<vmem>>, vector<8x8xf32>
    %c115 = arith.constant 115 : index
    %c0_79 = arith.constant 0 : index
    %81 = tpu.strided_load %arg17[%c115, %c0_79] {strides = array<i32: 2, 1>} : memref<329x8xf32, #tpu.memory_space<vmem>>, vector<8x8xf32>
    %82 = arith.maximumf %78, %79 : vector<8x8xf32>
    %83 = arith.maximumf %80, %81 : vector<8x8xf32>
    %84 = arith.maximumf %82, %83 : vector<8x8xf32>
    %c36 = arith.constant 36 : index
    %c0_80 = arith.constant 0 : index
    %85 = vector.load %arg20[%c36, %c0_80] : memref<105x8xf32, #tpu.memory_space<vmem>>, vector<8x8xf32>
    tpu.vector_store %arg20[%c36, %c0_80], %84 {strides = array<i32>} : memref<105x8xf32, #tpu.memory_space<vmem>>, vector<8x8xf32>,
    %c132 = arith.constant 132 : index
    %c0_81 = arith.constant 0 : index
    %86 = tpu.strided_load %arg17[%c132, %c0_81] {strides = array<i32: 2, 1>} : memref<329x8xf32, #tpu.memory_space<vmem>>, vector<8x8xf32>
    %c133 = arith.constant 133 : index
    %c0_82 = arith.constant 0 : index
    %87 = tpu.strided_load %arg17[%c133, %c0_82] {strides = array<i32: 2, 1>} : memref<329x8xf32, #tpu.memory_space<vmem>>, vector<8x8xf32>
    %c150 = arith.constant 150 : index
    %c0_83 = arith.constant 0 : index
    %88 = tpu.strided_load %arg17[%c150, %c0_83] {strides = array<i32: 2, 1>} : memref<329x8xf32, #tpu.memory_space<vmem>>, vector<8x8xf32>
    %c151 = arith.constant 151 : index
    %c0_84 = arith.constant 0 : index
    %89 = tpu.strided_load %arg17[%c151, %c0_84] {strides = array<i32: 2, 1>} : memref<329x8xf32, #tpu.memory_space<vmem>>, vector<8x8xf32>
    %90 = arith.maximumf %86, %87 : vector<8x8xf32>
    %91 = arith.maximumf %88, %89 : vector<8x8xf32>
    %92 = arith.maximumf %90, %91 : vector<8x8xf32>
    %c46 = arith.constant 46 : index
    %c0_85 = arith.constant 0 : index
    %93 = vector.load %arg20[%c46, %c0_85] : memref<105x8xf32, #tpu.memory_space<vmem>>, vector<8x8xf32>
    tpu.vector_store %arg20[%c46, %c0_85], %92 {strides = array<i32>} : memref<105x8xf32, #tpu.memory_space<vmem>>, vector<8x8xf32>,
    %c168 = arith.constant 168 : index
    %c0_86 = arith.constant 0 : index
    %94 = tpu.strided_load %arg17[%c168, %c0_86] {strides = array<i32: 2, 1>} : memref<329x8xf32, #tpu.memory_space<vmem>>, vector<8x8xf32>
    %c169 = arith.constant 169 : index
    %c0_87 = arith.constant 0 : index
    %95 = tpu.strided_load %arg17[%c169, %c0_87] {strides = array<i32: 2, 1>} : memref<329x8xf32, #tpu.memory_space<vmem>>, vector<8x8xf32>
    %c186 = arith.constant 186 : index
    %c0_88 = arith.constant 0 : index
    %96 = tpu.strided_load %arg17[%c186, %c0_88] {strides = array<i32: 2, 1>} : memref<329x8xf32, #tpu.memory_space<vmem>>, vector<8x8xf32>
    %c187 = arith.constant 187 : index
    %c0_89 = arith.constant 0 : index
    %97 = tpu.strided_load %arg17[%c187, %c0_89] {strides = array<i32: 2, 1>} : memref<329x8xf32, #tpu.memory_space<vmem>>, vector<8x8xf32>
    %98 = arith.maximumf %94, %95 : vector<8x8xf32>
    %99 = arith.maximumf %96, %97 : vector<8x8xf32>
    %100 = arith.maximumf %98, %99 : vector<8x8xf32>
    %c56 = arith.constant 56 : index
    %c0_90 = arith.constant 0 : index
    %101 = vector.load %arg20[%c56, %c0_90] : memref<105x8xf32, #tpu.memory_space<vmem>>, vector<8x8xf32>
    tpu.vector_store %arg20[%c56, %c0_90], %100 {strides = array<i32>} : memref<105x8xf32, #tpu.memory_space<vmem>>, vector<8x8xf32>,
    %c204 = arith.constant 204 : index
    %c0_91 = arith.constant 0 : index
    %102 = tpu.strided_load %arg17[%c204, %c0_91] {strides = array<i32: 2, 1>} : memref<329x8xf32, #tpu.memory_space<vmem>>, vector<8x8xf32>
    %c205 = arith.constant 205 : index
    %c0_92 = arith.constant 0 : index
    %103 = tpu.strided_load %arg17[%c205, %c0_92] {strides = array<i32: 2, 1>} : memref<329x8xf32, #tpu.memory_space<vmem>>, vector<8x8xf32>
    %c222 = arith.constant 222 : index
    %c0_93 = arith.constant 0 : index
    %104 = tpu.strided_load %arg17[%c222, %c0_93] {strides = array<i32: 2, 1>} : memref<329x8xf32, #tpu.memory_space<vmem>>, vector<8x8xf32>
    %c223 = arith.constant 223 : index
    %c0_94 = arith.constant 0 : index
    %105 = tpu.strided_load %arg17[%c223, %c0_94] {strides = array<i32: 2, 1>} : memref<329x8xf32, #tpu.memory_space<vmem>>, vector<8x8xf32>
    %106 = arith.maximumf %102, %103 : vector<8x8xf32>
    %107 = arith.maximumf %104, %105 : vector<8x8xf32>
    %108 = arith.maximumf %106, %107 : vector<8x8xf32>
    %c66 = arith.constant 66 : index
    %c0_95 = arith.constant 0 : index
    %109 = vector.load %arg20[%c66, %c0_95] : memref<105x8xf32, #tpu.memory_space<vmem>>, vector<8x8xf32>
    tpu.vector_store %arg20[%c66, %c0_95], %108 {strides = array<i32>} : memref<105x8xf32, #tpu.memory_space<vmem>>, vector<8x8xf32>,
    %c240 = arith.constant 240 : index
    %c0_96 = arith.constant 0 : index
    %110 = tpu.strided_load %arg17[%c240, %c0_96] {strides = array<i32: 2, 1>} : memref<329x8xf32, #tpu.memory_space<vmem>>, vector<8x8xf32>
    %c241 = arith.constant 241 : index
    %c0_97 = arith.constant 0 : index
    %111 = tpu.strided_load %arg17[%c241, %c0_97] {strides = array<i32: 2, 1>} : memref<329x8xf32, #tpu.memory_space<vmem>>, vector<8x8xf32>
    %c258 = arith.constant 258 : index
    %c0_98 = arith.constant 0 : index
    %112 = tpu.strided_load %arg17[%c258, %c0_98] {strides = array<i32: 2, 1>} : memref<329x8xf32, #tpu.memory_space<vmem>>, vector<8x8xf32>
    %c259 = arith.constant 259 : index
    %c0_99 = arith.constant 0 : index
    %113 = tpu.strided_load %arg17[%c259, %c0_99] {strides = array<i32: 2, 1>} : memref<329x8xf32, #tpu.memory_space<vmem>>, vector<8x8xf32>
    %114 = arith.maximumf %110, %111 : vector<8x8xf32>
    %115 = arith.maximumf %112, %113 : vector<8x8xf32>
    %116 = arith.maximumf %114, %115 : vector<8x8xf32>
    %c76 = arith.constant 76 : index
    %c0_100 = arith.constant 0 : index
    %117 = vector.load %arg20[%c76, %c0_100] : memref<105x8xf32, #tpu.memory_space<vmem>>, vector<8x8xf32>
    tpu.vector_store %arg20[%c76, %c0_100], %116 {strides = array<i32>} : memref<105x8xf32, #tpu.memory_space<vmem>>, vector<8x8xf32>,
    %c276 = arith.constant 276 : index
    %c0_101 = arith.constant 0 : index
    %118 = tpu.strided_load %arg17[%c276, %c0_101] {strides = array<i32: 2, 1>} : memref<329x8xf32, #tpu.memory_space<vmem>>, vector<8x8xf32>
    %c277 = arith.constant 277 : index
    %c0_102 = arith.constant 0 : index
    %119 = tpu.strided_load %arg17[%c277, %c0_102] {strides = array<i32: 2, 1>} : memref<329x8xf32, #tpu.memory_space<vmem>>, vector<8x8xf32>
    %c294 = arith.constant 294 : index
    %c0_103 = arith.constant 0 : index
    %120 = tpu.strided_load %arg17[%c294, %c0_103] {strides = array<i32: 2, 1>} : memref<329x8xf32, #tpu.memory_space<vmem>>, vector<8x8xf32>
    %c295 = arith.constant 295 : index
    %c0_104 = arith.constant 0 : index
    %121 = tpu.strided_load %arg17[%c295, %c0_104] {strides = array<i32: 2, 1>} : memref<329x8xf32, #tpu.memory_space<vmem>>, vector<8x8xf32>
    %122 = arith.maximumf %118, %119 : vector<8x8xf32>
    %123 = arith.maximumf %120, %121 : vector<8x8xf32>
    %124 = arith.maximumf %122, %123 : vector<8x8xf32>
    %c86 = arith.constant 86 : index
    %c0_105 = arith.constant 0 : index
    %125 = vector.load %arg20[%c86, %c0_105] : memref<105x8xf32, #tpu.memory_space<vmem>>, vector<8x8xf32>
    tpu.vector_store %arg20[%c86, %c0_105], %124 {strides = array<i32>} : memref<105x8xf32, #tpu.memory_space<vmem>>, vector<8x8xf32>,
    %126 = tpu.concatenate %68, %76, %84, %92, %100, %108, %116, %124 in 0 : vector<8x8xf32>, vector<8x8xf32>, vector<8x8xf32>, vector<8x8xf32>, vector<8x8xf32>, vector<8x8xf32>, vector<8x8xf32>, vector<8x8xf32> -> vector<64x8xf32>
    %127 = tpu.transpose %126, [1, 0] : vector<64x8xf32> -> vector<8x64xf32>
    %c0_106 = arith.constant 0 : index
    %c0_107 = arith.constant 0 : index
    %c0_108 = arith.constant 0 : index
    %128 = vector.load %arg14[%c0_106, %c0_107, %c0_108] : memref<1x8x64xf32, #tpu.memory_space<vmem>>, vector<1x8x64xf32>
    %129 = vector.shape_cast %128 : vector<1x8x64xf32> to vector<8x64xf32>
    %130 = vector.shape_cast %127 : vector<8x64xf32> to vector<1x8x64xf32>
    tpu.vector_store %arg14[%c0_106, %c0_107, %c0_108], %130 {strides = array<i32>} : memref<1x8x64xf32, #tpu.memory_space<vmem>>, vector<1x8x64xf32>,
    %c5_109 = arith.constant 5 : index
    %c0_110 = arith.constant 0 : index
    %131 = vector.load %arg20[%c5_109, %c0_110] : memref<105x8xf32, #tpu.memory_space<vmem>>, vector<78x8xf32>
    %c6_111 = arith.constant 6 : index
    %c0_112 = arith.constant 0 : index
    %132 = vector.load %arg20[%c6_111, %c0_112] : memref<105x8xf32, #tpu.memory_space<vmem>>, vector<78x8xf32>
    %c7_113 = arith.constant 7 : index
    %c0_114 = arith.constant 0 : index
    %133 = vector.load %arg20[%c7_113, %c0_114] : memref<105x8xf32, #tpu.memory_space<vmem>>, vector<78x8xf32>
    %c15 = arith.constant 15 : index
    %c0_115 = arith.constant 0 : index
    %134 = vector.load %arg20[%c15, %c0_115] : memref<105x8xf32, #tpu.memory_space<vmem>>, vector<78x8xf32>
    %c16_116 = arith.constant 16 : index
    %c0_117 = arith.constant 0 : index
    %135 = vector.load %arg20[%c16_116, %c0_117] : memref<105x8xf32, #tpu.memory_space<vmem>>, vector<78x8xf32>
    %c17 = arith.constant 17 : index
    %c0_118 = arith.constant 0 : index
    %136 = vector.load %arg20[%c17, %c0_118] : memref<105x8xf32, #tpu.memory_space<vmem>>, vector<78x8xf32>
    %c25_119 = arith.constant 25 : index
    %c0_120 = arith.constant 0 : index
    %137 = vector.load %arg20[%c25_119, %c0_120] : memref<105x8xf32, #tpu.memory_space<vmem>>, vector<78x8xf32>
    %c26_121 = arith.constant 26 : index
    %c0_122 = arith.constant 0 : index
    %138 = vector.load %arg20[%c26_121, %c0_122] : memref<105x8xf32, #tpu.memory_space<vmem>>, vector<78x8xf32>
    %c27 = arith.constant 27 : index
    %c0_123 = arith.constant 0 : index
    %139 = vector.load %arg20[%c27, %c0_123] : memref<105x8xf32, #tpu.memory_space<vmem>>, vector<78x8xf32>
    %140 = tpu.concatenate %131, %132, %133, %134, %135, %136, %137, %138, %139 in 1 : vector<78x8xf32>, vector<78x8xf32>, vector<78x8xf32>, vector<78x8xf32>, vector<78x8xf32>, vector<78x8xf32>, vector<78x8xf32>, vector<78x8xf32>, vector<78x8xf32> -> vector<78x72xf32>
    %141 = arith.truncf %140 : vector<78x72xf32> to vector<78x72xbf16>
    %c0_124 = arith.constant 0 : index
    %c0_125 = arith.constant 0 : index
    %142 = vector.load %arg8[%c0_124, %c0_125] : memref<72x16xbf16, #tpu.memory_space<vmem>>, vector<72x16xbf16>
    %cst_126 = arith.constant dense<0.000000e+00> : vector<78x16xf32>
    %143 = tpu.matmul %141, %142, %cst_126 {dimension_numbers = #tpu.dot_dimension_numbers<[1], [0], [0], [1], [0, 0, 1, 1], [], []>} : vector<78x72xbf16>, vector<72x16xbf16>, vector<78x16xf32> -> vector<78x16xf32>
    %c0_127 = arith.constant 0 : index
    %c0_128 = arith.constant 0 : index
    %144 = vector.load %arg9[%c0_127, %c0_128] : memref<1x16xf32, #tpu.memory_space<vmem>>, vector<1x16xf32>
    %145 = vector.broadcast %144 : vector<1x16xf32> to vector<78x16xf32>
    %146 = arith.addf %143, %145 : vector<78x16xf32>
    %cst_129 = arith.constant 0.000000e+00 : f32
    %147 = vector.broadcast %cst_129 : f32 to vector<78x16xf32>
    %148 = arith.cmpf oge, %146, %147 : vector<78x16xf32>
    %cst_130 = arith.constant 1.000000e-01 : f32
    %149 = vector.broadcast %cst_130 : f32 to vector<78x16xf32>
    %150 = arith.mulf %149, %146 : vector<78x16xf32>
    %151 = arith.select %148, %146, %150 : vector<78x16xi1>, vector<78x16xf32>
    %c0_131 = arith.constant 0 : index
    %c0_132 = arith.constant 0 : index
    %152 = vector.load %arg3[%c0_131, %c0_132] : memref<78x1xf32, #tpu.memory_space<vmem>>, vector<78x1xf32>
    %153 = vector.broadcast %152 : vector<78x1xf32> to vector<78x16xf32>
    %154 = arith.mulf %151, %153 : vector<78x16xf32>
    %cst_133 = arith.constant 0.000000e+00 : f32
    %155 = vector.broadcast %cst_133 : f32 to vector<16x16xf32>
    %c0_134 = arith.constant 0 : index
    %c0_135 = arith.constant 0 : index
    %156 = vector.load %arg18[%c0_134, %c0_135] : memref<105x16xf32, #tpu.memory_space<vmem>>, vector<16x16xf32>
    tpu.vector_store %arg18[%c0_134, %c0_135], %155 {strides = array<i32>} : memref<105x16xf32, #tpu.memory_space<vmem>>, vector<16x16xf32>,
    %cst_136 = arith.constant 0.000000e+00 : f32
    %157 = vector.broadcast %cst_136 : f32 to vector<11x16xf32>
    %c94 = arith.constant 94 : index
    %c0_137 = arith.constant 0 : index
    %158 = vector.load %arg18[%c94, %c0_137] : memref<105x16xf32, #tpu.memory_space<vmem>>, vector<11x16xf32>
    tpu.vector_store %arg18[%c94, %c0_137], %157 {strides = array<i32>} : memref<105x16xf32, #tpu.memory_space<vmem>>, vector<11x16xf32>,
    %c16_138 = arith.constant 16 : index
    %c0_139 = arith.constant 0 : index
    %159 = vector.load %arg18[%c16_138, %c0_139] : memref<105x16xf32, #tpu.memory_space<vmem>>, vector<78x16xf32>
    tpu.vector_store %arg18[%c16_138, %c0_139], %154 {strides = array<i32>} : memref<105x16xf32, #tpu.memory_space<vmem>>, vector<78x16xf32>,
    %c5_140 = arith.constant 5 : index
    %c0_141 = arith.constant 0 : index
    %160 = vector.load %arg18[%c5_140, %c0_141] : memref<105x16xf32, #tpu.memory_space<vmem>>, vector<78x16xf32>
    %c6_142 = arith.constant 6 : index
    %c0_143 = arith.constant 0 : index
    %161 = vector.load %arg18[%c6_142, %c0_143] : memref<105x16xf32, #tpu.memory_space<vmem>>, vector<78x16xf32>
    %c7_144 = arith.constant 7 : index
    %c0_145 = arith.constant 0 : index
    %162 = vector.load %arg18[%c7_144, %c0_145] : memref<105x16xf32, #tpu.memory_space<vmem>>, vector<78x16xf32>
    %c15_146 = arith.constant 15 : index
    %c0_147 = arith.constant 0 : index
    %163 = vector.load %arg18[%c15_146, %c0_147] : memref<105x16xf32, #tpu.memory_space<vmem>>, vector<78x16xf32>
    %c16_148 = arith.constant 16 : index
    %c0_149 = arith.constant 0 : index
    %164 = vector.load %arg18[%c16_148, %c0_149] : memref<105x16xf32, #tpu.memory_space<vmem>>, vector<78x16xf32>
    %c17_150 = arith.constant 17 : index
    %c0_151 = arith.constant 0 : index
    %165 = vector.load %arg18[%c17_150, %c0_151] : memref<105x16xf32, #tpu.memory_space<vmem>>, vector<78x16xf32>
    %c25_152 = arith.constant 25 : index
    %c0_153 = arith.constant 0 : index
    %166 = vector.load %arg18[%c25_152, %c0_153] : memref<105x16xf32, #tpu.memory_space<vmem>>, vector<78x16xf32>
    %c26_154 = arith.constant 26 : index
    %c0_155 = arith.constant 0 : index
    %167 = vector.load %arg18[%c26_154, %c0_155] : memref<105x16xf32, #tpu.memory_space<vmem>>, vector<78x16xf32>
    %c27_156 = arith.constant 27 : index
    %c0_157 = arith.constant 0 : index
    %168 = vector.load %arg18[%c27_156, %c0_157] : memref<105x16xf32, #tpu.memory_space<vmem>>, vector<78x16xf32>
    %169 = tpu.concatenate %160, %161, %162, %163, %164, %165, %166, %167, %168 in 1 : vector<78x16xf32>, vector<78x16xf32>, vector<78x16xf32>, vector<78x16xf32>, vector<78x16xf32>, vector<78x16xf32>, vector<78x16xf32>, vector<78x16xf32>, vector<78x16xf32> -> vector<78x144xf32>
    %170 = arith.truncf %169 : vector<78x144xf32> to vector<78x144xbf16>
    %c0_158 = arith.constant 0 : index
    %c0_159 = arith.constant 0 : index
    %171 = vector.load %arg10[%c0_158, %c0_159] : memref<144x16xbf16, #tpu.memory_space<vmem>>, vector<144x16xbf16>
    %cst_160 = arith.constant dense<0.000000e+00> : vector<78x16xf32>
    %172 = tpu.matmul %170, %171, %cst_160 {dimension_numbers = #tpu.dot_dimension_numbers<[1], [0], [0], [1], [0, 0, 1, 1], [], []>} : vector<78x144xbf16>, vector<144x16xbf16>, vector<78x16xf32> -> vector<78x16xf32>
    %c0_161 = arith.constant 0 : index
    %c0_162 = arith.constant 0 : index
    %173 = vector.load %arg11[%c0_161, %c0_162] : memref<1x16xf32, #tpu.memory_space<vmem>>, vector<1x16xf32>
    %174 = vector.broadcast %173 : vector<1x16xf32> to vector<78x16xf32>
    %175 = arith.addf %172, %174 : vector<78x16xf32>
    %cst_163 = arith.constant 0.000000e+00 : f32
    %176 = vector.broadcast %cst_163 : f32 to vector<78x16xf32>
    %177 = arith.cmpf oge, %175, %176 : vector<78x16xf32>
    %cst_164 = arith.constant 1.000000e-01 : f32
    %178 = vector.broadcast %cst_164 : f32 to vector<78x16xf32>
    %179 = arith.mulf %178, %175 : vector<78x16xf32>
    %180 = arith.select %177, %175, %179 : vector<78x16xi1>, vector<78x16xf32>
    %c16_165 = arith.constant 16 : index
    %c0_166 = arith.constant 0 : index
    %181 = vector.load %arg19[%c16_165, %c0_166] : memref<105x16xf32, #tpu.memory_space<vmem>>, vector<78x16xf32>
    tpu.vector_store %arg19[%c16_165, %c0_166], %180 {strides = array<i32>} : memref<105x16xf32, #tpu.memory_space<vmem>>, vector<78x16xf32>,
    %cst_167 = arith.constant 0.000000e+00 : f32
    %182 = vector.broadcast %cst_167 : f32 to vector<37x16xf32>
    %c0_168 = arith.constant 0 : index
    %c0_169 = arith.constant 0 : index
    %183 = vector.load %arg21[%c0_168, %c0_169] : memref<37x16xf32, #tpu.memory_space<vmem>>, vector<37x16xf32>
    tpu.vector_store %arg21[%c0_168, %c0_169], %182 {strides = array<i32>} : memref<37x16xf32, #tpu.memory_space<vmem>>, vector<37x16xf32>,
    %c16_170 = arith.constant 16 : index
    %c0_171 = arith.constant 0 : index
    %184 = tpu.strided_load %arg19[%c16_170, %c0_171] {strides = array<i32: 2, 1>} : memref<105x16xf32, #tpu.memory_space<vmem>>, vector<4x16xf32>
    %c17_172 = arith.constant 17 : index
    %c0_173 = arith.constant 0 : index
    %185 = tpu.strided_load %arg19[%c17_172, %c0_173] {strides = array<i32: 2, 1>} : memref<105x16xf32, #tpu.memory_space<vmem>>, vector<4x16xf32>
    %c26_174 = arith.constant 26 : index
    %c0_175 = arith.constant 0 : index
    %186 = tpu.strided_load %arg19[%c26_174, %c0_175] {strides = array<i32: 2, 1>} : memref<105x16xf32, #tpu.memory_space<vmem>>, vector<4x16xf32>
    %c27_176 = arith.constant 27 : index
    %c0_177 = arith.constant 0 : index
    %187 = tpu.strided_load %arg19[%c27_176, %c0_177] {strides = array<i32: 2, 1>} : memref<105x16xf32, #tpu.memory_space<vmem>>, vector<4x16xf32>
    %188 = arith.maximumf %184, %185 : vector<4x16xf32>
    %189 = arith.maximumf %186, %187 : vector<4x16xf32>
    %190 = arith.maximumf %188, %189 : vector<4x16xf32>
    %c8 = arith.constant 8 : index
    %c0_178 = arith.constant 0 : index
    %191 = vector.load %arg21[%c8, %c0_178] : memref<37x16xf32, #tpu.memory_space<vmem>>, vector<4x16xf32>
    tpu.vector_store %arg21[%c8, %c0_178], %190 {strides = array<i32>} : memref<37x16xf32, #tpu.memory_space<vmem>>, vector<4x16xf32>,
    %c36_179 = arith.constant 36 : index
    %c0_180 = arith.constant 0 : index
    %192 = tpu.strided_load %arg19[%c36_179, %c0_180] {strides = array<i32: 2, 1>} : memref<105x16xf32, #tpu.memory_space<vmem>>, vector<4x16xf32>
    %c37 = arith.constant 37 : index
    %c0_181 = arith.constant 0 : index
    %193 = tpu.strided_load %arg19[%c37, %c0_181] {strides = array<i32: 2, 1>} : memref<105x16xf32, #tpu.memory_space<vmem>>, vector<4x16xf32>
    %c46_182 = arith.constant 46 : index
    %c0_183 = arith.constant 0 : index
    %194 = tpu.strided_load %arg19[%c46_182, %c0_183] {strides = array<i32: 2, 1>} : memref<105x16xf32, #tpu.memory_space<vmem>>, vector<4x16xf32>
    %c47 = arith.constant 47 : index
    %c0_184 = arith.constant 0 : index
    %195 = tpu.strided_load %arg19[%c47, %c0_184] {strides = array<i32: 2, 1>} : memref<105x16xf32, #tpu.memory_space<vmem>>, vector<4x16xf32>
    %196 = arith.maximumf %192, %193 : vector<4x16xf32>
    %197 = arith.maximumf %194, %195 : vector<4x16xf32>
    %198 = arith.maximumf %196, %197 : vector<4x16xf32>
    %c14 = arith.constant 14 : index
    %c0_185 = arith.constant 0 : index
    %199 = vector.load %arg21[%c14, %c0_185] : memref<37x16xf32, #tpu.memory_space<vmem>>, vector<4x16xf32>
    tpu.vector_store %arg21[%c14, %c0_185], %198 {strides = array<i32>} : memref<37x16xf32, #tpu.memory_space<vmem>>, vector<4x16xf32>,
    %c56_186 = arith.constant 56 : index
    %c0_187 = arith.constant 0 : index
    %200 = tpu.strided_load %arg19[%c56_186, %c0_187] {strides = array<i32: 2, 1>} : memref<105x16xf32, #tpu.memory_space<vmem>>, vector<4x16xf32>
    %c57 = arith.constant 57 : index
    %c0_188 = arith.constant 0 : index
    %201 = tpu.strided_load %arg19[%c57, %c0_188] {strides = array<i32: 2, 1>} : memref<105x16xf32, #tpu.memory_space<vmem>>, vector<4x16xf32>
    %c66_189 = arith.constant 66 : index
    %c0_190 = arith.constant 0 : index
    %202 = tpu.strided_load %arg19[%c66_189, %c0_190] {strides = array<i32: 2, 1>} : memref<105x16xf32, #tpu.memory_space<vmem>>, vector<4x16xf32>
    %c67 = arith.constant 67 : index
    %c0_191 = arith.constant 0 : index
    %203 = tpu.strided_load %arg19[%c67, %c0_191] {strides = array<i32: 2, 1>} : memref<105x16xf32, #tpu.memory_space<vmem>>, vector<4x16xf32>
    %204 = arith.maximumf %200, %201 : vector<4x16xf32>
    %205 = arith.maximumf %202, %203 : vector<4x16xf32>
    %206 = arith.maximumf %204, %205 : vector<4x16xf32>
    %c20 = arith.constant 20 : index
    %c0_192 = arith.constant 0 : index
    %207 = vector.load %arg21[%c20, %c0_192] : memref<37x16xf32, #tpu.memory_space<vmem>>, vector<4x16xf32>
    tpu.vector_store %arg21[%c20, %c0_192], %206 {strides = array<i32>} : memref<37x16xf32, #tpu.memory_space<vmem>>, vector<4x16xf32>,
    %c76_193 = arith.constant 76 : index
    %c0_194 = arith.constant 0 : index
    %208 = tpu.strided_load %arg19[%c76_193, %c0_194] {strides = array<i32: 2, 1>} : memref<105x16xf32, #tpu.memory_space<vmem>>, vector<4x16xf32>
    %c77 = arith.constant 77 : index
    %c0_195 = arith.constant 0 : index
    %209 = tpu.strided_load %arg19[%c77, %c0_195] {strides = array<i32: 2, 1>} : memref<105x16xf32, #tpu.memory_space<vmem>>, vector<4x16xf32>
    %c86_196 = arith.constant 86 : index
    %c0_197 = arith.constant 0 : index
    %210 = tpu.strided_load %arg19[%c86_196, %c0_197] {strides = array<i32: 2, 1>} : memref<105x16xf32, #tpu.memory_space<vmem>>, vector<4x16xf32>
    %c87 = arith.constant 87 : index
    %c0_198 = arith.constant 0 : index
    %211 = tpu.strided_load %arg19[%c87, %c0_198] {strides = array<i32: 2, 1>} : memref<105x16xf32, #tpu.memory_space<vmem>>, vector<4x16xf32>
    %212 = arith.maximumf %208, %209 : vector<4x16xf32>
    %213 = arith.maximumf %210, %211 : vector<4x16xf32>
    %214 = arith.maximumf %212, %213 : vector<4x16xf32>
    %c26_199 = arith.constant 26 : index
    %c0_200 = arith.constant 0 : index
    %215 = vector.load %arg21[%c26_199, %c0_200] : memref<37x16xf32, #tpu.memory_space<vmem>>, vector<4x16xf32>
    tpu.vector_store %arg21[%c26_199, %c0_200], %214 {strides = array<i32>} : memref<37x16xf32, #tpu.memory_space<vmem>>, vector<4x16xf32>,
    %c1 = arith.constant 1 : index
    %c0_201 = arith.constant 0 : index
    %216 = vector.load %arg21[%c1, %c0_201] : memref<37x16xf32, #tpu.memory_space<vmem>>, vector<22x16xf32>
    %c2 = arith.constant 2 : index
    %c0_202 = arith.constant 0 : index
    %217 = vector.load %arg21[%c2, %c0_202] : memref<37x16xf32, #tpu.memory_space<vmem>>, vector<22x16xf32>
    %c3 = arith.constant 3 : index
    %c0_203 = arith.constant 0 : index
    %218 = vector.load %arg21[%c3, %c0_203] : memref<37x16xf32, #tpu.memory_space<vmem>>, vector<22x16xf32>
    %c7_204 = arith.constant 7 : index
    %c0_205 = arith.constant 0 : index
    %219 = vector.load %arg21[%c7_204, %c0_205] : memref<37x16xf32, #tpu.memory_space<vmem>>, vector<22x16xf32>
    %c8_206 = arith.constant 8 : index
    %c0_207 = arith.constant 0 : index
    %220 = vector.load %arg21[%c8_206, %c0_207] : memref<37x16xf32, #tpu.memory_space<vmem>>, vector<22x16xf32>
    %c9 = arith.constant 9 : index
    %c0_208 = arith.constant 0 : index
    %221 = vector.load %arg21[%c9, %c0_208] : memref<37x16xf32, #tpu.memory_space<vmem>>, vector<22x16xf32>
    %c13 = arith.constant 13 : index
    %c0_209 = arith.constant 0 : index
    %222 = vector.load %arg21[%c13, %c0_209] : memref<37x16xf32, #tpu.memory_space<vmem>>, vector<22x16xf32>
    %c14_210 = arith.constant 14 : index
    %c0_211 = arith.constant 0 : index
    %223 = vector.load %arg21[%c14_210, %c0_211] : memref<37x16xf32, #tpu.memory_space<vmem>>, vector<22x16xf32>
    %c15_212 = arith.constant 15 : index
    %c0_213 = arith.constant 0 : index
    %224 = vector.load %arg21[%c15_212, %c0_213] : memref<37x16xf32, #tpu.memory_space<vmem>>, vector<22x16xf32>
    %225 = tpu.concatenate %216, %217, %218, %219, %220, %221, %222, %223, %224 in 1 : vector<22x16xf32>, vector<22x16xf32>, vector<22x16xf32>, vector<22x16xf32>, vector<22x16xf32>, vector<22x16xf32>, vector<22x16xf32>, vector<22x16xf32>, vector<22x16xf32> -> vector<22x144xf32>
    %226 = arith.truncf %225 : vector<22x144xf32> to vector<22x144xbf16>
    %c0_214 = arith.constant 0 : index
    %c0_215 = arith.constant 0 : index
    %227 = vector.load %arg12[%c0_214, %c0_215] : memref<144x16xbf16, #tpu.memory_space<vmem>>, vector<144x16xbf16>
    %cst_216 = arith.constant dense<0.000000e+00> : vector<22x16xf32>
    %228 = tpu.matmul %226, %227, %cst_216 {dimension_numbers = #tpu.dot_dimension_numbers<[1], [0], [0], [1], [0, 0, 1, 1], [], []>} : vector<22x144xbf16>, vector<144x16xbf16>, vector<22x16xf32> -> vector<22x16xf32>
    %c0_217 = arith.constant 0 : index
    %c0_218 = arith.constant 0 : index
    %229 = vector.load %arg13[%c0_217, %c0_218] : memref<1x16xf32, #tpu.memory_space<vmem>>, vector<1x16xf32>
    %230 = vector.broadcast %229 : vector<1x16xf32> to vector<22x16xf32>
    %231 = arith.addf %228, %230 : vector<22x16xf32>
    %cst_219 = arith.constant 0.000000e+00 : f32
    %232 = vector.broadcast %cst_219 : f32 to vector<22x16xf32>
    %233 = arith.cmpf oge, %231, %232 : vector<22x16xf32>
    %cst_220 = arith.constant 1.000000e-01 : f32
    %234 = vector.broadcast %cst_220 : f32 to vector<22x16xf32>
    %235 = arith.mulf %234, %231 : vector<22x16xf32>
    %236 = arith.select %233, %231, %235 : vector<22x16xi1>, vector<22x16xf32>
    %237 = vector.extract_strided_slice %236 {offsets = [0, 0], sizes = [4, 16], strides = [1, 1]} : vector<22x16xf32> to vector<4x16xf32>
    %238 = vector.extract_strided_slice %236 {offsets = [6, 0], sizes = [4, 16], strides = [1, 1]} : vector<22x16xf32> to vector<4x16xf32>
    %239 = vector.extract_strided_slice %236 {offsets = [12, 0], sizes = [4, 16], strides = [1, 1]} : vector<22x16xf32> to vector<4x16xf32>
    %240 = vector.extract_strided_slice %236 {offsets = [18, 0], sizes = [4, 16], strides = [1, 1]} : vector<22x16xf32> to vector<4x16xf32>
    %241 = tpu.concatenate %237, %238, %239, %240 in 0 : vector<4x16xf32>, vector<4x16xf32>, vector<4x16xf32>, vector<4x16xf32> -> vector<16x16xf32>
    %242 = tpu.transpose %241, [1, 0] : vector<16x16xf32> -> vector<16x16xf32>
    %c0_221 = arith.constant 0 : index
    %c0_222 = arith.constant 0 : index
    %c0_223 = arith.constant 0 : index
    %243 = vector.load %arg15[%c0_221, %c0_222, %c0_223] : memref<1x16x16xf32, #tpu.memory_space<vmem>>, vector<1x16x16xf32>
    %244 = vector.shape_cast %243 : vector<1x16x16xf32> to vector<16x16xf32>
    %245 = vector.shape_cast %242 : vector<16x16xf32> to vector<1x16x16xf32>
    tpu.vector_store %arg15[%c0_221, %c0_222, %c0_223], %245 {strides = array<i32>} : memref<1x16x16xf32, #tpu.memory_space<vmem>>, vector<1x16x16xf32>,
    return
  }
  func.func @transform_0(%arg0: i32) -> (i32, i32, i32) {
    %c0_i32 = arith.constant 0 : i32
    %c0_i32_0 = arith.constant 0 : i32
    %c0_i32_1 = arith.constant 0 : i32
    return %arg0, %c0_i32, %c0_i32_0 : i32, i32, i32
  }
  func.func @transform_1(%arg0: i32) -> (i32, i32) {
    %c0_i32 = arith.constant 0 : i32
    %c0_i32_0 = arith.constant 0 : i32
    %c0_i32_1 = arith.constant 0 : i32
    return %c0_i32, %c0_i32_0 : i32, i32
  }
  func.func @transform_2(%arg0: i32) -> (i32, i32) {
    %c0_i32 = arith.constant 0 : i32
    %c0_i32_0 = arith.constant 0 : i32
    %c0_i32_1 = arith.constant 0 : i32
    return %c0_i32, %c0_i32_0 : i32, i32
  }
  func.func @transform_3(%arg0: i32) -> (i32, i32) {
    %c0_i32 = arith.constant 0 : i32
    %c0_i32_0 = arith.constant 0 : i32
    %c0_i32_1 = arith.constant 0 : i32
    return %c0_i32, %c0_i32_0 : i32, i32
  }
  func.func @transform_4(%arg0: i32) -> (i32, i32) {
    %c0_i32 = arith.constant 0 : i32
    %c0_i32_0 = arith.constant 0 : i32
    %c0_i32_1 = arith.constant 0 : i32
    return %c0_i32, %c0_i32_0 : i32, i32
  }
  func.func @transform_5(%arg0: i32) -> (i32, i32) {
    %c0_i32 = arith.constant 0 : i32
    %c0_i32_0 = arith.constant 0 : i32
    %c0_i32_1 = arith.constant 0 : i32
    return %c0_i32, %c0_i32_0 : i32, i32
  }
  func.func @transform_6(%arg0: i32) -> (i32, i32) {
    %c0_i32 = arith.constant 0 : i32
    %c0_i32_0 = arith.constant 0 : i32
    %c0_i32_1 = arith.constant 0 : i32
    return %c0_i32, %c0_i32_0 : i32, i32
  }
  func.func @transform_7(%arg0: i32) -> (i32, i32) {
    %c0_i32 = arith.constant 0 : i32
    %c0_i32_0 = arith.constant 0 : i32
    %c0_i32_1 = arith.constant 0 : i32
    return %c0_i32, %c0_i32_0 : i32, i32
  }
  func.func @transform_8(%arg0: i32) -> (i32, i32) {
    %c0_i32 = arith.constant 0 : i32
    %c0_i32_0 = arith.constant 0 : i32
    %c0_i32_1 = arith.constant 0 : i32
    return %c0_i32, %c0_i32_0 : i32, i32
  }
  func.func @transform_9(%arg0: i32) -> (i32, i32) {
    %c0_i32 = arith.constant 0 : i32
    %c0_i32_0 = arith.constant 0 : i32
    %c0_i32_1 = arith.constant 0 : i32
    return %c0_i32, %c0_i32_0 : i32, i32
  }
  func.func @transform_10(%arg0: i32) -> (i32, i32) {
    %c0_i32 = arith.constant 0 : i32
    %c0_i32_0 = arith.constant 0 : i32
    %c0_i32_1 = arith.constant 0 : i32
    return %c0_i32, %c0_i32_0 : i32, i32
  }
  func.func @transform_11(%arg0: i32) -> (i32, i32) {
    %c0_i32 = arith.constant 0 : i32
    %c0_i32_0 = arith.constant 0 : i32
    %c0_i32_1 = arith.constant 0 : i32
    return %c0_i32, %c0_i32_0 : i32, i32
  }
  func.func @transform_12(%arg0: i32) -> (i32, i32) {
    %c0_i32 = arith.constant 0 : i32
    %c0_i32_0 = arith.constant 0 : i32
    %c0_i32_1 = arith.constant 0 : i32
    return %c0_i32, %c0_i32_0 : i32, i32
  }
  func.func @transform_13(%arg0: i32) -> (i32, i32, i32) {
    %c0_i32 = arith.constant 0 : i32
    %c0_i32_0 = arith.constant 0 : i32
    %c0_i32_1 = arith.constant 0 : i32
    return %arg0, %c0_i32, %c0_i32_0 : i32, i32, i32
  }
  func.func @transform_14(%arg0: i32) -> (i32, i32, i32) {
    %c0_i32 = arith.constant 0 : i32
    %c0_i32_0 = arith.constant 0 : i32
    %c0_i32_1 = arith.constant 0 : i32
    return %arg0, %c0_i32, %c0_i32_0 : i32, i32, i32
  }
}

</mosaic_0001>

<llo_original>
// kernel: denoiser_encoder_forward.1
$region0: #{denoiser_encoder_forward.1}
  #allocation0 [shape = 'u32[]', space=smem, size = 0x4, offset = 0x4, fixed_abs, tag = 'smem constant byte address 0x4 - core index']
  #allocation1 [shape = 'u32[144,128]{1,0:T(1,128)}', space=vmem, size = 0x12000, scoped, tag = 'internal scratch']
  #allocation2 [shape = 'f32[329,8]{1,0:T(8,128)}', space=vmem, size = 0x2a000, scoped, tag = 'scratch operand']
  #allocation3 [shape = 'f32[329,8]{1,0:T(8,128)}', space=vmem, size = 0x2a000, scoped, tag = 'scratch operand']
  #allocation4 [shape = 'f32[105,16]{1,0:T(8,128)}', space=vmem, size = 0xe000, scoped, tag = 'scratch operand']
  #allocation5 [shape = 'f32[105,16]{1,0:T(8,128)}', space=vmem, size = 0xe000, scoped, tag = 'scratch operand']
  #allocation6 [shape = 'f32[105,8]{1,0:T(8,128)}', space=vmem, size = 0xe000, scoped, tag = 'scratch operand']
  #allocation7 [shape = 'f32[37,16]{1,0:T(8,128)}', space=vmem, size = 0x5000, scoped, tag = 'scratch operand']
  %s0 = inlined_call_operand.vmem [shape: f32[2,329,4], index: 0, kind: input, shape index: {}]
  %s1 = inlined_call_operand.vmem [shape: f32[286,1], index: 1, kind: input, shape index: {}]
  %s2 = inlined_call_operand.vmem [shape: f32[78,1], index: 2, kind: input, shape index: {}]
  %s3 = inlined_call_operand.vmem [shape: bf16[36,8], index: 3, kind: input, shape index: {}]
  %s4 = inlined_call_operand.vmem [shape: f32[1,8], index: 4, kind: input, shape index: {}]
  %s5 = inlined_call_operand.vmem [shape: bf16[72,8], index: 5, kind: input, shape index: {}]
  %s6 = inlined_call_operand.vmem [shape: f32[1,8], index: 6, kind: input, shape index: {}]
  %s7 = inlined_call_operand.vmem [shape: bf16[72,16], index: 7, kind: input, shape index: {}]
  %s8 = inlined_call_operand.vmem [shape: f32[1,16], index: 8, kind: input, shape index: {}]
  %s9 = inlined_call_operand.vmem [shape: bf16[144,16], index: 9, kind: input, shape index: {}]
  %s10 = inlined_call_operand.vmem [shape: f32[1,16], index: 10, kind: input, shape index: {}]
  %s11 = inlined_call_operand.vmem [shape: bf16[144,16], index: 11, kind: input, shape index: {}]
  %s12 = inlined_call_operand.vmem [shape: f32[1,16], index: 12, kind: input, shape index: {}]
  %s13 = inlined_call_operand.vmem [shape: f32[2,8,64], index: 13, kind: output, shape index: {0}]
  %s14 = inlined_call_operand.vmem [shape: f32[2,16,16], index: 14, kind: output, shape index: {1}]
  %15 = xla_tuple %s13, %s14
  %s16 = sld [smem:[#allocation0]]
  $region93: #{denoiser_encoder_forward.1} parent=0
    _
  %s18 = ssub.s32 1, %s16
  %s19 = scalar_select 0, %s18, %s16
  loop: start=0, step=1, limit=4
  $region2: #{denoiser_encoder_forward.1} parent=0 // loop_pre_header
    _
  $region3: #{denoiser_encoder_forward.1} parent=0 // loop_header
    %s21 = sphi 0, %s25
    %p22 = scmp.ge.s32.totalorder %s21, 4
    %s31 = sphi 0, %s33
    %s34 = sphi 0, %s31
    %s35 = sphi 0, %s34
    %s51 = sphi 0, %s35
    %s55 = sphi 0, %s55
    %s57 = sphi 0, %s55
    %s58 = sphi 0, %s57
    %s72 = sphi 0, %s58
    %s76 = sphi 0, %s76
    %s78 = sphi 0, %s76
    %s79 = sphi 0, %s78
    %s93 = sphi 0, %s79
    %s97 = sphi 0, %s97
    %s99 = sphi 0, %s97
    %s100 = sphi 0, %s99
    %s114 = sphi 0, %s100
    %s118 = sphi 0, %s118
    %s120 = sphi 0, %s118
    %s121 = sphi 0, %s120
    %s135 = sphi 0, %s121
    %s139 = sphi 0, %s139
    %s141 = sphi 0, %s139
    %s142 = sphi 0, %s141
    %s156 = sphi 0, %s142
    %s160 = sphi 0, %s160
    %s162 = sphi 0, %s160
    %s163 = sphi 0, %s162
    %s177 = sphi 0, %s163
    %s181 = sphi 0, %s181
    %s183 = sphi 0, %s181
    %s184 = sphi 0, %s183
    %s198 = sphi 0, %s184
    %s202 = sphi 0, %s202
    %s204 = sphi 0, %s202
    %s205 = sphi 0, %s204
    %s219 = sphi 0, %s205
    %s223 = sphi 0, %s223
    %s225 = sphi 0, %s223
    %s226 = sphi 0, %s225
    %s240 = sphi 0, %s226
    %s244 = sphi 0, %s244
    %s246 = sphi 0, %s244
    %s247 = sphi 0, %s246
    %s261 = sphi 0, %s247
    %s265 = sphi 0, %s265
    %s267 = sphi 0, %s265
    %s268 = sphi 0, %s267
    %s282 = sphi 0, %s268
    %s286 = sphi 0, %s286
    %s288 = sphi 0, %s286
    %s289 = sphi 0, %s288
    %s303 = sphi 0, %s289
    %s309 = sphi 0, %s311
    %s312 = sphi 0, %s309
    %s313 = sphi 0, %s312
    %s329 = sphi 0, %s313
    %s335 = sphi 0, %s337
    %s338 = sphi 0, %s335
    %s339 = sphi 0, %s338
    %s355 = sphi 0, %s339
  $region4: #{denoiser_encoder_forward.1} parent=0 // loop_header_branch
    %24 = sbr.rel (%p22) target = $region8
  $region5: #{denoiser_encoder_forward.1} parent=0 // loop_body
    %s26 = ssub.s32 %s21, 1
    %s27 = ssub.s32 %s21, 2
    %s28 = sadd.s32 %s21, 1
    %s29 = ssub.s32 %s21, %s28
    %p30 = scmp.eq.s32.totalorder %s29, 0
    %s32 = sadd.s32 %s31, 1
    %s33 = scalar_select %p30, %s31, %s32
    %p36 = pneg %p30
    %p37 = scmp.eq.s32.totalorder %s21, 1
    %p38 = por %p36, %p37
    %p39 = scmp.ne.s32.totalorder %s31, %s34
    %p40 = scmp.eq.s32.totalorder %s21, 0
    %p41 = por %p39, %p40
    %p42 = scmp.ne.s32.totalorder %s31, %s34
    %p43 = scmp.eq.s32.totalorder %s26, 1
    %p44 = por %p42, %p43
    %p45 = scmp.ne.s32.totalorder %s34, %s35
    %p46 = scmp.eq.s32.totalorder %s26, 0
    %p47 = por %p45, %p46
    %p48 = scmp.ne.s32.totalorder %s34, %s35
    %p49 = scmp.eq.s32.totalorder %s27, 1
    %p50 = por %p48, %p49
    %p52 = scmp.ne.s32.totalorder %s35, %s51
    %p53 = scmp.eq.s32.totalorder %s27, 0
    %p54 = por %p52, %p53
    %s56 = sadd.s32 %s55, 1
    %p59 = scmp.eq.s32.totalorder %s21, 1
    %p60 = scmp.ne.s32.totalorder %s55, %s57
    %p61 = scmp.eq.s32.totalorder %s21, 0
    %p62 = por %p60, %p61
    %p63 = scmp.ne.s32.totalorder %s55, %s57
    %p64 = scmp.eq.s32.totalorder %s26, 1
    %p65 = por %p63, %p64
    %p66 = scmp.ne.s32.totalorder %s57, %s58
    %p67 = scmp.eq.s32.totalorder %s26, 0
    %p68 = por %p66, %p67
    %p69 = scmp.ne.s32.totalorder %s57, %s58
    %p70 = scmp.eq.s32.totalorder %s27, 1
    %p71 = por %p69, %p70
    %p73 = scmp.ne.s32.totalorder %s58, %s72
    %p74 = scmp.eq.s32.totalorder %s27, 0
    %p75 = por %p73, %p74
    %s77 = sadd.s32 %s76, 1
    %p80 = scmp.eq.s32.totalorder %s21, 1
    %p81 = scmp.ne.s32.totalorder %s76, %s78
    %p82 = scmp.eq.s32.totalorder %s21, 0
    %p83 = por %p81, %p82
    %p84 = scmp.ne.s32.totalorder %s76, %s78
    %p85 = scmp.eq.s32.totalorder %s26, 1
    %p86 = por %p84, %p85
    %p87 = scmp.ne.s32.totalorder %s78, %s79
    %p88 = scmp.eq.s32.totalorder %s26, 0
    %p89 = por %p87, %p88
    %p90 = scmp.ne.s32.totalorder %s78, %s79
    %p91 = scmp.eq.s32.totalorder %s27, 1
    %p92 = por %p90, %p91
    %p94 = scmp.ne.s32.totalorder %s79, %s93
    %p95 = scmp.eq.s32.totalorder %s27, 0
    %p96 = por %p94, %p95
    %s98 = sadd.s32 %s97, 1
    %p101 = scmp.eq.s32.totalorder %s21, 1
    %p102 = scmp.ne.s32.totalorder %s97, %s99
    %p103 = scmp.eq.s32.totalorder %s21, 0
    %p104 = por %p102, %p103
    %p105 = scmp.ne.s32.totalorder %s97, %s99
    %p106 = scmp.eq.s32.totalorder %s26, 1
    %p107 = por %p105, %p106
    %p108 = scmp.ne.s32.totalorder %s99, %s100
    %p109 = scmp.eq.s32.totalorder %s26, 0
    %p110 = por %p108, %p109
    %p111 = scmp.ne.s32.totalorder %s99, %s100
    %p112 = scmp.eq.s32.totalorder %s27, 1
    %p113 = por %p111, %p112
    %p115 = scmp.ne.s32.totalorder %s100, %s114
    %p116 = scmp.eq.s32.totalorder %s27, 0
    %p117 = por %p115, %p116
    %s119 = sadd.s32 %s118, 1
    %p122 = scmp.eq.s32.totalorder %s21, 1
    %p123 = scmp.ne.s32.totalorder %s118, %s120
    %p124 = scmp.eq.s32.totalorder %s21, 0
    %p125 = por %p123, %p124
    %p126 = scmp.ne.s32.totalorder %s118, %s120
    %p127 = scmp.eq.s32.totalorder %s26, 1
    %p128 = por %p126, %p127
    %p129 = scmp.ne.s32.totalorder %s120, %s121
    %p130 = scmp.eq.s32.totalorder %s26, 0
    %p131 = por %p129, %p130
    %p132 = scmp.ne.s32.totalorder %s120, %s121
    %p133 = scmp.eq.s32.totalorder %s27, 1
    %p134 = por %p132, %p133
    %p136 = scmp.ne.s32.totalorder %s121, %s135
    %p137 = scmp.eq.s32.totalorder %s27, 0
    %p138 = por %p136, %p137
    %s140 = sadd.s32 %s139, 1
    %p143 = scmp.eq.s32.totalorder %s21, 1
    %p144 = scmp.ne.s32.totalorder %s139, %s141
    %p145 = scmp.eq.s32.totalorder %s21, 0
    %p146 = por %p144, %p145
    %p147 = scmp.ne.s32.totalorder %s139, %s141
    %p148 = scmp.eq.s32.totalorder %s26, 1
    %p149 = por %p147, %p148
    %p150 = scmp.ne.s32.totalorder %s141, %s142
    %p151 = scmp.eq.s32.totalorder %s26, 0
    %p152 = por %p150, %p151
    %p153 = scmp.ne.s32.totalorder %s141, %s142
    %p154 = scmp.eq.s32.totalorder %s27, 1
    %p155 = por %p153, %p154
    %p157 = scmp.ne.s32.totalorder %s142, %s156
    %p158 = scmp.eq.s32.totalorder %s27, 0
    %p159 = por %p157, %p158
    %s161 = sadd.s32 %s160, 1
    %p164 = scmp.eq.s32.totalorder %s21, 1
    %p165 = scmp.ne.s32.totalorder %s160, %s162
    %p166 = scmp.eq.s32.totalorder %s21, 0
    %p167 = por %p165, %p166
    %p168 = scmp.ne.s32.totalorder %s160, %s162
    %p169 = scmp.eq.s32.totalorder %s26, 1
    %p170 = por %p168, %p169
    %p171 = scmp.ne.s32.totalorder %s162, %s163
    %p172 = scmp.eq.s32.totalorder %s26, 0
    %p173 = por %p171, %p172
    %p174 = scmp.ne.s32.totalorder %s162, %s163
    %p175 = scmp.eq.s32.totalorder %s27, 1
    %p176 = por %p174, %p175
    %p178 = scmp.ne.s32.totalorder %s163, %s177
    %p179 = scmp.eq.s32.totalorder %s27, 0
    %p180 = por %p178, %p179
    %s182 = sadd.s32 %s181, 1
    %p185 = scmp.eq.s32.totalorder %s21, 1
    %p186 = scmp.ne.s32.totalorder %s181, %s183
    %p187 = scmp.eq.s32.totalorder %s21, 0
    %p188 = por %p186, %p187
    %p189 = scmp.ne.s32.totalorder %s181, %s183
    %p190 = scmp.eq.s32.totalorder %s26, 1
    %p191 = por %p189, %p190
    %p192 = scmp.ne.s32.totalorder %s183, %s184
    %p193 = scmp.eq.s32.totalorder %s26, 0
    %p194 = por %p192, %p193
    %p195 = scmp.ne.s32.totalorder %s183, %s184
    %p196 = scmp.eq.s32.totalorder %s27, 1
    %p197 = por %p195, %p196
    %p199 = scmp.ne.s32.totalorder %s184, %s198
    %p200 = scmp.eq.s32.totalorder %s27, 0
    %p201 = por %p199, %p200
    %s203 = sadd.s32 %s202, 1
    %p206 = scmp.eq.s32.totalorder %s21, 1
    %p207 = scmp.ne.s32.totalorder %s202, %s204
    %p208 = scmp.eq.s32.totalorder %s21, 0
    %p209 = por %p207, %p208
    %p210 = scmp.ne.s32.totalorder %s202, %s204
    %p211 = scmp.eq.s32.totalorder %s26, 1
    %p212 = por %p210, %p211
    %p213 = scmp.ne.s32.totalorder %s204, %s205
    %p214 = scmp.eq.s32.totalorder %s26, 0
    %p215 = por %p213, %p214
    %p216 = scmp.ne.s32.totalorder %s204, %s205
    %p217 = scmp.eq.s32.totalorder %s27, 1
    %p218 = por %p216, %p217
    %p220 = scmp.ne.s32.totalorder %s205, %s219
    %p221 = scmp.eq.s32.totalorder %s27, 0
    %p222 = por %p220, %p221
    %s224 = sadd.s32 %s223, 1
    %p227 = scmp.eq.s32.totalorder %s21, 1
    %p228 = scmp.ne.s32.totalorder %s223, %s225
    %p229 = scmp.eq.s32.totalorder %s21, 0
    %p230 = por %p228, %p229
    %p231 = scmp.ne.s32.totalorder %s223, %s225
    %p232 = scmp.eq.s32.totalorder %s26, 1
    %p233 = por %p231, %p232
    %p234 = scmp.ne.s32.totalorder %s225, %s226
    %p235 = scmp.eq.s32.totalorder %s26, 0
    %p236 = por %p234, %p235
    %p237 = scmp.ne.s32.totalorder %s225, %s226
    %p238 = scmp.eq.s32.totalorder %s27, 1
    %p239 = por %p237, %p238
    %p241 = scmp.ne.s32.totalorder %s226, %s240
    %p242 = scmp.eq.s32.totalorder %s27, 0
    %p243 = por %p241, %p242
    %s245 = sadd.s32 %s244, 1
    %p248 = scmp.eq.s32.totalorder %s21, 1
    %p249 = scmp.ne.s32.totalorder %s244, %s246
    %p250 = scmp.eq.s32.totalorder %s21, 0
    %p251 = por %p249, %p250
    %p252 = scmp.ne.s32.totalorder %s244, %s246
    %p253 = scmp.eq.s32.totalorder %s26, 1
    %p254 = por %p252, %p253
    %p255 = scmp.ne.s32.totalorder %s246, %s247
    %p256 = scmp.eq.s32.totalorder %s26, 0
    %p257 = por %p255, %p256
    %p258 = scmp.ne.s32.totalorder %s246, %s247
    %p259 = scmp.eq.s32.totalorder %s27, 1
    %p260 = por %p258, %p259
    %p262 = scmp.ne.s32.totalorder %s247, %s261
    %p263 = scmp.eq.s32.totalorder %s27, 0
    %p264 = por %p262, %p263
    %s266 = sadd.s32 %s265, 1
    %p269 = scmp.eq.s32.totalorder %s21, 1
    %p270 = scmp.ne.s32.totalorder %s265, %s267
    %p271 = scmp.eq.s32.totalorder %s21, 0
    %p272 = por %p270, %p271
    %p273 = scmp.ne.s32.totalorder %s265, %s267
    %p274 = scmp.eq.s32.totalorder %s26, 1
    %p275 = por %p273, %p274
    %p276 = scmp.ne.s32.totalorder %s267, %s268
    %p277 = scmp.eq.s32.totalorder %s26, 0
    %p278 = por %p276, %p277
    %p279 = scmp.ne.s32.totalorder %s267, %s268
    %p280 = scmp.eq.s32.totalorder %s27, 1
    %p281 = por %p279, %p280
    %p283 = scmp.ne.s32.totalorder %s268, %s282
    %p284 = scmp.eq.s32.totalorder %s27, 0
    %p285 = por %p283, %p284
    %s287 = sadd.s32 %s286, 1
    %p290 = scmp.eq.s32.totalorder %s21, 1
    %p291 = scmp.ne.s32.totalorder %s286, %s288
    %p292 = scmp.eq.s32.totalorder %s21, 0
    %p293 = por %p291, %p292
    %p294 = scmp.ne.s32.totalorder %s286, %s288
    %p295 = scmp.eq.s32.totalorder %s26, 1
    %p296 = por %p294, %p295
    %p297 = scmp.ne.s32.totalorder %s288, %s289
    %p298 = scmp.eq.s32.totalorder %s26, 0
    %p299 = por %p297, %p298
    %p300 = scmp.ne.s32.totalorder %s288, %s289
    %p301 = scmp.eq.s32.totalorder %s27, 1
    %p302 = por %p300, %p301
    %p304 = scmp.ne.s32.totalorder %s289, %s303
    %p305 = scmp.eq.s32.totalorder %s27, 0
    %p306 = por %p304, %p305
    %s307 = ssub.s32 %s21, %s28
    %p308 = scmp.eq.s32.totalorder %s307, 0
    %s310 = sadd.s32 %s309, 1
    %s311 = scalar_select %p308, %s309, %s310
    %p314 = pneg %p308
    %p315 = scmp.eq.s32.totalorder %s21, 1
    %p316 = por %p314, %p315
    %p317 = scmp.ne.s32.totalorder %s309, %s312
    %p318 = scmp.eq.s32.totalorder %s21, 0
    %p319 = por %p317, %p318
    %p320 = scmp.ne.s32.totalorder %s309, %s312
    %p321 = scmp.eq.s32.totalorder %s26, 1
    %p322 = por %p320, %p321
    %p323 = scmp.ne.s32.totalorder %s312, %s313
    %p324 = scmp.eq.s32.totalorder %s26, 0
    %p325 = por %p323, %p324
    %p326 = scmp.ne.s32.totalorder %s312, %s313
    %p327 = scmp.eq.s32.totalorder %s27, 1
    %p328 = por %p326, %p327
    %p330 = scmp.ne.s32.totalorder %s313, %s329
    %p331 = scmp.eq.s32.totalorder %s27, 0
    %p332 = por %p330, %p331
    %s333 = ssub.s32 %s21, %s28
    %p334 = scmp.eq.s32.totalorder %s333, 0
    %s336 = sadd.s32 %s335, 1
    %s337 = scalar_select %p334, %s335, %s336
    %p340 = pneg %p334
    %p341 = scmp.eq.s32.totalorder %s21, 1
    %p342 = por %p340, %p341
    %p343 = scmp.ne.s32.totalorder %s335, %s338
    %p344 = scmp.eq.s32.totalorder %s21, 0
    %p345 = por %p343, %p344
    %p346 = scmp.ne.s32.totalorder %s335, %s338
    %p347 = scmp.eq.s32.totalorder %s26, 1
    %p348 = por %p346, %p347
    %p349 = scmp.ne.s32.totalorder %s338, %s339
    %p350 = scmp.eq.s32.totalorder %s26, 0
    %p351 = por %p349, %p350
    %p352 = scmp.ne.s32.totalorder %s338, %s339
    %p353 = scmp.eq.s32.totalorder %s27, 1
    %p354 = por %p352, %p353
    %p356 = scmp.ne.s32.totalorder %s339, %s355
    %p357 = scmp.eq.s32.totalorder %s27, 0
    %p358 = por %p356, %p357
    %p359 = scmp.le.s32.totalorder 1, %s21
    %p360 = scmp.lt.s32.totalorder %s21, 3
    %p361 = pnand %p359, %p360
    %p362 = pneg %p361
    // Predicated region
    $region9: #{denoiser_encoder_forward.1} parent=5 // pred_check
      _
    $region10: #{denoiser_encoder_forward.1} parent=5 // pred_check_branch
      %364 = sbr.rel (%p361) target = $region12
    $region11: #{denoiser_encoder_forward.1} parent=5 // pred_region
      %s365 = ssub.s32 %s21, 1
      // Predicated region
      $region13: #{denoiser_encoder_forward.1} parent=11 // pred_check
        %p366 = pneg %p68
      $region14: #{denoiser_encoder_forward.1} parent=11 // pred_check_branch
        %368 = sbr.rel (%p366) target = $region16
      $region15: #{denoiser_encoder_forward.1} parent=11 // pred_region
        _
      $region16: #{denoiser_encoder_forward.1} parent=11 // pred_fallthru
        _
      // Predicated region
      $region17: #{denoiser_encoder_forward.1} parent=11 // pred_check
        %p369 = pneg %p89
      $region18: #{denoiser_encoder_forward.1} parent=11 // pred_check_branch
        %371 = sbr.rel (%p369) target = $region20
      $region19: #{denoiser_encoder_forward.1} parent=11 // pred_region
        _
      $region20: #{denoiser_encoder_forward.1} parent=11 // pred_fallthru
        _
      // Predicated region
      $region21: #{denoiser_encoder_forward.1} parent=11 // pred_check
        %p372 = pneg %p110
      $region22: #{denoiser_encoder_forward.1} parent=11 // pred_check_branch
        %374 = sbr.rel (%p372) target = $region24
      $region23: #{denoiser_encoder_forward.1} parent=11 // pred_region
        _
      $region24: #{denoiser_encoder_forward.1} parent=11 // pred_fallthru
        _
      // Predicated region
      $region25: #{denoiser_encoder_forward.1} parent=11 // pred_check
        %p375 = pneg %p131
      $region26: #{denoiser_encoder_forward.1} parent=11 // pred_check_branch
        %377 = sbr.rel (%p375) target = $region28
      $region27: #{denoiser_encoder_forward.1} parent=11 // pred_region
        _
      $region28: #{denoiser_encoder_forward.1} parent=11 // pred_fallthru
        _
      // Predicated region
      $region29: #{denoiser_encoder_forward.1} parent=11 // pred_check
        %p378 = pneg %p152
      $region30: #{denoiser_encoder_forward.1} parent=11 // pred_check_branch
        %380 = sbr.rel (%p378) target = $region32
      $region31: #{denoiser_encoder_forward.1} parent=11 // pred_region
        _
      $region32: #{denoiser_encoder_forward.1} parent=11 // pred_fallthru
        _
      // Predicated region
      $region33: #{denoiser_encoder_forward.1} parent=11 // pred_check
        %p381 = pneg %p173
      $region34: #{denoiser_encoder_forward.1} parent=11 // pred_check_branch
        %383 = sbr.rel (%p381) target = $region36
      $region35: #{denoiser_encoder_forward.1} parent=11 // pred_region
        _
      $region36: #{denoiser_encoder_forward.1} parent=11 // pred_fallthru
        _
      // Predicated region
      $region37: #{denoiser_encoder_forward.1} parent=11 // pred_check
        %p384 = pneg %p194
      $region38: #{denoiser_encoder_forward.1} parent=11 // pred_check_branch
        %386 = sbr.rel (%p384) target = $region40
      $region39: #{denoiser_encoder_forward.1} parent=11 // pred_region
        _
      $region40: #{denoiser_encoder_forward.1} parent=11 // pred_fallthru
        _
      // Predicated region
      $region41: #{denoiser_encoder_forward.1} parent=11 // pred_check
        %p387 = pneg %p215
      $region42: #{denoiser_encoder_forward.1} parent=11 // pred_check_branch
        %389 = sbr.rel (%p387) target = $region44
      $region43: #{denoiser_encoder_forward.1} parent=11 // pred_region
        _
      $region44: #{denoiser_encoder_forward.1} parent=11 // pred_fallthru
        _
      // Predicated region
      $region45: #{denoiser_encoder_forward.1} parent=11 // pred_check
        %p390 = pneg %p236
      $region46: #{denoiser_encoder_forward.1} parent=11 // pred_check_branch
        %392 = sbr.rel (%p390) target = $region48
      $region47: #{denoiser_encoder_forward.1} parent=11 // pred_region
        _
      $region48: #{denoiser_encoder_forward.1} parent=11 // pred_fallthru
        _
      // Predicated region
      $region49: #{denoiser_encoder_forward.1} parent=11 // pred_check
        %p393 = pneg %p257
      $region50: #{denoiser_encoder_forward.1} parent=11 // pred_check_branch
        %395 = sbr.rel (%p393) target = $region52
      $region51: #{denoiser_encoder_forward.1} parent=11 // pred_region
        _
      $region52: #{denoiser_encoder_forward.1} parent=11 // pred_fallthru
        _
      // Predicated region
      $region53: #{denoiser_encoder_forward.1} parent=11 // pred_check
        %p396 = pneg %p278
      $region54: #{denoiser_encoder_forward.1} parent=11 // pred_check_branch
        %398 = sbr.rel (%p396) target = $region56
      $region55: #{denoiser_encoder_forward.1} parent=11 // pred_region
        _
      $region56: #{denoiser_encoder_forward.1} parent=11 // pred_fallthru
        _
      // Predicated region
      $region57: #{denoiser_encoder_forward.1} parent=11 // pred_check
        %p399 = pneg %p299
      $region58: #{denoiser_encoder_forward.1} parent=11 // pred_check_branch
        %401 = sbr.rel (%p399) target = $region60
      $region59: #{denoiser_encoder_forward.1} parent=11 // pred_region
        _
      $region60: #{denoiser_encoder_forward.1} parent=11 // pred_fallthru
        _
    $region12: #{denoiser_encoder_forward.1} parent=5 // pred_fallthru
      _
    %p402 = scmp.lt.s32.totalorder %s21, 2
    // Predicated region
    $region61: #{denoiser_encoder_forward.1} parent=5 // pred_check
      %p403 = pneg %p402
    $region62: #{denoiser_encoder_forward.1} parent=5 // pred_check_branch
      %405 = sbr.rel (%p403) target = $region64
    $region63: #{denoiser_encoder_forward.1} parent=5 // pred_region
      // Predicated region
      $region65: #{denoiser_encoder_forward.1} parent=63 // pred_check
        %p406 = pneg %p41
      $region66: #{denoiser_encoder_forward.1} parent=63 // pred_check_branch
        %408 = sbr.rel (%p406) target = $region68
      $region67: #{denoiser_encoder_forward.1} parent=63 // pred_region
        %p409 = scmp.lt.s32.totalorder %s21, 1
        %s410 = scalar_select %p409, %s21, 1
        %s411 = smul.addr %s410, 42
        %s412 = smul.addr %s411, 8
        %s413 = scalar_lea.vmem %s0, %s412
      $region68: #{denoiser_encoder_forward.1} parent=63 // pred_fallthru
        _
    $region64: #{denoiser_encoder_forward.1} parent=5 // pred_fallthru
      _
    %p414 = scmp.le.s32.totalorder 1, %s21
    %p415 = scmp.lt.s32.totalorder %s21, 3
    %p416 = pnand %p414, %p415
    %p417 = pneg %p416
    // Predicated region
    $region69: #{denoiser_encoder_forward.1} parent=5 // pred_check
      _
    $region70: #{denoiser_encoder_forward.1} parent=5 // pred_check_branch
      %419 = sbr.rel (%p416) target = $region72
    $region71: #{denoiser_encoder_forward.1} parent=5 // pred_region
      %s420 = ssub.s32 %s21, 1
      %p421 = scmp.lt.s32.totalorder %s26, 1
      %s422 = scalar_select %p421, %s26, 1
      %s423 = smul.addr %s422, 42
      %s424 = smul.addr %s423, 8
      %s425 = scalar_lea.vmem %s0, %s424
      %p426 = pneg %p47
      %p427 = pneg %p44
      %p428 = pneg %p68
      %p429 = pneg %p65
      %p430 = pneg %p89
      %p431 = pneg %p86
      %p432 = pneg %p110
      %p433 = pneg %p107
      %p434 = pneg %p131
      %p435 = pneg %p128
      %p436 = pneg %p152
      %p437 = pneg %p149
      %p438 = pneg %p173
      %p439 = pneg %p170
      %p440 = pneg %p194
      %p441 = pneg %p191
      %p442 = pneg %p215
      %p443 = pneg %p212
      %p444 = pneg %p236
      %p445 = pneg %p233
      %p446 = pneg %p257
      %p447 = pneg %p254
      %p448 = pneg %p278
      %p449 = pneg %p275
      %p450 = pneg %p299
      %p451 = pneg %p296
      %p452 = pneg %p325
      %p453 = pneg %p322
      %p454 = scmp.lt.s32.totalorder %s26, 1
      %s455 = scalar_select %p454, %s26, 1
      %s456 = smul.addr %s455, 8
      %s457 = scalar_lea.vmem %s13, %s456
      %p458 = pneg %p351
      %p459 = pneg %p348
      %p460 = scmp.lt.s32.totalorder %s26, 1
      %s461 = scalar_select %p460, %s26, 1
      %s462 = smul.addr %s461, 2
      %s463 = smul.addr %s462, 8
      %s464 = scalar_lea.vmem %s14, %s463
      %p465 = scmp.lt.s32.totalorder %s26, 1
      %s466 = scalar_select %p465, %s26, 1
      %s467 = smul.addr %s466, 42
      %s468 = smul.addr %s467, 8
      %s469 = scalar_lea.vmem %s0, %s468
      %p470 = scmp.lt.s32.totalorder %s26, 1
      %s471 = scalar_select %p470, %s26, 1
      %s472 = smul.addr %s471, 8
      %s473 = scalar_lea.vmem %s13, %s472
      %p474 = scmp.lt.s32.totalorder %s26, 1
      %s475 = scalar_select %p474, %s26, 1
      %s476 = smul.addr %s475, 2
      %s477 = smul.addr %s476, 8
      %s478 = scalar_lea.vmem %s14, %s477
      %v480 = vld [vmem:[%s469 + $0x5] sm:$0xff]
      %v481 = vld [vmem:[%s469 + $0xd] sm:$0xff]
      %v482 = vld [vmem:[%s469 + $0x15] sm:$0xff]
      %v483 = vld [vmem:[%s469 + $0x1d] sm:$0xff]
      %v484 = vld [vmem:[%s469 + $0x25] sm:$0xff]
      %v485 = vld [vmem:[%s469 + $0x2d] sm:$0xff]
      %v486 = vld [vmem:[%s469 + $0x35] sm:$0xff]
      %v487 = vld [vmem:[%s469 + $0x3d] sm:$0xff]
      %v488 = vld [vmem:[%s469 + $0x45] sm:$0xff]
      %v489 = vld [vmem:[%s469 + $0x4d] sm:$0xff]
      %v490 = vld [vmem:[%s469 + $0x55] sm:$0xff]
      %v491 = vld [vmem:[%s469 + $0x5d] sm:$0xff]
      %v492 = vld [vmem:[%s469 + $0x65] sm:$0xff]
      %v493 = vld [vmem:[%s469 + $0x6d] sm:$0xff]
      %v494 = vld [vmem:[%s469 + $0x75] sm:$0xff]
      %v495 = vld [vmem:[%s469 + $0x7d] sm:$0xff]
      %v496 = vld [vmem:[%s469 + $0x85] sm:$0xff]
      %v497 = vld [vmem:[%s469 + $0x8d] sm:$0xff]
      %v498 = vld [vmem:[%s469 + $0x95] sm:$0xff]
      %v499 = vld [vmem:[%s469 + $0x9d] sm:$0xff]
      %v500 = vld [vmem:[%s469 + $0xa5] sm:$0xff]
      %v501 = vld [vmem:[%s469 + $0xad] sm:$0xff]
      %v502 = vld [vmem:[%s469 + $0xb5] sm:$0xff]
      %v503 = vld [vmem:[%s469 + $0xbd] sm:$0xff]
      %v504 = vld [vmem:[%s469 + $0xc5] sm:$0xff]
      %v505 = vld [vmem:[%s469 + $0xcd] sm:$0xff]
      %v506 = vld [vmem:[%s469 + $0xd5] sm:$0xff]
      %v507 = vld [vmem:[%s469 + $0xdd] sm:$0xff]
      %v508 = vld [vmem:[%s469 + $0xe5] sm:$0xff]
      %v509 = vld [vmem:[%s469 + $0xed] sm:$0xff]
      %v510 = vld [vmem:[%s469 + $0xf5] sm:$0xff]
      %v511 = vld [vmem:[%s469 + $0xfd] sm:$0xff]
      %v512 = vld [vmem:[%s469 + $0x105] sm:$0xff]
      %v513 = vld [vmem:[%s469 + $0x10d] sm:$0xff]
      %v514 = vld [vmem:[%s469 + $0x115] sm:$0xff]
      %v515 = vld [vmem:[%s469 + $0x11d] sm:$0x3f]
      %v516 = vld [vmem:[%s469 + $0x6] sm:$0xff]
      %v517 = vld [vmem:[%s469 + $0xe] sm:$0xff]
      %v518 = vld [vmem:[%s469 + $0x16] sm:$0xff]
      %v519 = vld [vmem:[%s469 + $0x1e] sm:$0xff]
      %v520 = vld [vmem:[%s469 + $0x26] sm:$0xff]
      %v521 = vld [vmem:[%s469 + $0x2e] sm:$0xff]
      %v522 = vld [vmem:[%s469 + $0x36] sm:$0xff]
      %v523 = vld [vmem:[%s469 + $0x3e] sm:$0xff]
      %v524 = vld [vmem:[%s469 + $0x46] sm:$0xff]
      %v525 = vld [vmem:[%s469 + $0x4e] sm:$0xff]
      %v526 = vld [vmem:[%s469 + $0x56] sm:$0xff]
      %v527 = vld [vmem:[%s469 + $0x5e] sm:$0xff]
      %v528 = vld [vmem:[%s469 + $0x66] sm:$0xff]
      %v529 = vld [vmem:[%s469 + $0x6e] sm:$0xff]
      %v530 = vld [vmem:[%s469 + $0x76] sm:$0xff]
      %v531 = vld [vmem:[%s469 + $0x7e] sm:$0xff]
      %v532 = vld [vmem:[%s469 + $0x86] sm:$0xff]
      %v533 = vld [vmem:[%s469 + $0x8e] sm:$0xff]
      %v534 = vld [vmem:[%s469 + $0x96] sm:$0xff]
      %v535 = vld [vmem:[%s469 + $0x9e] sm:$0xff]
      %v536 = vld [vmem:[%s469 + $0xa6] sm:$0xff]
      %v537 = vld [vmem:[%s469 + $0xae] sm:$0xff]
      %v538 = vld [vmem:[%s469 + $0xb6] sm:$0xff]
      %v539 = vld [vmem:[%s469 + $0xbe] sm:$0xff]
      %v540 = vld [vmem:[%s469 + $0xc6] sm:$0xff]
      %v541 = vld [vmem:[%s469 + $0xce] sm:$0xff]
      %v542 = vld [vmem:[%s469 + $0xd6] sm:$0xff]
      %v543 = vld [vmem:[%s469 + $0xde] sm:$0xff]
      %v544 = vld [vmem:[%s469 + $0xe6] sm:$0xff]
      %v545 = vld [vmem:[%s469 + $0xee] sm:$0xff]
      %v546 = vld [vmem:[%s469 + $0xf6] sm:$0xff]
      %v547 = vld [vmem:[%s469 + $0xfe] sm:$0xff]
      %v548 = vld [vmem:[%s469 + $0x106] sm:$0xff]
      %v549 = vld [vmem:[%s469 + $0x10e] sm:$0xff]
      %v550 = vld [vmem:[%s469 + $0x116] sm:$0xff]
      %v551 = vld [vmem:[%s469 + $0x11e] sm:$0x3f]
      %v552 = vld [vmem:[%s469 + $0x7] sm:$0xff]
      %v553 = vld [vmem:[%s469 + $0xf] sm:$0xff]
      %v554 = vld [vmem:[%s469 + $0x17] sm:$0xff]
      %v555 = vld [vmem:[%s469 + $0x1f] sm:$0xff]
      %v556 = vld [vmem:[%s469 + $0x27] sm:$0xff]
      %v557 = vld [vmem:[%s469 + $0x2f] sm:$0xff]
      %v558 = vld [vmem:[%s469 + $0x37] sm:$0xff]
      %v559 = vld [vmem:[%s469 + $0x3f] sm:$0xff]
      %v560 = vld [vmem:[%s469 + $0x47] sm:$0xff]
      %v561 = vld [vmem:[%s469 + $0x4f] sm:$0xff]
      %v562 = vld [vmem:[%s469 + $0x57] sm:$0xff]
      %v563 = vld [vmem:[%s469 + $0x5f] sm:$0xff]
      %v564 = vld [vmem:[%s469 + $0x67] sm:$0xff]
      %v565 = vld [vmem:[%s469 + $0x6f] sm:$0xff]
      %v566 = vld [vmem:[%s469 + $0x77] sm:$0xff]
      %v567 = vld [vmem:[%s469 + $0x7f] sm:$0xff]
      %v568 = vld [vmem:[%s469 + $0x87] sm:$0xff]
      %v569 = vld [vmem:[%s469 + $0x8f] sm:$0xff]
      %v570 = vld [vmem:[%s469 + $0x97] sm:$0xff]
      %v571 = vld [vmem:[%s469 + $0x9f] sm:$0xff]
      %v572 = vld [vmem:[%s469 + $0xa7] sm:$0xff]
      %v573 = vld [vmem:[%s469 + $0xaf] sm:$0xff]
      %v574 = vld [vmem:[%s469 + $0xb7] sm:$0xff]
      %v575 = vld [vmem:[%s469 + $0xbf] sm:$0xff]
      %v576 = vld [vmem:[%s469 + $0xc7] sm:$0xff]
      %v577 = vld [vmem:[%s469 + $0xcf] sm:$0xff]
      %v578 = vld [vmem:[%s469 + $0xd7] sm:$0xff]
      %v579 = vld [vmem:[%s469 + $0xdf] sm:$0xff]
      %v580 = vld [vmem:[%s469 + $0xe7] sm:$0xff]
      %v581 = vld [vmem:[%s469 + $0xef] sm:$0xff]
      %v582 = vld [vmem:[%s469 + $0xf7] sm:$0xff]
      %v583 = vld [vmem:[%s469 + $0xff] sm:$0xff]
      %v584 = vld [vmem:[%s469 + $0x107] sm:$0xff]
      %v585 = vld [vmem:[%s469 + $0x10f] sm:$0xff]
      %v586 = vld [vmem:[%s469 + $0x117] sm:$0xff]
      %v587 = vld [vmem:[%s469 + $0x11f] sm:$0x3f]
      %v588 = vld [vmem:[%s469 + $0x11f] sm:$0xff]
      %v589 = vld [vmem:[%s469 + $0x127] sm:$0xff]
      %v590 = vld [vmem:[%s469 + $0x12f] sm:$0x3f]
      %v591 = vld [vmem:[%s469 + $0x18] sm:$0xff]
      %v592 = vld [vmem:[%s469 + $0x20] sm:$0xff]
      %v593 = vld [vmem:[%s469 + $0x28] sm:$0xff]
      %v594 = vld [vmem:[%s469 + $0x30] sm:$0xff]
      %v595 = vld [vmem:[%s469 + $0x38] sm:$0xff]
      %v596 = vld [vmem:[%s469 + $0x40] sm:$0xff]
      %v597 = vld [vmem:[%s469 + $0x48] sm:$0xff]
      %v598 = vld [vmem:[%s469 + $0x50] sm:$0xff]
      %v599 = vld [vmem:[%s469 + $0x58] sm:$0xff]
      %v600 = vld [vmem:[%s469 + $0x60] sm:$0xff]
      %v601 = vld [vmem:[%s469 + $0x68] sm:$0xff]
      %v602 = vld [vmem:[%s469 + $0x70] sm:$0xff]
      %v603 = vld [vmem:[%s469 + $0x78] sm:$0xff]
      %v604 = vld [vmem:[%s469 + $0x80] sm:$0xff]
      %v605 = vld [vmem:[%s469 + $0x88] sm:$0xff]
      %v606 = vld [vmem:[%s469 + $0x90] sm:$0xff]
      %v607 = vld [vmem:[%s469 + $0x98] sm:$0xff]
      %v608 = vld [vmem:[%s469 + $0xa0] sm:$0xff]
      %v609 = vld [vmem:[%s469 + $0xa8] sm:$0xff]
      %v610 = vld [vmem:[%s469 + $0xb0] sm:$0xff]
      %v611 = vld [vmem:[%s469 + $0xb8] sm:$0xff]
      %v612 = vld [vmem:[%s469 + $0xc0] sm:$0xff]
      %v613 = vld [vmem:[%s469 + $0xc8] sm:$0xff]
      %v614 = vld [vmem:[%s469 + $0xd0] sm:$0xff]
      %v615 = vld [vmem:[%s469 + $0xd8] sm:$0xff]
      %v616 = vld [vmem:[%s469 + $0xe0] sm:$0xff]
      %v617 = vld [vmem:[%s469 + $0xe8] sm:$0xff]
      %v618 = vld [vmem:[%s469 + $0xf0] sm:$0xff]
      %v619 = vld [vmem:[%s469 + $0xf8] sm:$0xff]
      %v620 = vld [vmem:[%s469 + $0x100] sm:$0xff]
      %v621 = vld [vmem:[%s469 + $0x108] sm:$0xff]
      %v622 = vld [vmem:[%s469 + $0x110] sm:$0xff]
      %v623 = vld [vmem:[%s469 + $0x118] sm:$0xff]
      %v624 = vld [vmem:[%s469 + $0x120] sm:$0xff]
      %v625 = vld [vmem:[%s469 + $0x128] sm:$0xff]
      %v626 = vld [vmem:[%s469 + $0x130] sm:$0x3f]
      %v627 = vld [vmem:[%s469 + $0x19] sm:$0xff]
      %v628 = vld [vmem:[%s469 + $0x21] sm:$0xff]
      %v629 = vld [vmem:[%s469 + $0x29] sm:$0xff]
      %v630 = vld [vmem:[%s469 + $0x31] sm:$0xff]
      %v631 = vld [vmem:[%s469 + $0x39] sm:$0xff]
      %v632 = vld [vmem:[%s469 + $0x41] sm:$0xff]
      %v633 = vld [vmem:[%s469 + $0x49] sm:$0xff]
      %v634 = vld [vmem:[%s469 + $0x51] sm:$0xff]
      %v635 = vld [vmem:[%s469 + $0x59] sm:$0xff]
      %v636 = vld [vmem:[%s469 + $0x61] sm:$0xff]
      %v637 = vld [vmem:[%s469 + $0x69] sm:$0xff]
      %v638 = vld [vmem:[%s469 + $0x71] sm:$0xff]
      %v639 = vld [vmem:[%s469 + $0x79] sm:$0xff]
      %v640 = vld [vmem:[%s469 + $0x81] sm:$0xff]
      %v641 = vld [vmem:[%s469 + $0x89] sm:$0xff]
      %v642 = vld [vmem:[%s469 + $0x91] sm:$0xff]
      %v643 = vld [vmem:[%s469 + $0x99] sm:$0xff]
      %v644 = vld [vmem:[%s469 + $0xa1] sm:$0xff]
      %v645 = vld [vmem:[%s469 + $0xa9] sm:$0xff]
      %v646 = vld [vmem:[%s469 + $0xb1] sm:$0xff]
      %v647 = vld [vmem:[%s469 + $0xb9] sm:$0xff]
      %v648 = vld [vmem:[%s469 + $0xc1] sm:$0xff]
      %v649 = vld [vmem:[%s469 + $0xc9] sm:$0xff]
      %v650 = vld [vmem:[%s469 + $0xd1] sm:$0xff]
      %v651 = vld [vmem:[%s469 + $0xd9] sm:$0xff]
      %v652 = vld [vmem:[%s469 + $0xe1] sm:$0xff]
      %v653 = vld [vmem:[%s469 + $0xe9] sm:$0xff]
      %v654 = vld [vmem:[%s469 + $0xf1] sm:$0xff]
      %v655 = vld [vmem:[%s469 + $0xf9] sm:$0xff]
      %v656 = vld [vmem:[%s469 + $0x101] sm:$0xff]
      %v657 = vld [vmem:[%s469 + $0x109] sm:$0xff]
      %v658 = vld [vmem:[%s469 + $0x111] sm:$0xff]
      %v659 = vld [vmem:[%s469 + $0x119] sm:$0xff]
      %v660 = vld [vmem:[%s469 + $0x121] sm:$0xff]
      %v661 = vld [vmem:[%s469 + $0x129] sm:$0xff]
      %v662 = vld [vmem:[%s469 + $0x131] sm:$0x3f]
      %v663 = vld [vmem:[%s469 + $0x131] sm:$0xff]
      %v664 = vld [vmem:[%s469 + $0x139] sm:$0xff]
      %v665 = vld [vmem:[%s469 + $0x141] sm:$0x3f]
      %v666 = vld [vmem:[%s469 + $0x2a] sm:$0xff]
      %v667 = vld [vmem:[%s469 + $0x32] sm:$0xff]
      %v668 = vld [vmem:[%s469 + $0x3a] sm:$0xff]
      %v669 = vld [vmem:[%s469 + $0x42] sm:$0xff]
      %v670 = vld [vmem:[%s469 + $0x4a] sm:$0xff]
      %v671 = vld [vmem:[%s469 + $0x52] sm:$0xff]
      %v672 = vld [vmem:[%s469 + $0x5a] sm:$0xff]
      %v673 = vld [vmem:[%s469 + $0x62] sm:$0xff]
      %v674 = vld [vmem:[%s469 + $0x6a] sm:$0xff]
      %v675 = vld [vmem:[%s469 + $0x72] sm:$0xff]
      %v676 = vld [vmem:[%s469 + $0x7a] sm:$0xff]
      %v677 = vld [vmem:[%s469 + $0x82] sm:$0xff]
      %v678 = vld [vmem:[%s469 + $0x8a] sm:$0xff]
      %v679 = vld [vmem:[%s469 + $0x92] sm:$0xff]
      %v680 = vld [vmem:[%s469 + $0x9a] sm:$0xff]
      %v681 = vld [vmem:[%s469 + $0xa2] sm:$0xff]
      %v682 = vld [vmem:[%s469 + $0xaa] sm:$0xff]
      %v683 = vld [vmem:[%s469 + $0xb2] sm:$0xff]
      %v684 = vld [vmem:[%s469 + $0xba] sm:$0xff]
      %v685 = vld [vmem:[%s469 + $0xc2] sm:$0xff]
      %v686 = vld [vmem:[%s469 + $0xca] sm:$0xff]
      %v687 = vld [vmem:[%s469 + $0xd2] sm:$0xff]
      %v688 = vld [vmem:[%s469 + $0xda] sm:$0xff]
      %v689 = vld [vmem:[%s469 + $0xe2] sm:$0xff]
      %v690 = vld [vmem:[%s469 + $0xea] sm:$0xff]
      %v691 = vld [vmem:[%s469 + $0xf2] sm:$0xff]
      %v692 = vld [vmem:[%s469 + $0xfa] sm:$0xff]
      %v693 = vld [vmem:[%s469 + $0x102] sm:$0xff]
      %v694 = vld [vmem:[%s469 + $0x10a] sm:$0xff]
      %v695 = vld [vmem:[%s469 + $0x112] sm:$0xff]
      %v696 = vld [vmem:[%s469 + $0x11a] sm:$0xff]
      %v697 = vld [vmem:[%s469 + $0x122] sm:$0xff]
      %v698 = vld [vmem:[%s469 + $0x12a] sm:$0xff]
      %v699 = vld [vmem:[%s469 + $0x132] sm:$0xff]
      %v700 = vld [vmem:[%s469 + $0x13a] sm:$0xff]
      %v701 = vld [vmem:[%s469 + $0x142] sm:$0x3f]
      %v702 = vld [vmem:[%s469 + $0x2b] sm:$0xff]
      %v703 = vld [vmem:[%s469 + $0x33] sm:$0xff]
      %v704 = vld [vmem:[%s469 + $0x3b] sm:$0xff]
      %v705 = vld [vmem:[%s469 + $0x43] sm:$0xff]
      %v706 = vld [vmem:[%s469 + $0x4b] sm:$0xff]
      %v707 = vld [vmem:[%s469 + $0x53] sm:$0xff]
      %v708 = vld [vmem:[%s469 + $0x5b] sm:$0xff]
      %v709 = vld [vmem:[%s469 + $0x63] sm:$0xff]
      %v710 = vld [vmem:[%s469 + $0x6b] sm:$0xff]
      %v711 = vld [vmem:[%s469 + $0x73] sm:$0xff]
      %v712 = vld [vmem:[%s469 + $0x7b] sm:$0xff]
      %v713 = vld [vmem:[%s469 + $0x83] sm:$0xff]
      %v714 = vld [vmem:[%s469 + $0x8b] sm:$0xff]
      %v715 = vld [vmem:[%s469 + $0x93] sm:$0xff]
      %v716 = vld [vmem:[%s469 + $0x9b] sm:$0xff]
      %v717 = vld [vmem:[%s469 + $0xa3] sm:$0xff]
      %v718 = vld [vmem:[%s469 + $0xab] sm:$0xff]
      %v719 = vld [vmem:[%s469 + $0xb3] sm:$0xff]
      %v720 = vld [vmem:[%s469 + $0xbb] sm:$0xff]
      %v721 = vld [vmem:[%s469 + $0xc3] sm:$0xff]
      %v722 = vld [vmem:[%s469 + $0xcb] sm:$0xff]
      %v723 = vld [vmem:[%s469 + $0xd3] sm:$0xff]
      %v724 = vld [vmem:[%s469 + $0xdb] sm:$0xff]
      %v725 = vld [vmem:[%s469 + $0xe3] sm:$0xff]
      %v726 = vld [vmem:[%s469 + $0xeb] sm:$0xff]
      %v727 = vld [vmem:[%s469 + $0xf3] sm:$0xff]
      %v728 = vld [vmem:[%s469 + $0xfb] sm:$0xff]
      %v729 = vld [vmem:[%s469 + $0x103] sm:$0xff]
      %v730 = vld [vmem:[%s469 + $0x10b] sm:$0xff]
      %v731 = vld [vmem:[%s469 + $0x113] sm:$0xff]
      %v732 = vld [vmem:[%s469 + $0x11b] sm:$0xff]
      %v733 = vld [vmem:[%s469 + $0x123] sm:$0xff]
      %v734 = vld [vmem:[%s469 + $0x12b] sm:$0xff]
      %v735 = vld [vmem:[%s469 + $0x133] sm:$0xff]
      %v736 = vld [vmem:[%s469 + $0x13b] sm:$0xff]
      %v737 = vld [vmem:[%s469 + $0x143] sm:$0x3f]
      %774 = vrot.lane.b32.xlu0 %v516, 4
      %v775 = vpop.permute.xlu0 %774
      %776 = vrot.lane.b32.xlu0 %v517, 4
      %v777 = vpop.permute.xlu0 %776
      %778 = vrot.lane.b32.xlu0 %v518, 4
      %v779 = vpop.permute.xlu0 %778
      %780 = vrot.lane.b32.xlu0 %v519, 4
      %v781 = vpop.permute.xlu0 %780
      %782 = vrot.lane.b32.xlu0 %v520, 4
      %v783 = vpop.permute.xlu0 %782
      %784 = vrot.lane.b32.xlu0 %v521, 4
      %v785 = vpop.permute.xlu0 %784
      %786 = vrot.lane.b32.xlu0 %v522, 4
      %v787 = vpop.permute.xlu0 %786
      %788 = vrot.lane.b32.xlu0 %v523, 4
      %v789 = vpop.permute.xlu0 %788
      %790 = vrot.lane.b32.xlu0 %v524, 4
      %v791 = vpop.permute.xlu0 %790
      %792 = vrot.lane.b32.xlu0 %v525, 4
      %v793 = vpop.permute.xlu0 %792
      %794 = vrot.lane.b32.xlu0 %v526, 4
      %v795 = vpop.permute.xlu0 %794
      %796 = vrot.lane.b32.xlu0 %v527, 4
      %v797 = vpop.permute.xlu0 %796
      %798 = vrot.lane.b32.xlu0 %v528, 4
      %v799 = vpop.permute.xlu0 %798
      %800 = vrot.lane.b32.xlu0 %v529, 4
      %v801 = vpop.permute.xlu0 %800
      %802 = vrot.lane.b32.xlu0 %v530, 4
      %v803 = vpop.permute.xlu0 %802
      %804 = vrot.lane.b32.xlu0 %v531, 4
      %v805 = vpop.permute.xlu0 %804
      %806 = vrot.lane.b32.xlu0 %v532, 4
      %v807 = vpop.permute.xlu0 %806
      %808 = vrot.lane.b32.xlu0 %v533, 4
      %v809 = vpop.permute.xlu0 %808
      %810 = vrot.lane.b32.xlu0 %v534, 4
      %v811 = vpop.permute.xlu0 %810
      %812 = vrot.lane.b32.xlu0 %v535, 4
      %v813 = vpop.permute.xlu0 %812
      %814 = vrot.lane.b32.xlu0 %v536, 4
      %v815 = vpop.permute.xlu0 %814
      %816 = vrot.lane.b32.xlu0 %v537, 4
      %v817 = vpop.permute.xlu0 %816
      %818 = vrot.lane.b32.xlu0 %v538, 4
      %v819 = vpop.permute.xlu0 %818
      %820 = vrot.lane.b32.xlu0 %v539, 4
      %v821 = vpop.permute.xlu0 %820
      %822 = vrot.lane.b32.xlu0 %v540, 4
      %v823 = vpop.permute.xlu0 %822
      %824 = vrot.lane.b32.xlu0 %v541, 4
      %v825 = vpop.permute.xlu0 %824
      %826 = vrot.lane.b32.xlu0 %v542, 4
      %v827 = vpop.permute.xlu0 %826
      %828 = vrot.lane.b32.xlu0 %v543, 4
      %v829 = vpop.permute.xlu0 %828
      %830 = vrot.lane.b32.xlu0 %v544, 4
      %v831 = vpop.permute.xlu0 %830
      %832 = vrot.lane.b32.xlu0 %v545, 4
      %v833 = vpop.permute.xlu0 %832
      %834 = vrot.lane.b32.xlu0 %v546, 4
      %v835 = vpop.permute.xlu0 %834
      %836 = vrot.lane.b32.xlu0 %v547, 4
      %v837 = vpop.permute.xlu0 %836
      %838 = vrot.lane.b32.xlu0 %v548, 4
      %v839 = vpop.permute.xlu0 %838
      %840 = vrot.lane.b32.xlu0 %v549, 4
      %v841 = vpop.permute.xlu0 %840
      %842 = vrot.lane.b32.xlu0 %v550, 4
      %v843 = vpop.permute.xlu0 %842
      %844 = vrot.lane.b32.xlu0 %v551, 4
      %v845 = vpop.permute.xlu0 %844
      %918 = vrot.lane.b32.xlu0 %v552, 8
      %v919 = vpop.permute.xlu0 %918
      %920 = vrot.lane.b32.xlu0 %v553, 8
      %v921 = vpop.permute.xlu0 %920
      %922 = vrot.lane.b32.xlu0 %v554, 8
      %v923 = vpop.permute.xlu0 %922
      %924 = vrot.lane.b32.xlu0 %v555, 8
      %v925 = vpop.permute.xlu0 %924
      %926 = vrot.lane.b32.xlu0 %v556, 8
      %v927 = vpop.permute.xlu0 %926
      %928 = vrot.lane.b32.xlu0 %v557, 8
      %v929 = vpop.permute.xlu0 %928
      %930 = vrot.lane.b32.xlu0 %v558, 8
      %v931 = vpop.permute.xlu0 %930
      %932 = vrot.lane.b32.xlu0 %v559, 8
      %v933 = vpop.permute.xlu0 %932
      %934 = vrot.lane.b32.xlu0 %v560, 8
      %v935 = vpop.permute.xlu0 %934
      %936 = vrot.lane.b32.xlu0 %v561, 8
      %v937 = vpop.permute.xlu0 %936
      %938 = vrot.lane.b32.xlu0 %v562, 8
      %v939 = vpop.permute.xlu0 %938
      %940 = vrot.lane.b32.xlu0 %v563, 8
      %v941 = vpop.permute.xlu0 %940
      %942 = vrot.lane.b32.xlu0 %v564, 8
      %v943 = vpop.permute.xlu0 %942
      %944 = vrot.lane.b32.xlu0 %v565, 8
      %v945 = vpop.permute.xlu0 %944
      %946 = vrot.lane.b32.xlu0 %v566, 8
      %v947 = vpop.permute.xlu0 %946
      %948 = vrot.lane.b32.xlu0 %v567, 8
      %v949 = vpop.permute.xlu0 %948
      %950 = vrot.lane.b32.xlu0 %v568, 8
      %v951 = vpop.permute.xlu0 %950
      %952 = vrot.lane.b32.xlu0 %v569, 8
      %v953 = vpop.permute.xlu0 %952
      %954 = vrot.lane.b32.xlu0 %v570, 8
      %v955 = vpop.permute.xlu0 %954
      %956 = vrot.lane.b32.xlu0 %v571, 8
      %v957 = vpop.permute.xlu0 %956
      %958 = vrot.lane.b32.xlu0 %v572, 8
      %v959 = vpop.permute.xlu0 %958
      %960 = vrot.lane.b32.xlu0 %v573, 8
      %v961 = vpop.permute.xlu0 %960
      %962 = vrot.lane.b32.xlu0 %v574, 8
      %v963 = vpop.permute.xlu0 %962
      %964 = vrot.lane.b32.xlu0 %v575, 8
      %v965 = vpop.permute.xlu0 %964
      %966 = vrot.lane.b32.xlu0 %v576, 8
      %v967 = vpop.permute.xlu0 %966
      %968 = vrot.lane.b32.xlu0 %v577, 8
      %v969 = vpop.permute.xlu0 %968
      %970 = vrot.lane.b32.xlu0 %v578, 8
      %v971 = vpop.permute.xlu0 %970
      %972 = vrot.lane.b32.xlu0 %v579, 8
      %v973 = vpop.permute.xlu0 %972
      %974 = vrot.lane.b32.xlu0 %v580, 8
      %v975 = vpop.permute.xlu0 %974
      %976 = vrot.lane.b32.xlu0 %v581, 8
      %v977 = vpop.permute.xlu0 %976
      %978 = vrot.lane.b32.xlu0 %v582, 8
      %v979 = vpop.permute.xlu0 %978
      %980 = vrot.lane.b32.xlu0 %v583, 8
      %v981 = vpop.permute.xlu0 %980
      %982 = vrot.lane.b32.xlu0 %v584, 8
      %v983 = vpop.permute.xlu0 %982
      %984 = vrot.lane.b32.xlu0 %v585, 8
      %v985 = vpop.permute.xlu0 %984
      %986 = vrot.lane.b32.xlu0 %v586, 8
      %v987 = vpop.permute.xlu0 %986
      %988 = vrot.lane.b32.xlu0 %v587, 8
      %v989 = vpop.permute.xlu0 %988
      %1029 = vrot.lane.b32.xlu0 %v554, 12
      %v1030 = vpop.permute.xlu0 %1029
      %1031 = vrot.lane.b32.xlu0 %v555, 12
      %v1032 = vpop.permute.xlu0 %1031
      %1033 = vrot.lane.b32.xlu0 %v556, 12
      %v1034 = vpop.permute.xlu0 %1033
      %1035 = vrot.lane.b32.xlu0 %v557, 12
      %v1036 = vpop.permute.xlu0 %1035
      %1037 = vrot.lane.b32.xlu0 %v558, 12
      %v1038 = vpop.permute.xlu0 %1037
      %1039 = vrot.lane.b32.xlu0 %v559, 12
      %v1040 = vpop.permute.xlu0 %1039
      %1041 = vrot.lane.b32.xlu0 %v560, 12
      %v1042 = vpop.permute.xlu0 %1041
      %1043 = vrot.lane.b32.xlu0 %v561, 12
      %v1044 = vpop.permute.xlu0 %1043
      %1045 = vrot.lane.b32.xlu0 %v562, 12
      %v1046 = vpop.permute.xlu0 %1045
      %1047 = vrot.lane.b32.xlu0 %v563, 12
      %v1048 = vpop.permute.xlu0 %1047
      %1049 = vrot.lane.b32.xlu0 %v564, 12
      %v1050 = vpop.permute.xlu0 %1049
      %1051 = vrot.lane.b32.xlu0 %v565, 12
      %v1052 = vpop.permute.xlu0 %1051
      %1053 = vrot.lane.b32.xlu0 %v566, 12
      %v1054 = vpop.permute.xlu0 %1053
      %1055 = vrot.lane.b32.xlu0 %v567, 12
      %v1056 = vpop.permute.xlu0 %1055
      %1057 = vrot.lane.b32.xlu0 %v568, 12
      %v1058 = vpop.permute.xlu0 %1057
      %1059 = vrot.lane.b32.xlu0 %v569, 12
      %v1060 = vpop.permute.xlu0 %1059
      %1061 = vrot.lane.b32.xlu0 %v570, 12
      %v1062 = vpop.permute.xlu0 %1061
      %1063 = vrot.lane.b32.xlu0 %v571, 12
      %v1064 = vpop.permute.xlu0 %1063
      %1065 = vrot.lane.b32.xlu0 %v572, 12
      %v1066 = vpop.permute.xlu0 %1065
      %1067 = vrot.lane.b32.xlu0 %v573, 12
      %v1068 = vpop.permute.xlu0 %1067
      %1069 = vrot.lane.b32.xlu0 %v574, 12
      %v1070 = vpop.permute.xlu0 %1069
      %1071 = vrot.lane.b32.xlu0 %v575, 12
      %v1072 = vpop.permute.xlu0 %1071
      %1073 = vrot.lane.b32.xlu0 %v576, 12
      %v1074 = vpop.permute.xlu0 %1073
      %1075 = vrot.lane.b32.xlu0 %v577, 12
      %v1076 = vpop.permute.xlu0 %1075
      %1077 = vrot.lane.b32.xlu0 %v578, 12
      %v1078 = vpop.permute.xlu0 %1077
      %1079 = vrot.lane.b32.xlu0 %v579, 12
      %v1080 = vpop.permute.xlu0 %1079
      %1081 = vrot.lane.b32.xlu0 %v580, 12
      %v1082 = vpop.permute.xlu0 %1081
      %1083 = vrot.lane.b32.xlu0 %v581, 12
      %v1084 = vpop.permute.xlu0 %1083
      %1085 = vrot.lane.b32.xlu0 %v582, 12
      %v1086 = vpop.permute.xlu0 %1085
      %1087 = vrot.lane.b32.xlu0 %v583, 12
      %v1088 = vpop.permute.xlu0 %1087
      %1089 = vrot.lane.b32.xlu0 %v584, 12
      %v1090 = vpop.permute.xlu0 %1089
      %1091 = vrot.lane.b32.xlu0 %v585, 12
      %v1092 = vpop.permute.xlu0 %1091
      %1093 = vrot.lane.b32.xlu0 %v586, 12
      %v1094 = vpop.permute.xlu0 %1093
      %1095 = vrot.lane.b32.xlu0 %v588, 12
      %v1096 = vpop.permute.xlu0 %1095
      %1097 = vrot.lane.b32.xlu0 %v589, 12
      %v1098 = vpop.permute.xlu0 %1097
      %1099 = vrot.lane.b32.xlu0 %v590, 12
      %v1100 = vpop.permute.xlu0 %1099
      %1173 = vrot.lane.b32.xlu0 %v591, 16
      %v1174 = vpop.permute.xlu0 %1173
      %1175 = vrot.lane.b32.xlu0 %v592, 16
      %v1176 = vpop.permute.xlu0 %1175
      %1177 = vrot.lane.b32.xlu0 %v593, 16
      %v1178 = vpop.permute.xlu0 %1177
      %1179 = vrot.lane.b32.xlu0 %v594, 16
      %v1180 = vpop.permute.xlu0 %1179
      %1181 = vrot.lane.b32.xlu0 %v595, 16
      %v1182 = vpop.permute.xlu0 %1181
      %1183 = vrot.lane.b32.xlu0 %v596, 16
      %v1184 = vpop.permute.xlu0 %1183
      %1185 = vrot.lane.b32.xlu0 %v597, 16
      %v1186 = vpop.permute.xlu0 %1185
      %1187 = vrot.lane.b32.xlu0 %v598, 16
      %v1188 = vpop.permute.xlu0 %1187
      %1189 = vrot.lane.b32.xlu0 %v599, 16
      %v1190 = vpop.permute.xlu0 %1189
      %1191 = vrot.lane.b32.xlu0 %v600, 16
      %v1192 = vpop.permute.xlu0 %1191
      %1193 = vrot.lane.b32.xlu0 %v601, 16
      %v1194 = vpop.permute.xlu0 %1193
      %1195 = vrot.lane.b32.xlu0 %v602, 16
      %v1196 = vpop.permute.xlu0 %1195
      %1197 = vrot.lane.b32.xlu0 %v603, 16
      %v1198 = vpop.permute.xlu0 %1197
      %1199 = vrot.lane.b32.xlu0 %v604, 16
      %v1200 = vpop.permute.xlu0 %1199
      %1201 = vrot.lane.b32.xlu0 %v605, 16
      %v1202 = vpop.permute.xlu0 %1201
      %1203 = vrot.lane.b32.xlu0 %v606, 16
      %v1204 = vpop.permute.xlu0 %1203
      %1205 = vrot.lane.b32.xlu0 %v607, 16
      %v1206 = vpop.permute.xlu0 %1205
      %1207 = vrot.lane.b32.xlu0 %v608, 16
      %v1208 = vpop.permute.xlu0 %1207
      %1209 = vrot.lane.b32.xlu0 %v609, 16
      %v1210 = vpop.permute.xlu0 %1209
      %1211 = vrot.lane.b32.xlu0 %v610, 16
      %v1212 = vpop.permute.xlu0 %1211
      %1213 = vrot.lane.b32.xlu0 %v611, 16
      %v1214 = vpop.permute.xlu0 %1213
      %1215 = vrot.lane.b32.xlu0 %v612, 16
      %v1216 = vpop.permute.xlu0 %1215
      %1217 = vrot.lane.b32.xlu0 %v613, 16
      %v1218 = vpop.permute.xlu0 %1217
      %1219 = vrot.lane.b32.xlu0 %v614, 16
      %v1220 = vpop.permute.xlu0 %1219
      %1221 = vrot.lane.b32.xlu0 %v615, 16
      %v1222 = vpop.permute.xlu0 %1221
      %1223 = vrot.lane.b32.xlu0 %v616, 16
      %v1224 = vpop.permute.xlu0 %1223
      %1225 = vrot.lane.b32.xlu0 %v617, 16
      %v1226 = vpop.permute.xlu0 %1225
      %1227 = vrot.lane.b32.xlu0 %v618, 16
      %v1228 = vpop.permute.xlu0 %1227
      %1229 = vrot.lane.b32.xlu0 %v619, 16
      %v1230 = vpop.permute.xlu0 %1229
      %1231 = vrot.lane.b32.xlu0 %v620, 16
      %v1232 = vpop.permute.xlu0 %1231
      %1233 = vrot.lane.b32.xlu0 %v621, 16
      %v1234 = vpop.permute.xlu0 %1233
      %1235 = vrot.lane.b32.xlu0 %v622, 16
      %v1236 = vpop.permute.xlu0 %1235
      %1237 = vrot.lane.b32.xlu0 %v623, 16
      %v1238 = vpop.permute.xlu0 %1237
      %1239 = vrot.lane.b32.xlu0 %v624, 16
      %v1240 = vpop.permute.xlu0 %1239
      %1241 = vrot.lane.b32.xlu0 %v625, 16
      %v1242 = vpop.permute.xlu0 %1241
      %1243 = vrot.lane.b32.xlu0 %v626, 16
      %v1244 = vpop.permute.xlu0 %1243
      %1317 = vrot.lane.b32.xlu0 %v627, 20
      %v1318 = vpop.permute.xlu0 %1317
      %1319 = vrot.lane.b32.xlu0 %v628, 20
      %v1320 = vpop.permute.xlu0 %1319
      %1321 = vrot.lane.b32.xlu0 %v629, 20
      %v1322 = vpop.permute.xlu0 %1321
      %1323 = vrot.lane.b32.xlu0 %v630, 20
      %v1324 = vpop.permute.xlu0 %1323
      %1325 = vrot.lane.b32.xlu0 %v631, 20
      %v1326 = vpop.permute.xlu0 %1325
      %1327 = vrot.lane.b32.xlu0 %v632, 20
      %v1328 = vpop.permute.xlu0 %1327
      %1329 = vrot.lane.b32.xlu0 %v633, 20
      %v1330 = vpop.permute.xlu0 %1329
      %1331 = vrot.lane.b32.xlu0 %v634, 20
      %v1332 = vpop.permute.xlu0 %1331
      %1333 = vrot.lane.b32.xlu0 %v635, 20
      %v1334 = vpop.permute.xlu0 %1333
      %1335 = vrot.lane.b32.xlu0 %v636, 20
      %v1336 = vpop.permute.xlu0 %1335
      %1337 = vrot.lane.b32.xlu0 %v637, 20
      %v1338 = vpop.permute.xlu0 %1337
      %1339 = vrot.lane.b32.xlu0 %v638, 20
      %v1340 = vpop.permute.xlu0 %1339
      %1341 = vrot.lane.b32.xlu0 %v639, 20
      %v1342 = vpop.permute.xlu0 %1341
      %1343 = vrot.lane.b32.xlu0 %v640, 20
      %v1344 = vpop.permute.xlu0 %1343
      %1345 = vrot.lane.b32.xlu0 %v641, 20
      %v1346 = vpop.permute.xlu0 %1345
      %1347 = vrot.lane.b32.xlu0 %v642, 20
      %v1348 = vpop.permute.xlu0 %1347
      %1349 = vrot.lane.b32.xlu0 %v643, 20
      %v1350 = vpop.permute.xlu0 %1349
      %1351 = vrot.lane.b32.xlu0 %v644, 20
      %v1352 = vpop.permute.xlu0 %1351
      %1353 = vrot.lane.b32.xlu0 %v645, 20
      %v1354 = vpop.permute.xlu0 %1353
      %1355 = vrot.lane.b32.xlu0 %v646, 20
      %v1356 = vpop.permute.xlu0 %1355
      %1357 = vrot.lane.b32.xlu0 %v647, 20
      %v1358 = vpop.permute.xlu0 %1357
      %1359 = vrot.lane.b32.xlu0 %v648, 20
      %v1360 = vpop.permute.xlu0 %1359
      %1361 = vrot.lane.b32.xlu0 %v649, 20
      %v1362 = vpop.permute.xlu0 %1361
      %1363 = vrot.lane.b32.xlu0 %v650, 20
      %v1364 = vpop.permute.xlu0 %1363
      %1365 = vrot.lane.b32.xlu0 %v651, 20
      %v1366 = vpop.permute.xlu0 %1365
      %1367 = vrot.lane.b32.xlu0 %v652, 20
      %v1368 = vpop.permute.xlu0 %1367
      %1369 = vrot.lane.b32.xlu0 %v653, 20
      %v1370 = vpop.permute.xlu0 %1369
      %1371 = vrot.lane.b32.xlu0 %v654, 20
      %v1372 = vpop.permute.xlu0 %1371
      %1373 = vrot.lane.b32.xlu0 %v655, 20
      %v1374 = vpop.permute.xlu0 %1373
      %1375 = vrot.lane.b32.xlu0 %v656, 20
      %v1376 = vpop.permute.xlu0 %1375
      %1377 = vrot.lane.b32.xlu0 %v657, 20
      %v1378 = vpop.permute.xlu0 %1377
      %1379 = vrot.lane.b32.xlu0 %v658, 20
      %v1380 = vpop.permute.xlu0 %1379
      %1381 = vrot.lane.b32.xlu0 %v659, 20
      %v1382 = vpop.permute.xlu0 %1381
      %1383 = vrot.lane.b32.xlu0 %v660, 20
      %v1384 = vpop.permute.xlu0 %1383
      %1385 = vrot.lane.b32.xlu0 %v661, 20
      %v1386 = vpop.permute.xlu0 %1385
      %1387 = vrot.lane.b32.xlu0 %v662, 20
      %v1388 = vpop.permute.xlu0 %1387
      %1428 = vrot.lane.b32.xlu0 %v629, 24
      %v1429 = vpop.permute.xlu0 %1428
      %1430 = vrot.lane.b32.xlu0 %v630, 24
      %v1431 = vpop.permute.xlu0 %1430
      %1432 = vrot.lane.b32.xlu0 %v631, 24
      %v1433 = vpop.permute.xlu0 %1432
      %1434 = vrot.lane.b32.xlu0 %v632, 24
      %v1435 = vpop.permute.xlu0 %1434
      %1436 = vrot.lane.b32.xlu0 %v633, 24
      %v1437 = vpop.permute.xlu0 %1436
      %1438 = vrot.lane.b32.xlu0 %v634, 24
      %v1439 = vpop.permute.xlu0 %1438
      %1440 = vrot.lane.b32.xlu0 %v635, 24
      %v1441 = vpop.permute.xlu0 %1440
      %1442 = vrot.lane.b32.xlu0 %v636, 24
      %v1443 = vpop.permute.xlu0 %1442
      %1444 = vrot.lane.b32.xlu0 %v637, 24
      %v1445 = vpop.permute.xlu0 %1444
      %1446 = vrot.lane.b32.xlu0 %v638, 24
      %v1447 = vpop.permute.xlu0 %1446
      %1448 = vrot.lane.b32.xlu0 %v639, 24
      %v1449 = vpop.permute.xlu0 %1448
      %1450 = vrot.lane.b32.xlu0 %v640, 24
      %v1451 = vpop.permute.xlu0 %1450
      %1452 = vrot.lane.b32.xlu0 %v641, 24
      %v1453 = vpop.permute.xlu0 %1452
      %1454 = vrot.lane.b32.xlu0 %v642, 24
      %v1455 = vpop.permute.xlu0 %1454
      %1456 = vrot.lane.b32.xlu0 %v643, 24
      %v1457 = vpop.permute.xlu0 %1456
      %1458 = vrot.lane.b32.xlu0 %v644, 24
      %v1459 = vpop.permute.xlu0 %1458
      %1460 = vrot.lane.b32.xlu0 %v645, 24
      %v1461 = vpop.permute.xlu0 %1460
      %1462 = vrot.lane.b32.xlu0 %v646, 24
      %v1463 = vpop.permute.xlu0 %1462
      %1464 = vrot.lane.b32.xlu0 %v647, 24
      %v1465 = vpop.permute.xlu0 %1464
      %1466 = vrot.lane.b32.xlu0 %v648, 24
      %v1467 = vpop.permute.xlu0 %1466
      %1468 = vrot.lane.b32.xlu0 %v649, 24
      %v1469 = vpop.permute.xlu0 %1468
      %1470 = vrot.lane.b32.xlu0 %v650, 24
      %v1471 = vpop.permute.xlu0 %1470
      %1472 = vrot.lane.b32.xlu0 %v651, 24
      %v1473 = vpop.permute.xlu0 %1472
      %1474 = vrot.lane.b32.xlu0 %v652, 24
      %v1475 = vpop.permute.xlu0 %1474
      %1476 = vrot.lane.b32.xlu0 %v653, 24
      %v1477 = vpop.permute.xlu0 %1476
      %1478 = vrot.lane.b32.xlu0 %v654, 24
      %v1479 = vpop.permute.xlu0 %1478
      %1480 = vrot.lane.b32.xlu0 %v655, 24
      %v1481 = vpop.permute.xlu0 %1480
      %1482 = vrot.lane.b32.xlu0 %v656, 24
      %v1483 = vpop.permute.xlu0 %1482
      %1484 = vrot.lane.b32.xlu0 %v657, 24
      %v1485 = vpop.permute.xlu0 %1484
      %1486 = vrot.lane.b32.xlu0 %v658, 24
      %v1487 = vpop.permute.xlu0 %1486
      %1488 = vrot.lane.b32.xlu0 %v659, 24
      %v1489 = vpop.permute.xlu0 %1488
      %1490 = vrot.lane.b32.xlu0 %v660, 24
      %v1491 = vpop.permute.xlu0 %1490
      %1492 = vrot.lane.b32.xlu0 %v661, 24
      %v1493 = vpop.permute.xlu0 %1492
      %1494 = vrot.lane.b32.xlu0 %v663, 24
      %v1495 = vpop.permute.xlu0 %1494
      %1496 = vrot.lane.b32.xlu0 %v664, 24
      %v1497 = vpop.permute.xlu0 %1496
      %1498 = vrot.lane.b32.xlu0 %v665, 24
      %v1499 = vpop.permute.xlu0 %1498
      %1572 = vrot.lane.b32.xlu0 %v666, 28
      %v1573 = vpop.permute.xlu0 %1572
      %1574 = vrot.lane.b32.xlu0 %v667, 28
      %v1575 = vpop.permute.xlu0 %1574
      %1576 = vrot.lane.b32.xlu0 %v668, 28
      %v1577 = vpop.permute.xlu0 %1576
      %1578 = vrot.lane.b32.xlu0 %v669, 28
      %v1579 = vpop.permute.xlu0 %1578
      %1580 = vrot.lane.b32.xlu0 %v670, 28
      %v1581 = vpop.permute.xlu0 %1580
      %1582 = vrot.lane.b32.xlu0 %v671, 28
      %v1583 = vpop.permute.xlu0 %1582
      %1584 = vrot.lane.b32.xlu0 %v672, 28
      %v1585 = vpop.permute.xlu0 %1584
      %1586 = vrot.lane.b32.xlu0 %v673, 28
      %v1587 = vpop.permute.xlu0 %1586
      %1588 = vrot.lane.b32.xlu0 %v674, 28
      %v1589 = vpop.permute.xlu0 %1588
      %1590 = vrot.lane.b32.xlu0 %v675, 28
      %v1591 = vpop.permute.xlu0 %1590
      %1592 = vrot.lane.b32.xlu0 %v676, 28
      %v1593 = vpop.permute.xlu0 %1592
      %1594 = vrot.lane.b32.xlu0 %v677, 28
      %v1595 = vpop.permute.xlu0 %1594
      %1596 = vrot.lane.b32.xlu0 %v678, 28
      %v1597 = vpop.permute.xlu0 %1596
      %1598 = vrot.lane.b32.xlu0 %v679, 28
      %v1599 = vpop.permute.xlu0 %1598
      %1600 = vrot.lane.b32.xlu0 %v680, 28
      %v1601 = vpop.permute.xlu0 %1600
      %1602 = vrot.lane.b32.xlu0 %v681, 28
      %v1603 = vpop.permute.xlu0 %1602
      %1604 = vrot.lane.b32.xlu0 %v682, 28
      %v1605 = vpop.permute.xlu0 %1604
      %1606 = vrot.lane.b32.xlu0 %v683, 28
      %v1607 = vpop.permute.xlu0 %1606
      %1608 = vrot.lane.b32.xlu0 %v684, 28
      %v1609 = vpop.permute.xlu0 %1608
      %1610 = vrot.lane.b32.xlu0 %v685, 28
      %v1611 = vpop.permute.xlu0 %1610
      %1612 = vrot.lane.b32.xlu0 %v686, 28
      %v1613 = vpop.permute.xlu0 %1612
      %1614 = vrot.lane.b32.xlu0 %v687, 28
      %v1615 = vpop.permute.xlu0 %1614
      %1616 = vrot.lane.b32.xlu0 %v688, 28
      %v1617 = vpop.permute.xlu0 %1616
      %1618 = vrot.lane.b32.xlu0 %v689, 28
      %v1619 = vpop.permute.xlu0 %1618
      %1620 = vrot.lane.b32.xlu0 %v690, 28
      %v1621 = vpop.permute.xlu0 %1620
      %1622 = vrot.lane.b32.xlu0 %v691, 28
      %v1623 = vpop.permute.xlu0 %1622
      %1624 = vrot.lane.b32.xlu0 %v692, 28
      %v1625 = vpop.permute.xlu0 %1624
      %1626 = vrot.lane.b32.xlu0 %v693, 28
      %v1627 = vpop.permute.xlu0 %1626
      %1628 = vrot.lane.b32.xlu0 %v694, 28
      %v1629 = vpop.permute.xlu0 %1628
      %1630 = vrot.lane.b32.xlu0 %v695, 28
      %v1631 = vpop.permute.xlu0 %1630
      %1632 = vrot.lane.b32.xlu0 %v696, 28
      %v1633 = vpop.permute.xlu0 %1632
      %1634 = vrot.lane.b32.xlu0 %v697, 28
      %v1635 = vpop.permute.xlu0 %1634
      %1636 = vrot.lane.b32.xlu0 %v698, 28
      %v1637 = vpop.permute.xlu0 %1636
      %1638 = vrot.lane.b32.xlu0 %v699, 28
      %v1639 = vpop.permute.xlu0 %1638
      %1640 = vrot.lane.b32.xlu0 %v700, 28
      %v1641 = vpop.permute.xlu0 %1640
      %1642 = vrot.lane.b32.xlu0 %v701, 28
      %v1643 = vpop.permute.xlu0 %1642
      %1716 = vrot.lane.b32.xlu0 %v702, 32
      %v1717 = vpop.permute.xlu0 %1716
      %1718 = vrot.lane.b32.xlu0 %v703, 32
      %v1719 = vpop.permute.xlu0 %1718
      %1720 = vrot.lane.b32.xlu0 %v704, 32
      %v1721 = vpop.permute.xlu0 %1720
      %1722 = vrot.lane.b32.xlu0 %v705, 32
      %v1723 = vpop.permute.xlu0 %1722
      %1724 = vrot.lane.b32.xlu0 %v706, 32
      %v1725 = vpop.permute.xlu0 %1724
      %1726 = vrot.lane.b32.xlu0 %v707, 32
      %v1727 = vpop.permute.xlu0 %1726
      %1728 = vrot.lane.b32.xlu0 %v708, 32
      %v1729 = vpop.permute.xlu0 %1728
      %1730 = vrot.lane.b32.xlu0 %v709, 32
      %v1731 = vpop.permute.xlu0 %1730
      %1732 = vrot.lane.b32.xlu0 %v710, 32
      %v1733 = vpop.permute.xlu0 %1732
      %1734 = vrot.lane.b32.xlu0 %v711, 32
      %v1735 = vpop.permute.xlu0 %1734
      %1736 = vrot.lane.b32.xlu0 %v712, 32
      %v1737 = vpop.permute.xlu0 %1736
      %1738 = vrot.lane.b32.xlu0 %v713, 32
      %v1739 = vpop.permute.xlu0 %1738
      %1740 = vrot.lane.b32.xlu0 %v714, 32
      %v1741 = vpop.permute.xlu0 %1740
      %1742 = vrot.lane.b32.xlu0 %v715, 32
      %v1743 = vpop.permute.xlu0 %1742
      %1744 = vrot.lane.b32.xlu0 %v716, 32
      %v1745 = vpop.permute.xlu0 %1744
      %1746 = vrot.lane.b32.xlu0 %v717, 32
      %v1747 = vpop.permute.xlu0 %1746
      %1748 = vrot.lane.b32.xlu0 %v718, 32
      %v1749 = vpop.permute.xlu0 %1748
      %1750 = vrot.lane.b32.xlu0 %v719, 32
      %v1751 = vpop.permute.xlu0 %1750
      %1752 = vrot.lane.b32.xlu0 %v720, 32
      %v1753 = vpop.permute.xlu0 %1752
      %1754 = vrot.lane.b32.xlu0 %v721, 32
      %v1755 = vpop.permute.xlu0 %1754
      %1756 = vrot.lane.b32.xlu0 %v722, 32
      %v1757 = vpop.permute.xlu0 %1756
      %1758 = vrot.lane.b32.xlu0 %v723, 32
      %v1759 = vpop.permute.xlu0 %1758
      %1760 = vrot.lane.b32.xlu0 %v724, 32
      %v1761 = vpop.permute.xlu0 %1760
      %1762 = vrot.lane.b32.xlu0 %v725, 32
      %v1763 = vpop.permute.xlu0 %1762
      %1764 = vrot.lane.b32.xlu0 %v726, 32
      %v1765 = vpop.permute.xlu0 %1764
      %1766 = vrot.lane.b32.xlu0 %v727, 32
      %v1767 = vpop.permute.xlu0 %1766
      %1768 = vrot.lane.b32.xlu0 %v728, 32
      %v1769 = vpop.permute.xlu0 %1768
      %1770 = vrot.lane.b32.xlu0 %v729, 32
      %v1771 = vpop.permute.xlu0 %1770
      %1772 = vrot.lane.b32.xlu0 %v730, 32
      %v1773 = vpop.permute.xlu0 %1772
      %1774 = vrot.lane.b32.xlu0 %v731, 32
      %v1775 = vpop.permute.xlu0 %1774
      %1776 = vrot.lane.b32.xlu0 %v732, 32
      %v1777 = vpop.permute.xlu0 %1776
      %1778 = vrot.lane.b32.xlu0 %v733, 32
      %v1779 = vpop.permute.xlu0 %1778
      %1780 = vrot.lane.b32.xlu0 %v734, 32
      %v1781 = vpop.permute.xlu0 %1780
      %1782 = vrot.lane.b32.xlu0 %v735, 32
      %v1783 = vpop.permute.xlu0 %1782
      %1784 = vrot.lane.b32.xlu0 %v736, 32
      %v1785 = vpop.permute.xlu0 %1784
      %1786 = vrot.lane.b32.xlu0 %v737, 32
      %v1787 = vpop.permute.xlu0 %1786
      %vm1824 = vcmask 31744
      %v1825 = vsel %vm1824, %v480, %v775
      %v1826 = vsel %vm1824, %v481, %v777
      %v1827 = vsel %vm1824, %v482, %v779
      %v1828 = vsel %vm1824, %v483, %v781
      %v1829 = vsel %vm1824, %v484, %v783
      %v1830 = vsel %vm1824, %v485, %v785
      %v1831 = vsel %vm1824, %v486, %v787
      %v1832 = vsel %vm1824, %v487, %v789
      %v1833 = vsel %vm1824, %v488, %v791
      %v1834 = vsel %vm1824, %v489, %v793
      %v1835 = vsel %vm1824, %v490, %v795
      %v1836 = vsel %vm1824, %v491, %v797
      %v1837 = vsel %vm1824, %v492, %v799
      %v1838 = vsel %vm1824, %v493, %v801
      %v1839 = vsel %vm1824, %v494, %v803
      %v1840 = vsel %vm1824, %v495, %v805
      %v1841 = vsel %vm1824, %v496, %v807
      %v1842 = vsel %vm1824, %v497, %v809
      %v1843 = vsel %vm1824, %v498, %v811
      %v1844 = vsel %vm1824, %v499, %v813
      %v1845 = vsel %vm1824, %v500, %v815
      %v1846 = vsel %vm1824, %v501, %v817
      %v1847 = vsel %vm1824, %v502, %v819
      %v1848 = vsel %vm1824, %v503, %v821
      %v1849 = vsel %vm1824, %v504, %v823
      %v1850 = vsel %vm1824, %v505, %v825
      %v1851 = vsel %vm1824, %v506, %v827
      %v1852 = vsel %vm1824, %v507, %v829
      %v1853 = vsel %vm1824, %v508, %v831
      %v1854 = vsel %vm1824, %v509, %v833
      %v1855 = vsel %vm1824, %v510, %v835
      %v1856 = vsel %vm1824, %v511, %v837
      %v1857 = vsel %vm1824, %v512, %v839
      %v1858 = vsel %vm1824, %v513, %v841
      %v1859 = vsel %vm1824, %v514, %v843
      %v1860 = vsel %vm1824, %v515, %v845
      %vm1861 = vcmask 64512
      %v1862 = vsel %vm1861, %v1825, %v919
      %v1863 = vsel %vm1861, %v1826, %v921
      %v1864 = vsel %vm1861, %v1827, %v923
      %v1865 = vsel %vm1861, %v1828, %v925
      %v1866 = vsel %vm1861, %v1829, %v927
      %v1867 = vsel %vm1861, %v1830, %v929
      %v1868 = vsel %vm1861, %v1831, %v931
      %v1869 = vsel %vm1861, %v1832, %v933
      %v1870 = vsel %vm1861, %v1833, %v935
      %v1871 = vsel %vm1861, %v1834, %v937
      %v1872 = vsel %vm1861, %v1835, %v939
      %v1873 = vsel %vm1861, %v1836, %v941
      %v1874 = vsel %vm1861, %v1837, %v943
      %v1875 = vsel %vm1861, %v1838, %v945
      %v1876 = vsel %vm1861, %v1839, %v947
      %v1877 = vsel %vm1861, %v1840, %v949
      %v1878 = vsel %vm1861, %v1841, %v951
      %v1879 = vsel %vm1861, %v1842, %v953
      %v1880 = vsel %vm1861, %v1843, %v955
      %v1881 = vsel %vm1861, %v1844, %v957
      %v1882 = vsel %vm1861, %v1845, %v959
      %v1883 = vsel %vm1861, %v1846, %v961
      %v1884 = vsel %vm1861, %v1847, %v963
      %v1885 = vsel %vm1861, %v1848, %v965
      %v1886 = vsel %vm1861, %v1849, %v967
      %v1887 = vsel %vm1861, %v1850, %v969
      %v1888 = vsel %vm1861, %v1851, %v971
      %v1889 = vsel %vm1861, %v1852, %v973
      %v1890 = vsel %vm1861, %v1853, %v975
      %v1891 = vsel %vm1861, %v1854, %v977
      %v1892 = vsel %vm1861, %v1855, %v979
      %v1893 = vsel %vm1861, %v1856, %v981
      %v1894 = vsel %vm1861, %v1857, %v983
      %v1895 = vsel %vm1861, %v1858, %v985
      %v1896 = vsel %vm1861, %v1859, %v987
      %v1897 = vsel %vm1861, %v1860, %v989
      %vm1898 = vcmask 97280
      %v1899 = vsel %vm1898, %v1862, %v1030
      %v1900 = vsel %vm1898, %v1863, %v1032
      %v1901 = vsel %vm1898, %v1864, %v1034
      %v1902 = vsel %vm1898, %v1865, %v1036
      %v1903 = vsel %vm1898, %v1866, %v1038
      %v1904 = vsel %vm1898, %v1867, %v1040
      %v1905 = vsel %vm1898, %v1868, %v1042
      %v1906 = vsel %vm1898, %v1869, %v1044
      %v1907 = vsel %vm1898, %v1870, %v1046
      %v1908 = vsel %vm1898, %v1871, %v1048
      %v1909 = vsel %vm1898, %v1872, %v1050
      %v1910 = vsel %vm1898, %v1873, %v1052
      %v1911 = vsel %vm1898, %v1874, %v1054
      %v1912 = vsel %vm1898, %v1875, %v1056
      %v1913 = vsel %vm1898, %v1876, %v1058
      %v1914 = vsel %vm1898, %v1877, %v1060
      %v1915 = vsel %vm1898, %v1878, %v1062
      %v1916 = vsel %vm1898, %v1879, %v1064
      %v1917 = vsel %vm1898, %v1880, %v1066
      %v1918 = vsel %vm1898, %v1881, %v1068
      %v1919 = vsel %vm1898, %v1882, %v1070
      %v1920 = vsel %vm1898, %v1883, %v1072
      %v1921 = vsel %vm1898, %v1884, %v1074
      %v1922 = vsel %vm1898, %v1885, %v1076
      %v1923 = vsel %vm1898, %v1886, %v1078
      %v1924 = vsel %vm1898, %v1887, %v1080
      %v1925 = vsel %vm1898, %v1888, %v1082
      %v1926 = vsel %vm1898, %v1889, %v1084
      %v1927 = vsel %vm1898, %v1890, %v1086
      %v1928 = vsel %vm1898, %v1891, %v1088
      %v1929 = vsel %vm1898, %v1892, %v1090
      %v1930 = vsel %vm1898, %v1893, %v1092
      %v1931 = vsel %vm1898, %v1894, %v1094
      %v1932 = vsel %vm1898, %v1895, %v1096
      %v1933 = vsel %vm1898, %v1896, %v1098
      %v1934 = vsel %vm1898, %v1897, %v1100
      %vm1935 = vcmask 130048
      %v1936 = vsel %vm1935, %v1899, %v1174
      %v1937 = vsel %vm1935, %v1900, %v1176
      %v1938 = vsel %vm1935, %v1901, %v1178
      %v1939 = vsel %vm1935, %v1902, %v1180
      %v1940 = vsel %vm1935, %v1903, %v1182
      %v1941 = vsel %vm1935, %v1904, %v1184
      %v1942 = vsel %vm1935, %v1905, %v1186
      %v1943 = vsel %vm1935, %v1906, %v1188
      %v1944 = vsel %vm1935, %v1907, %v1190
      %v1945 = vsel %vm1935, %v1908, %v1192
      %v1946 = vsel %vm1935, %v1909, %v1194
      %v1947 = vsel %vm1935, %v1910, %v1196
      %v1948 = vsel %vm1935, %v1911, %v1198
      %v1949 = vsel %vm1935, %v1912, %v1200
      %v1950 = vsel %vm1935, %v1913, %v1202
      %v1951 = vsel %vm1935, %v1914, %v1204
      %v1952 = vsel %vm1935, %v1915, %v1206
      %v1953 = vsel %vm1935, %v1916, %v1208
      %v1954 = vsel %vm1935, %v1917, %v1210
      %v1955 = vsel %vm1935, %v1918, %v1212
      %v1956 = vsel %vm1935, %v1919, %v1214
      %v1957 = vsel %vm1935, %v1920, %v1216
      %v1958 = vsel %vm1935, %v1921, %v1218
      %v1959 = vsel %vm1935, %v1922, %v1220
      %v1960 = vsel %vm1935, %v1923, %v1222
      %v1961 = vsel %vm1935, %v1924, %v1224
      %v1962 = vsel %vm1935, %v1925, %v1226
      %v1963 = vsel %vm1935, %v1926, %v1228
      %v1964 = vsel %vm1935, %v1927, %v1230
      %v1965 = vsel %vm1935, %v1928, %v1232
      %v1966 = vsel %vm1935, %v1929, %v1234
      %v1967 = vsel %vm1935, %v1930, %v1236
      %v1968 = vsel %vm1935, %v1931, %v1238
      %v1969 = vsel %vm1935, %v1932, %v1240
      %v1970 = vsel %vm1935, %v1933, %v1242
      %v1971 = vsel %vm1935, %v1934, %v1244
      %vm1972 = vcmask 162816
      %v1973 = vsel %vm1972, %v1936, %v1318
      %v1974 = vsel %vm1972, %v1937, %v1320
      %v1975 = vsel %vm1972, %v1938, %v1322
      %v1976 = vsel %vm1972, %v1939, %v1324
      %v1977 = vsel %vm1972, %v1940, %v1326
      %v1978 = vsel %vm1972, %v1941, %v1328
      %v1979 = vsel %vm1972, %v1942, %v1330
      %v1980 = vsel %vm1972, %v1943, %v1332
      %v1981 = vsel %vm1972, %v1944, %v1334
      %v1982 = vsel %vm1972, %v1945, %v1336
      %v1983 = vsel %vm1972, %v1946, %v1338
      %v1984 = vsel %vm1972, %v1947, %v1340
      %v1985 = vsel %vm1972, %v1948, %v1342
      %v1986 = vsel %vm1972, %v1949, %v1344
      %v1987 = vsel %vm1972, %v1950, %v1346
      %v1988 = vsel %vm1972, %v1951, %v1348
      %v1989 = vsel %vm1972, %v1952, %v1350
      %v1990 = vsel %vm1972, %v1953, %v1352
      %v1991 = vsel %vm1972, %v1954, %v1354
      %v1992 = vsel %vm1972, %v1955, %v1356
      %v1993 = vsel %vm1972, %v1956, %v1358
      %v1994 = vsel %vm1972, %v1957, %v1360
      %v1995 = vsel %vm1972, %v1958, %v1362
      %v1996 = vsel %vm1972, %v1959, %v1364
      %v1997 = vsel %vm1972, %v1960, %v1366
      %v1998 = vsel %vm1972, %v1961, %v1368
      %v1999 = vsel %vm1972, %v1962, %v1370
      %v2000 = vsel %vm1972, %v1963, %v1372
      %v2001 = vsel %vm1972, %v1964, %v1374
      %v2002 = vsel %vm1972, %v1965, %v1376
      %v2003 = vsel %vm1972, %v1966, %v1378
      %v2004 = vsel %vm1972, %v1967, %v1380
      %v2005 = vsel %vm1972, %v1968, %v1382
      %v2006 = vsel %vm1972, %v1969, %v1384
      %v2007 = vsel %vm1972, %v1970, %v1386
      %v2008 = vsel %vm1972, %v1971, %v1388
      %vm2009 = vcmask 195584
      %v2010 = vsel %vm2009, %v1973, %v1429
      %v2011 = vsel %vm2009, %v1974, %v1431
      %v2012 = vsel %vm2009, %v1975, %v1433
      %v2013 = vsel %vm2009, %v1976, %v1435
      %v2014 = vsel %vm2009, %v1977, %v1437
      %v2015 = vsel %vm2009, %v1978, %v1439
      %v2016 = vsel %vm2009, %v1979, %v1441
      %v2017 = vsel %vm2009, %v1980, %v1443
      %v2018 = vsel %vm2009, %v1981, %v1445
      %v2019 = vsel %vm2009, %v1982, %v1447
      %v2020 = vsel %vm2009, %v1983, %v1449
      %v2021 = vsel %vm2009, %v1984, %v1451
      %v2022 = vsel %vm2009, %v1985, %v1453
      %v2023 = vsel %vm2009, %v1986, %v1455
      %v2024 = vsel %vm2009, %v1987, %v1457
      %v2025 = vsel %vm2009, %v1988, %v1459
      %v2026 = vsel %vm2009, %v1989, %v1461
      %v2027 = vsel %vm2009, %v1990, %v1463
      %v2028 = vsel %vm2009, %v1991, %v1465
      %v2029 = vsel %vm2009, %v1992, %v1467
      %v2030 = vsel %vm2009, %v1993, %v1469
      %v2031 = vsel %vm2009, %v1994, %v1471
      %v2032 = vsel %vm2009, %v1995, %v1473
      %v2033 = vsel %vm2009, %v1996, %v1475
      %v2034 = vsel %vm2009, %v1997, %v1477
      %v2035 = vsel %vm2009, %v1998, %v1479
      %v2036 = vsel %vm2009, %v1999, %v1481
      %v2037 = vsel %vm2009, %v2000, %v1483
      %v2038 = vsel %vm2009, %v2001, %v1485
      %v2039 = vsel %vm2009, %v2002, %v1487
      %v2040 = vsel %vm2009, %v2003, %v1489
      %v2041 = vsel %vm2009, %v2004, %v1491
      %v2042 = vsel %vm2009, %v2005, %v1493
      %v2043 = vsel %vm2009, %v2006, %v1495
      %v2044 = vsel %vm2009, %v2007, %v1497
      %v2045 = vsel %vm2009, %v2008, %v1499
      %vm2046 = vcmask 228352
      %v2047 = vsel %vm2046, %v2010, %v1573
      %v2048 = vsel %vm2046, %v2011, %v1575
      %v2049 = vsel %vm2046, %v2012, %v1577
      %v2050 = vsel %vm2046, %v2013, %v1579
      %v2051 = vsel %vm2046, %v2014, %v1581
      %v2052 = vsel %vm2046, %v2015, %v1583
      %v2053 = vsel %vm2046, %v2016, %v1585
      %v2054 = vsel %vm2046, %v2017, %v1587
      %v2055 = vsel %vm2046, %v2018, %v1589
      %v2056 = vsel %vm2046, %v2019, %v1591
      %v2057 = vsel %vm2046, %v2020, %v1593
      %v2058 = vsel %vm2046, %v2021, %v1595
      %v2059 = vsel %vm2046, %v2022, %v1597
      %v2060 = vsel %vm2046, %v2023, %v1599
      %v2061 = vsel %vm2046, %v2024, %v1601
      %v2062 = vsel %vm2046, %v2025, %v1603
      %v2063 = vsel %vm2046, %v2026, %v1605
      %v2064 = vsel %vm2046, %v2027, %v1607
      %v2065 = vsel %vm2046, %v2028, %v1609
      %v2066 = vsel %vm2046, %v2029, %v1611
      %v2067 = vsel %vm2046, %v2030, %v1613
      %v2068 = vsel %vm2046, %v2031, %v1615
      %v2069 = vsel %vm2046, %v2032, %v1617
      %v2070 = vsel %vm2046, %v2033, %v1619
      %v2071 = vsel %vm2046, %v2034, %v1621
      %v2072 = vsel %vm2046, %v2035, %v1623
      %v2073 = vsel %vm2046, %v2036, %v1625
      %v2074 = vsel %vm2046, %v2037, %v1627
      %v2075 = vsel %vm2046, %v2038, %v1629
      %v2076 = vsel %vm2046, %v2039, %v1631
      %v2077 = vsel %vm2046, %v2040, %v1633
      %v2078 = vsel %vm2046, %v2041, %v1635
      %v2079 = vsel %vm2046, %v2042, %v1637
      %v2080 = vsel %vm2046, %v2043, %v1639
      %v2081 = vsel %vm2046, %v2044, %v1641
      %v2082 = vsel %vm2046, %v2045, %v1643
      %vm2083 = vcmask 261120
      %v2084 = vsel %vm2083, %v2047, %v1717
      %v2085 = vsel %vm2083, %v2048, %v1719
      %v2086 = vsel %vm2083, %v2049, %v1721
      %v2087 = vsel %vm2083, %v2050, %v1723
      %v2088 = vsel %vm2083, %v2051, %v1725
      %v2089 = vsel %vm2083, %v2052, %v1727
      %v2090 = vsel %vm2083, %v2053, %v1729
      %v2091 = vsel %vm2083, %v2054, %v1731
      %v2092 = vsel %vm2083, %v2055, %v1733
      %v2093 = vsel %vm2083, %v2056, %v1735
      %v2094 = vsel %vm2083, %v2057, %v1737
      %v2095 = vsel %vm2083, %v2058, %v1739
      %v2096 = vsel %vm2083, %v2059, %v1741
      %v2097 = vsel %vm2083, %v2060, %v1743
      %v2098 = vsel %vm2083, %v2061, %v1745
      %v2099 = vsel %vm2083, %v2062, %v1747
      %v2100 = vsel %vm2083, %v2063, %v1749
      %v2101 = vsel %vm2083, %v2064, %v1751
      %v2102 = vsel %vm2083, %v2065, %v1753
      %v2103 = vsel %vm2083, %v2066, %v1755
      %v2104 = vsel %vm2083, %v2067, %v1757
      %v2105 = vsel %vm2083, %v2068, %v1759
      %v2106 = vsel %vm2083, %v2069, %v1761
      %v2107 = vsel %vm2083, %v2070, %v1763
      %v2108 = vsel %vm2083, %v2071, %v1765
      %v2109 = vsel %vm2083, %v2072, %v1767
      %v2110 = vsel %vm2083, %v2073, %v1769
      %v2111 = vsel %vm2083, %v2074, %v1771
      %v2112 = vsel %vm2083, %v2075, %v1773
      %v2113 = vsel %vm2083, %v2076, %v1775
      %v2114 = vsel %vm2083, %v2077, %v1777
      %v2115 = vsel %vm2083, %v2078, %v1779
      %v2116 = vsel %vm2083, %v2079, %v1781
      %v2117 = vsel %vm2083, %v2080, %v1783
      %v2118 = vsel %vm2083, %v2081, %v1785
      %v2119 = vsel %vm2083, %v2082, %v1787
      %v2120 = vpack.c.bf16 %v2085, %v2084
      %v2121 = vpack.c.bf16 %v2087, %v2086
      %v2122 = vpack.c.bf16 %v2089, %v2088
      %v2123 = vpack.c.bf16 %v2091, %v2090
      %v2124 = vpack.c.bf16 %v2093, %v2092
      %v2125 = vpack.c.bf16 %v2095, %v2094
      %v2126 = vpack.c.bf16 %v2097, %v2096
      %v2127 = vpack.c.bf16 %v2099, %v2098
      %v2128 = vpack.c.bf16 %v2101, %v2100
      %v2129 = vpack.c.bf16 %v2103, %v2102
      %v2130 = vpack.c.bf16 %v2105, %v2104
      %v2131 = vpack.c.bf16 %v2107, %v2106
      %v2132 = vpack.c.bf16 %v2109, %v2108
      %v2133 = vpack.c.bf16 %v2111, %v2110
      %v2134 = vpack.c.bf16 %v2113, %v2112
      %v2135 = vpack.c.bf16 %v2115, %v2114
      %v2136 = vpack.c.bf16 %v2117, %v2116
      %v2137 = vpack.c.bf16 %v2119, %v2118
      %v2138 = vld [vmem:[%s3] sm:$0xf]
      %v2139 = vld [vmem:[%s3 + $0x4] sm:$0xf]
      %v2140 = vld [vmem:[%s3 + $0x8] sm:$0xf]
      %v2141 = vld [vmem:[%s3 + $0xc] sm:$0xf]
      %v2142 = vld [vmem:[%s3 + $0x10] sm:$0x3]
      %v2143 = vld [vmem:[%s4] sm:$0x1]
      %v2145 = vlaneseq
      %v2146 = vshrl.u32 %v2145, 7
      %v2147 = vsub.s32 0, %v2146
      %v2148 = vrot.slane %v2143, %v2147
      %v2155 = vunpack.c.l.b16 %v2138
      %v2156 = vunpack.c.l.b16 %v2139
      %v2157 = vunpack.c.l.b16 %v2140
      %v2158 = vunpack.c.l.b16 %v2141
      %v2159 = vunpack.c.l.b16 %v2142
      %v2160 = vpack.c.b16 %v2156, %v2155
      %v2161 = vpack.c.b16 %v2158, %v2157
      %v2162 = vpack.c.b16 %v2159, %v2159
      %vm2165 = vcmask 293888
      %v2167 = vsel %vm2165, %v2120, 0
      %v2170 = vsel %vm2165, %v2121, 0
      %v2173 = vsel %vm2165, %v2122, 0
      %v2176 = vsel %vm2165, %v2123, 0
      %v2179 = vsel %vm2165, %v2124, 0
      %v2182 = vsel %vm2165, %v2125, 0
      %v2185 = vsel %vm2165, %v2126, 0
      %v2188 = vsel %vm2165, %v2127, 0
      %v2191 = vsel %vm2165, %v2128, 0
      %v2194 = vsel %vm2165, %v2129, 0
      %v2197 = vsel %vm2165, %v2130, 0
      %v2200 = vsel %vm2165, %v2131, 0
      %v2203 = vsel %vm2165, %v2132, 0
      %v2206 = vsel %vm2165, %v2133, 0
      %v2209 = vsel %vm2165, %v2134, 0
      %v2212 = vsel %vm2165, %v2135, 0
      %v2215 = vsel %vm2165, %v2136, 0
      %v2218 = vsel %vm2165, %v2137, 0
      %vm2220 = vcmask 1041408
      %v2222 = vsel %vm2220, %v2162, 0
      %2224 = vmatprep.subr.bf16.mxu0 0
      %2225 = vmatpush1.bf16.msra.mxu0 0
      %2226 = vmatprep.subr.bf16.mxu0 0
      %2227 = vmatpush1.bf16.msra.mxu0 0
      %2228 = vmatprep.subr.bf16.mxu0 0
      %2229 = vmatpush1.bf16.msra.mxu0 0
      %2230 = vmatprep.subr.bf16.mxu0 0
      %2231 = vmatpush1.bf16.msra.mxu0 0
      %2232 = vmatprep.subr.bf16.mxu0 0
      %2233 = vmatpush1.bf16.msra.mxu0 0
      %2234 = vmatprep.subr.bf16.mxu0 0
      %2235 = vmatpush1.bf16.msra.mxu0 %v2222
      %2236 = vmatprep.subr.bf16.mxu0 0
      %2237 = vmatpush1.bf16.msra.mxu0 %v2161
      %2238 = vmatprep.subr.bf16.mxu0 0
      %2239 = vmatpush1.bf16.msra.mxu0 %v2160
      %2240 = vmatprep.subr.bf16.mxu0 0
      %2241 = vmatpush2.bf16.msra.mxu0 0
      %2242 = vmatprep.subr.bf16.mxu0 0
      %2243 = vmatpush2.bf16.msra.mxu0 0
      %2244 = vmatprep.subr.bf16.mxu0 0
      %2245 = vmatpush2.bf16.msra.mxu0 0
      %2246 = vmatprep.subr.bf16.mxu0 0
      %2247 = vmatpush2.bf16.msra.mxu0 0
      %2248 = vmatprep.subr.bf16.mxu0 0
      %2249 = vmatpush2.bf16.msra.mxu0 0
      %2250 = vmatprep.subr.bf16.mxu0 0
      %2251 = vmatpush2.bf16.msra.mxu0 0
      %2252 = vmatprep.subr.bf16.mxu0 0
      %2253 = vmatpush2.bf16.msra.mxu0 0
      %2254 = vmatprep.subr.bf16.mxu0 0
      %2255 = vmatpush2.bf16.msra.mxu0 0
      %2256 = vmatprep.mubr.bf16.mxu0 0
      %2257 = vmatmul.mubr.bf16.gmra.mxu0 %v2167
      %v2258 = vpop.f32.mrf.mxu0
      %v2259 = vadd.f32 %v2148, %v2258
      %v2260 = vpop.f32.mrf.mxu0
      %v2261 = vpop.f32.mrf.mxu0
      %v2262 = vadd.f32 %v2148, %v2261
      %v2263 = vpop.f32.mrf.mxu0
      %2264 = vmatprep.mubr.bf16.mxu0 0
      %2265 = vmatmul.mubr.bf16.gmra.mxu0 %v2170
      %v2266 = vpop.f32.mrf.mxu0
      %v2267 = vadd.f32 %v2148, %v2266
      %v2268 = vpop.f32.mrf.mxu0
      %v2269 = vpop.f32.mrf.mxu0
      %v2270 = vadd.f32 %v2148, %v2269
      %v2271 = vpop.f32.mrf.mxu0
      %2272 = vmatprep.mubr.bf16.mxu0 0
      %2273 = vmatmul.mubr.bf16.gmra.mxu0 %v2173
      %v2274 = vpop.f32.mrf.mxu0
      %v2275 = vadd.f32 %v2148, %v2274
      %v2276 = vpop.f32.mrf.mxu0
      %v2277 = vpop.f32.mrf.mxu0
      %v2278 = vadd.f32 %v2148, %v2277
      %v2279 = vpop.f32.mrf.mxu0
      %2280 = vmatprep.mubr.bf16.mxu0 0
      %2281 = vmatmul.mubr.bf16.gmra.mxu0 %v2176
      %v2282 = vpop.f32.mrf.mxu0
      %v2283 = vadd.f32 %v2148, %v2282
      %v2284 = vpop.f32.mrf.mxu0
      %v2285 = vpop.f32.mrf.mxu0
      %v2286 = vadd.f32 %v2148, %v2285
      %v2287 = vpop.f32.mrf.mxu0
      %2288 = vmatprep.mubr.bf16.mxu0 0
      %2289 = vmatmul.mubr.bf16.gmra.mxu0 %v2179
      %v2290 = vpop.f32.mrf.mxu0
      %v2291 = vadd.f32 %v2148, %v2290
      %v2292 = vpop.f32.mrf.mxu0
      %v2293 = vpop.f32.mrf.mxu0
      %v2294 = vadd.f32 %v2148, %v2293
      %v2295 = vpop.f32.mrf.mxu0
      %2296 = vmatprep.mubr.bf16.mxu0 0
      %2297 = vmatmul.mubr.bf16.gmra.mxu0 %v2182
      %v2298 = vpop.f32.mrf.mxu0
      %v2299 = vadd.f32 %v2148, %v2298
      %v2300 = vpop.f32.mrf.mxu0
      %v2301 = vpop.f32.mrf.mxu0
      %v2302 = vadd.f32 %v2148, %v2301
      %v2303 = vpop.f32.mrf.mxu0
      %2304 = vmatprep.mubr.bf16.mxu0 0
      %2305 = vmatmul.mubr.bf16.gmra.mxu0 %v2185
      %v2306 = vpop.f32.mrf.mxu0
      %v2307 = vadd.f32 %v2148, %v2306
      %v2308 = vpop.f32.mrf.mxu0
      %v2309 = vpop.f32.mrf.mxu0
      %v2310 = vadd.f32 %v2148, %v2309
      %v2311 = vpop.f32.mrf.mxu0
      %2312 = vmatprep.mubr.bf16.mxu0 0
      %2313 = vmatmul.mubr.bf16.gmra.mxu0 %v2188
      %v2314 = vpop.f32.mrf.mxu0
      %v2315 = vadd.f32 %v2148, %v2314
      %v2316 = vpop.f32.mrf.mxu0
      %v2317 = vpop.f32.mrf.mxu0
      %v2318 = vadd.f32 %v2148, %v2317
      %v2319 = vpop.f32.mrf.mxu0
      %2320 = vmatprep.mubr.bf16.mxu0 0
      %2321 = vmatmul.mubr.bf16.gmra.mxu0 %v2191
      %v2322 = vpop.f32.mrf.mxu0
      %v2323 = vadd.f32 %v2148, %v2322
      %v2324 = vpop.f32.mrf.mxu0
      %v2325 = vpop.f32.mrf.mxu0
      %v2326 = vadd.f32 %v2148, %v2325
      %v2327 = vpop.f32.mrf.mxu0
      %2328 = vmatprep.mubr.bf16.mxu0 0
      %2329 = vmatmul.mubr.bf16.gmra.mxu0 %v2194
      %v2330 = vpop.f32.mrf.mxu0
      %v2331 = vadd.f32 %v2148, %v2330
      %v2332 = vpop.f32.mrf.mxu0
      %v2333 = vpop.f32.mrf.mxu0
      %v2334 = vadd.f32 %v2148, %v2333
      %v2335 = vpop.f32.mrf.mxu0
      %2336 = vmatprep.mubr.bf16.mxu0 0
      %2337 = vmatmul.mubr.bf16.gmra.mxu0 %v2197
      %v2338 = vpop.f32.mrf.mxu0
      %v2339 = vadd.f32 %v2148, %v2338
      %v2340 = vpop.f32.mrf.mxu0
      %v2341 = vpop.f32.mrf.mxu0
      %v2342 = vadd.f32 %v2148, %v2341
      %v2343 = vpop.f32.mrf.mxu0
      %2344 = vmatprep.mubr.bf16.mxu0 0
      %2345 = vmatmul.mubr.bf16.gmra.mxu0 %v2200
      %v2346 = vpop.f32.mrf.mxu0
      %v2347 = vadd.f32 %v2148, %v2346
      %v2348 = vpop.f32.mrf.mxu0
      %v2349 = vpop.f32.mrf.mxu0
      %v2350 = vadd.f32 %v2148, %v2349
      %v2351 = vpop.f32.mrf.mxu0
      %2352 = vmatprep.mubr.bf16.mxu0 0
      %2353 = vmatmul.mubr.bf16.gmra.mxu0 %v2203
      %v2354 = vpop.f32.mrf.mxu0
      %v2355 = vadd.f32 %v2148, %v2354
      %v2356 = vpop.f32.mrf.mxu0
      %v2357 = vpop.f32.mrf.mxu0
      %v2358 = vadd.f32 %v2148, %v2357
      %v2359 = vpop.f32.mrf.mxu0
      %2360 = vmatprep.mubr.bf16.mxu0 0
      %2361 = vmatmul.mubr.bf16.gmra.mxu0 %v2206
      %v2362 = vpop.f32.mrf.mxu0
      %v2363 = vadd.f32 %v2148, %v2362
      %v2364 = vpop.f32.mrf.mxu0
      %v2365 = vpop.f32.mrf.mxu0
      %v2366 = vadd.f32 %v2148, %v2365
      %v2367 = vpop.f32.mrf.mxu0
      %2368 = vmatprep.mubr.bf16.mxu0 0
      %2369 = vmatmul.mubr.bf16.gmra.mxu0 %v2209
      %v2370 = vpop.f32.mrf.mxu0
      %v2371 = vadd.f32 %v2148, %v2370
      %v2372 = vpop.f32.mrf.mxu0
      %v2373 = vpop.f32.mrf.mxu0
      %v2374 = vadd.f32 %v2148, %v2373
      %v2375 = vpop.f32.mrf.mxu0
      %2376 = vmatprep.mubr.bf16.mxu0 0
      %2377 = vmatmul.mubr.bf16.gmra.mxu0 %v2212
      %v2378 = vpop.f32.mrf.mxu0
      %v2379 = vadd.f32 %v2148, %v2378
      %v2380 = vpop.f32.mrf.mxu0
      %v2381 = vpop.f32.mrf.mxu0
      %v2382 = vadd.f32 %v2148, %v2381
      %v2383 = vpop.f32.mrf.mxu0
      %2384 = vmatprep.mubr.bf16.mxu0 0
      %2385 = vmatmul.mubr.bf16.gmra.mxu0 %v2215
      %v2386 = vpop.f32.mrf.mxu0
      %v2387 = vadd.f32 %v2148, %v2386
      %v2388 = vpop.f32.mrf.mxu0
      %v2389 = vpop.f32.mrf.mxu0
      %v2390 = vadd.f32 %v2148, %v2389
      %v2391 = vpop.f32.mrf.mxu0
      %2392 = vmatprep.mubr.bf16.mxu0 0
      %2393 = vmatmul.mubr.bf16.gmra.mxu0 %v2218
      %v2394 = vpop.f32.mrf.mxu0
      %v2395 = vadd.f32 %v2148, %v2394
      %v2396 = vpop.f32.mrf.mxu0
      %v2397 = vpop.f32.mrf.mxu0
      %v2398 = vadd.f32 %v2148, %v2397
      %v2399 = vpop.f32.mrf.mxu0
      %2400 = vdwg.mxu0
      %vm2401 = vcmp.ge.f32.partialorder %v2259, 0.0
      %vm2402 = vcmp.ge.f32.partialorder %v2262, 0.0
      %vm2403 = vcmp.ge.f32.partialorder %v2267, 0.0
      %vm2404 = vcmp.ge.f32.partialorder %v2270, 0.0
      %vm2405 = vcmp.ge.f32.partialorder %v2275, 0.0
      %vm2406 = vcmp.ge.f32.partialorder %v2278, 0.0
      %vm2407 = vcmp.ge.f32.partialorder %v2283, 0.0
      %vm2408 = vcmp.ge.f32.partialorder %v2286, 0.0
      %vm2409 = vcmp.ge.f32.partialorder %v2291, 0.0
      %vm2410 = vcmp.ge.f32.partialorder %v2294, 0.0
      %vm2411 = vcmp.ge.f32.partialorder %v2299, 0.0
      %vm2412 = vcmp.ge.f32.partialorder %v2302, 0.0
      %vm2413 = vcmp.ge.f32.partialorder %v2307, 0.0
      %vm2414 = vcmp.ge.f32.partialorder %v2310, 0.0
      %vm2415 = vcmp.ge.f32.partialorder %v2315, 0.0
      %vm2416 = vcmp.ge.f32.partialorder %v2318, 0.0
      %vm2417 = vcmp.ge.f32.partialorder %v2323, 0.0
      %vm2418 = vcmp.ge.f32.partialorder %v2326, 0.0
      %vm2419 = vcmp.ge.f32.partialorder %v2331, 0.0
      %vm2420 = vcmp.ge.f32.partialorder %v2334, 0.0
      %vm2421 = vcmp.ge.f32.partialorder %v2339, 0.0
      %vm2422 = vcmp.ge.f32.partialorder %v2342, 0.0
      %vm2423 = vcmp.ge.f32.partialorder %v2347, 0.0
      %vm2424 = vcmp.ge.f32.partialorder %v2350, 0.0
      %vm2425 = vcmp.ge.f32.partialorder %v2355, 0.0
      %vm2426 = vcmp.ge.f32.partialorder %v2358, 0.0
      %vm2427 = vcmp.ge.f32.partialorder %v2363, 0.0
      %vm2428 = vcmp.ge.f32.partialorder %v2366, 0.0
      %vm2429 = vcmp.ge.f32.partialorder %v2371, 0.0
      %vm2430 = vcmp.ge.f32.partialorder %v2374, 0.0
      %vm2431 = vcmp.ge.f32.partialorder %v2379, 0.0
      %vm2432 = vcmp.ge.f32.partialorder %v2382, 0.0
      %vm2433 = vcmp.ge.f32.partialorder %v2387, 0.0
      %vm2434 = vcmp.ge.f32.partialorder %v2390, 0.0
      %vm2435 = vcmp.ge.f32.partialorder %v2395, 0.0
      %vm2436 = vcmp.ge.f32.partialorder %v2398, 0.0
      %v2437 = vmul.f32 %v2259, 0.1
      %v2438 = vmul.f32 %v2262, 0.1
      %v2439 = vmul.f32 %v2267, 0.1
      %v2440 = vmul.f32 %v2270, 0.1
      %v2441 = vmul.f32 %v2275, 0.1
      %v2442 = vmul.f32 %v2278, 0.1
      %v2443 = vmul.f32 %v2283, 0.1
      %v2444 = vmul.f32 %v2286, 0.1
      %v2445 = vmul.f32 %v2291, 0.1
      %v2446 = vmul.f32 %v2294, 0.1
      %v2447 = vmul.f32 %v2299, 0.1
      %v2448 = vmul.f32 %v2302, 0.1
      %v2449 = vmul.f32 %v2307, 0.1
      %v2450 = vmul.f32 %v2310, 0.1
      %v2451 = vmul.f32 %v2315, 0.1
      %v2452 = vmul.f32 %v2318, 0.1
      %v2453 = vmul.f32 %v2323, 0.1
      %v2454 = vmul.f32 %v2326, 0.1
      %v2455 = vmul.f32 %v2331, 0.1
      %v2456 = vmul.f32 %v2334, 0.1
      %v2457 = vmul.f32 %v2339, 0.1
      %v2458 = vmul.f32 %v2342, 0.1
      %v2459 = vmul.f32 %v2347, 0.1
      %v2460 = vmul.f32 %v2350, 0.1
      %v2461 = vmul.f32 %v2355, 0.1
      %v2462 = vmul.f32 %v2358, 0.1
      %v2463 = vmul.f32 %v2363, 0.1
      %v2464 = vmul.f32 %v2366, 0.1
      %v2465 = vmul.f32 %v2371, 0.1
      %v2466 = vmul.f32 %v2374, 0.1
      %v2467 = vmul.f32 %v2379, 0.1
      %v2468 = vmul.f32 %v2382, 0.1
      %v2469 = vmul.f32 %v2387, 0.1
      %v2470 = vmul.f32 %v2390, 0.1
      %v2471 = vmul.f32 %v2395, 0.1
      %v2472 = vmul.f32 %v2398, 0.1
      %v2473 = vsel %vm2401, %v2259, %v2437
      %v2474 = vsel %vm2402, %v2262, %v2438
      %v2475 = vsel %vm2403, %v2267, %v2439
      %v2476 = vsel %vm2404, %v2270, %v2440
      %v2477 = vsel %vm2405, %v2275, %v2441
      %v2478 = vsel %vm2406, %v2278, %v2442
      %v2479 = vsel %vm2407, %v2283, %v2443
      %v2480 = vsel %vm2408, %v2286, %v2444
      %v2481 = vsel %vm2409, %v2291, %v2445
      %v2482 = vsel %vm2410, %v2294, %v2446
      %v2483 = vsel %vm2411, %v2299, %v2447
      %v2484 = vsel %vm2412, %v2302, %v2448
      %v2485 = vsel %vm2413, %v2307, %v2449
      %v2486 = vsel %vm2414, %v2310, %v2450
      %v2487 = vsel %vm2415, %v2315, %v2451
      %v2488 = vsel %vm2416, %v2318, %v2452
      %v2489 = vsel %vm2417, %v2323, %v2453
      %v2490 = vsel %vm2418, %v2326, %v2454
      %v2491 = vsel %vm2419, %v2331, %v2455
      %v2492 = vsel %vm2420, %v2334, %v2456
      %v2493 = vsel %vm2421, %v2339, %v2457
      %v2494 = vsel %vm2422, %v2342, %v2458
      %v2495 = vsel %vm2423, %v2347, %v2459
      %v2496 = vsel %vm2424, %v2350, %v2460
      %v2497 = vsel %vm2425, %v2355, %v2461
      %v2498 = vsel %vm2426, %v2358, %v2462
      %v2499 = vsel %vm2427, %v2363, %v2463
      %v2500 = vsel %vm2428, %v2366, %v2464
      %v2501 = vsel %vm2429, %v2371, %v2465
      %v2502 = vsel %vm2430, %v2374, %v2466
      %v2503 = vsel %vm2431, %v2379, %v2467
      %v2504 = vsel %vm2432, %v2382, %v2468
      %v2505 = vsel %vm2433, %v2387, %v2469
      %v2506 = vsel %vm2434, %v2390, %v2470
      %v2507 = vsel %vm2435, %v2395, %v2471
      %v2508 = vsel %vm2436, %v2398, %v2472
      %v2509 = vld [vmem:[%s1] sm:$0xff]
      %v2510 = vld [vmem:[%s1 + $0x8] sm:$0xff]
      %v2511 = vld [vmem:[%s1 + $0x10] sm:$0xff]
      %v2512 = vld [vmem:[%s1 + $0x18] sm:$0xff]
      %v2513 = vld [vmem:[%s1 + $0x20] sm:$0xff]
      %v2514 = vld [vmem:[%s1 + $0x28] sm:$0xff]
      %v2515 = vld [vmem:[%s1 + $0x30] sm:$0xff]
      %v2516 = vld [vmem:[%s1 + $0x38] sm:$0xff]
      %v2517 = vld [vmem:[%s1 + $0x40] sm:$0xff]
      %v2518 = vld [vmem:[%s1 + $0x48] sm:$0xff]
      %v2519 = vld [vmem:[%s1 + $0x50] sm:$0xff]
      %v2520 = vld [vmem:[%s1 + $0x58] sm:$0xff]
      %v2521 = vld [vmem:[%s1 + $0x60] sm:$0xff]
      %v2522 = vld [vmem:[%s1 + $0x68] sm:$0xff]
      %v2523 = vld [vmem:[%s1 + $0x70] sm:$0xff]
      %v2524 = vld [vmem:[%s1 + $0x78] sm:$0xff]
      %v2525 = vld [vmem:[%s1 + $0x80] sm:$0xff]
      %v2526 = vld [vmem:[%s1 + $0x88] sm:$0xff]
      %v2527 = vld [vmem:[%s1 + $0x90] sm:$0xff]
      %v2528 = vld [vmem:[%s1 + $0x98] sm:$0xff]
      %v2529 = vld [vmem:[%s1 + $0xa0] sm:$0xff]
      %v2530 = vld [vmem:[%s1 + $0xa8] sm:$0xff]
      %v2531 = vld [vmem:[%s1 + $0xb0] sm:$0xff]
      %v2532 = vld [vmem:[%s1 + $0xb8] sm:$0xff]
      %v2533 = vld [vmem:[%s1 + $0xc0] sm:$0xff]
      %v2534 = vld [vmem:[%s1 + $0xc8] sm:$0xff]
      %v2535 = vld [vmem:[%s1 + $0xd0] sm:$0xff]
      %v2536 = vld [vmem:[%s1 + $0xd8] sm:$0xff]
      %v2537 = vld [vmem:[%s1 + $0xe0] sm:$0xff]
      %v2538 = vld [vmem:[%s1 + $0xe8] sm:$0xff]
      %v2539 = vld [vmem:[%s1 + $0xf0] sm:$0xff]
      %v2540 = vld [vmem:[%s1 + $0xf8] sm:$0xff]
      %v2541 = vld [vmem:[%s1 + $0x100] sm:$0xff]
      %v2542 = vld [vmem:[%s1 + $0x108] sm:$0xff]
      %v2543 = vld [vmem:[%s1 + $0x110] sm:$0xff]
      %v2544 = vld [vmem:[%s1 + $0x118] sm:$0x3f]
      %2546 = vset.pattern.permute.xlu0 0
      %2547 = vperm.xlu0 %2546, %v2509
      %v2548 = vpop.permute.xlu0 %2547
      %2551 = vset.pattern.permute.xlu0 0
      %2552 = vperm.xlu0 %2551, %v2510
      %v2553 = vpop.permute.xlu0 %2552
      %2556 = vset.pattern.permute.xlu0 0
      %2557 = vperm.xlu0 %2556, %v2511
      %v2558 = vpop.permute.xlu0 %2557
      %2561 = vset.pattern.permute.xlu0 0
      %2562 = vperm.xlu0 %2561, %v2512
      %v2563 = vpop.permute.xlu0 %2562
      %2566 = vset.pattern.permute.xlu0 0
      %2567 = vperm.xlu0 %2566, %v2513
      %v2568 = vpop.permute.xlu0 %2567
      %2571 = vset.pattern.permute.xlu0 0
      %2572 = vperm.xlu0 %2571, %v2514
      %v2573 = vpop.permute.xlu0 %2572
      %2576 = vset.pattern.permute.xlu0 0
      %2577 = vperm.xlu0 %2576, %v2515
      %v2578 = vpop.permute.xlu0 %2577
      %2581 = vset.pattern.permute.xlu0 0
      %2582 = vperm.xlu0 %2581, %v2516
      %v2583 = vpop.permute.xlu0 %2582
      %2586 = vset.pattern.permute.xlu0 0
      %2587 = vperm.xlu0 %2586, %v2517
      %v2588 = vpop.permute.xlu0 %2587
      %2591 = vset.pattern.permute.xlu0 0
      %2592 = vperm.xlu0 %2591, %v2518
      %v2593 = vpop.permute.xlu0 %2592
      %2596 = vset.pattern.permute.xlu0 0
      %2597 = vperm.xlu0 %2596, %v2519
      %v2598 = vpop.permute.xlu0 %2597
      %2601 = vset.pattern.permute.xlu0 0
      %2602 = vperm.xlu0 %2601, %v2520
      %v2603 = vpop.permute.xlu0 %2602
      %2606 = vset.pattern.permute.xlu0 0
      %2607 = vperm.xlu0 %2606, %v2521
      %v2608 = vpop.permute.xlu0 %2607
      %2611 = vset.pattern.permute.xlu0 0
      %2612 = vperm.xlu0 %2611, %v2522
      %v2613 = vpop.permute.xlu0 %2612
      %2616 = vset.pattern.permute.xlu0 0
      %2617 = vperm.xlu0 %2616, %v2523
      %v2618 = vpop.permute.xlu0 %2617
      %2621 = vset.pattern.permute.xlu0 0
      %2622 = vperm.xlu0 %2621, %v2524
      %v2623 = vpop.permute.xlu0 %2622
      %2626 = vset.pattern.permute.xlu0 0
      %2627 = vperm.xlu0 %2626, %v2525
      %v2628 = vpop.permute.xlu0 %2627
      %2631 = vset.pattern.permute.xlu0 0
      %2632 = vperm.xlu0 %2631, %v2526
      %v2633 = vpop.permute.xlu0 %2632
      %2636 = vset.pattern.permute.xlu0 0
      %2637 = vperm.xlu0 %2636, %v2527
      %v2638 = vpop.permute.xlu0 %2637
      %2641 = vset.pattern.permute.xlu0 0
      %2642 = vperm.xlu0 %2641, %v2528
      %v2643 = vpop.permute.xlu0 %2642
      %2646 = vset.pattern.permute.xlu0 0
      %2647 = vperm.xlu0 %2646, %v2529
      %v2648 = vpop.permute.xlu0 %2647
      %2651 = vset.pattern.permute.xlu0 0
      %2652 = vperm.xlu0 %2651, %v2530
      %v2653 = vpop.permute.xlu0 %2652
      %2656 = vset.pattern.permute.xlu0 0
      %2657 = vperm.xlu0 %2656, %v2531
      %v2658 = vpop.permute.xlu0 %2657
      %2661 = vset.pattern.permute.xlu0 0
      %2662 = vperm.xlu0 %2661, %v2532
      %v2663 = vpop.permute.xlu0 %2662
      %2666 = vset.pattern.permute.xlu0 0
      %2667 = vperm.xlu0 %2666, %v2533
      %v2668 = vpop.permute.xlu0 %2667
      %2671 = vset.pattern.permute.xlu0 0
      %2672 = vperm.xlu0 %2671, %v2534
      %v2673 = vpop.permute.xlu0 %2672
      %2676 = vset.pattern.permute.xlu0 0
      %2677 = vperm.xlu0 %2676, %v2535
      %v2678 = vpop.permute.xlu0 %2677
      %2681 = vset.pattern.permute.xlu0 0
      %2682 = vperm.xlu0 %2681, %v2536
      %v2683 = vpop.permute.xlu0 %2682
      %2686 = vset.pattern.permute.xlu0 0
      %2687 = vperm.xlu0 %2686, %v2537
      %v2688 = vpop.permute.xlu0 %2687
      %2691 = vset.pattern.permute.xlu0 0
      %2692 = vperm.xlu0 %2691, %v2538
      %v2693 = vpop.permute.xlu0 %2692
      %2696 = vset.pattern.permute.xlu0 0
      %2697 = vperm.xlu0 %2696, %v2539
      %v2698 = vpop.permute.xlu0 %2697
      %2701 = vset.pattern.permute.xlu0 0
      %2702 = vperm.xlu0 %2701, %v2540
      %v2703 = vpop.permute.xlu0 %2702
      %2706 = vset.pattern.permute.xlu0 0
      %2707 = vperm.xlu0 %2706, %v2541
      %v2708 = vpop.permute.xlu0 %2707
      %2711 = vset.pattern.permute.xlu0 0
      %2712 = vperm.xlu0 %2711, %v2542
      %v2713 = vpop.permute.xlu0 %2712
      %2716 = vset.pattern.permute.xlu0 0
      %2717 = vperm.xlu0 %2716, %v2543
      %v2718 = vpop.permute.xlu0 %2717
      %2721 = vset.pattern.permute.xlu0 0
      %2722 = vperm.xlu0 %2721, %v2544
      %v2723 = vpop.permute.xlu0 %2722
      %v2725 = vmul.f32 %v2473, %v2548
      %v2726 = vmul.f32 %v2474, %v2553
      %v2727 = vmul.f32 %v2475, %v2558
      %v2728 = vmul.f32 %v2476, %v2563
      %v2729 = vmul.f32 %v2477, %v2568
      %v2730 = vmul.f32 %v2478, %v2573
      %v2731 = vmul.f32 %v2479, %v2578
      %v2732 = vmul.f32 %v2480, %v2583
      %v2733 = vmul.f32 %v2481, %v2588
      %v2734 = vmul.f32 %v2482, %v2593
      %v2735 = vmul.f32 %v2483, %v2598
      %v2736 = vmul.f32 %v2484, %v2603
      %v2737 = vmul.f32 %v2485, %v2608
      %v2738 = vmul.f32 %v2486, %v2613
      %v2739 = vmul.f32 %v2487, %v2618
      %v2740 = vmul.f32 %v2488, %v2623
      %v2741 = vmul.f32 %v2489, %v2628
      %v2742 = vmul.f32 %v2490, %v2633
      %v2743 = vmul.f32 %v2491, %v2638
      %v2744 = vmul.f32 %v2492, %v2643
      %v2745 = vmul.f32 %v2493, %v2648
      %v2746 = vmul.f32 %v2494, %v2653
      %v2747 = vmul.f32 %v2495, %v2658
      %v2748 = vmul.f32 %v2496, %v2663
      %v2749 = vmul.f32 %v2497, %v2668
      %v2750 = vmul.f32 %v2498, %v2673
      %v2751 = vmul.f32 %v2499, %v2678
      %v2752 = vmul.f32 %v2500, %v2683
      %v2753 = vmul.f32 %v2501, %v2688
      %v2754 = vmul.f32 %v2502, %v2693
      %v2755 = vmul.f32 %v2503, %v2698
      %v2756 = vmul.f32 %v2504, %v2703
      %v2757 = vmul.f32 %v2505, %v2708
      %v2758 = vmul.f32 %v2506, %v2713
      %v2759 = vmul.f32 %v2507, %v2718
      %v2760 = vmul.f32 %v2508, %v2723
      %2761 = vst.msk [vmem:[#allocation2] sm:$0xff] %vm1861, 0.0
      %2762 = vst.msk [vmem:[#allocation2 + $0x8] sm:$0xff] %vm1861, 0.0
      %2763 = vst.msk [vmem:[#allocation2 + $0x10] sm:$0xff] %vm1861, 0.0
      %2764 = vst.msk [vmem:[#allocation2 + $0x136] sm:$0xff] %vm1861, 0.0
      %2765 = vst.msk [vmem:[#allocation2 + $0x13e] sm:$0xff] %vm1861, 0.0
      %vm2766 = vcmask 59392
      %2767 = vst.msk [vmem:[#allocation2 + $0x146] sm:$0x7] %vm2766, 0.0
      %2768 = vst.msk [vmem:[#allocation2 + $0x18] sm:$0xff] %vm1861, %v2725
      %2769 = vst.msk [vmem:[#allocation2 + $0x20] sm:$0xff] %vm1861, %v2726
      %2770 = vst.msk [vmem:[#allocation2 + $0x28] sm:$0xff] %vm1861, %v2727
      %2771 = vst.msk [vmem:[#allocation2 + $0x30] sm:$0xff] %vm1861, %v2728
      %2772 = vst.msk [vmem:[#allocation2 + $0x38] sm:$0xff] %vm1861, %v2729
      %2773 = vst.msk [vmem:[#allocation2 + $0x40] sm:$0xff] %vm1861, %v2730
      %2774 = vst.msk [vmem:[#allocation2 + $0x48] sm:$0xff] %vm1861, %v2731
      %2775 = vst.msk [vmem:[#allocation2 + $0x50] sm:$0xff] %vm1861, %v2732
      %2776 = vst.msk [vmem:[#allocation2 + $0x58] sm:$0xff] %vm1861, %v2733
      %2777 = vst.msk [vmem:[#allocation2 + $0x60] sm:$0xff] %vm1861, %v2734
      %2778 = vst.msk [vmem:[#allocation2 + $0x68] sm:$0xff] %vm1861, %v2735
      %2779 = vst.msk [vmem:[#allocation2 + $0x70] sm:$0xff] %vm1861, %v2736
      %2780 = vst.msk [vmem:[#allocation2 + $0x78] sm:$0xff] %vm1861, %v2737
      %2781 = vst.msk [vmem:[#allocation2 + $0x80] sm:$0xff] %vm1861, %v2738
      %2782 = vst.msk [vmem:[#allocation2 + $0x88] sm:$0xff] %vm1861, %v2739
      %2783 = vst.msk [vmem:[#allocation2 + $0x90] sm:$0xff] %vm1861, %v2740
      %2784 = vst.msk [vmem:[#allocation2 + $0x98] sm:$0xff] %vm1861, %v2741
      %2785 = vst.msk [vmem:[#allocation2 + $0xa0] sm:$0xff] %vm1861, %v2742
      %2786 = vst.msk [vmem:[#allocation2 + $0xa8] sm:$0xff] %vm1861, %v2743
      %2787 = vst.msk [vmem:[#allocation2 + $0xb0] sm:$0xff] %vm1861, %v2744
      %2788 = vst.msk [vmem:[#allocation2 + $0xb8] sm:$0xff] %vm1861, %v2745
      %2789 = vst.msk [vmem:[#allocation2 + $0xc0] sm:$0xff] %vm1861, %v2746
      %2790 = vst.msk [vmem:[#allocation2 + $0xc8] sm:$0xff] %vm1861, %v2747
      %2791 = vst.msk [vmem:[#allocation2 + $0xd0] sm:$0xff] %vm1861, %v2748
      %2792 = vst.msk [vmem:[#allocation2 + $0xd8] sm:$0xff] %vm1861, %v2749
      %2793 = vst.msk [vmem:[#allocation2 + $0xe0] sm:$0xff] %vm1861, %v2750
      %2794 = vst.msk [vmem:[#allocation2 + $0xe8] sm:$0xff] %vm1861, %v2751
      %2795 = vst.msk [vmem:[#allocation2 + $0xf0] sm:$0xff] %vm1861, %v2752
      %2796 = vst.msk [vmem:[#allocation2 + $0xf8] sm:$0xff] %vm1861, %v2753
      %2797 = vst.msk [vmem:[#allocation2 + $0x100] sm:$0xff] %vm1861, %v2754
      %2798 = vst.msk [vmem:[#allocation2 + $0x108] sm:$0xff] %vm1861, %v2755
      %2799 = vst.msk [vmem:[#allocation2 + $0x110] sm:$0xff] %vm1861, %v2756
      %2800 = vst.msk [vmem:[#allocation2 + $0x118] sm:$0xff] %vm1861, %v2757
      %2801 = vst.msk [vmem:[#allocation2 + $0x120] sm:$0xff] %vm1861, %v2758
      %2802 = vst.msk [vmem:[#allocation2 + $0x128] sm:$0xff] %vm1861, %v2759
      %vm2803 = vcmask 62464
      %2804 = vst.msk [vmem:[#allocation2 + $0x130] sm:$0x3f] %vm2803, %v2760
      %v2805 = vld [vmem:[#allocation2 + $0x5] sm:$0xff]
      %v2806 = vld [vmem:[#allocation2 + $0xd] sm:$0xff]
      %v2807 = vld [vmem:[#allocation2 + $0x15] sm:$0xff]
      %v2808 = vld [vmem:[#allocation2 + $0x1d] sm:$0xff]
      %v2809 = vld [vmem:[#allocation2 + $0x25] sm:$0xff]
      %v2810 = vld [vmem:[#allocation2 + $0x2d] sm:$0xff]
      %v2811 = vld [vmem:[#allocation2 + $0x35] sm:$0xff]
      %v2812 = vld [vmem:[#allocation2 + $0x3d] sm:$0xff]
      %v2813 = vld [vmem:[#allocation2 + $0x45] sm:$0xff]
      %v2814 = vld [vmem:[#allocation2 + $0x4d] sm:$0xff]
      %v2815 = vld [vmem:[#allocation2 + $0x55] sm:$0xff]
      %v2816 = vld [vmem:[#allocation2 + $0x5d] sm:$0xff]
      %v2817 = vld [vmem:[#allocation2 + $0x65] sm:$0xff]
      %v2818 = vld [vmem:[#allocation2 + $0x6d] sm:$0xff]
      %v2819 = vld [vmem:[#allocation2 + $0x75] sm:$0xff]
      %v2820 = vld [vmem:[#allocation2 + $0x7d] sm:$0xff]
      %v2821 = vld [vmem:[#allocation2 + $0x85] sm:$0xff]
      %v2822 = vld [vmem:[#allocation2 + $0x8d] sm:$0xff]
      %v2823 = vld [vmem:[#allocation2 + $0x95] sm:$0xff]
      %v2824 = vld [vmem:[#allocation2 + $0x9d] sm:$0xff]
      %v2825 = vld [vmem:[#allocation2 + $0xa5] sm:$0xff]
      %v2826 = vld [vmem:[#allocation2 + $0xad] sm:$0xff]
      %v2827 = vld [vmem:[#allocation2 + $0xb5] sm:$0xff]
      %v2828 = vld [vmem:[#allocation2 + $0xbd] sm:$0xff]
      %v2829 = vld [vmem:[#allocation2 + $0xc5] sm:$0xff]
      %v2830 = vld [vmem:[#allocation2 + $0xcd] sm:$0xff]
      %v2831 = vld [vmem:[#allocation2 + $0xd5] sm:$0xff]
      %v2832 = vld [vmem:[#allocation2 + $0xdd] sm:$0xff]
      %v2833 = vld [vmem:[#allocation2 + $0xe5] sm:$0xff]
      %v2834 = vld [vmem:[#allocation2 + $0xed] sm:$0xff]
      %v2835 = vld [vmem:[#allocation2 + $0xf5] sm:$0xff]
      %v2836 = vld [vmem:[#allocation2 + $0xfd] sm:$0xff]
      %v2837 = vld [vmem:[#allocation2 + $0x105] sm:$0xff]
      %v2838 = vld [vmem:[#allocation2 + $0x10d] sm:$0xff]
      %v2839 = vld [vmem:[#allocation2 + $0x115] sm:$0xff]
      %v2840 = vld [vmem:[#allocation2 + $0x11d] sm:$0x3f]
      %v2841 = vld [vmem:[#allocation2 + $0x6] sm:$0xff]
      %v2842 = vld [vmem:[#allocation2 + $0xe] sm:$0xff]
      %v2843 = vld [vmem:[#allocation2 + $0x16] sm:$0xff]
      %v2844 = vld [vmem:[#allocation2 + $0x1e] sm:$0xff]
      %v2845 = vld [vmem:[#allocation2 + $0x26] sm:$0xff]
      %v2846 = vld [vmem:[#allocation2 + $0x2e] sm:$0xff]
      %v2847 = vld [vmem:[#allocation2 + $0x36] sm:$0xff]
      %v2848 = vld [vmem:[#allocation2 + $0x3e] sm:$0xff]
      %v2849 = vld [vmem:[#allocation2 + $0x46] sm:$0xff]
      %v2850 = vld [vmem:[#allocation2 + $0x4e] sm:$0xff]
      %v2851 = vld [vmem:[#allocation2 + $0x56] sm:$0xff]
      %v2852 = vld [vmem:[#allocation2 + $0x5e] sm:$0xff]
      %v2853 = vld [vmem:[#allocation2 + $0x66] sm:$0xff]
      %v2854 = vld [vmem:[#allocation2 + $0x6e] sm:$0xff]
      %v2855 = vld [vmem:[#allocation2 + $0x76] sm:$0xff]
      %v2856 = vld [vmem:[#allocation2 + $0x7e] sm:$0xff]
      %v2857 = vld [vmem:[#allocation2 + $0x86] sm:$0xff]
      %v2858 = vld [vmem:[#allocation2 + $0x8e] sm:$0xff]
      %v2859 = vld [vmem:[#allocation2 + $0x96] sm:$0xff]
      %v2860 = vld [vmem:[#allocation2 + $0x9e] sm:$0xff]
      %v2861 = vld [vmem:[#allocation2 + $0xa6] sm:$0xff]
      %v2862 = vld [vmem:[#allocation2 + $0xae] sm:$0xff]
      %v2863 = vld [vmem:[#allocation2 + $0xb6] sm:$0xff]
      %v2864 = vld [vmem:[#allocation2 + $0xbe] sm:$0xff]
      %v2865 = vld [vmem:[#allocation2 + $0xc6] sm:$0xff]
      %v2866 = vld [vmem:[#allocation2 + $0xce] sm:$0xff]
      %v2867 = vld [vmem:[#allocation2 + $0xd6] sm:$0xff]
      %v2868 = vld [vmem:[#allocation2 + $0xde] sm:$0xff]
      %v2869 = vld [vmem:[#allocation2 + $0xe6] sm:$0xff]
      %v2870 = vld [vmem:[#allocation2 + $0xee] sm:$0xff]
      %v2871 = vld [vmem:[#allocation2 + $0xf6] sm:$0xff]
      %v2872 = vld [vmem:[#allocation2 + $0xfe] sm:$0xff]
      %v2873 = vld [vmem:[#allocation2 + $0x106] sm:$0xff]
      %v2874 = vld [vmem:[#allocation2 + $0x10e] sm:$0xff]
      %v2875 = vld [vmem:[#allocation2 + $0x116] sm:$0xff]
      %v2876 = vld [vmem:[#allocation2 + $0x11e] sm:$0x3f]
      %v2877 = vld [vmem:[#allocation2 + $0x7] sm:$0xff]
      %v2878 = vld [vmem:[#allocation2 + $0xf] sm:$0xff]
      %v2879 = vld [vmem:[#allocation2 + $0x17] sm:$0xff]
      %v2880 = vld [vmem:[#allocation2 + $0x1f] sm:$0xff]
      %v2881 = vld [vmem:[#allocation2 + $0x27] sm:$0xff]
      %v2882 = vld [vmem:[#allocation2 + $0x2f] sm:$0xff]
      %v2883 = vld [vmem:[#allocation2 + $0x37] sm:$0xff]
      %v2884 = vld [vmem:[#allocation2 + $0x3f] sm:$0xff]
      %v2885 = vld [vmem:[#allocation2 + $0x47] sm:$0xff]
      %v2886 = vld [vmem:[#allocation2 + $0x4f] sm:$0xff]
      %v2887 = vld [vmem:[#allocation2 + $0x57] sm:$0xff]
      %v2888 = vld [vmem:[#allocation2 + $0x5f] sm:$0xff]
      %v2889 = vld [vmem:[#allocation2 + $0x67] sm:$0xff]
      %v2890 = vld [vmem:[#allocation2 + $0x6f] sm:$0xff]
      %v2891 = vld [vmem:[#allocation2 + $0x77] sm:$0xff]
      %v2892 = vld [vmem:[#allocation2 + $0x7f] sm:$0xff]
      %v2893 = vld [vmem:[#allocation2 + $0x87] sm:$0xff]
      %v2894 = vld [vmem:[#allocation2 + $0x8f] sm:$0xff]
      %v2895 = vld [vmem:[#allocation2 + $0x97] sm:$0xff]
      %v2896 = vld [vmem:[#allocation2 + $0x9f] sm:$0xff]
      %v2897 = vld [vmem:[#allocation2 + $0xa7] sm:$0xff]
      %v2898 = vld [vmem:[#allocation2 + $0xaf] sm:$0xff]
      %v2899 = vld [vmem:[#allocation2 + $0xb7] sm:$0xff]
      %v2900 = vld [vmem:[#allocation2 + $0xbf] sm:$0xff]
      %v2901 = vld [vmem:[#allocation2 + $0xc7] sm:$0xff]
      %v2902 = vld [vmem:[#allocation2 + $0xcf] sm:$0xff]
      %v2903 = vld [vmem:[#allocation2 + $0xd7] sm:$0xff]
      %v2904 = vld [vmem:[#allocation2 + $0xdf] sm:$0xff]
      %v2905 = vld [vmem:[#allocation2 + $0xe7] sm:$0xff]
      %v2906 = vld [vmem:[#allocation2 + $0xef] sm:$0xff]
      %v2907 = vld [vmem:[#allocation2 + $0xf7] sm:$0xff]
      %v2908 = vld [vmem:[#allocation2 + $0xff] sm:$0xff]
      %v2909 = vld [vmem:[#allocation2 + $0x107] sm:$0xff]
      %v2910 = vld [vmem:[#allocation2 + $0x10f] sm:$0xff]
      %v2911 = vld [vmem:[#allocation2 + $0x117] sm:$0xff]
      %v2912 = vld [vmem:[#allocation2 + $0x11f] sm:$0x3f]
      %v2913 = vld [vmem:[#allocation2 + $0x11f] sm:$0xff]
      %v2914 = vld [vmem:[#allocation2 + $0x127] sm:$0xff]
      %v2915 = vld [vmem:[#allocation2 + $0x12f] sm:$0x3f]
      %v2916 = vld [vmem:[#allocation2 + $0x18] sm:$0xff]
      %v2917 = vld [vmem:[#allocation2 + $0x20] sm:$0xff]
      %v2918 = vld [vmem:[#allocation2 + $0x28] sm:$0xff]
      %v2919 = vld [vmem:[#allocation2 + $0x30] sm:$0xff]
      %v2920 = vld [vmem:[#allocation2 + $0x38] sm:$0xff]
      %v2921 = vld [vmem:[#allocation2 + $0x40] sm:$0xff]
      %v2922 = vld [vmem:[#allocation2 + $0x48] sm:$0xff]
      %v2923 = vld [vmem:[#allocation2 + $0x50] sm:$0xff]
      %v2924 = vld [vmem:[#allocation2 + $0x58] sm:$0xff]
      %v2925 = vld [vmem:[#allocation2 + $0x60] sm:$0xff]
      %v2926 = vld [vmem:[#allocation2 + $0x68] sm:$0xff]
      %v2927 = vld [vmem:[#allocation2 + $0x70] sm:$0xff]
      %v2928 = vld [vmem:[#allocation2 + $0x78] sm:$0xff]
      %v2929 = vld [vmem:[#allocation2 + $0x80] sm:$0xff]
      %v2930 = vld [vmem:[#allocation2 + $0x88] sm:$0xff]
      %v2931 = vld [vmem:[#allocation2 + $0x90] sm:$0xff]
      %v2932 = vld [vmem:[#allocation2 + $0x98] sm:$0xff]
      %v2933 = vld [vmem:[#allocation2 + $0xa0] sm:$0xff]
      %v2934 = vld [vmem:[#allocation2 + $0xa8] sm:$0xff]
      %v2935 = vld [vmem:[#allocation2 + $0xb0] sm:$0xff]
      %v2936 = vld [vmem:[#allocation2 + $0xb8] sm:$0xff]
      %v2937 = vld [vmem:[#allocation2 + $0xc0] sm:$0xff]
      %v2938 = vld [vmem:[#allocation2 + $0xc8] sm:$0xff]
      %v2939 = vld [vmem:[#allocation2 + $0xd0] sm:$0xff]
      %v2940 = vld [vmem:[#allocation2 + $0xd8] sm:$0xff]
      %v2941 = vld [vmem:[#allocation2 + $0xe0] sm:$0xff]
      %v2942 = vld [vmem:[#allocation2 + $0xe8] sm:$0xff]
      %v2943 = vld [vmem:[#allocation2 + $0xf0] sm:$0xff]
      %v2944 = vld [vmem:[#allocation2 + $0xf8] sm:$0xff]
      %v2945 = vld [vmem:[#allocation2 + $0x100] sm:$0xff]
      %v2946 = vld [vmem:[#allocation2 + $0x108] sm:$0xff]
      %v2947 = vld [vmem:[#allocation2 + $0x110] sm:$0xff]
      %v2948 = vld [vmem:[#allocation2 + $0x118] sm:$0xff]
      %v2949 = vld [vmem:[#allocation2 + $0x120] sm:$0xff]
      %v2950 = vld [vmem:[#allocation2 + $0x128] sm:$0xff]
      %v2951 = vld [vmem:[#allocation2 + $0x130] sm:$0x3f]
      %v2952 = vld [vmem:[#allocation2 + $0x19] sm:$0xff]
      %v2953 = vld [vmem:[#allocation2 + $0x21] sm:$0xff]
      %v2954 = vld [vmem:[#allocation2 + $0x29] sm:$0xff]
      %v2955 = vld [vmem:[#allocation2 + $0x31] sm:$0xff]
      %v2956 = vld [vmem:[#allocation2 + $0x39] sm:$0xff]
      %v2957 = vld [vmem:[#allocation2 + $0x41] sm:$0xff]
      %v2958 = vld [vmem:[#allocation2 + $0x49] sm:$0xff]
      %v2959 = vld [vmem:[#allocation2 + $0x51] sm:$0xff]
      %v2960 = vld [vmem:[#allocation2 + $0x59] sm:$0xff]
      %v2961 = vld [vmem:[#allocation2 + $0x61] sm:$0xff]
      %v2962 = vld [vmem:[#allocation2 + $0x69] sm:$0xff]
      %v2963 = vld [vmem:[#allocation2 + $0x71] sm:$0xff]
      %v2964 = vld [vmem:[#allocation2 + $0x79] sm:$0xff]
      %v2965 = vld [vmem:[#allocation2 + $0x81] sm:$0xff]
      %v2966 = vld [vmem:[#allocation2 + $0x89] sm:$0xff]
      %v2967 = vld [vmem:[#allocation2 + $0x91] sm:$0xff]
      %v2968 = vld [vmem:[#allocation2 + $0x99] sm:$0xff]
      %v2969 = vld [vmem:[#allocation2 + $0xa1] sm:$0xff]
      %v2970 = vld [vmem:[#allocation2 + $0xa9] sm:$0xff]
      %v2971 = vld [vmem:[#allocation2 + $0xb1] sm:$0xff]
      %v2972 = vld [vmem:[#allocation2 + $0xb9] sm:$0xff]
      %v2973 = vld [vmem:[#allocation2 + $0xc1] sm:$0xff]
      %v2974 = vld [vmem:[#allocation2 + $0xc9] sm:$0xff]
      %v2975 = vld [vmem:[#allocation2 + $0xd1] sm:$0xff]
      %v2976 = vld [vmem:[#allocation2 + $0xd9] sm:$0xff]
      %v2977 = vld [vmem:[#allocation2 + $0xe1] sm:$0xff]
      %v2978 = vld [vmem:[#allocation2 + $0xe9] sm:$0xff]
      %v2979 = vld [vmem:[#allocation2 + $0xf1] sm:$0xff]
      %v2980 = vld [vmem:[#allocation2 + $0xf9] sm:$0xff]
      %v2981 = vld [vmem:[#allocation2 + $0x101] sm:$0xff]
      %v2982 = vld [vmem:[#allocation2 + $0x109] sm:$0xff]
      %v2983 = vld [vmem:[#allocation2 + $0x111] sm:$0xff]
      %v2984 = vld [vmem:[#allocation2 + $0x119] sm:$0xff]
      %v2985 = vld [vmem:[#allocation2 + $0x121] sm:$0xff]
      %v2986 = vld [vmem:[#allocation2 + $0x129] sm:$0xff]
      %v2987 = vld [vmem:[#allocation2 + $0x131] sm:$0x3f]
      %v2988 = vld [vmem:[#allocation2 + $0x131] sm:$0xff]
      %v2989 = vld [vmem:[#allocation2 + $0x139] sm:$0xff]
      %v2990 = vld [vmem:[#allocation2 + $0x141] sm:$0x3f]
      %v2991 = vld [vmem:[#allocation2 + $0x2a] sm:$0xff]
      %v2992 = vld [vmem:[#allocation2 + $0x32] sm:$0xff]
      %v2993 = vld [vmem:[#allocation2 + $0x3a] sm:$0xff]
      %v2994 = vld [vmem:[#allocation2 + $0x42] sm:$0xff]
      %v2995 = vld [vmem:[#allocation2 + $0x4a] sm:$0xff]
      %v2996 = vld [vmem:[#allocation2 + $0x52] sm:$0xff]
      %v2997 = vld [vmem:[#allocation2 + $0x5a] sm:$0xff]
      %v2998 = vld [vmem:[#allocation2 + $0x62] sm:$0xff]
      %v2999 = vld [vmem:[#allocation2 + $0x6a] sm:$0xff]
      %v3000 = vld [vmem:[#allocation2 + $0x72] sm:$0xff]
      %v3001 = vld [vmem:[#allocation2 + $0x7a] sm:$0xff]
      %v3002 = vld [vmem:[#allocation2 + $0x82] sm:$0xff]
      %v3003 = vld [vmem:[#allocation2 + $0x8a] sm:$0xff]
      %v3004 = vld [vmem:[#allocation2 + $0x92] sm:$0xff]
      %v3005 = vld [vmem:[#allocation2 + $0x9a] sm:$0xff]
      %v3006 = vld [vmem:[#allocation2 + $0xa2] sm:$0xff]
      %v3007 = vld [vmem:[#allocation2 + $0xaa] sm:$0xff]
      %v3008 = vld [vmem:[#allocation2 + $0xb2] sm:$0xff]
      %v3009 = vld [vmem:[#allocation2 + $0xba] sm:$0xff]
      %v3010 = vld [vmem:[#allocation2 + $0xc2] sm:$0xff]
      %v3011 = vld [vmem:[#allocation2 + $0xca] sm:$0xff]
      %v3012 = vld [vmem:[#allocation2 + $0xd2] sm:$0xff]
      %v3013 = vld [vmem:[#allocation2 + $0xda] sm:$0xff]
      %v3014 = vld [vmem:[#allocation2 + $0xe2] sm:$0xff]
      %v3015 = vld [vmem:[#allocation2 + $0xea] sm:$0xff]
      %v3016 = vld [vmem:[#allocation2 + $0xf2] sm:$0xff]
      %v3017 = vld [vmem:[#allocation2 + $0xfa] sm:$0xff]
      %v3018 = vld [vmem:[#allocation2 + $0x102] sm:$0xff]
      %v3019 = vld [vmem:[#allocation2 + $0x10a] sm:$0xff]
      %v3020 = vld [vmem:[#allocation2 + $0x112] sm:$0xff]
      %v3021 = vld [vmem:[#allocation2 + $0x11a] sm:$0xff]
      %v3022 = vld [vmem:[#allocation2 + $0x122] sm:$0xff]
      %v3023 = vld [vmem:[#allocation2 + $0x12a] sm:$0xff]
      %v3024 = vld [vmem:[#allocation2 + $0x132] sm:$0xff]
      %v3025 = vld [vmem:[#allocation2 + $0x13a] sm:$0xff]
      %v3026 = vld [vmem:[#allocation2 + $0x142] sm:$0x3f]
      %v3027 = vld [vmem:[#allocation2 + $0x2b] sm:$0xff]
      %v3028 = vld [vmem:[#allocation2 + $0x33] sm:$0xff]
      %v3029 = vld [vmem:[#allocation2 + $0x3b] sm:$0xff]
      %v3030 = vld [vmem:[#allocation2 + $0x43] sm:$0xff]
      %v3031 = vld [vmem:[#allocation2 + $0x4b] sm:$0xff]
      %v3032 = vld [vmem:[#allocation2 + $0x53] sm:$0xff]
      %v3033 = vld [vmem:[#allocation2 + $0x5b] sm:$0xff]
      %v3034 = vld [vmem:[#allocation2 + $0x63] sm:$0xff]
      %v3035 = vld [vmem:[#allocation2 + $0x6b] sm:$0xff]
      %v3036 = vld [vmem:[#allocation2 + $0x73] sm:$0xff]
      %v3037 = vld [vmem:[#allocation2 + $0x7b] sm:$0xff]
      %v3038 = vld [vmem:[#allocation2 + $0x83] sm:$0xff]
      %v3039 = vld [vmem:[#allocation2 + $0x8b] sm:$0xff]
      %v3040 = vld [vmem:[#allocation2 + $0x93] sm:$0xff]
      %v3041 = vld [vmem:[#allocation2 + $0x9b] sm:$0xff]
      %v3042 = vld [vmem:[#allocation2 + $0xa3] sm:$0xff]
      %v3043 = vld [vmem:[#allocation2 + $0xab] sm:$0xff]
      %v3044 = vld [vmem:[#allocation2 + $0xb3] sm:$0xff]
      %v3045 = vld [vmem:[#allocation2 + $0xbb] sm:$0xff]
      %v3046 = vld [vmem:[#allocation2 + $0xc3] sm:$0xff]
      %v3047 = vld [vmem:[#allocation2 + $0xcb] sm:$0xff]
      %v3048 = vld [vmem:[#allocation2 + $0xd3] sm:$0xff]
      %v3049 = vld [vmem:[#allocation2 + $0xdb] sm:$0xff]
      %v3050 = vld [vmem:[#allocation2 + $0xe3] sm:$0xff]
      %v3051 = vld [vmem:[#allocation2 + $0xeb] sm:$0xff]
      %v3052 = vld [vmem:[#allocation2 + $0xf3] sm:$0xff]
      %v3053 = vld [vmem:[#allocation2 + $0xfb] sm:$0xff]
      %v3054 = vld [vmem:[#allocation2 + $0x103] sm:$0xff]
      %v3055 = vld [vmem:[#allocation2 + $0x10b] sm:$0xff]
      %v3056 = vld [vmem:[#allocation2 + $0x113] sm:$0xff]
      %v3057 = vld [vmem:[#allocation2 + $0x11b] sm:$0xff]
      %v3058 = vld [vmem:[#allocation2 + $0x123] sm:$0xff]
      %v3059 = vld [vmem:[#allocation2 + $0x12b] sm:$0xff]
      %v3060 = vld [vmem:[#allocation2 + $0x133] sm:$0xff]
      %v3061 = vld [vmem:[#allocation2 + $0x13b] sm:$0xff]
      %v3062 = vld [vmem:[#allocation2 + $0x143] sm:$0x3f]
      %3099 = vrot.lane.b32.xlu0 %v2841, 8
      %v3100 = vpop.permute.xlu0 %3099
      %3101 = vrot.lane.b32.xlu0 %v2842, 8
      %v3102 = vpop.permute.xlu0 %3101
      %3103 = vrot.lane.b32.xlu0 %v2843, 8
      %v3104 = vpop.permute.xlu0 %3103
      %3105 = vrot.lane.b32.xlu0 %v2844, 8
      %v3106 = vpop.permute.xlu0 %3105
      %3107 = vrot.lane.b32.xlu0 %v2845, 8
      %v3108 = vpop.permute.xlu0 %3107
      %3109 = vrot.lane.b32.xlu0 %v2846, 8
      %v3110 = vpop.permute.xlu0 %3109
      %3111 = vrot.lane.b32.xlu0 %v2847, 8
      %v3112 = vpop.permute.xlu0 %3111
      %3113 = vrot.lane.b32.xlu0 %v2848, 8
      %v3114 = vpop.permute.xlu0 %3113
      %3115 = vrot.lane.b32.xlu0 %v2849, 8
      %v3116 = vpop.permute.xlu0 %3115
      %3117 = vrot.lane.b32.xlu0 %v2850, 8
      %v3118 = vpop.permute.xlu0 %3117
      %3119 = vrot.lane.b32.xlu0 %v2851, 8
      %v3120 = vpop.permute.xlu0 %3119
      %3121 = vrot.lane.b32.xlu0 %v2852, 8
      %v3122 = vpop.permute.xlu0 %3121
      %3123 = vrot.lane.b32.xlu0 %v2853, 8
      %v3124 = vpop.permute.xlu0 %3123
      %3125 = vrot.lane.b32.xlu0 %v2854, 8
      %v3126 = vpop.permute.xlu0 %3125
      %3127 = vrot.lane.b32.xlu0 %v2855, 8
      %v3128 = vpop.permute.xlu0 %3127
      %3129 = vrot.lane.b32.xlu0 %v2856, 8
      %v3130 = vpop.permute.xlu0 %3129
      %3131 = vrot.lane.b32.xlu0 %v2857, 8
      %v3132 = vpop.permute.xlu0 %3131
      %3133 = vrot.lane.b32.xlu0 %v2858, 8
      %v3134 = vpop.permute.xlu0 %3133
      %3135 = vrot.lane.b32.xlu0 %v2859, 8
      %v3136 = vpop.permute.xlu0 %3135
      %3137 = vrot.lane.b32.xlu0 %v2860, 8
      %v3138 = vpop.permute.xlu0 %3137
      %3139 = vrot.lane.b32.xlu0 %v2861, 8
      %v3140 = vpop.permute.xlu0 %3139
      %3141 = vrot.lane.b32.xlu0 %v2862, 8
      %v3142 = vpop.permute.xlu0 %3141
      %3143 = vrot.lane.b32.xlu0 %v2863, 8
      %v3144 = vpop.permute.xlu0 %3143
      %3145 = vrot.lane.b32.xlu0 %v2864, 8
      %v3146 = vpop.permute.xlu0 %3145
      %3147 = vrot.lane.b32.xlu0 %v2865, 8
      %v3148 = vpop.permute.xlu0 %3147
      %3149 = vrot.lane.b32.xlu0 %v2866, 8
      %v3150 = vpop.permute.xlu0 %3149
      %3151 = vrot.lane.b32.xlu0 %v2867, 8
      %v3152 = vpop.permute.xlu0 %3151
      %3153 = vrot.lane.b32.xlu0 %v2868, 8
      %v3154 = vpop.permute.xlu0 %3153
      %3155 = vrot.lane.b32.xlu0 %v2869, 8
      %v3156 = vpop.permute.xlu0 %3155
      %3157 = vrot.lane.b32.xlu0 %v2870, 8
      %v3158 = vpop.permute.xlu0 %3157
      %3159 = vrot.lane.b32.xlu0 %v2871, 8
      %v3160 = vpop.permute.xlu0 %3159
      %3161 = vrot.lane.b32.xlu0 %v2872, 8
      %v3162 = vpop.permute.xlu0 %3161
      %3163 = vrot.lane.b32.xlu0 %v2873, 8
      %v3164 = vpop.permute.xlu0 %3163
      %3165 = vrot.lane.b32.xlu0 %v2874, 8
      %v3166 = vpop.permute.xlu0 %3165
      %3167 = vrot.lane.b32.xlu0 %v2875, 8
      %v3168 = vpop.permute.xlu0 %3167
      %3169 = vrot.lane.b32.xlu0 %v2876, 8
      %v3170 = vpop.permute.xlu0 %3169
      %3243 = vrot.lane.b32.xlu0 %v2877, 16
      %v3244 = vpop.permute.xlu0 %3243
      %3245 = vrot.lane.b32.xlu0 %v2878, 16
      %v3246 = vpop.permute.xlu0 %3245
      %3247 = vrot.lane.b32.xlu0 %v2879, 16
      %v3248 = vpop.permute.xlu0 %3247
      %3249 = vrot.lane.b32.xlu0 %v2880, 16
      %v3250 = vpop.permute.xlu0 %3249
      %3251 = vrot.lane.b32.xlu0 %v2881, 16
      %v3252 = vpop.permute.xlu0 %3251
      %3253 = vrot.lane.b32.xlu0 %v2882, 16
      %v3254 = vpop.permute.xlu0 %3253
      %3255 = vrot.lane.b32.xlu0 %v2883, 16
      %v3256 = vpop.permute.xlu0 %3255
      %3257 = vrot.lane.b32.xlu0 %v2884, 16
      %v3258 = vpop.permute.xlu0 %3257
      %3259 = vrot.lane.b32.xlu0 %v2885, 16
      %v3260 = vpop.permute.xlu0 %3259
      %3261 = vrot.lane.b32.xlu0 %v2886, 16
      %v3262 = vpop.permute.xlu0 %3261
      %3263 = vrot.lane.b32.xlu0 %v2887, 16
      %v3264 = vpop.permute.xlu0 %3263
      %3265 = vrot.lane.b32.xlu0 %v2888, 16
      %v3266 = vpop.permute.xlu0 %3265
      %3267 = vrot.lane.b32.xlu0 %v2889, 16
      %v3268 = vpop.permute.xlu0 %3267
      %3269 = vrot.lane.b32.xlu0 %v2890, 16
      %v3270 = vpop.permute.xlu0 %3269
      %3271 = vrot.lane.b32.xlu0 %v2891, 16
      %v3272 = vpop.permute.xlu0 %3271
      %3273 = vrot.lane.b32.xlu0 %v2892, 16
      %v3274 = vpop.permute.xlu0 %3273
      %3275 = vrot.lane.b32.xlu0 %v2893, 16
      %v3276 = vpop.permute.xlu0 %3275
      %3277 = vrot.lane.b32.xlu0 %v2894, 16
      %v3278 = vpop.permute.xlu0 %3277
      %3279 = vrot.lane.b32.xlu0 %v2895, 16
      %v3280 = vpop.permute.xlu0 %3279
      %3281 = vrot.lane.b32.xlu0 %v2896, 16
      %v3282 = vpop.permute.xlu0 %3281
      %3283 = vrot.lane.b32.xlu0 %v2897, 16
      %v3284 = vpop.permute.xlu0 %3283
      %3285 = vrot.lane.b32.xlu0 %v2898, 16
      %v3286 = vpop.permute.xlu0 %3285
      %3287 = vrot.lane.b32.xlu0 %v2899, 16
      %v3288 = vpop.permute.xlu0 %3287
      %3289 = vrot.lane.b32.xlu0 %v2900, 16
      %v3290 = vpop.permute.xlu0 %3289
      %3291 = vrot.lane.b32.xlu0 %v2901, 16
      %v3292 = vpop.permute.xlu0 %3291
      %3293 = vrot.lane.b32.xlu0 %v2902, 16
      %v3294 = vpop.permute.xlu0 %3293
      %3295 = vrot.lane.b32.xlu0 %v2903, 16
      %v3296 = vpop.permute.xlu0 %3295
      %3297 = vrot.lane.b32.xlu0 %v2904, 16
      %v3298 = vpop.permute.xlu0 %3297
      %3299 = vrot.lane.b32.xlu0 %v2905, 16
      %v3300 = vpop.permute.xlu0 %3299
      %3301 = vrot.lane.b32.xlu0 %v2906, 16
      %v3302 = vpop.permute.xlu0 %3301
      %3303 = vrot.lane.b32.xlu0 %v2907, 16
      %v3304 = vpop.permute.xlu0 %3303
      %3305 = vrot.lane.b32.xlu0 %v2908, 16
      %v3306 = vpop.permute.xlu0 %3305
      %3307 = vrot.lane.b32.xlu0 %v2909, 16
      %v3308 = vpop.permute.xlu0 %3307
      %3309 = vrot.lane.b32.xlu0 %v2910, 16
      %v3310 = vpop.permute.xlu0 %3309
      %3311 = vrot.lane.b32.xlu0 %v2911, 16
      %v3312 = vpop.permute.xlu0 %3311
      %3313 = vrot.lane.b32.xlu0 %v2912, 16
      %v3314 = vpop.permute.xlu0 %3313
      %3354 = vrot.lane.b32.xlu0 %v2879, 24
      %v3355 = vpop.permute.xlu0 %3354
      %3356 = vrot.lane.b32.xlu0 %v2880, 24
      %v3357 = vpop.permute.xlu0 %3356
      %3358 = vrot.lane.b32.xlu0 %v2881, 24
      %v3359 = vpop.permute.xlu0 %3358
      %3360 = vrot.lane.b32.xlu0 %v2882, 24
      %v3361 = vpop.permute.xlu0 %3360
      %3362 = vrot.lane.b32.xlu0 %v2883, 24
      %v3363 = vpop.permute.xlu0 %3362
      %3364 = vrot.lane.b32.xlu0 %v2884, 24
      %v3365 = vpop.permute.xlu0 %3364
      %3366 = vrot.lane.b32.xlu0 %v2885, 24
      %v3367 = vpop.permute.xlu0 %3366
      %3368 = vrot.lane.b32.xlu0 %v2886, 24
      %v3369 = vpop.permute.xlu0 %3368
      %3370 = vrot.lane.b32.xlu0 %v2887, 24
      %v3371 = vpop.permute.xlu0 %3370
      %3372 = vrot.lane.b32.xlu0 %v2888, 24
      %v3373 = vpop.permute.xlu0 %3372
      %3374 = vrot.lane.b32.xlu0 %v2889, 24
      %v3375 = vpop.permute.xlu0 %3374
      %3376 = vrot.lane.b32.xlu0 %v2890, 24
      %v3377 = vpop.permute.xlu0 %3376
      %3378 = vrot.lane.b32.xlu0 %v2891, 24
      %v3379 = vpop.permute.xlu0 %3378
      %3380 = vrot.lane.b32.xlu0 %v2892, 24
      %v3381 = vpop.permute.xlu0 %3380
      %3382 = vrot.lane.b32.xlu0 %v2893, 24
      %v3383 = vpop.permute.xlu0 %3382
      %3384 = vrot.lane.b32.xlu0 %v2894, 24
      %v3385 = vpop.permute.xlu0 %3384
      %3386 = vrot.lane.b32.xlu0 %v2895, 24
      %v3387 = vpop.permute.xlu0 %3386
      %3388 = vrot.lane.b32.xlu0 %v2896, 24
      %v3389 = vpop.permute.xlu0 %3388
      %3390 = vrot.lane.b32.xlu0 %v2897, 24
      %v3391 = vpop.permute.xlu0 %3390
      %3392 = vrot.lane.b32.xlu0 %v2898, 24
      %v3393 = vpop.permute.xlu0 %3392
      %3394 = vrot.lane.b32.xlu0 %v2899, 24
      %v3395 = vpop.permute.xlu0 %3394
      %3396 = vrot.lane.b32.xlu0 %v2900, 24
      %v3397 = vpop.permute.xlu0 %3396
      %3398 = vrot.lane.b32.xlu0 %v2901, 24
      %v3399 = vpop.permute.xlu0 %3398
      %3400 = vrot.lane.b32.xlu0 %v2902, 24
      %v3401 = vpop.permute.xlu0 %3400
      %3402 = vrot.lane.b32.xlu0 %v2903, 24
      %v3403 = vpop.permute.xlu0 %3402
      %3404 = vrot.lane.b32.xlu0 %v2904, 24
      %v3405 = vpop.permute.xlu0 %3404
      %3406 = vrot.lane.b32.xlu0 %v2905, 24
      %v3407 = vpop.permute.xlu0 %3406
      %3408 = vrot.lane.b32.xlu0 %v2906, 24
      %v3409 = vpop.permute.xlu0 %3408
      %3410 = vrot.lane.b32.xlu0 %v2907, 24
      %v3411 = vpop.permute.xlu0 %3410
      %3412 = vrot.lane.b32.xlu0 %v2908, 24
      %v3413 = vpop.permute.xlu0 %3412
      %3414 = vrot.lane.b32.xlu0 %v2909, 24
      %v3415 = vpop.permute.xlu0 %3414
      %3416 = vrot.lane.b32.xlu0 %v2910, 24
      %v3417 = vpop.permute.xlu0 %3416
      %3418 = vrot.lane.b32.xlu0 %v2911, 24
      %v3419 = vpop.permute.xlu0 %3418
      %3420 = vrot.lane.b32.xlu0 %v2913, 24
      %v3421 = vpop.permute.xlu0 %3420
      %3422 = vrot.lane.b32.xlu0 %v2914, 24
      %v3423 = vpop.permute.xlu0 %3422
      %3424 = vrot.lane.b32.xlu0 %v2915, 24
      %v3425 = vpop.permute.xlu0 %3424
      %3498 = vrot.lane.b32.xlu0 %v2916, 32
      %v3499 = vpop.permute.xlu0 %3498
      %3500 = vrot.lane.b32.xlu0 %v2917, 32
      %v3501 = vpop.permute.xlu0 %3500
      %3502 = vrot.lane.b32.xlu0 %v2918, 32
      %v3503 = vpop.permute.xlu0 %3502
      %3504 = vrot.lane.b32.xlu0 %v2919, 32
      %v3505 = vpop.permute.xlu0 %3504
      %3506 = vrot.lane.b32.xlu0 %v2920, 32
      %v3507 = vpop.permute.xlu0 %3506
      %3508 = vrot.lane.b32.xlu0 %v2921, 32
      %v3509 = vpop.permute.xlu0 %3508
      %3510 = vrot.lane.b32.xlu0 %v2922, 32
      %v3511 = vpop.permute.xlu0 %3510
      %3512 = vrot.lane.b32.xlu0 %v2923, 32
      %v3513 = vpop.permute.xlu0 %3512
      %3514 = vrot.lane.b32.xlu0 %v2924, 32
      %v3515 = vpop.permute.xlu0 %3514
      %3516 = vrot.lane.b32.xlu0 %v2925, 32
      %v3517 = vpop.permute.xlu0 %3516
      %3518 = vrot.lane.b32.xlu0 %v2926, 32
      %v3519 = vpop.permute.xlu0 %3518
      %3520 = vrot.lane.b32.xlu0 %v2927, 32
      %v3521 = vpop.permute.xlu0 %3520
      %3522 = vrot.lane.b32.xlu0 %v2928, 32
      %v3523 = vpop.permute.xlu0 %3522
      %3524 = vrot.lane.b32.xlu0 %v2929, 32
      %v3525 = vpop.permute.xlu0 %3524
      %3526 = vrot.lane.b32.xlu0 %v2930, 32
      %v3527 = vpop.permute.xlu0 %3526
      %3528 = vrot.lane.b32.xlu0 %v2931, 32
      %v3529 = vpop.permute.xlu0 %3528
      %3530 = vrot.lane.b32.xlu0 %v2932, 32
      %v3531 = vpop.permute.xlu0 %3530
      %3532 = vrot.lane.b32.xlu0 %v2933, 32
      %v3533 = vpop.permute.xlu0 %3532
      %3534 = vrot.lane.b32.xlu0 %v2934, 32
      %v3535 = vpop.permute.xlu0 %3534
      %3536 = vrot.lane.b32.xlu0 %v2935, 32
      %v3537 = vpop.permute.xlu0 %3536
      %3538 = vrot.lane.b32.xlu0 %v2936, 32
      %v3539 = vpop.permute.xlu0 %3538
      %3540 = vrot.lane.b32.xlu0 %v2937, 32
      %v3541 = vpop.permute.xlu0 %3540
      %3542 = vrot.lane.b32.xlu0 %v2938, 32
      %v3543 = vpop.permute.xlu0 %3542
      %3544 = vrot.lane.b32.xlu0 %v2939, 32
      %v3545 = vpop.permute.xlu0 %3544
      %3546 = vrot.lane.b32.xlu0 %v2940, 32
      %v3547 = vpop.permute.xlu0 %3546
      %3548 = vrot.lane.b32.xlu0 %v2941, 32
      %v3549 = vpop.permute.xlu0 %3548
      %3550 = vrot.lane.b32.xlu0 %v2942, 32
      %v3551 = vpop.permute.xlu0 %3550
      %3552 = vrot.lane.b32.xlu0 %v2943, 32
      %v3553 = vpop.permute.xlu0 %3552
      %3554 = vrot.lane.b32.xlu0 %v2944, 32
      %v3555 = vpop.permute.xlu0 %3554
      %3556 = vrot.lane.b32.xlu0 %v2945, 32
      %v3557 = vpop.permute.xlu0 %3556
      %3558 = vrot.lane.b32.xlu0 %v2946, 32
      %v3559 = vpop.permute.xlu0 %3558
      %3560 = vrot.lane.b32.xlu0 %v2947, 32
      %v3561 = vpop.permute.xlu0 %3560
      %3562 = vrot.lane.b32.xlu0 %v2948, 32
      %v3563 = vpop.permute.xlu0 %3562
      %3564 = vrot.lane.b32.xlu0 %v2949, 32
      %v3565 = vpop.permute.xlu0 %3564
      %3566 = vrot.lane.b32.xlu0 %v2950, 32
      %v3567 = vpop.permute.xlu0 %3566
      %3568 = vrot.lane.b32.xlu0 %v2951, 32
      %v3569 = vpop.permute.xlu0 %3568
      %3642 = vrot.lane.b32.xlu0 %v2952, 40
      %v3643 = vpop.permute.xlu0 %3642
      %3644 = vrot.lane.b32.xlu0 %v2953, 40
      %v3645 = vpop.permute.xlu0 %3644
      %3646 = vrot.lane.b32.xlu0 %v2954, 40
      %v3647 = vpop.permute.xlu0 %3646
      %3648 = vrot.lane.b32.xlu0 %v2955, 40
      %v3649 = vpop.permute.xlu0 %3648
      %3650 = vrot.lane.b32.xlu0 %v2956, 40
      %v3651 = vpop.permute.xlu0 %3650
      %3652 = vrot.lane.b32.xlu0 %v2957, 40
      %v3653 = vpop.permute.xlu0 %3652
      %3654 = vrot.lane.b32.xlu0 %v2958, 40
      %v3655 = vpop.permute.xlu0 %3654
      %3656 = vrot.lane.b32.xlu0 %v2959, 40
      %v3657 = vpop.permute.xlu0 %3656
      %3658 = vrot.lane.b32.xlu0 %v2960, 40
      %v3659 = vpop.permute.xlu0 %3658
      %3660 = vrot.lane.b32.xlu0 %v2961, 40
      %v3661 = vpop.permute.xlu0 %3660
      %3662 = vrot.lane.b32.xlu0 %v2962, 40
      %v3663 = vpop.permute.xlu0 %3662
      %3664 = vrot.lane.b32.xlu0 %v2963, 40
      %v3665 = vpop.permute.xlu0 %3664
      %3666 = vrot.lane.b32.xlu0 %v2964, 40
      %v3667 = vpop.permute.xlu0 %3666
      %3668 = vrot.lane.b32.xlu0 %v2965, 40
      %v3669 = vpop.permute.xlu0 %3668
      %3670 = vrot.lane.b32.xlu0 %v2966, 40
      %v3671 = vpop.permute.xlu0 %3670
      %3672 = vrot.lane.b32.xlu0 %v2967, 40
      %v3673 = vpop.permute.xlu0 %3672
      %3674 = vrot.lane.b32.xlu0 %v2968, 40
      %v3675 = vpop.permute.xlu0 %3674
      %3676 = vrot.lane.b32.xlu0 %v2969, 40
      %v3677 = vpop.permute.xlu0 %3676
      %3678 = vrot.lane.b32.xlu0 %v2970, 40
      %v3679 = vpop.permute.xlu0 %3678
      %3680 = vrot.lane.b32.xlu0 %v2971, 40
      %v3681 = vpop.permute.xlu0 %3680
      %3682 = vrot.lane.b32.xlu0 %v2972, 40
      %v3683 = vpop.permute.xlu0 %3682
      %3684 = vrot.lane.b32.xlu0 %v2973, 40
      %v3685 = vpop.permute.xlu0 %3684
      %3686 = vrot.lane.b32.xlu0 %v2974, 40
      %v3687 = vpop.permute.xlu0 %3686
      %3688 = vrot.lane.b32.xlu0 %v2975, 40
      %v3689 = vpop.permute.xlu0 %3688
      %3690 = vrot.lane.b32.xlu0 %v2976, 40
      %v3691 = vpop.permute.xlu0 %3690
      %3692 = vrot.lane.b32.xlu0 %v2977, 40
      %v3693 = vpop.permute.xlu0 %3692
      %3694 = vrot.lane.b32.xlu0 %v2978, 40
      %v3695 = vpop.permute.xlu0 %3694
      %3696 = vrot.lane.b32.xlu0 %v2979, 40
      %v3697 = vpop.permute.xlu0 %3696
      %3698 = vrot.lane.b32.xlu0 %v2980, 40
      %v3699 = vpop.permute.xlu0 %3698
      %3700 = vrot.lane.b32.xlu0 %v2981, 40
      %v3701 = vpop.permute.xlu0 %3700
      %3702 = vrot.lane.b32.xlu0 %v2982, 40
      %v3703 = vpop.permute.xlu0 %3702
      %3704 = vrot.lane.b32.xlu0 %v2983, 40
      %v3705 = vpop.permute.xlu0 %3704
      %3706 = vrot.lane.b32.xlu0 %v2984, 40
      %v3707 = vpop.permute.xlu0 %3706
      %3708 = vrot.lane.b32.xlu0 %v2985, 40
      %v3709 = vpop.permute.xlu0 %3708
      %3710 = vrot.lane.b32.xlu0 %v2986, 40
      %v3711 = vpop.permute.xlu0 %3710
      %3712 = vrot.lane.b32.xlu0 %v2987, 40
      %v3713 = vpop.permute.xlu0 %3712
      %3753 = vrot.lane.b32.xlu0 %v2954, 48
      %v3754 = vpop.permute.xlu0 %3753
      %3755 = vrot.lane.b32.xlu0 %v2955, 48
      %v3756 = vpop.permute.xlu0 %3755
      %3757 = vrot.lane.b32.xlu0 %v2956, 48
      %v3758 = vpop.permute.xlu0 %3757
      %3759 = vrot.lane.b32.xlu0 %v2957, 48
      %v3760 = vpop.permute.xlu0 %3759
      %3761 = vrot.lane.b32.xlu0 %v2958, 48
      %v3762 = vpop.permute.xlu0 %3761
      %3763 = vrot.lane.b32.xlu0 %v2959, 48
      %v3764 = vpop.permute.xlu0 %3763
      %3765 = vrot.lane.b32.xlu0 %v2960, 48
      %v3766 = vpop.permute.xlu0 %3765
      %3767 = vrot.lane.b32.xlu0 %v2961, 48
      %v3768 = vpop.permute.xlu0 %3767
      %3769 = vrot.lane.b32.xlu0 %v2962, 48
      %v3770 = vpop.permute.xlu0 %3769
      %3771 = vrot.lane.b32.xlu0 %v2963, 48
      %v3772 = vpop.permute.xlu0 %3771
      %3773 = vrot.lane.b32.xlu0 %v2964, 48
      %v3774 = vpop.permute.xlu0 %3773
      %3775 = vrot.lane.b32.xlu0 %v2965, 48
      %v3776 = vpop.permute.xlu0 %3775
      %3777 = vrot.lane.b32.xlu0 %v2966, 48
      %v3778 = vpop.permute.xlu0 %3777
      %3779 = vrot.lane.b32.xlu0 %v2967, 48
      %v3780 = vpop.permute.xlu0 %3779
      %3781 = vrot.lane.b32.xlu0 %v2968, 48
      %v3782 = vpop.permute.xlu0 %3781
      %3783 = vrot.lane.b32.xlu0 %v2969, 48
      %v3784 = vpop.permute.xlu0 %3783
      %3785 = vrot.lane.b32.xlu0 %v2970, 48
      %v3786 = vpop.permute.xlu0 %3785
      %3787 = vrot.lane.b32.xlu0 %v2971, 48
      %v3788 = vpop.permute.xlu0 %3787
      %3789 = vrot.lane.b32.xlu0 %v2972, 48
      %v3790 = vpop.permute.xlu0 %3789
      %3791 = vrot.lane.b32.xlu0 %v2973, 48
      %v3792 = vpop.permute.xlu0 %3791
      %3793 = vrot.lane.b32.xlu0 %v2974, 48
      %v3794 = vpop.permute.xlu0 %3793
      %3795 = vrot.lane.b32.xlu0 %v2975, 48
      %v3796 = vpop.permute.xlu0 %3795
      %3797 = vrot.lane.b32.xlu0 %v2976, 48
      %v3798 = vpop.permute.xlu0 %3797
      %3799 = vrot.lane.b32.xlu0 %v2977, 48
      %v3800 = vpop.permute.xlu0 %3799
      %3801 = vrot.lane.b32.xlu0 %v2978, 48
      %v3802 = vpop.permute.xlu0 %3801
      %3803 = vrot.lane.b32.xlu0 %v2979, 48
      %v3804 = vpop.permute.xlu0 %3803
      %3805 = vrot.lane.b32.xlu0 %v2980, 48
      %v3806 = vpop.permute.xlu0 %3805
      %3807 = vrot.lane.b32.xlu0 %v2981, 48
      %v3808 = vpop.permute.xlu0 %3807
      %3809 = vrot.lane.b32.xlu0 %v2982, 48
      %v3810 = vpop.permute.xlu0 %3809
      %3811 = vrot.lane.b32.xlu0 %v2983, 48
      %v3812 = vpop.permute.xlu0 %3811
      %3813 = vrot.lane.b32.xlu0 %v2984, 48
      %v3814 = vpop.permute.xlu0 %3813
      %3815 = vrot.lane.b32.xlu0 %v2985, 48
      %v3816 = vpop.permute.xlu0 %3815
      %3817 = vrot.lane.b32.xlu0 %v2986, 48
      %v3818 = vpop.permute.xlu0 %3817
      %3819 = vrot.lane.b32.xlu0 %v2988, 48
      %v3820 = vpop.permute.xlu0 %3819
      %3821 = vrot.lane.b32.xlu0 %v2989, 48
      %v3822 = vpop.permute.xlu0 %3821
      %3823 = vrot.lane.b32.xlu0 %v2990, 48
      %v3824 = vpop.permute.xlu0 %3823
      %3897 = vrot.lane.b32.xlu0 %v2991, 56
      %v3898 = vpop.permute.xlu0 %3897
      %3899 = vrot.lane.b32.xlu0 %v2992, 56
      %v3900 = vpop.permute.xlu0 %3899
      %3901 = vrot.lane.b32.xlu0 %v2993, 56
      %v3902 = vpop.permute.xlu0 %3901
      %3903 = vrot.lane.b32.xlu0 %v2994, 56
      %v3904 = vpop.permute.xlu0 %3903
      %3905 = vrot.lane.b32.xlu0 %v2995, 56
      %v3906 = vpop.permute.xlu0 %3905
      %3907 = vrot.lane.b32.xlu0 %v2996, 56
      %v3908 = vpop.permute.xlu0 %3907
      %3909 = vrot.lane.b32.xlu0 %v2997, 56
      %v3910 = vpop.permute.xlu0 %3909
      %3911 = vrot.lane.b32.xlu0 %v2998, 56
      %v3912 = vpop.permute.xlu0 %3911
      %3913 = vrot.lane.b32.xlu0 %v2999, 56
      %v3914 = vpop.permute.xlu0 %3913
      %3915 = vrot.lane.b32.xlu0 %v3000, 56
      %v3916 = vpop.permute.xlu0 %3915
      %3917 = vrot.lane.b32.xlu0 %v3001, 56
      %v3918 = vpop.permute.xlu0 %3917
      %3919 = vrot.lane.b32.xlu0 %v3002, 56
      %v3920 = vpop.permute.xlu0 %3919
      %3921 = vrot.lane.b32.xlu0 %v3003, 56
      %v3922 = vpop.permute.xlu0 %3921
      %3923 = vrot.lane.b32.xlu0 %v3004, 56
      %v3924 = vpop.permute.xlu0 %3923
      %3925 = vrot.lane.b32.xlu0 %v3005, 56
      %v3926 = vpop.permute.xlu0 %3925
      %3927 = vrot.lane.b32.xlu0 %v3006, 56
      %v3928 = vpop.permute.xlu0 %3927
      %3929 = vrot.lane.b32.xlu0 %v3007, 56
      %v3930 = vpop.permute.xlu0 %3929
      %3931 = vrot.lane.b32.xlu0 %v3008, 56
      %v3932 = vpop.permute.xlu0 %3931
      %3933 = vrot.lane.b32.xlu0 %v3009, 56
      %v3934 = vpop.permute.xlu0 %3933
      %3935 = vrot.lane.b32.xlu0 %v3010, 56
      %v3936 = vpop.permute.xlu0 %3935
      %3937 = vrot.lane.b32.xlu0 %v3011, 56
      %v3938 = vpop.permute.xlu0 %3937
      %3939 = vrot.lane.b32.xlu0 %v3012, 56
      %v3940 = vpop.permute.xlu0 %3939
      %3941 = vrot.lane.b32.xlu0 %v3013, 56
      %v3942 = vpop.permute.xlu0 %3941
      %3943 = vrot.lane.b32.xlu0 %v3014, 56
      %v3944 = vpop.permute.xlu0 %3943
      %3945 = vrot.lane.b32.xlu0 %v3015, 56
      %v3946 = vpop.permute.xlu0 %3945
      %3947 = vrot.lane.b32.xlu0 %v3016, 56
      %v3948 = vpop.permute.xlu0 %3947
      %3949 = vrot.lane.b32.xlu0 %v3017, 56
      %v3950 = vpop.permute.xlu0 %3949
      %3951 = vrot.lane.b32.xlu0 %v3018, 56
      %v3952 = vpop.permute.xlu0 %3951
      %3953 = vrot.lane.b32.xlu0 %v3019, 56
      %v3954 = vpop.permute.xlu0 %3953
      %3955 = vrot.lane.b32.xlu0 %v3020, 56
      %v3956 = vpop.permute.xlu0 %3955
      %3957 = vrot.lane.b32.xlu0 %v3021, 56
      %v3958 = vpop.permute.xlu0 %3957
      %3959 = vrot.lane.b32.xlu0 %v3022, 56
      %v3960 = vpop.permute.xlu0 %3959
      %3961 = vrot.lane.b32.xlu0 %v3023, 56
      %v3962 = vpop.permute.xlu0 %3961
      %3963 = vrot.lane.b32.xlu0 %v3024, 56
      %v3964 = vpop.permute.xlu0 %3963
      %3965 = vrot.lane.b32.xlu0 %v3025, 56
      %v3966 = vpop.permute.xlu0 %3965
      %3967 = vrot.lane.b32.xlu0 %v3026, 56
      %v3968 = vpop.permute.xlu0 %3967
      %4041 = vrot.lane.b32.xlu0 %v3027, 64
      %v4042 = vpop.permute.xlu0 %4041
      %4043 = vrot.lane.b32.xlu0 %v3028, 64
      %v4044 = vpop.permute.xlu0 %4043
      %4045 = vrot.lane.b32.xlu0 %v3029, 64
      %v4046 = vpop.permute.xlu0 %4045
      %4047 = vrot.lane.b32.xlu0 %v3030, 64
      %v4048 = vpop.permute.xlu0 %4047
      %4049 = vrot.lane.b32.xlu0 %v3031, 64
      %v4050 = vpop.permute.xlu0 %4049
      %4051 = vrot.lane.b32.xlu0 %v3032, 64
      %v4052 = vpop.permute.xlu0 %4051
      %4053 = vrot.lane.b32.xlu0 %v3033, 64
      %v4054 = vpop.permute.xlu0 %4053
      %4055 = vrot.lane.b32.xlu0 %v3034, 64
      %v4056 = vpop.permute.xlu0 %4055
      %4057 = vrot.lane.b32.xlu0 %v3035, 64
      %v4058 = vpop.permute.xlu0 %4057
      %4059 = vrot.lane.b32.xlu0 %v3036, 64
      %v4060 = vpop.permute.xlu0 %4059
      %4061 = vrot.lane.b32.xlu0 %v3037, 64
      %v4062 = vpop.permute.xlu0 %4061
      %4063 = vrot.lane.b32.xlu0 %v3038, 64
      %v4064 = vpop.permute.xlu0 %4063
      %4065 = vrot.lane.b32.xlu0 %v3039, 64
      %v4066 = vpop.permute.xlu0 %4065
      %4067 = vrot.lane.b32.xlu0 %v3040, 64
      %v4068 = vpop.permute.xlu0 %4067
      %4069 = vrot.lane.b32.xlu0 %v3041, 64
      %v4070 = vpop.permute.xlu0 %4069
      %4071 = vrot.lane.b32.xlu0 %v3042, 64
      %v4072 = vpop.permute.xlu0 %4071
      %4073 = vrot.lane.b32.xlu0 %v3043, 64
      %v4074 = vpop.permute.xlu0 %4073
      %4075 = vrot.lane.b32.xlu0 %v3044, 64
      %v4076 = vpop.permute.xlu0 %4075
      %4077 = vrot.lane.b32.xlu0 %v3045, 64
      %v4078 = vpop.permute.xlu0 %4077
      %4079 = vrot.lane.b32.xlu0 %v3046, 64
      %v4080 = vpop.permute.xlu0 %4079
      %4081 = vrot.lane.b32.xlu0 %v3047, 64
      %v4082 = vpop.permute.xlu0 %4081
      %4083 = vrot.lane.b32.xlu0 %v3048, 64
      %v4084 = vpop.permute.xlu0 %4083
      %4085 = vrot.lane.b32.xlu0 %v3049, 64
      %v4086 = vpop.permute.xlu0 %4085
      %4087 = vrot.lane.b32.xlu0 %v3050, 64
      %v4088 = vpop.permute.xlu0 %4087
      %4089 = vrot.lane.b32.xlu0 %v3051, 64
      %v4090 = vpop.permute.xlu0 %4089
      %4091 = vrot.lane.b32.xlu0 %v3052, 64
      %v4092 = vpop.permute.xlu0 %4091
      %4093 = vrot.lane.b32.xlu0 %v3053, 64
      %v4094 = vpop.permute.xlu0 %4093
      %4095 = vrot.lane.b32.xlu0 %v3054, 64
      %v4096 = vpop.permute.xlu0 %4095
      %4097 = vrot.lane.b32.xlu0 %v3055, 64
      %v4098 = vpop.permute.xlu0 %4097
      %4099 = vrot.lane.b32.xlu0 %v3056, 64
      %v4100 = vpop.permute.xlu0 %4099
      %4101 = vrot.lane.b32.xlu0 %v3057, 64
      %v4102 = vpop.permute.xlu0 %4101
      %4103 = vrot.lane.b32.xlu0 %v3058, 64
      %v4104 = vpop.permute.xlu0 %4103
      %4105 = vrot.lane.b32.xlu0 %v3059, 64
      %v4106 = vpop.permute.xlu0 %4105
      %4107 = vrot.lane.b32.xlu0 %v3060, 64
      %v4108 = vpop.permute.xlu0 %4107
      %4109 = vrot.lane.b32.xlu0 %v3061, 64
      %v4110 = vpop.permute.xlu0 %4109
      %4111 = vrot.lane.b32.xlu0 %v3062, 64
      %v4112 = vpop.permute.xlu0 %4111
      %v4149 = vsel %vm1861, %v2805, %v3100
      %v4150 = vsel %vm1861, %v2806, %v3102
      %v4151 = vsel %vm1861, %v2807, %v3104
      %v4152 = vsel %vm1861, %v2808, %v3106
      %v4153 = vsel %vm1861, %v2809, %v3108
      %v4154 = vsel %vm1861, %v2810, %v3110
      %v4155 = vsel %vm1861, %v2811, %v3112
      %v4156 = vsel %vm1861, %v2812, %v3114
      %v4157 = vsel %vm1861, %v2813, %v3116
      %v4158 = vsel %vm1861, %v2814, %v3118
      %v4159 = vsel %vm1861, %v2815, %v3120
      %v4160 = vsel %vm1861, %v2816, %v3122
      %v4161 = vsel %vm1861, %v2817, %v3124
      %v4162 = vsel %vm1861, %v2818, %v3126
      %v4163 = vsel %vm1861, %v2819, %v3128
      %v4164 = vsel %vm1861, %v2820, %v3130
      %v4165 = vsel %vm1861, %v2821, %v3132
      %v4166 = vsel %vm1861, %v2822, %v3134
      %v4167 = vsel %vm1861, %v2823, %v3136
      %v4168 = vsel %vm1861, %v2824, %v3138
      %v4169 = vsel %vm1861, %v2825, %v3140
      %v4170 = vsel %vm1861, %v2826, %v3142
      %v4171 = vsel %vm1861, %v2827, %v3144
      %v4172 = vsel %vm1861, %v2828, %v3146
      %v4173 = vsel %vm1861, %v2829, %v3148
      %v4174 = vsel %vm1861, %v2830, %v3150
      %v4175 = vsel %vm1861, %v2831, %v3152
      %v4176 = vsel %vm1861, %v2832, %v3154
      %v4177 = vsel %vm1861, %v2833, %v3156
      %v4178 = vsel %vm1861, %v2834, %v3158
      %v4179 = vsel %vm1861, %v2835, %v3160
      %v4180 = vsel %vm1861, %v2836, %v3162
      %v4181 = vsel %vm1861, %v2837, %v3164
      %v4182 = vsel %vm1861, %v2838, %v3166
      %v4183 = vsel %vm1861, %v2839, %v3168
      %v4184 = vsel %vm1861, %v2840, %v3170
      %v4185 = vsel %vm1935, %v4149, %v3244
      %v4186 = vsel %vm1935, %v4150, %v3246
      %v4187 = vsel %vm1935, %v4151, %v3248
      %v4188 = vsel %vm1935, %v4152, %v3250
      %v4189 = vsel %vm1935, %v4153, %v3252
      %v4190 = vsel %vm1935, %v4154, %v3254
      %v4191 = vsel %vm1935, %v4155, %v3256
      %v4192 = vsel %vm1935, %v4156, %v3258
      %v4193 = vsel %vm1935, %v4157, %v3260
      %v4194 = vsel %vm1935, %v4158, %v3262
      %v4195 = vsel %vm1935, %v4159, %v3264
      %v4196 = vsel %vm1935, %v4160, %v3266
      %v4197 = vsel %vm1935, %v4161, %v3268
      %v4198 = vsel %vm1935, %v4162, %v3270
      %v4199 = vsel %vm1935, %v4163, %v3272
      %v4200 = vsel %vm1935, %v4164, %v3274
      %v4201 = vsel %vm1935, %v4165, %v3276
      %v4202 = vsel %vm1935, %v4166, %v3278
      %v4203 = vsel %vm1935, %v4167, %v3280
      %v4204 = vsel %vm1935, %v4168, %v3282
      %v4205 = vsel %vm1935, %v4169, %v3284
      %v4206 = vsel %vm1935, %v4170, %v3286
      %v4207 = vsel %vm1935, %v4171, %v3288
      %v4208 = vsel %vm1935, %v4172, %v3290
      %v4209 = vsel %vm1935, %v4173, %v3292
      %v4210 = vsel %vm1935, %v4174, %v3294
      %v4211 = vsel %vm1935, %v4175, %v3296
      %v4212 = vsel %vm1935, %v4176, %v3298
      %v4213 = vsel %vm1935, %v4177, %v3300
      %v4214 = vsel %vm1935, %v4178, %v3302
      %v4215 = vsel %vm1935, %v4179, %v3304
      %v4216 = vsel %vm1935, %v4180, %v3306
      %v4217 = vsel %vm1935, %v4181, %v3308
      %v4218 = vsel %vm1935, %v4182, %v3310
      %v4219 = vsel %vm1935, %v4183, %v3312
      %v4220 = vsel %vm1935, %v4184, %v3314
      %v4221 = vsel %vm2009, %v4185, %v3355
      %v4222 = vsel %vm2009, %v4186, %v3357
      %v4223 = vsel %vm2009, %v4187, %v3359
      %v4224 = vsel %vm2009, %v4188, %v3361
      %v4225 = vsel %vm2009, %v4189, %v3363
      %v4226 = vsel %vm2009, %v4190, %v3365
      %v4227 = vsel %vm2009, %v4191, %v3367
      %v4228 = vsel %vm2009, %v4192, %v3369
      %v4229 = vsel %vm2009, %v4193, %v3371
      %v4230 = vsel %vm2009, %v4194, %v3373
      %v4231 = vsel %vm2009, %v4195, %v3375
      %v4232 = vsel %vm2009, %v4196, %v3377
      %v4233 = vsel %vm2009, %v4197, %v3379
      %v4234 = vsel %vm2009, %v4198, %v3381
      %v4235 = vsel %vm2009, %v4199, %v3383
      %v4236 = vsel %vm2009, %v4200, %v3385
      %v4237 = vsel %vm2009, %v4201, %v3387
      %v4238 = vsel %vm2009, %v4202, %v3389
      %v4239 = vsel %vm2009, %v4203, %v3391
      %v4240 = vsel %vm2009, %v4204, %v3393
      %v4241 = vsel %vm2009, %v4205, %v3395
      %v4242 = vsel %vm2009, %v4206, %v3397
      %v4243 = vsel %vm2009, %v4207, %v3399
      %v4244 = vsel %vm2009, %v4208, %v3401
      %v4245 = vsel %vm2009, %v4209, %v3403
      %v4246 = vsel %vm2009, %v4210, %v3405
      %v4247 = vsel %vm2009, %v4211, %v3407
      %v4248 = vsel %vm2009, %v4212, %v3409
      %v4249 = vsel %vm2009, %v4213, %v3411
      %v4250 = vsel %vm2009, %v4214, %v3413
      %v4251 = vsel %vm2009, %v4215, %v3415
      %v4252 = vsel %vm2009, %v4216, %v3417
      %v4253 = vsel %vm2009, %v4217, %v3419
      %v4254 = vsel %vm2009, %v4218, %v3421
      %v4255 = vsel %vm2009, %v4219, %v3423
      %v4256 = vsel %vm2009, %v4220, %v3425
      %v4257 = vsel %vm2083, %v4221, %v3499
      %v4258 = vsel %vm2083, %v4222, %v3501
      %v4259 = vsel %vm2083, %v4223, %v3503
      %v4260 = vsel %vm2083, %v4224, %v3505
      %v4261 = vsel %vm2083, %v4225, %v3507
      %v4262 = vsel %vm2083, %v4226, %v3509
      %v4263 = vsel %vm2083, %v4227, %v3511
      %v4264 = vsel %vm2083, %v4228, %v3513
      %v4265 = vsel %vm2083, %v4229, %v3515
      %v4266 = vsel %vm2083, %v4230, %v3517
      %v4267 = vsel %vm2083, %v4231, %v3519
      %v4268 = vsel %vm2083, %v4232, %v3521
      %v4269 = vsel %vm2083, %v4233, %v3523
      %v4270 = vsel %vm2083, %v4234, %v3525
      %v4271 = vsel %vm2083, %v4235, %v3527
      %v4272 = vsel %vm2083, %v4236, %v3529
      %v4273 = vsel %vm2083, %v4237, %v3531
      %v4274 = vsel %vm2083, %v4238, %v3533
      %v4275 = vsel %vm2083, %v4239, %v3535
      %v4276 = vsel %vm2083, %v4240, %v3537
      %v4277 = vsel %vm2083, %v4241, %v3539
      %v4278 = vsel %vm2083, %v4242, %v3541
      %v4279 = vsel %vm2083, %v4243, %v3543
      %v4280 = vsel %vm2083, %v4244, %v3545
      %v4281 = vsel %vm2083, %v4245, %v3547
      %v4282 = vsel %vm2083, %v4246, %v3549
      %v4283 = vsel %vm2083, %v4247, %v3551
      %v4284 = vsel %vm2083, %v4248, %v3553
      %v4285 = vsel %vm2083, %v4249, %v3555
      %v4286 = vsel %vm2083, %v4250, %v3557
      %v4287 = vsel %vm2083, %v4251, %v3559
      %v4288 = vsel %vm2083, %v4252, %v3561
      %v4289 = vsel %vm2083, %v4253, %v3563
      %v4290 = vsel %vm2083, %v4254, %v3565
      %v4291 = vsel %vm2083, %v4255, %v3567
      %v4292 = vsel %vm2083, %v4256, %v3569
      %vm4293 = vcmask 326656
      %v4294 = vsel %vm4293, %v4257, %v3643
      %v4295 = vsel %vm4293, %v4258, %v3645
      %v4296 = vsel %vm4293, %v4259, %v3647
      %v4297 = vsel %vm4293, %v4260, %v3649
      %v4298 = vsel %vm4293, %v4261, %v3651
      %v4299 = vsel %vm4293, %v4262, %v3653
      %v4300 = vsel %vm4293, %v4263, %v3655
      %v4301 = vsel %vm4293, %v4264, %v3657
      %v4302 = vsel %vm4293, %v4265, %v3659
      %v4303 = vsel %vm4293, %v4266, %v3661
      %v4304 = vsel %vm4293, %v4267, %v3663
      %v4305 = vsel %vm4293, %v4268, %v3665
      %v4306 = vsel %vm4293, %v4269, %v3667
      %v4307 = vsel %vm4293, %v4270, %v3669
      %v4308 = vsel %vm4293, %v4271, %v3671
      %v4309 = vsel %vm4293, %v4272, %v3673
      %v4310 = vsel %vm4293, %v4273, %v3675
      %v4311 = vsel %vm4293, %v4274, %v3677
      %v4312 = vsel %vm4293, %v4275, %v3679
      %v4313 = vsel %vm4293, %v4276, %v3681
      %v4314 = vsel %vm4293, %v4277, %v3683
      %v4315 = vsel %vm4293, %v4278, %v3685
      %v4316 = vsel %vm4293, %v4279, %v3687
      %v4317 = vsel %vm4293, %v4280, %v3689
      %v4318 = vsel %vm4293, %v4281, %v3691
      %v4319 = vsel %vm4293, %v4282, %v3693
      %v4320 = vsel %vm4293, %v4283, %v3695
      %v4321 = vsel %vm4293, %v4284, %v3697
      %v4322 = vsel %vm4293, %v4285, %v3699
      %v4323 = vsel %vm4293, %v4286, %v3701
      %v4324 = vsel %vm4293, %v4287, %v3703
      %v4325 = vsel %vm4293, %v4288, %v3705
      %v4326 = vsel %vm4293, %v4289, %v3707
      %v4327 = vsel %vm4293, %v4290, %v3709
      %v4328 = vsel %vm4293, %v4291, %v3711
      %v4329 = vsel %vm4293, %v4292, %v3713
      %vm4330 = vcmask 392192
      %v4331 = vsel %vm4330, %v4294, %v3754
      %v4332 = vsel %vm4330, %v4295, %v3756
      %v4333 = vsel %vm4330, %v4296, %v3758
      %v4334 = vsel %vm4330, %v4297, %v3760
      %v4335 = vsel %vm4330, %v4298, %v3762
      %v4336 = vsel %vm4330, %v4299, %v3764
      %v4337 = vsel %vm4330, %v4300, %v3766
      %v4338 = vsel %vm4330, %v4301, %v3768
      %v4339 = vsel %vm4330, %v4302, %v3770
      %v4340 = vsel %vm4330, %v4303, %v3772
      %v4341 = vsel %vm4330, %v4304, %v3774
      %v4342 = vsel %vm4330, %v4305, %v3776
      %v4343 = vsel %vm4330, %v4306, %v3778
      %v4344 = vsel %vm4330, %v4307, %v3780
      %v4345 = vsel %vm4330, %v4308, %v3782
      %v4346 = vsel %vm4330, %v4309, %v3784
      %v4347 = vsel %vm4330, %v4310, %v3786
      %v4348 = vsel %vm4330, %v4311, %v3788
      %v4349 = vsel %vm4330, %v4312, %v3790
      %v4350 = vsel %vm4330, %v4313, %v3792
      %v4351 = vsel %vm4330, %v4314, %v3794
      %v4352 = vsel %vm4330, %v4315, %v3796
      %v4353 = vsel %vm4330, %v4316, %v3798
      %v4354 = vsel %vm4330, %v4317, %v3800
      %v4355 = vsel %vm4330, %v4318, %v3802
      %v4356 = vsel %vm4330, %v4319, %v3804
      %v4357 = vsel %vm4330, %v4320, %v3806
      %v4358 = vsel %vm4330, %v4321, %v3808
      %v4359 = vsel %vm4330, %v4322, %v3810
      %v4360 = vsel %vm4330, %v4323, %v3812
      %v4361 = vsel %vm4330, %v4324, %v3814
      %v4362 = vsel %vm4330, %v4325, %v3816
      %v4363 = vsel %vm4330, %v4326, %v3818
      %v4364 = vsel %vm4330, %v4327, %v3820
      %v4365 = vsel %vm4330, %v4328, %v3822
      %v4366 = vsel %vm4330, %v4329, %v3824
      %vm4367 = vcmask 457728
      %v4368 = vsel %vm4367, %v4331, %v3898
      %v4369 = vsel %vm4367, %v4332, %v3900
      %v4370 = vsel %vm4367, %v4333, %v3902
      %v4371 = vsel %vm4367, %v4334, %v3904
      %v4372 = vsel %vm4367, %v4335, %v3906
      %v4373 = vsel %vm4367, %v4336, %v3908
      %v4374 = vsel %vm4367, %v4337, %v3910
      %v4375 = vsel %vm4367, %v4338, %v3912
      %v4376 = vsel %vm4367, %v4339, %v3914
      %v4377 = vsel %vm4367, %v4340, %v3916
      %v4378 = vsel %vm4367, %v4341, %v3918
      %v4379 = vsel %vm4367, %v4342, %v3920
      %v4380 = vsel %vm4367, %v4343, %v3922
      %v4381 = vsel %vm4367, %v4344, %v3924
      %v4382 = vsel %vm4367, %v4345, %v3926
      %v4383 = vsel %vm4367, %v4346, %v3928
      %v4384 = vsel %vm4367, %v4347, %v3930
      %v4385 = vsel %vm4367, %v4348, %v3932
      %v4386 = vsel %vm4367, %v4349, %v3934
      %v4387 = vsel %vm4367, %v4350, %v3936
      %v4388 = vsel %vm4367, %v4351, %v3938
      %v4389 = vsel %vm4367, %v4352, %v3940
      %v4390 = vsel %vm4367, %v4353, %v3942
      %v4391 = vsel %vm4367, %v4354, %v3944
      %v4392 = vsel %vm4367, %v4355, %v3946
      %v4393 = vsel %vm4367, %v4356, %v3948
      %v4394 = vsel %vm4367, %v4357, %v3950
      %v4395 = vsel %vm4367, %v4358, %v3952
      %v4396 = vsel %vm4367, %v4359, %v3954
      %v4397 = vsel %vm4367, %v4360, %v3956
      %v4398 = vsel %vm4367, %v4361, %v3958
      %v4399 = vsel %vm4367, %v4362, %v3960
      %v4400 = vsel %vm4367, %v4363, %v3962
      %v4401 = vsel %vm4367, %v4364, %v3964
      %v4402 = vsel %vm4367, %v4365, %v3966
      %v4403 = vsel %vm4367, %v4366, %v3968
      %vm4404 = vcmask 523264
      %v4405 = vsel %vm4404, %v4368, %v4042
      %v4406 = vsel %vm4404, %v4369, %v4044
      %v4407 = vsel %vm4404, %v4370, %v4046
      %v4408 = vsel %vm4404, %v4371, %v4048
      %v4409 = vsel %vm4404, %v4372, %v4050
      %v4410 = vsel %vm4404, %v4373, %v4052
      %v4411 = vsel %vm4404, %v4374, %v4054
      %v4412 = vsel %vm4404, %v4375, %v4056
      %v4413 = vsel %vm4404, %v4376, %v4058
      %v4414 = vsel %vm4404, %v4377, %v4060
      %v4415 = vsel %vm4404, %v4378, %v4062
      %v4416 = vsel %vm4404, %v4379, %v4064
      %v4417 = vsel %vm4404, %v4380, %v4066
      %v4418 = vsel %vm4404, %v4381, %v4068
      %v4419 = vsel %vm4404, %v4382, %v4070
      %v4420 = vsel %vm4404, %v4383, %v4072
      %v4421 = vsel %vm4404, %v4384, %v4074
      %v4422 = vsel %vm4404, %v4385, %v4076
      %v4423 = vsel %vm4404, %v4386, %v4078
      %v4424 = vsel %vm4404, %v4387, %v4080
      %v4425 = vsel %vm4404, %v4388, %v4082
      %v4426 = vsel %vm4404, %v4389, %v4084
      %v4427 = vsel %vm4404, %v4390, %v4086
      %v4428 = vsel %vm4404, %v4391, %v4088
      %v4429 = vsel %vm4404, %v4392, %v4090
      %v4430 = vsel %vm4404, %v4393, %v4092
      %v4431 = vsel %vm4404, %v4394, %v4094
      %v4432 = vsel %vm4404, %v4395, %v4096
      %v4433 = vsel %vm4404, %v4396, %v4098
      %v4434 = vsel %vm4404, %v4397, %v4100
      %v4435 = vsel %vm4404, %v4398, %v4102
      %v4436 = vsel %vm4404, %v4399, %v4104
      %v4437 = vsel %vm4404, %v4400, %v4106
      %v4438 = vsel %vm4404, %v4401, %v4108
      %v4439 = vsel %vm4404, %v4402, %v4110
      %v4440 = vsel %vm4404, %v4403, %v4112
      %v4441 = vpack.c.bf16 %v4406, %v4405
      %v4442 = vpack.c.bf16 %v4408, %v4407
      %v4443 = vpack.c.bf16 %v4410, %v4409
      %v4444 = vpack.c.bf16 %v4412, %v4411
      %v4445 = vpack.c.bf16 %v4414, %v4413
      %v4446 = vpack.c.bf16 %v4416, %v4415
      %v4447 = vpack.c.bf16 %v4418, %v4417
      %v4448 = vpack.c.bf16 %v4420, %v4419
      %v4449 = vpack.c.bf16 %v4422, %v4421
      %v4450 = vpack.c.bf16 %v4424, %v4423
      %v4451 = vpack.c.bf16 %v4426, %v4425
      %v4452 = vpack.c.bf16 %v4428, %v4427
      %v4453 = vpack.c.bf16 %v4430, %v4429
      %v4454 = vpack.c.bf16 %v4432, %v4431
      %v4455 = vpack.c.bf16 %v4434, %v4433
      %v4456 = vpack.c.bf16 %v4436, %v4435
      %v4457 = vpack.c.bf16 %v4438, %v4437
      %v4458 = vpack.c.bf16 %v4440, %v4439
      %v4459 = vld [vmem:[%s5] sm:$0xf]
      %v4460 = vld [vmem:[%s5 + $0x4] sm:$0xf]
      %v4461 = vld [vmem:[%s5 + $0x8] sm:$0xf]
      %v4462 = vld [vmem:[%s5 + $0xc] sm:$0xf]
      %v4463 = vld [vmem:[%s5 + $0x10] sm:$0xf]
      %v4464 = vld [vmem:[%s5 + $0x14] sm:$0xf]
      %v4465 = vld [vmem:[%s5 + $0x18] sm:$0xf]
      %v4466 = vld [vmem:[%s5 + $0x1c] sm:$0xf]
      %v4467 = vld [vmem:[%s5 + $0x20] sm:$0xf]
      %v4468 = vld [vmem:[%s6] sm:$0x1]
      %v4470 = vlaneseq
      %v4471 = vshrl.u32 %v4470, 7
      %v4472 = vsub.s32 0, %v4471
      %v4473 = vrot.slane %v4468, %v4472
      %v4484 = vunpack.c.l.b16 %v4459
      %v4485 = vunpack.c.l.b16 %v4460
      %v4486 = vunpack.c.l.b16 %v4461
      %v4487 = vunpack.c.l.b16 %v4462
      %v4488 = vunpack.c.l.b16 %v4463
      %v4489 = vunpack.c.l.b16 %v4464
      %v4490 = vunpack.c.l.b16 %v4465
      %v4491 = vunpack.c.l.b16 %v4466
      %v4492 = vunpack.c.l.b16 %v4467
      %v4493 = vpack.c.b16 %v4485, %v4484
      %v4494 = vpack.c.b16 %v4487, %v4486
      %v4495 = vpack.c.b16 %v4489, %v4488
      %v4496 = vpack.c.b16 %v4491, %v4490
      %v4497 = vpack.c.b16 %v4492, %v4492
      %vm4502 = vcmask 588800
      %v4504 = vsel %vm4502, %v4441, 0
      %v4507 = vsel %vm4502, %v4442, 0
      %v4510 = vsel %vm4502, %v4443, 0
      %v4513 = vsel %vm4502, %v4444, 0
      %v4516 = vsel %vm4502, %v4445, 0
      %v4519 = vsel %vm4502, %v4446, 0
      %v4522 = vsel %vm4502, %v4447, 0
      %v4525 = vsel %vm4502, %v4448, 0
      %v4528 = vsel %vm4502, %v4449, 0
      %v4531 = vsel %vm4502, %v4450, 0
      %v4534 = vsel %vm4502, %v4451, 0
      %v4537 = vsel %vm4502, %v4452, 0
      %v4540 = vsel %vm4502, %v4453, 0
      %v4543 = vsel %vm4502, %v4454, 0
      %v4546 = vsel %vm4502, %v4455, 0
      %v4549 = vsel %vm4502, %v4456, 0
      %v4552 = vsel %vm4502, %v4457, 0
      %v4555 = vsel %vm4502, %v4458, 0
      %vm4557 = vcmask 1043456
      %v4559 = vsel %vm4557, %v4497, 0
      %4561 = vmatprep.subr.bf16.mxu0 0
      %4562 = vmatpush1.bf16.msra.mxu0 0
      %4563 = vmatprep.subr.bf16.mxu0 0
      %4564 = vmatpush1.bf16.msra.mxu0 0
      %4565 = vmatprep.subr.bf16.mxu0 0
      %4566 = vmatpush1.bf16.msra.mxu0 0
      %4567 = vmatprep.subr.bf16.mxu0 0
      %4568 = vmatpush1.bf16.msra.mxu0 %v4559
      %4569 = vmatprep.subr.bf16.mxu0 0
      %4570 = vmatpush1.bf16.msra.mxu0 %v4496
      %4571 = vmatprep.subr.bf16.mxu0 0
      %4572 = vmatpush1.bf16.msra.mxu0 %v4495
      %4573 = vmatprep.subr.bf16.mxu0 0
      %4574 = vmatpush1.bf16.msra.mxu0 %v4494
      %4575 = vmatprep.subr.bf16.mxu0 0
      %4576 = vmatpush1.bf16.msra.mxu0 %v4493
      %4577 = vmatprep.subr.bf16.mxu0 0
      %4578 = vmatpush2.bf16.msra.mxu0 0
      %4579 = vmatprep.subr.bf16.mxu0 0
      %4580 = vmatpush2.bf16.msra.mxu0 0
      %4581 = vmatprep.subr.bf16.mxu0 0
      %4582 = vmatpush2.bf16.msra.mxu0 0
      %4583 = vmatprep.subr.bf16.mxu0 0
      %4584 = vmatpush2.bf16.msra.mxu0 0
      %4585 = vmatprep.subr.bf16.mxu0 0
      %4586 = vmatpush2.bf16.msra.mxu0 0
      %4587 = vmatprep.subr.bf16.mxu0 0
      %4588 = vmatpush2.bf16.msra.mxu0 0
      %4589 = vmatprep.subr.bf16.mxu0 0
      %4590 = vmatpush2.bf16.msra.mxu0 0
      %4591 = vmatprep.subr.bf16.mxu0 0
      %4592 = vmatpush2.bf16.msra.mxu0 0
      %4593 = vmatprep.mubr.bf16.mxu0 0
      %4594 = vmatmul.mubr.bf16.gmra.mxu0 %v4504
      %v4595 = vpop.f32.mrf.mxu0
      %v4596 = vadd.f32 %v4473, %v4595
      %v4597 = vpop.f32.mrf.mxu0
      %v4598 = vpop.f32.mrf.mxu0
      %v4599 = vadd.f32 %v4473, %v4598
      %v4600 = vpop.f32.mrf.mxu0
      %4601 = vmatprep.mubr.bf16.mxu0 0
      %4602 = vmatmul.mubr.bf16.gmra.mxu0 %v4507
      %v4603 = vpop.f32.mrf.mxu0
      %v4604 = vadd.f32 %v4473, %v4603
      %v4605 = vpop.f32.mrf.mxu0
      %v4606 = vpop.f32.mrf.mxu0
      %v4607 = vadd.f32 %v4473, %v4606
      %v4608 = vpop.f32.mrf.mxu0
      %4609 = vmatprep.mubr.bf16.mxu0 0
      %4610 = vmatmul.mubr.bf16.gmra.mxu0 %v4510
      %v4611 = vpop.f32.mrf.mxu0
      %v4612 = vadd.f32 %v4473, %v4611
      %v4613 = vpop.f32.mrf.mxu0
      %v4614 = vpop.f32.mrf.mxu0
      %v4615 = vadd.f32 %v4473, %v4614
      %v4616 = vpop.f32.mrf.mxu0
      %4617 = vmatprep.mubr.bf16.mxu0 0
      %4618 = vmatmul.mubr.bf16.gmra.mxu0 %v4513
      %v4619 = vpop.f32.mrf.mxu0
      %v4620 = vadd.f32 %v4473, %v4619
      %v4621 = vpop.f32.mrf.mxu0
      %v4622 = vpop.f32.mrf.mxu0
      %v4623 = vadd.f32 %v4473, %v4622
      %v4624 = vpop.f32.mrf.mxu0
      %4625 = vmatprep.mubr.bf16.mxu0 0
      %4626 = vmatmul.mubr.bf16.gmra.mxu0 %v4516
      %v4627 = vpop.f32.mrf.mxu0
      %v4628 = vadd.f32 %v4473, %v4627
      %v4629 = vpop.f32.mrf.mxu0
      %v4630 = vpop.f32.mrf.mxu0
      %v4631 = vadd.f32 %v4473, %v4630
      %v4632 = vpop.f32.mrf.mxu0
      %4633 = vmatprep.mubr.bf16.mxu0 0
      %4634 = vmatmul.mubr.bf16.gmra.mxu0 %v4519
      %v4635 = vpop.f32.mrf.mxu0
      %v4636 = vadd.f32 %v4473, %v4635
      %v4637 = vpop.f32.mrf.mxu0
      %v4638 = vpop.f32.mrf.mxu0
      %v4639 = vadd.f32 %v4473, %v4638
      %v4640 = vpop.f32.mrf.mxu0
      %4641 = vmatprep.mubr.bf16.mxu0 0
      %4642 = vmatmul.mubr.bf16.gmra.mxu0 %v4522
      %v4643 = vpop.f32.mrf.mxu0
      %v4644 = vadd.f32 %v4473, %v4643
      %v4645 = vpop.f32.mrf.mxu0
      %v4646 = vpop.f32.mrf.mxu0
      %v4647 = vadd.f32 %v4473, %v4646
      %v4648 = vpop.f32.mrf.mxu0
      %4649 = vmatprep.mubr.bf16.mxu0 0
      %4650 = vmatmul.mubr.bf16.gmra.mxu0 %v4525
      %v4651 = vpop.f32.mrf.mxu0
      %v4652 = vadd.f32 %v4473, %v4651
      %v4653 = vpop.f32.mrf.mxu0
      %v4654 = vpop.f32.mrf.mxu0
      %v4655 = vadd.f32 %v4473, %v4654
      %v4656 = vpop.f32.mrf.mxu0
      %4657 = vmatprep.mubr.bf16.mxu0 0
      %4658 = vmatmul.mubr.bf16.gmra.mxu0 %v4528
      %v4659 = vpop.f32.mrf.mxu0
      %v4660 = vadd.f32 %v4473, %v4659
      %v4661 = vpop.f32.mrf.mxu0
      %v4662 = vpop.f32.mrf.mxu0
      %v4663 = vadd.f32 %v4473, %v4662
      %v4664 = vpop.f32.mrf.mxu0
      %4665 = vmatprep.mubr.bf16.mxu0 0
      %4666 = vmatmul.mubr.bf16.gmra.mxu0 %v4531
      %v4667 = vpop.f32.mrf.mxu0
      %v4668 = vadd.f32 %v4473, %v4667
      %v4669 = vpop.f32.mrf.mxu0
      %v4670 = vpop.f32.mrf.mxu0
      %v4671 = vadd.f32 %v4473, %v4670
      %v4672 = vpop.f32.mrf.mxu0
      %4673 = vmatprep.mubr.bf16.mxu0 0
      %4674 = vmatmul.mubr.bf16.gmra.mxu0 %v4534
      %v4675 = vpop.f32.mrf.mxu0
      %v4676 = vadd.f32 %v4473, %v4675
      %v4677 = vpop.f32.mrf.mxu0
      %v4678 = vpop.f32.mrf.mxu0
      %v4679 = vadd.f32 %v4473, %v4678
      %v4680 = vpop.f32.mrf.mxu0
      %4681 = vmatprep.mubr.bf16.mxu0 0
      %4682 = vmatmul.mubr.bf16.gmra.mxu0 %v4537
      %v4683 = vpop.f32.mrf.mxu0
      %v4684 = vadd.f32 %v4473, %v4683
      %v4685 = vpop.f32.mrf.mxu0
      %v4686 = vpop.f32.mrf.mxu0
      %v4687 = vadd.f32 %v4473, %v4686
      %v4688 = vpop.f32.mrf.mxu0
      %4689 = vmatprep.mubr.bf16.mxu0 0
      %4690 = vmatmul.mubr.bf16.gmra.mxu0 %v4540
      %v4691 = vpop.f32.mrf.mxu0
      %v4692 = vadd.f32 %v4473, %v4691
      %v4693 = vpop.f32.mrf.mxu0
      %v4694 = vpop.f32.mrf.mxu0
      %v4695 = vadd.f32 %v4473, %v4694
      %v4696 = vpop.f32.mrf.mxu0
      %4697 = vmatprep.mubr.bf16.mxu0 0
      %4698 = vmatmul.mubr.bf16.gmra.mxu0 %v4543
      %v4699 = vpop.f32.mrf.mxu0
      %v4700 = vadd.f32 %v4473, %v4699
      %v4701 = vpop.f32.mrf.mxu0
      %v4702 = vpop.f32.mrf.mxu0
      %v4703 = vadd.f32 %v4473, %v4702
      %v4704 = vpop.f32.mrf.mxu0
      %4705 = vmatprep.mubr.bf16.mxu0 0
      %4706 = vmatmul.mubr.bf16.gmra.mxu0 %v4546
      %v4707 = vpop.f32.mrf.mxu0
      %v4708 = vadd.f32 %v4473, %v4707
      %v4709 = vpop.f32.mrf.mxu0
      %v4710 = vpop.f32.mrf.mxu0
      %v4711 = vadd.f32 %v4473, %v4710
      %v4712 = vpop.f32.mrf.mxu0
      %4713 = vmatprep.mubr.bf16.mxu0 0
      %4714 = vmatmul.mubr.bf16.gmra.mxu0 %v4549
      %v4715 = vpop.f32.mrf.mxu0
      %v4716 = vadd.f32 %v4473, %v4715
      %v4717 = vpop.f32.mrf.mxu0
      %v4718 = vpop.f32.mrf.mxu0
      %v4719 = vadd.f32 %v4473, %v4718
      %v4720 = vpop.f32.mrf.mxu0
      %4721 = vmatprep.mubr.bf16.mxu0 0
      %4722 = vmatmul.mubr.bf16.gmra.mxu0 %v4552
      %v4723 = vpop.f32.mrf.mxu0
      %v4724 = vadd.f32 %v4473, %v4723
      %v4725 = vpop.f32.mrf.mxu0
      %v4726 = vpop.f32.mrf.mxu0
      %v4727 = vadd.f32 %v4473, %v4726
      %v4728 = vpop.f32.mrf.mxu0
      %4729 = vmatprep.mubr.bf16.mxu0 0
      %4730 = vmatmul.mubr.bf16.gmra.mxu0 %v4555
      %v4731 = vpop.f32.mrf.mxu0
      %v4732 = vadd.f32 %v4473, %v4731
      %v4733 = vpop.f32.mrf.mxu0
      %v4734 = vpop.f32.mrf.mxu0
      %v4735 = vadd.f32 %v4473, %v4734
      %v4736 = vpop.f32.mrf.mxu0
      %4737 = vdwg.mxu0
      %vm4738 = vcmp.ge.f32.partialorder %v4596, 0.0
      %vm4739 = vcmp.ge.f32.partialorder %v4599, 0.0
      %vm4740 = vcmp.ge.f32.partialorder %v4604, 0.0
      %vm4741 = vcmp.ge.f32.partialorder %v4607, 0.0
      %vm4742 = vcmp.ge.f32.partialorder %v4612, 0.0
      %vm4743 = vcmp.ge.f32.partialorder %v4615, 0.0
      %vm4744 = vcmp.ge.f32.partialorder %v4620, 0.0
      %vm4745 = vcmp.ge.f32.partialorder %v4623, 0.0
      %vm4746 = vcmp.ge.f32.partialorder %v4628, 0.0
      %vm4747 = vcmp.ge.f32.partialorder %v4631, 0.0
      %vm4748 = vcmp.ge.f32.partialorder %v4636, 0.0
      %vm4749 = vcmp.ge.f32.partialorder %v4639, 0.0
      %vm4750 = vcmp.ge.f32.partialorder %v4644, 0.0
      %vm4751 = vcmp.ge.f32.partialorder %v4647, 0.0
      %vm4752 = vcmp.ge.f32.partialorder %v4652, 0.0
      %vm4753 = vcmp.ge.f32.partialorder %v4655, 0.0
      %vm4754 = vcmp.ge.f32.partialorder %v4660, 0.0
      %vm4755 = vcmp.ge.f32.partialorder %v4663, 0.0
      %vm4756 = vcmp.ge.f32.partialorder %v4668, 0.0
      %vm4757 = vcmp.ge.f32.partialorder %v4671, 0.0
      %vm4758 = vcmp.ge.f32.partialorder %v4676, 0.0
      %vm4759 = vcmp.ge.f32.partialorder %v4679, 0.0
      %vm4760 = vcmp.ge.f32.partialorder %v4684, 0.0
      %vm4761 = vcmp.ge.f32.partialorder %v4687, 0.0
      %vm4762 = vcmp.ge.f32.partialorder %v4692, 0.0
      %vm4763 = vcmp.ge.f32.partialorder %v4695, 0.0
      %vm4764 = vcmp.ge.f32.partialorder %v4700, 0.0
      %vm4765 = vcmp.ge.f32.partialorder %v4703, 0.0
      %vm4766 = vcmp.ge.f32.partialorder %v4708, 0.0
      %vm4767 = vcmp.ge.f32.partialorder %v4711, 0.0
      %vm4768 = vcmp.ge.f32.partialorder %v4716, 0.0
      %vm4769 = vcmp.ge.f32.partialorder %v4719, 0.0
      %vm4770 = vcmp.ge.f32.partialorder %v4724, 0.0
      %vm4771 = vcmp.ge.f32.partialorder %v4727, 0.0
      %vm4772 = vcmp.ge.f32.partialorder %v4732, 0.0
      %vm4773 = vcmp.ge.f32.partialorder %v4735, 0.0
      %v4774 = vmul.f32 %v4596, 0.1
      %v4775 = vmul.f32 %v4599, 0.1
      %v4776 = vmul.f32 %v4604, 0.1
      %v4777 = vmul.f32 %v4607, 0.1
      %v4778 = vmul.f32 %v4612, 0.1
      %v4779 = vmul.f32 %v4615, 0.1
      %v4780 = vmul.f32 %v4620, 0.1
      %v4781 = vmul.f32 %v4623, 0.1
      %v4782 = vmul.f32 %v4628, 0.1
      %v4783 = vmul.f32 %v4631, 0.1
      %v4784 = vmul.f32 %v4636, 0.1
      %v4785 = vmul.f32 %v4639, 0.1
      %v4786 = vmul.f32 %v4644, 0.1
      %v4787 = vmul.f32 %v4647, 0.1
      %v4788 = vmul.f32 %v4652, 0.1
      %v4789 = vmul.f32 %v4655, 0.1
      %v4790 = vmul.f32 %v4660, 0.1
      %v4791 = vmul.f32 %v4663, 0.1
      %v4792 = vmul.f32 %v4668, 0.1
      %v4793 = vmul.f32 %v4671, 0.1
      %v4794 = vmul.f32 %v4676, 0.1
      %v4795 = vmul.f32 %v4679, 0.1
      %v4796 = vmul.f32 %v4684, 0.1
      %v4797 = vmul.f32 %v4687, 0.1
      %v4798 = vmul.f32 %v4692, 0.1
      %v4799 = vmul.f32 %v4695, 0.1
      %v4800 = vmul.f32 %v4700, 0.1
      %v4801 = vmul.f32 %v4703, 0.1
      %v4802 = vmul.f32 %v4708, 0.1
      %v4803 = vmul.f32 %v4711, 0.1
      %v4804 = vmul.f32 %v4716, 0.1
      %v4805 = vmul.f32 %v4719, 0.1
      %v4806 = vmul.f32 %v4724, 0.1
      %v4807 = vmul.f32 %v4727, 0.1
      %v4808 = vmul.f32 %v4732, 0.1
      %v4809 = vmul.f32 %v4735, 0.1
      %v4810 = vsel %vm4738, %v4596, %v4774
      %v4811 = vsel %vm4739, %v4599, %v4775
      %v4812 = vsel %vm4740, %v4604, %v4776
      %v4813 = vsel %vm4741, %v4607, %v4777
      %v4814 = vsel %vm4742, %v4612, %v4778
      %v4815 = vsel %vm4743, %v4615, %v4779
      %v4816 = vsel %vm4744, %v4620, %v4780
      %v4817 = vsel %vm4745, %v4623, %v4781
      %v4818 = vsel %vm4746, %v4628, %v4782
      %v4819 = vsel %vm4747, %v4631, %v4783
      %v4820 = vsel %vm4748, %v4636, %v4784
      %v4821 = vsel %vm4749, %v4639, %v4785
      %v4822 = vsel %vm4750, %v4644, %v4786
      %v4823 = vsel %vm4751, %v4647, %v4787
      %v4824 = vsel %vm4752, %v4652, %v4788
      %v4825 = vsel %vm4753, %v4655, %v4789
      %v4826 = vsel %vm4754, %v4660, %v4790
      %v4827 = vsel %vm4755, %v4663, %v4791
      %v4828 = vsel %vm4756, %v4668, %v4792
      %v4829 = vsel %vm4757, %v4671, %v4793
      %v4830 = vsel %vm4758, %v4676, %v4794
      %v4831 = vsel %vm4759, %v4679, %v4795
      %v4832 = vsel %vm4760, %v4684, %v4796
      %v4833 = vsel %vm4761, %v4687, %v4797
      %v4834 = vsel %vm4762, %v4692, %v4798
      %v4835 = vsel %vm4763, %v4695, %v4799
      %v4836 = vsel %vm4764, %v4700, %v4800
      %v4837 = vsel %vm4765, %v4703, %v4801
      %v4838 = vsel %vm4766, %v4708, %v4802
      %v4839 = vsel %vm4767, %v4711, %v4803
      %v4840 = vsel %vm4768, %v4716, %v4804
      %v4841 = vsel %vm4769, %v4719, %v4805
      %v4842 = vsel %vm4770, %v4724, %v4806
      %v4843 = vsel %vm4771, %v4727, %v4807
      %v4844 = vsel %vm4772, %v4732, %v4808
      %v4845 = vsel %vm4773, %v4735, %v4809
      %4846 = vst.msk [vmem:[#allocation3 + $0x18] sm:$0xff] %vm1861, %v4810
      %4847 = vst.msk [vmem:[#allocation3 + $0x20] sm:$0xff] %vm1861, %v4811
      %4848 = vst.msk [vmem:[#allocation3 + $0x28] sm:$0xff] %vm1861, %v4812
      %4849 = vst.msk [vmem:[#allocation3 + $0x30] sm:$0xff] %vm1861, %v4813
      %4850 = vst.msk [vmem:[#allocation3 + $0x38] sm:$0xff] %vm1861, %v4814
      %4851 = vst.msk [vmem:[#allocation3 + $0x40] sm:$0xff] %vm1861, %v4815
      %4852 = vst.msk [vmem:[#allocation3 + $0x48] sm:$0xff] %vm1861, %v4816
      %4853 = vst.msk [vmem:[#allocation3 + $0x50] sm:$0xff] %vm1861, %v4817
      %4854 = vst.msk [vmem:[#allocation3 + $0x58] sm:$0xff] %vm1861, %v4818
      %4855 = vst.msk [vmem:[#allocation3 + $0x60] sm:$0xff] %vm1861, %v4819
      %4856 = vst.msk [vmem:[#allocation3 + $0x68] sm:$0xff] %vm1861, %v4820
      %4857 = vst.msk [vmem:[#allocation3 + $0x70] sm:$0xff] %vm1861, %v4821
      %4858 = vst.msk [vmem:[#allocation3 + $0x78] sm:$0xff] %vm1861, %v4822
      %4859 = vst.msk [vmem:[#allocation3 + $0x80] sm:$0xff] %vm1861, %v4823
      %4860 = vst.msk [vmem:[#allocation3 + $0x88] sm:$0xff] %vm1861, %v4824
      %4861 = vst.msk [vmem:[#allocation3 + $0x90] sm:$0xff] %vm1861, %v4825
      %4862 = vst.msk [vmem:[#allocation3 + $0x98] sm:$0xff] %vm1861, %v4826
      %4863 = vst.msk [vmem:[#allocation3 + $0xa0] sm:$0xff] %vm1861, %v4827
      %4864 = vst.msk [vmem:[#allocation3 + $0xa8] sm:$0xff] %vm1861, %v4828
      %4865 = vst.msk [vmem:[#allocation3 + $0xb0] sm:$0xff] %vm1861, %v4829
      %4866 = vst.msk [vmem:[#allocation3 + $0xb8] sm:$0xff] %vm1861, %v4830
      %4867 = vst.msk [vmem:[#allocation3 + $0xc0] sm:$0xff] %vm1861, %v4831
      %4868 = vst.msk [vmem:[#allocation3 + $0xc8] sm:$0xff] %vm1861, %v4832
      %4869 = vst.msk [vmem:[#allocation3 + $0xd0] sm:$0xff] %vm1861, %v4833
      %4870 = vst.msk [vmem:[#allocation3 + $0xd8] sm:$0xff] %vm1861, %v4834
      %4871 = vst.msk [vmem:[#allocation3 + $0xe0] sm:$0xff] %vm1861, %v4835
      %4872 = vst.msk [vmem:[#allocation3 + $0xe8] sm:$0xff] %vm1861, %v4836
      %4873 = vst.msk [vmem:[#allocation3 + $0xf0] sm:$0xff] %vm1861, %v4837
      %4874 = vst.msk [vmem:[#allocation3 + $0xf8] sm:$0xff] %vm1861, %v4838
      %4875 = vst.msk [vmem:[#allocation3 + $0x100] sm:$0xff] %vm1861, %v4839
      %4876 = vst.msk [vmem:[#allocation3 + $0x108] sm:$0xff] %vm1861, %v4840
      %4877 = vst.msk [vmem:[#allocation3 + $0x110] sm:$0xff] %vm1861, %v4841
      %4878 = vst.msk [vmem:[#allocation3 + $0x118] sm:$0xff] %vm1861, %v4842
      %4879 = vst.msk [vmem:[#allocation3 + $0x120] sm:$0xff] %vm1861, %v4843
      %4880 = vst.msk [vmem:[#allocation3 + $0x128] sm:$0xff] %vm1861, %v4844
      %4881 = vst.msk [vmem:[#allocation3 + $0x130] sm:$0x3f] %vm2803, %v4845
      %4882 = vst.msk [vmem:[#allocation6] sm:$0xff] %vm1861, 0.0
      %4883 = vst.msk [vmem:[#allocation6 + $0x8] sm:$0xff] %vm1861, 0.0
      %4884 = vst.msk [vmem:[#allocation6 + $0x10] sm:$0xff] %vm1861, 0.0
      %4885 = vst.msk [vmem:[#allocation6 + $0x18] sm:$0xff] %vm1861, 0.0
      %4886 = vst.msk [vmem:[#allocation6 + $0x20] sm:$0xff] %vm1861, 0.0
      %4887 = vst.msk [vmem:[#allocation6 + $0x28] sm:$0xff] %vm1861, 0.0
      %4888 = vst.msk [vmem:[#allocation6 + $0x30] sm:$0xff] %vm1861, 0.0
      %4889 = vst.msk [vmem:[#allocation6 + $0x38] sm:$0xff] %vm1861, 0.0
      %4890 = vst.msk [vmem:[#allocation6 + $0x40] sm:$0xff] %vm1861, 0.0
      %4891 = vst.msk [vmem:[#allocation6 + $0x48] sm:$0xff] %vm1861, 0.0
      %4892 = vst.msk [vmem:[#allocation6 + $0x50] sm:$0xff] %vm1861, 0.0
      %4893 = vst.msk [vmem:[#allocation6 + $0x58] sm:$0xff] %vm1861, 0.0
      %4894 = vst.msk [vmem:[#allocation6 + $0x60] sm:$0xff] %vm1861, 0.0
      %vm4895 = vcmask 57344
      %4896 = vst.msk [vmem:[#allocation6 + $0x68] sm:$0x1] %vm4895, 0.0
      %s4897 = scalar_lea.vmem [#allocation3], 24
      %v4898 = vld [vmem:[%s4897] ss:$2 sm:$0xff]
      %s4899 = scalar_lea.vmem [#allocation3], 25
      %v4900 = vld [vmem:[%s4899] ss:$2 sm:$0xff]
      %s4901 = scalar_lea.vmem [#allocation3], 42
      %v4902 = vld [vmem:[%s4901] ss:$2 sm:$0xff]
      %s4903 = scalar_lea.vmem [#allocation3], 43
      %v4904 = vld [vmem:[%s4903] ss:$2 sm:$0xff]
      %v4905 = vmax.f32 %v4898, %v4900
      %v4906 = vmax.f32 %v4902, %v4904
      %v4907 = vmax.f32 %v4905, %v4906
      %4908 = vst.msk [vmem:[#allocation6 + $0x10] sm:$0xff] %vm1861, %v4907
      %s4909 = scalar_lea.vmem [#allocation3], 60
      %v4910 = vld [vmem:[%s4909] ss:$2 sm:$0xff]
      %s4911 = scalar_lea.vmem [#allocation3], 61
      %v4912 = vld [vmem:[%s4911] ss:$2 sm:$0xff]
      %s4913 = scalar_lea.vmem [#allocation3], 78
      %v4914 = vld [vmem:[%s4913] ss:$2 sm:$0xff]
      %s4915 = scalar_lea.vmem [#allocation3], 79
      %v4916 = vld [vmem:[%s4915] ss:$2 sm:$0xff]
      %v4917 = vmax.f32 %v4910, %v4912
      %v4918 = vmax.f32 %v4914, %v4916
      %v4919 = vmax.f32 %v4917, %v4918
      %4920 = vst.msk [vmem:[#allocation6 + $0x1a] sm:$0xff] %vm1861, %v4919
      %s4921 = scalar_lea.vmem [#allocation3], 96
      %v4922 = vld [vmem:[%s4921] ss:$2 sm:$0xff]
      %s4923 = scalar_lea.vmem [#allocation3], 97
      %v4924 = vld [vmem:[%s4923] ss:$2 sm:$0xff]
      %s4925 = scalar_lea.vmem [#allocation3], 114
      %v4926 = vld [vmem:[%s4925] ss:$2 sm:$0xff]
      %s4927 = scalar_lea.vmem [#allocation3], 115
      %v4928 = vld [vmem:[%s4927] ss:$2 sm:$0xff]
      %v4929 = vmax.f32 %v4922, %v4924
      %v4930 = vmax.f32 %v4926, %v4928
      %v4931 = vmax.f32 %v4929, %v4930
      %4932 = vst.msk [vmem:[#allocation6 + $0x24] sm:$0xff] %vm1861, %v4931
      %s4933 = scalar_lea.vmem [#allocation3], 132
      %v4934 = vld [vmem:[%s4933] ss:$2 sm:$0xff]
      %s4935 = scalar_lea.vmem [#allocation3], 133
      %v4936 = vld [vmem:[%s4935] ss:$2 sm:$0xff]
      %s4937 = scalar_lea.vmem [#allocation3], 150
      %v4938 = vld [vmem:[%s4937] ss:$2 sm:$0xff]
      %s4939 = scalar_lea.vmem [#allocation3], 151
      %v4940 = vld [vmem:[%s4939] ss:$2 sm:$0xff]
      %v4941 = vmax.f32 %v4934, %v4936
      %v4942 = vmax.f32 %v4938, %v4940
      %v4943 = vmax.f32 %v4941, %v4942
      %4944 = vst.msk [vmem:[#allocation6 + $0x2e] sm:$0xff] %vm1861, %v4943
      %s4945 = scalar_lea.vmem [#allocation3], 168
      %v4946 = vld [vmem:[%s4945] ss:$2 sm:$0xff]
      %s4947 = scalar_lea.vmem [#allocation3], 169
      %v4948 = vld [vmem:[%s4947] ss:$2 sm:$0xff]
      %s4949 = scalar_lea.vmem [#allocation3], 186
      %v4950 = vld [vmem:[%s4949] ss:$2 sm:$0xff]
      %s4951 = scalar_lea.vmem [#allocation3], 187
      %v4952 = vld [vmem:[%s4951] ss:$2 sm:$0xff]
      %v4953 = vmax.f32 %v4946, %v4948
      %v4954 = vmax.f32 %v4950, %v4952
      %v4955 = vmax.f32 %v4953, %v4954
      %4956 = vst.msk [vmem:[#allocation6 + $0x38] sm:$0xff] %vm1861, %v4955
      %s4957 = scalar_lea.vmem [#allocation3], 204
      %v4958 = vld [vmem:[%s4957] ss:$2 sm:$0xff]
      %s4959 = scalar_lea.vmem [#allocation3], 205
      %v4960 = vld [vmem:[%s4959] ss:$2 sm:$0xff]
      %s4961 = scalar_lea.vmem [#allocation3], 222
      %v4962 = vld [vmem:[%s4961] ss:$2 sm:$0xff]
      %s4963 = scalar_lea.vmem [#allocation3], 223
      %v4964 = vld [vmem:[%s4963] ss:$2 sm:$0xff]
      %v4965 = vmax.f32 %v4958, %v4960
      %v4966 = vmax.f32 %v4962, %v4964
      %v4967 = vmax.f32 %v4965, %v4966
      %4968 = vst.msk [vmem:[#allocation6 + $0x42] sm:$0xff] %vm1861, %v4967
      %s4969 = scalar_lea.vmem [#allocation3], 240
      %v4970 = vld [vmem:[%s4969] ss:$2 sm:$0xff]
      %s4971 = scalar_lea.vmem [#allocation3], 241
      %v4972 = vld [vmem:[%s4971] ss:$2 sm:$0xff]
      %s4973 = scalar_lea.vmem [#allocation3], 258
      %v4974 = vld [vmem:[%s4973] ss:$2 sm:$0xff]
      %s4975 = scalar_lea.vmem [#allocation3], 259
      %v4976 = vld [vmem:[%s4975] ss:$2 sm:$0xff]
      %v4977 = vmax.f32 %v4970, %v4972
      %v4978 = vmax.f32 %v4974, %v4976
      %v4979 = vmax.f32 %v4977, %v4978
      %4980 = vst.msk [vmem:[#allocation6 + $0x4c] sm:$0xff] %vm1861, %v4979
      %s4981 = scalar_lea.vmem [#allocation3], 276
      %v4982 = vld [vmem:[%s4981] ss:$2 sm:$0xff]
      %s4983 = scalar_lea.vmem [#allocation3], 277
      %v4984 = vld [vmem:[%s4983] ss:$2 sm:$0xff]
      %s4985 = scalar_lea.vmem [#allocation3], 294
      %v4986 = vld [vmem:[%s4985] ss:$2 sm:$0xff]
      %s4987 = scalar_lea.vmem [#allocation3], 295
      %v4988 = vld [vmem:[%s4987] ss:$2 sm:$0xff]
      %v4989 = vmax.f32 %v4982, %v4984
      %v4990 = vmax.f32 %v4986, %v4988
      %v4991 = vmax.f32 %v4989, %v4990
      %4992 = vst.msk [vmem:[#allocation6 + $0x56] sm:$0xff] %vm1861, %v4991
      %4993 = vxpose.xlu0.b32.start [1/16] %v4907, 128
      %4994 = vxpose.xlu0.b32.cont [2/16] %v4919, 128
      %4995 = vxpose.xlu0.b32.cont [3/16] %v4931, 128
      %4996 = vxpose.xlu0.b32.cont [4/16] %v4943, 128
      %4997 = vxpose.xlu0.b32.cont [5/16] %v4955, 128
      %4998 = vxpose.xlu0.b32.cont [6/16] %v4967, 128
      %4999 = vxpose.xlu0.b32.cont [7/16] %v4979, 128
      %5000 = vxpose.xlu0.b32.cont [8/16] %v4991, 128
      %5001 = vxpose.xlu0.b32.cont [9/16] 0.0, 128
      %5002 = vxpose.xlu0.b32.cont [10/16] 0.0, 128
      %5003 = vxpose.xlu0.b32.cont [11/16] 0.0, 128
      %5004 = vxpose.xlu0.b32.cont [12/16] 0.0, 128
      %5005 = vxpose.xlu0.b32.cont [13/16] 0.0, 128
      %5006 = vxpose.xlu0.b32.cont [14/16] 0.0, 128
      %5007 = vxpose.xlu0.b32.cont [15/16] 0.0, 128
      %5008 = vxpose.xlu0.b32.end [16/16] 0.0, 128
      %v5009 = vpop.trf.xlu0
      %v5010 = vpop.trf.xlu0
      %v5011 = vpop.trf.xlu0
      %v5012 = vpop.trf.xlu0
      %v5013 = vpop.trf.xlu0
      %v5014 = vpop.trf.xlu0
      %v5015 = vpop.trf.xlu0
      %v5016 = vpop.trf.xlu0
      %v5017 = vpop.trf.xlu0
      %v5018 = vpop.trf.xlu0
      %v5019 = vpop.trf.xlu0
      %v5020 = vpop.trf.xlu0
      %v5021 = vpop.trf.xlu0
      %v5022 = vpop.trf.xlu0
      %v5023 = vpop.trf.xlu0
      %v5024 = vpop.trf.xlu0
      %5025 = vst.msk [vmem:[%s473] sm:$0xff] %vm4404, %v5009
      %v5026 = vld [vmem:[#allocation6 + $0x5] sm:$0xff]
      %v5027 = vld [vmem:[#allocation6 + $0xd] sm:$0xff]
      %v5028 = vld [vmem:[#allocation6 + $0x15] sm:$0xff]
      %v5029 = vld [vmem:[#allocation6 + $0x1d] sm:$0xff]
      %v5030 = vld [vmem:[#allocation6 + $0x25] sm:$0xff]
      %v5031 = vld [vmem:[#allocation6 + $0x2d] sm:$0xff]
      %v5032 = vld [vmem:[#allocation6 + $0x35] sm:$0xff]
      %v5033 = vld [vmem:[#allocation6 + $0x3d] sm:$0xff]
      %v5034 = vld [vmem:[#allocation6 + $0x45] sm:$0xff]
      %v5035 = vld [vmem:[#allocation6 + $0x4d] sm:$0x3f]
      %v5036 = vld [vmem:[#allocation6 + $0x6] sm:$0xff]
      %v5037 = vld [vmem:[#allocation6 + $0xe] sm:$0xff]
      %v5038 = vld [vmem:[#allocation6 + $0x16] sm:$0xff]
      %v5039 = vld [vmem:[#allocation6 + $0x1e] sm:$0xff]
      %v5040 = vld [vmem:[#allocation6 + $0x26] sm:$0xff]
      %v5041 = vld [vmem:[#allocation6 + $0x2e] sm:$0xff]
      %v5042 = vld [vmem:[#allocation6 + $0x36] sm:$0xff]
      %v5043 = vld [vmem:[#allocation6 + $0x3e] sm:$0xff]
      %v5044 = vld [vmem:[#allocation6 + $0x46] sm:$0xff]
      %v5045 = vld [vmem:[#allocation6 + $0x4e] sm:$0x3f]
      %v5046 = vld [vmem:[#allocation6 + $0x7] sm:$0xff]
      %v5047 = vld [vmem:[#allocation6 + $0xf] sm:$0xff]
      %v5048 = vld [vmem:[#allocation6 + $0x17] sm:$0xff]
      %v5049 = vld [vmem:[#allocation6 + $0x1f] sm:$0xff]
      %v5050 = vld [vmem:[#allocation6 + $0x27] sm:$0xff]
      %v5051 = vld [vmem:[#allocation6 + $0x2f] sm:$0xff]
      %v5052 = vld [vmem:[#allocation6 + $0x37] sm:$0xff]
      %v5053 = vld [vmem:[#allocation6 + $0x3f] sm:$0xff]
      %v5054 = vld [vmem:[#allocation6 + $0x47] sm:$0xff]
      %v5055 = vld [vmem:[#allocation6 + $0x4f] sm:$0x3f]
      %v5056 = vld [vmem:[#allocation6 + $0x4f] sm:$0xff]
      %v5057 = vld [vmem:[#allocation6 + $0x57] sm:$0x3f]
      %v5058 = vld [vmem:[#allocation6 + $0x10] sm:$0xff]
      %v5059 = vld [vmem:[#allocation6 + $0x18] sm:$0xff]
      %v5060 = vld [vmem:[#allocation6 + $0x20] sm:$0xff]
      %v5061 = vld [vmem:[#allocation6 + $0x28] sm:$0xff]
      %v5062 = vld [vmem:[#allocation6 + $0x30] sm:$0xff]
      %v5063 = vld [vmem:[#allocation6 + $0x38] sm:$0xff]
      %v5064 = vld [vmem:[#allocation6 + $0x40] sm:$0xff]
      %v5065 = vld [vmem:[#allocation6 + $0x48] sm:$0xff]
      %v5066 = vld [vmem:[#allocation6 + $0x50] sm:$0xff]
      %v5067 = vld [vmem:[#allocation6 + $0x58] sm:$0x3f]
      %v5068 = vld [vmem:[#allocation6 + $0x11] sm:$0xff]
      %v5069 = vld [vmem:[#allocation6 + $0x19] sm:$0xff]
      %v5070 = vld [vmem:[#allocation6 + $0x21] sm:$0xff]
      %v5071 = vld [vmem:[#allocation6 + $0x29] sm:$0xff]
      %v5072 = vld [vmem:[#allocation6 + $0x31] sm:$0xff]
      %v5073 = vld [vmem:[#allocation6 + $0x39] sm:$0xff]
      %v5074 = vld [vmem:[#allocation6 + $0x41] sm:$0xff]
      %v5075 = vld [vmem:[#allocation6 + $0x49] sm:$0xff]
      %v5076 = vld [vmem:[#allocation6 + $0x51] sm:$0xff]
      %v5077 = vld [vmem:[#allocation6 + $0x59] sm:$0x3f]
      %v5078 = vld [vmem:[#allocation6 + $0x59] sm:$0xff]
      %v5079 = vld [vmem:[#allocation6 + $0x61] sm:$0x3f]
      %v5080 = vld [vmem:[#allocation6 + $0x1a] sm:$0xff]
      %v5081 = vld [vmem:[#allocation6 + $0x22] sm:$0xff]
      %v5082 = vld [vmem:[#allocation6 + $0x2a] sm:$0xff]
      %v5083 = vld [vmem:[#allocation6 + $0x32] sm:$0xff]
      %v5084 = vld [vmem:[#allocation6 + $0x3a] sm:$0xff]
      %v5085 = vld [vmem:[#allocation6 + $0x42] sm:$0xff]
      %v5086 = vld [vmem:[#allocation6 + $0x4a] sm:$0xff]
      %v5087 = vld [vmem:[#allocation6 + $0x52] sm:$0xff]
      %v5088 = vld [vmem:[#allocation6 + $0x5a] sm:$0xff]
      %v5089 = vld [vmem:[#allocation6 + $0x62] sm:$0x3f]
      %v5090 = vld [vmem:[#allocation6 + $0x1b] sm:$0xff]
      %v5091 = vld [vmem:[#allocation6 + $0x23] sm:$0xff]
      %v5092 = vld [vmem:[#allocation6 + $0x2b] sm:$0xff]
      %v5093 = vld [vmem:[#allocation6 + $0x33] sm:$0xff]
      %v5094 = vld [vmem:[#allocation6 + $0x3b] sm:$0xff]
      %v5095 = vld [vmem:[#allocation6 + $0x43] sm:$0xff]
      %v5096 = vld [vmem:[#allocation6 + $0x4b] sm:$0xff]
      %v5097 = vld [vmem:[#allocation6 + $0x53] sm:$0xff]
      %v5098 = vld [vmem:[#allocation6 + $0x5b] sm:$0xff]
      %v5099 = vld [vmem:[#allocation6 + $0x63] sm:$0x3f]
      %5110 = vrot.lane.b32.xlu0 %v5036, 8
      %v5111 = vpop.permute.xlu0 %5110
      %5112 = vrot.lane.b32.xlu0 %v5037, 8
      %v5113 = vpop.permute.xlu0 %5112
      %5114 = vrot.lane.b32.xlu0 %v5038, 8
      %v5115 = vpop.permute.xlu0 %5114
      %5116 = vrot.lane.b32.xlu0 %v5039, 8
      %v5117 = vpop.permute.xlu0 %5116
      %5118 = vrot.lane.b32.xlu0 %v5040, 8
      %v5119 = vpop.permute.xlu0 %5118
      %5120 = vrot.lane.b32.xlu0 %v5041, 8
      %v5121 = vpop.permute.xlu0 %5120
      %5122 = vrot.lane.b32.xlu0 %v5042, 8
      %v5123 = vpop.permute.xlu0 %5122
      %5124 = vrot.lane.b32.xlu0 %v5043, 8
      %v5125 = vpop.permute.xlu0 %5124
      %5126 = vrot.lane.b32.xlu0 %v5044, 8
      %v5127 = vpop.permute.xlu0 %5126
      %5128 = vrot.lane.b32.xlu0 %v5045, 8
      %v5129 = vpop.permute.xlu0 %5128
      %5150 = vrot.lane.b32.xlu0 %v5046, 16
      %v5151 = vpop.permute.xlu0 %5150
      %5152 = vrot.lane.b32.xlu0 %v5047, 16
      %v5153 = vpop.permute.xlu0 %5152
      %5154 = vrot.lane.b32.xlu0 %v5048, 16
      %v5155 = vpop.permute.xlu0 %5154
      %5156 = vrot.lane.b32.xlu0 %v5049, 16
      %v5157 = vpop.permute.xlu0 %5156
      %5158 = vrot.lane.b32.xlu0 %v5050, 16
      %v5159 = vpop.permute.xlu0 %5158
      %5160 = vrot.lane.b32.xlu0 %v5051, 16
      %v5161 = vpop.permute.xlu0 %5160
      %5162 = vrot.lane.b32.xlu0 %v5052, 16
      %v5163 = vpop.permute.xlu0 %5162
      %5164 = vrot.lane.b32.xlu0 %v5053, 16
      %v5165 = vpop.permute.xlu0 %5164
      %5166 = vrot.lane.b32.xlu0 %v5054, 16
      %v5167 = vpop.permute.xlu0 %5166
      %5168 = vrot.lane.b32.xlu0 %v5055, 16
      %v5169 = vpop.permute.xlu0 %5168
      %5182 = vrot.lane.b32.xlu0 %v5047, 24
      %v5183 = vpop.permute.xlu0 %5182
      %5184 = vrot.lane.b32.xlu0 %v5048, 24
      %v5185 = vpop.permute.xlu0 %5184
      %5186 = vrot.lane.b32.xlu0 %v5049, 24
      %v5187 = vpop.permute.xlu0 %5186
      %5188 = vrot.lane.b32.xlu0 %v5050, 24
      %v5189 = vpop.permute.xlu0 %5188
      %5190 = vrot.lane.b32.xlu0 %v5051, 24
      %v5191 = vpop.permute.xlu0 %5190
      %5192 = vrot.lane.b32.xlu0 %v5052, 24
      %v5193 = vpop.permute.xlu0 %5192
      %5194 = vrot.lane.b32.xlu0 %v5053, 24
      %v5195 = vpop.permute.xlu0 %5194
      %5196 = vrot.lane.b32.xlu0 %v5054, 24
      %v5197 = vpop.permute.xlu0 %5196
      %5198 = vrot.lane.b32.xlu0 %v5056, 24
      %v5199 = vpop.permute.xlu0 %5198
      %5200 = vrot.lane.b32.xlu0 %v5057, 24
      %v5201 = vpop.permute.xlu0 %5200
      %5222 = vrot.lane.b32.xlu0 %v5058, 32
      %v5223 = vpop.permute.xlu0 %5222
      %5224 = vrot.lane.b32.xlu0 %v5059, 32
      %v5225 = vpop.permute.xlu0 %5224
      %5226 = vrot.lane.b32.xlu0 %v5060, 32
      %v5227 = vpop.permute.xlu0 %5226
      %5228 = vrot.lane.b32.xlu0 %v5061, 32
      %v5229 = vpop.permute.xlu0 %5228
      %5230 = vrot.lane.b32.xlu0 %v5062, 32
      %v5231 = vpop.permute.xlu0 %5230
      %5232 = vrot.lane.b32.xlu0 %v5063, 32
      %v5233 = vpop.permute.xlu0 %5232
      %5234 = vrot.lane.b32.xlu0 %v5064, 32
      %v5235 = vpop.permute.xlu0 %5234
      %5236 = vrot.lane.b32.xlu0 %v5065, 32
      %v5237 = vpop.permute.xlu0 %5236
      %5238 = vrot.lane.b32.xlu0 %v5066, 32
      %v5239 = vpop.permute.xlu0 %5238
      %5240 = vrot.lane.b32.xlu0 %v5067, 32
      %v5241 = vpop.permute.xlu0 %5240
      %5262 = vrot.lane.b32.xlu0 %v5068, 40
      %v5263 = vpop.permute.xlu0 %5262
      %5264 = vrot.lane.b32.xlu0 %v5069, 40
      %v5265 = vpop.permute.xlu0 %5264
      %5266 = vrot.lane.b32.xlu0 %v5070, 40
      %v5267 = vpop.permute.xlu0 %5266
      %5268 = vrot.lane.b32.xlu0 %v5071, 40
      %v5269 = vpop.permute.xlu0 %5268
      %5270 = vrot.lane.b32.xlu0 %v5072, 40
      %v5271 = vpop.permute.xlu0 %5270
      %5272 = vrot.lane.b32.xlu0 %v5073, 40
      %v5273 = vpop.permute.xlu0 %5272
      %5274 = vrot.lane.b32.xlu0 %v5074, 40
      %v5275 = vpop.permute.xlu0 %5274
      %5276 = vrot.lane.b32.xlu0 %v5075, 40
      %v5277 = vpop.permute.xlu0 %5276
      %5278 = vrot.lane.b32.xlu0 %v5076, 40
      %v5279 = vpop.permute.xlu0 %5278
      %5280 = vrot.lane.b32.xlu0 %v5077, 40
      %v5281 = vpop.permute.xlu0 %5280
      %5294 = vrot.lane.b32.xlu0 %v5069, 48
      %v5295 = vpop.permute.xlu0 %5294
      %5296 = vrot.lane.b32.xlu0 %v5070, 48
      %v5297 = vpop.permute.xlu0 %5296
      %5298 = vrot.lane.b32.xlu0 %v5071, 48
      %v5299 = vpop.permute.xlu0 %5298
      %5300 = vrot.lane.b32.xlu0 %v5072, 48
      %v5301 = vpop.permute.xlu0 %5300
      %5302 = vrot.lane.b32.xlu0 %v5073, 48
      %v5303 = vpop.permute.xlu0 %5302
      %5304 = vrot.lane.b32.xlu0 %v5074, 48
      %v5305 = vpop.permute.xlu0 %5304
      %5306 = vrot.lane.b32.xlu0 %v5075, 48
      %v5307 = vpop.permute.xlu0 %5306
      %5308 = vrot.lane.b32.xlu0 %v5076, 48
      %v5309 = vpop.permute.xlu0 %5308
      %5310 = vrot.lane.b32.xlu0 %v5078, 48
      %v5311 = vpop.permute.xlu0 %5310
      %5312 = vrot.lane.b32.xlu0 %v5079, 48
      %v5313 = vpop.permute.xlu0 %5312
      %5334 = vrot.lane.b32.xlu0 %v5080, 56
      %v5335 = vpop.permute.xlu0 %5334
      %5336 = vrot.lane.b32.xlu0 %v5081, 56
      %v5337 = vpop.permute.xlu0 %5336
      %5338 = vrot.lane.b32.xlu0 %v5082, 56
      %v5339 = vpop.permute.xlu0 %5338
      %5340 = vrot.lane.b32.xlu0 %v5083, 56
      %v5341 = vpop.permute.xlu0 %5340
      %5342 = vrot.lane.b32.xlu0 %v5084, 56
      %v5343 = vpop.permute.xlu0 %5342
      %5344 = vrot.lane.b32.xlu0 %v5085, 56
      %v5345 = vpop.permute.xlu0 %5344
      %5346 = vrot.lane.b32.xlu0 %v5086, 56
      %v5347 = vpop.permute.xlu0 %5346
      %5348 = vrot.lane.b32.xlu0 %v5087, 56
      %v5349 = vpop.permute.xlu0 %5348
      %5350 = vrot.lane.b32.xlu0 %v5088, 56
      %v5351 = vpop.permute.xlu0 %5350
      %5352 = vrot.lane.b32.xlu0 %v5089, 56
      %v5353 = vpop.permute.xlu0 %5352
      %5374 = vrot.lane.b32.xlu0 %v5090, 64
      %v5375 = vpop.permute.xlu0 %5374
      %5376 = vrot.lane.b32.xlu0 %v5091, 64
      %v5377 = vpop.permute.xlu0 %5376
      %5378 = vrot.lane.b32.xlu0 %v5092, 64
      %v5379 = vpop.permute.xlu0 %5378
      %5380 = vrot.lane.b32.xlu0 %v5093, 64
      %v5381 = vpop.permute.xlu0 %5380
      %5382 = vrot.lane.b32.xlu0 %v5094, 64
      %v5383 = vpop.permute.xlu0 %5382
      %5384 = vrot.lane.b32.xlu0 %v5095, 64
      %v5385 = vpop.permute.xlu0 %5384
      %5386 = vrot.lane.b32.xlu0 %v5096, 64
      %v5387 = vpop.permute.xlu0 %5386
      %5388 = vrot.lane.b32.xlu0 %v5097, 64
      %v5389 = vpop.permute.xlu0 %5388
      %5390 = vrot.lane.b32.xlu0 %v5098, 64
      %v5391 = vpop.permute.xlu0 %5390
      %5392 = vrot.lane.b32.xlu0 %v5099, 64
      %v5393 = vpop.permute.xlu0 %5392
      %v5404 = vsel %vm1861, %v5026, %v5111
      %v5405 = vsel %vm1861, %v5027, %v5113
      %v5406 = vsel %vm1861, %v5028, %v5115
      %v5407 = vsel %vm1861, %v5029, %v5117
      %v5408 = vsel %vm1861, %v5030, %v5119
      %v5409 = vsel %vm1861, %v5031, %v5121
      %v5410 = vsel %vm1861, %v5032, %v5123
      %v5411 = vsel %vm1861, %v5033, %v5125
      %v5412 = vsel %vm1861, %v5034, %v5127
      %v5413 = vsel %vm1861, %v5035, %v5129
      %v5414 = vsel %vm1935, %v5404, %v5151
      %v5415 = vsel %vm1935, %v5405, %v5153
      %v5416 = vsel %vm1935, %v5406, %v5155
      %v5417 = vsel %vm1935, %v5407, %v5157
      %v5418 = vsel %vm1935, %v5408, %v5159
      %v5419 = vsel %vm1935, %v5409, %v5161
      %v5420 = vsel %vm1935, %v5410, %v5163
      %v5421 = vsel %vm1935, %v5411, %v5165
      %v5422 = vsel %vm1935, %v5412, %v5167
      %v5423 = vsel %vm1935, %v5413, %v5169
      %v5424 = vsel %vm2009, %v5414, %v5183
      %v5425 = vsel %vm2009, %v5415, %v5185
      %v5426 = vsel %vm2009, %v5416, %v5187
      %v5427 = vsel %vm2009, %v5417, %v5189
      %v5428 = vsel %vm2009, %v5418, %v5191
      %v5429 = vsel %vm2009, %v5419, %v5193
      %v5430 = vsel %vm2009, %v5420, %v5195
      %v5431 = vsel %vm2009, %v5421, %v5197
      %v5432 = vsel %vm2009, %v5422, %v5199
      %v5433 = vsel %vm2009, %v5423, %v5201
      %v5434 = vsel %vm2083, %v5424, %v5223
      %v5435 = vsel %vm2083, %v5425, %v5225
      %v5436 = vsel %vm2083, %v5426, %v5227
      %v5437 = vsel %vm2083, %v5427, %v5229
      %v5438 = vsel %vm2083, %v5428, %v5231
      %v5439 = vsel %vm2083, %v5429, %v5233
      %v5440 = vsel %vm2083, %v5430, %v5235
      %v5441 = vsel %vm2083, %v5431, %v5237
      %v5442 = vsel %vm2083, %v5432, %v5239
      %v5443 = vsel %vm2083, %v5433, %v5241
      %v5444 = vsel %vm4293, %v5434, %v5263
      %v5445 = vsel %vm4293, %v5435, %v5265
      %v5446 = vsel %vm4293, %v5436, %v5267
      %v5447 = vsel %vm4293, %v5437, %v5269
      %v5448 = vsel %vm4293, %v5438, %v5271
      %v5449 = vsel %vm4293, %v5439, %v5273
      %v5450 = vsel %vm4293, %v5440, %v5275
      %v5451 = vsel %vm4293, %v5441, %v5277
      %v5452 = vsel %vm4293, %v5442, %v5279
      %v5453 = vsel %vm4293, %v5443, %v5281
      %v5454 = vsel %vm4330, %v5444, %v5295
      %v5455 = vsel %vm4330, %v5445, %v5297
      %v5456 = vsel %vm4330, %v5446, %v5299
      %v5457 = vsel %vm4330, %v5447, %v5301
      %v5458 = vsel %vm4330, %v5448, %v5303
      %v5459 = vsel %vm4330, %v5449, %v5305
      %v5460 = vsel %vm4330, %v5450, %v5307
      %v5461 = vsel %vm4330, %v5451, %v5309
      %v5462 = vsel %vm4330, %v5452, %v5311
      %v5463 = vsel %vm4330, %v5453, %v5313
      %v5464 = vsel %vm4367, %v5454, %v5335
      %v5465 = vsel %vm4367, %v5455, %v5337
      %v5466 = vsel %vm4367, %v5456, %v5339
      %v5467 = vsel %vm4367, %v5457, %v5341
      %v5468 = vsel %vm4367, %v5458, %v5343
      %v5469 = vsel %vm4367, %v5459, %v5345
      %v5470 = vsel %vm4367, %v5460, %v5347
      %v5471 = vsel %vm4367, %v5461, %v5349
      %v5472 = vsel %vm4367, %v5462, %v5351
      %v5473 = vsel %vm4367, %v5463, %v5353
      %v5474 = vsel %vm4404, %v5464, %v5375
      %v5475 = vsel %vm4404, %v5465, %v5377
      %v5476 = vsel %vm4404, %v5466, %v5379
      %v5477 = vsel %vm4404, %v5467, %v5381
      %v5478 = vsel %vm4404, %v5468, %v5383
      %v5479 = vsel %vm4404, %v5469, %v5385
      %v5480 = vsel %vm4404, %v5470, %v5387
      %v5481 = vsel %vm4404, %v5471, %v5389
      %v5482 = vsel %vm4404, %v5472, %v5391
      %v5483 = vsel %vm4404, %v5473, %v5393
      %v5484 = vpack.c.bf16 %v5475, %v5474
      %v5485 = vpack.c.bf16 %v5477, %v5476
      %v5486 = vpack.c.bf16 %v5479, %v5478
      %v5487 = vpack.c.bf16 %v5481, %v5480
      %v5488 = vpack.c.bf16 %v5483, %v5482
      %v5489 = vld [vmem:[%s7] sm:$0xf]
      %v5490 = vld [vmem:[%s7 + $0x4] sm:$0xf]
      %v5491 = vld [vmem:[%s7 + $0x8] sm:$0xf]
      %v5492 = vld [vmem:[%s7 + $0xc] sm:$0xf]
      %v5493 = vld [vmem:[%s7 + $0x10] sm:$0xf]
      %v5494 = vld [vmem:[%s7 + $0x14] sm:$0xf]
      %v5495 = vld [vmem:[%s7 + $0x18] sm:$0xf]
      %v5496 = vld [vmem:[%s7 + $0x1c] sm:$0xf]
      %v5497 = vld [vmem:[%s7 + $0x20] sm:$0xf]
      %v5498 = vld [vmem:[%s8] sm:$0x1]
      %v5500 = vlaneseq
      %v5501 = vshrl.u32 %v5500, 7
      %v5502 = vsub.s32 0, %v5501
      %v5503 = vrot.slane %v5498, %v5502
      %v5514 = vunpack.c.l.b16 %v5489
      %v5515 = vunpack.c.l.b16 %v5490
      %v5516 = vunpack.c.l.b16 %v5491
      %v5517 = vunpack.c.l.b16 %v5492
      %v5518 = vunpack.c.l.b16 %v5493
      %v5519 = vunpack.c.l.b16 %v5494
      %v5520 = vunpack.c.l.b16 %v5495
      %v5521 = vunpack.c.l.b16 %v5496
      %v5522 = vunpack.c.l.b16 %v5497
      %v5523 = vpack.c.b16 %v5515, %v5514
      %v5524 = vpack.c.b16 %v5517, %v5516
      %v5525 = vpack.c.b16 %v5519, %v5518
      %v5526 = vpack.c.b16 %v5521, %v5520
      %v5527 = vpack.c.b16 %v5522, %v5522
      %v5533 = vsel %vm4502, %v5484, 0
      %v5536 = vsel %vm4502, %v5485, 0
      %v5539 = vsel %vm4502, %v5486, 0
      %v5542 = vsel %vm4502, %v5487, 0
      %v5545 = vsel %vm4502, %v5488, 0
      %v5548 = vsel %vm4557, %v5527, 0
      %5550 = vmatprep.subr.bf16.mxu0 0
      %5551 = vmatpush1.bf16.msra.mxu0 0
      %5552 = vmatprep.subr.bf16.mxu0 0
      %5553 = vmatpush1.bf16.msra.mxu0 0
      %5554 = vmatprep.subr.bf16.mxu0 0
      %5555 = vmatpush1.bf16.msra.mxu0 0
      %5556 = vmatprep.subr.bf16.mxu0 0
      %5557 = vmatpush1.bf16.msra.mxu0 %v5548
      %5558 = vmatprep.subr.bf16.mxu0 0
      %5559 = vmatpush1.bf16.msra.mxu0 %v5526
      %5560 = vmatprep.subr.bf16.mxu0 0
      %5561 = vmatpush1.bf16.msra.mxu0 %v5525
      %5562 = vmatprep.subr.bf16.mxu0 0
      %5563 = vmatpush1.bf16.msra.mxu0 %v5524
      %5564 = vmatprep.subr.bf16.mxu0 0
      %5565 = vmatpush1.bf16.msra.mxu0 %v5523
      %5566 = vmatprep.subr.bf16.mxu0 0
      %5567 = vmatpush2.bf16.msra.mxu0 0
      %5568 = vmatprep.subr.bf16.mxu0 0
      %5569 = vmatpush2.bf16.msra.mxu0 0
      %5570 = vmatprep.subr.bf16.mxu0 0
      %5571 = vmatpush2.bf16.msra.mxu0 0
      %5572 = vmatprep.subr.bf16.mxu0 0
      %5573 = vmatpush2.bf16.msra.mxu0 0
      %5574 = vmatprep.subr.bf16.mxu0 0
      %5575 = vmatpush2.bf16.msra.mxu0 0
      %5576 = vmatprep.subr.bf16.mxu0 0
      %5577 = vmatpush2.bf16.msra.mxu0 0
      %5578 = vmatprep.subr.bf16.mxu0 0
      %5579 = vmatpush2.bf16.msra.mxu0 0
      %5580 = vmatprep.subr.bf16.mxu0 0
      %5581 = vmatpush2.bf16.msra.mxu0 0
      %5582 = vmatprep.mubr.bf16.mxu0 0
      %5583 = vmatmul.mubr.bf16.gmra.mxu0 %v5533
      %v5584 = vpop.f32.mrf.mxu0
      %v5585 = vadd.f32 %v5503, %v5584
      %v5586 = vpop.f32.mrf.mxu0
      %v5587 = vpop.f32.mrf.mxu0
      %v5588 = vadd.f32 %v5503, %v5587
      %v5589 = vpop.f32.mrf.mxu0
      %5590 = vmatprep.mubr.bf16.mxu0 0
      %5591 = vmatmul.mubr.bf16.gmra.mxu0 %v5536
      %v5592 = vpop.f32.mrf.mxu0
      %v5593 = vadd.f32 %v5503, %v5592
      %v5594 = vpop.f32.mrf.mxu0
      %v5595 = vpop.f32.mrf.mxu0
      %v5596 = vadd.f32 %v5503, %v5595
      %v5597 = vpop.f32.mrf.mxu0
      %5598 = vmatprep.mubr.bf16.mxu0 0
      %5599 = vmatmul.mubr.bf16.gmra.mxu0 %v5539
      %v5600 = vpop.f32.mrf.mxu0
      %v5601 = vadd.f32 %v5503, %v5600
      %v5602 = vpop.f32.mrf.mxu0
      %v5603 = vpop.f32.mrf.mxu0
      %v5604 = vadd.f32 %v5503, %v5603
      %v5605 = vpop.f32.mrf.mxu0
      %5606 = vmatprep.mubr.bf16.mxu0 0
      %5607 = vmatmul.mubr.bf16.gmra.mxu0 %v5542
      %v5608 = vpop.f32.mrf.mxu0
      %v5609 = vadd.f32 %v5503, %v5608
      %v5610 = vpop.f32.mrf.mxu0
      %v5611 = vpop.f32.mrf.mxu0
      %v5612 = vadd.f32 %v5503, %v5611
      %v5613 = vpop.f32.mrf.mxu0
      %5614 = vmatprep.mubr.bf16.mxu0 0
      %5615 = vmatmul.mubr.bf16.gmra.mxu0 %v5545
      %v5616 = vpop.f32.mrf.mxu0
      %v5617 = vadd.f32 %v5503, %v5616
      %v5618 = vpop.f32.mrf.mxu0
      %v5619 = vpop.f32.mrf.mxu0
      %v5620 = vadd.f32 %v5503, %v5619
      %v5621 = vpop.f32.mrf.mxu0
      %5622 = vdwg.mxu0
      %vm5623 = vcmp.ge.f32.partialorder %v5585, 0.0
      %vm5624 = vcmp.ge.f32.partialorder %v5588, 0.0
      %vm5625 = vcmp.ge.f32.partialorder %v5593, 0.0
      %vm5626 = vcmp.ge.f32.partialorder %v5596, 0.0
      %vm5627 = vcmp.ge.f32.partialorder %v5601, 0.0
      %vm5628 = vcmp.ge.f32.partialorder %v5604, 0.0
      %vm5629 = vcmp.ge.f32.partialorder %v5609, 0.0
      %vm5630 = vcmp.ge.f32.partialorder %v5612, 0.0
      %vm5631 = vcmp.ge.f32.partialorder %v5617, 0.0
      %vm5632 = vcmp.ge.f32.partialorder %v5620, 0.0
      %v5633 = vmul.f32 %v5585, 0.1
      %v5634 = vmul.f32 %v5588, 0.1
      %v5635 = vmul.f32 %v5593, 0.1
      %v5636 = vmul.f32 %v5596, 0.1
      %v5637 = vmul.f32 %v5601, 0.1
      %v5638 = vmul.f32 %v5604, 0.1
      %v5639 = vmul.f32 %v5609, 0.1
      %v5640 = vmul.f32 %v5612, 0.1
      %v5641 = vmul.f32 %v5617, 0.1
      %v5642 = vmul.f32 %v5620, 0.1
      %v5643 = vsel %vm5623, %v5585, %v5633
      %v5644 = vsel %vm5624, %v5588, %v5634
      %v5645 = vsel %vm5625, %v5593, %v5635
      %v5646 = vsel %vm5626, %v5596, %v5636
      %v5647 = vsel %vm5627, %v5601, %v5637
      %v5648 = vsel %vm5628, %v5604, %v5638
      %v5649 = vsel %vm5629, %v5609, %v5639
      %v5650 = vsel %vm5630, %v5612, %v5640
      %v5651 = vsel %vm5631, %v5617, %v5641
      %v5652 = vsel %vm5632, %v5620, %v5642
      %v5653 = vld [vmem:[%s2] sm:$0xff]
      %v5654 = vld [vmem:[%s2 + $0x8] sm:$0xff]
      %v5655 = vld [vmem:[%s2 + $0x10] sm:$0xff]
      %v5656 = vld [vmem:[%s2 + $0x18] sm:$0xff]
      %v5657 = vld [vmem:[%s2 + $0x20] sm:$0xff]
      %v5658 = vld [vmem:[%s2 + $0x28] sm:$0xff]
      %v5659 = vld [vmem:[%s2 + $0x30] sm:$0xff]
      %v5660 = vld [vmem:[%s2 + $0x38] sm:$0xff]
      %v5661 = vld [vmem:[%s2 + $0x40] sm:$0xff]
      %v5662 = vld [vmem:[%s2 + $0x48] sm:$0x3f]
      %5664 = vset.pattern.permute.xlu0 0
      %5665 = vperm.xlu0 %5664, %v5653
      %v5666 = vpop.permute.xlu0 %5665
      %5669 = vset.pattern.permute.xlu0 0
      %5670 = vperm.xlu0 %5669, %v5654
      %v5671 = vpop.permute.xlu0 %5670
      %5674 = vset.pattern.permute.xlu0 0
      %5675 = vperm.xlu0 %5674, %v5655
      %v5676 = vpop.permute.xlu0 %5675
      %5679 = vset.pattern.permute.xlu0 0
      %5680 = vperm.xlu0 %5679, %v5656
      %v5681 = vpop.permute.xlu0 %5680
      %5684 = vset.pattern.permute.xlu0 0
      %5685 = vperm.xlu0 %5684, %v5657
      %v5686 = vpop.permute.xlu0 %5685
      %5689 = vset.pattern.permute.xlu0 0
      %5690 = vperm.xlu0 %5689, %v5658
      %v5691 = vpop.permute.xlu0 %5690
      %5694 = vset.pattern.permute.xlu0 0
      %5695 = vperm.xlu0 %5694, %v5659
      %v5696 = vpop.permute.xlu0 %5695
      %5699 = vset.pattern.permute.xlu0 0
      %5700 = vperm.xlu0 %5699, %v5660
      %v5701 = vpop.permute.xlu0 %5700
      %5704 = vset.pattern.permute.xlu0 0
      %5705 = vperm.xlu0 %5704, %v5661
      %v5706 = vpop.permute.xlu0 %5705
      %5709 = vset.pattern.permute.xlu0 0
      %5710 = vperm.xlu0 %5709, %v5662
      %v5711 = vpop.permute.xlu0 %5710
      %v5713 = vmul.f32 %v5643, %v5666
      %v5714 = vmul.f32 %v5644, %v5671
      %v5715 = vmul.f32 %v5645, %v5676
      %v5716 = vmul.f32 %v5646, %v5681
      %v5717 = vmul.f32 %v5647, %v5686
      %v5718 = vmul.f32 %v5648, %v5691
      %v5719 = vmul.f32 %v5649, %v5696
      %v5720 = vmul.f32 %v5650, %v5701
      %v5721 = vmul.f32 %v5651, %v5706
      %v5722 = vmul.f32 %v5652, %v5711
      %5723 = vst.msk [vmem:[#allocation4] sm:$0xff] %vm1935, 0.0
      %5724 = vst.msk [vmem:[#allocation4 + $0x8] sm:$0xff] %vm1935, 0.0
      %5725 = vst.msk [vmem:[#allocation4 + $0x5e] sm:$0xff] %vm1935, 0.0
      %vm5726 = vcmask 124928
      %5727 = vst.msk [vmem:[#allocation4 + $0x66] sm:$0x7] %vm5726, 0.0
      %5728 = vst.msk [vmem:[#allocation4 + $0x10] sm:$0xff] %vm1935, %v5713
      %5729 = vst.msk [vmem:[#allocation4 + $0x18] sm:$0xff] %vm1935, %v5714
      %5730 = vst.msk [vmem:[#allocation4 + $0x20] sm:$0xff] %vm1935, %v5715
      %5731 = vst.msk [vmem:[#allocation4 + $0x28] sm:$0xff] %vm1935, %v5716
      %5732 = vst.msk [vmem:[#allocation4 + $0x30] sm:$0xff] %vm1935, %v5717
      %5733 = vst.msk [vmem:[#allocation4 + $0x38] sm:$0xff] %vm1935, %v5718
      %5734 = vst.msk [vmem:[#allocation4 + $0x40] sm:$0xff] %vm1935, %v5719
      %5735 = vst.msk [vmem:[#allocation4 + $0x48] sm:$0xff] %vm1935, %v5720
      %5736 = vst.msk [vmem:[#allocation4 + $0x50] sm:$0xff] %vm1935, %v5721
      %vm5737 = vcmask 128000
      %5738 = vst.msk [vmem:[#allocation4 + $0x58] sm:$0x3f] %vm5737, %v5722
      %v5739 = vld [vmem:[#allocation4 + $0x5] sm:$0xff]
      %v5740 = vld [vmem:[#allocation4 + $0xd] sm:$0xff]
      %v5741 = vld [vmem:[#allocation4 + $0x15] sm:$0xff]
      %v5742 = vld [vmem:[#allocation4 + $0x1d] sm:$0xff]
      %v5743 = vld [vmem:[#allocation4 + $0x25] sm:$0xff]
      %v5744 = vld [vmem:[#allocation4 + $0x2d] sm:$0xff]
      %v5745 = vld [vmem:[#allocation4 + $0x35] sm:$0xff]
      %v5746 = vld [vmem:[#allocation4 + $0x3d] sm:$0xff]
      %v5747 = vld [vmem:[#allocation4 + $0x45] sm:$0xff]
      %v5748 = vld [vmem:[#allocation4 + $0x4d] sm:$0x3f]
      %v5749 = vld [vmem:[#allocation4 + $0x6] sm:$0xff]
      %v5750 = vld [vmem:[#allocation4 + $0xe] sm:$0xff]
      %v5751 = vld [vmem:[#allocation4 + $0x16] sm:$0xff]
      %v5752 = vld [vmem:[#allocation4 + $0x1e] sm:$0xff]
      %v5753 = vld [vmem:[#allocation4 + $0x26] sm:$0xff]
      %v5754 = vld [vmem:[#allocation4 + $0x2e] sm:$0xff]
      %v5755 = vld [vmem:[#allocation4 + $0x36] sm:$0xff]
      %v5756 = vld [vmem:[#allocation4 + $0x3e] sm:$0xff]
      %v5757 = vld [vmem:[#allocation4 + $0x46] sm:$0xff]
      %v5758 = vld [vmem:[#allocation4 + $0x4e] sm:$0x3f]
      %v5759 = vld [vmem:[#allocation4 + $0x7] sm:$0xff]
      %v5760 = vld [vmem:[#allocation4 + $0xf] sm:$0xff]
      %v5761 = vld [vmem:[#allocation4 + $0x17] sm:$0xff]
      %v5762 = vld [vmem:[#allocation4 + $0x1f] sm:$0xff]
      %v5763 = vld [vmem:[#allocation4 + $0x27] sm:$0xff]
      %v5764 = vld [vmem:[#allocation4 + $0x2f] sm:$0xff]
      %v5765 = vld [vmem:[#allocation4 + $0x37] sm:$0xff]
      %v5766 = vld [vmem:[#allocation4 + $0x3f] sm:$0xff]
      %v5767 = vld [vmem:[#allocation4 + $0x47] sm:$0xff]
      %v5768 = vld [vmem:[#allocation4 + $0x4f] sm:$0x3f]
      %v5769 = vld [vmem:[#allocation4 + $0x4f] sm:$0xff]
      %v5770 = vld [vmem:[#allocation4 + $0x57] sm:$0x3f]
      %v5771 = vld [vmem:[#allocation4 + $0x10] sm:$0xff]
      %v5772 = vld [vmem:[#allocation4 + $0x18] sm:$0xff]
      %v5773 = vld [vmem:[#allocation4 + $0x20] sm:$0xff]
      %v5774 = vld [vmem:[#allocation4 + $0x28] sm:$0xff]
      %v5775 = vld [vmem:[#allocation4 + $0x30] sm:$0xff]
      %v5776 = vld [vmem:[#allocation4 + $0x38] sm:$0xff]
      %v5777 = vld [vmem:[#allocation4 + $0x40] sm:$0xff]
      %v5778 = vld [vmem:[#allocation4 + $0x48] sm:$0xff]
      %v5779 = vld [vmem:[#allocation4 + $0x50] sm:$0xff]
      %v5780 = vld [vmem:[#allocation4 + $0x58] sm:$0x3f]
      %v5781 = vld [vmem:[#allocation4 + $0x11] sm:$0xff]
      %v5782 = vld [vmem:[#allocation4 + $0x19] sm:$0xff]
      %v5783 = vld [vmem:[#allocation4 + $0x21] sm:$0xff]
      %v5784 = vld [vmem:[#allocation4 + $0x29] sm:$0xff]
      %v5785 = vld [vmem:[#allocation4 + $0x31] sm:$0xff]
      %v5786 = vld [vmem:[#allocation4 + $0x39] sm:$0xff]
      %v5787 = vld [vmem:[#allocation4 + $0x41] sm:$0xff]
      %v5788 = vld [vmem:[#allocation4 + $0x49] sm:$0xff]
      %v5789 = vld [vmem:[#allocation4 + $0x51] sm:$0xff]
      %v5790 = vld [vmem:[#allocation4 + $0x59] sm:$0x3f]
      %v5791 = vld [vmem:[#allocation4 + $0x59] sm:$0xff]
      %v5792 = vld [vmem:[#allocation4 + $0x61] sm:$0x3f]
      %v5793 = vld [vmem:[#allocation4 + $0x1a] sm:$0xff]
      %v5794 = vld [vmem:[#allocation4 + $0x22] sm:$0xff]
      %v5795 = vld [vmem:[#allocation4 + $0x2a] sm:$0xff]
      %v5796 = vld [vmem:[#allocation4 + $0x32] sm:$0xff]
      %v5797 = vld [vmem:[#allocation4 + $0x3a] sm:$0xff]
      %v5798 = vld [vmem:[#allocation4 + $0x42] sm:$0xff]
      %v5799 = vld [vmem:[#allocation4 + $0x4a] sm:$0xff]
      %v5800 = vld [vmem:[#allocation4 + $0x52] sm:$0xff]
      %v5801 = vld [vmem:[#allocation4 + $0x5a] sm:$0xff]
      %v5802 = vld [vmem:[#allocation4 + $0x62] sm:$0x3f]
      %v5803 = vld [vmem:[#allocation4 + $0x1b] sm:$0xff]
      %v5804 = vld [vmem:[#allocation4 + $0x23] sm:$0xff]
      %v5805 = vld [vmem:[#allocation4 + $0x2b] sm:$0xff]
      %v5806 = vld [vmem:[#allocation4 + $0x33] sm:$0xff]
      %v5807 = vld [vmem:[#allocation4 + $0x3b] sm:$0xff]
      %v5808 = vld [vmem:[#allocation4 + $0x43] sm:$0xff]
      %v5809 = vld [vmem:[#allocation4 + $0x4b] sm:$0xff]
      %v5810 = vld [vmem:[#allocation4 + $0x53] sm:$0xff]
      %v5811 = vld [vmem:[#allocation4 + $0x5b] sm:$0xff]
      %v5812 = vld [vmem:[#allocation4 + $0x63] sm:$0x3f]
      %5823 = vrot.lane.b32.xlu0 %v5749, 16
      %v5824 = vpop.permute.xlu0 %5823
      %5825 = vrot.lane.b32.xlu0 %v5750, 16
      %v5826 = vpop.permute.xlu0 %5825
      %5827 = vrot.lane.b32.xlu0 %v5751, 16
      %v5828 = vpop.permute.xlu0 %5827
      %5829 = vrot.lane.b32.xlu0 %v5752, 16
      %v5830 = vpop.permute.xlu0 %5829
      %5831 = vrot.lane.b32.xlu0 %v5753, 16
      %v5832 = vpop.permute.xlu0 %5831
      %5833 = vrot.lane.b32.xlu0 %v5754, 16
      %v5834 = vpop.permute.xlu0 %5833
      %5835 = vrot.lane.b32.xlu0 %v5755, 16
      %v5836 = vpop.permute.xlu0 %5835
      %5837 = vrot.lane.b32.xlu0 %v5756, 16
      %v5838 = vpop.permute.xlu0 %5837
      %5839 = vrot.lane.b32.xlu0 %v5757, 16
      %v5840 = vpop.permute.xlu0 %5839
      %5841 = vrot.lane.b32.xlu0 %v5758, 16
      %v5842 = vpop.permute.xlu0 %5841
      %5863 = vrot.lane.b32.xlu0 %v5759, 32
      %v5864 = vpop.permute.xlu0 %5863
      %5865 = vrot.lane.b32.xlu0 %v5760, 32
      %v5866 = vpop.permute.xlu0 %5865
      %5867 = vrot.lane.b32.xlu0 %v5761, 32
      %v5868 = vpop.permute.xlu0 %5867
      %5869 = vrot.lane.b32.xlu0 %v5762, 32
      %v5870 = vpop.permute.xlu0 %5869
      %5871 = vrot.lane.b32.xlu0 %v5763, 32
      %v5872 = vpop.permute.xlu0 %5871
      %5873 = vrot.lane.b32.xlu0 %v5764, 32
      %v5874 = vpop.permute.xlu0 %5873
      %5875 = vrot.lane.b32.xlu0 %v5765, 32
      %v5876 = vpop.permute.xlu0 %5875
      %5877 = vrot.lane.b32.xlu0 %v5766, 32
      %v5878 = vpop.permute.xlu0 %5877
      %5879 = vrot.lane.b32.xlu0 %v5767, 32
      %v5880 = vpop.permute.xlu0 %5879
      %5881 = vrot.lane.b32.xlu0 %v5768, 32
      %v5882 = vpop.permute.xlu0 %5881
      %5895 = vrot.lane.b32.xlu0 %v5760, 48
      %v5896 = vpop.permute.xlu0 %5895
      %5897 = vrot.lane.b32.xlu0 %v5761, 48
      %v5898 = vpop.permute.xlu0 %5897
      %5899 = vrot.lane.b32.xlu0 %v5762, 48
      %v5900 = vpop.permute.xlu0 %5899
      %5901 = vrot.lane.b32.xlu0 %v5763, 48
      %v5902 = vpop.permute.xlu0 %5901
      %5903 = vrot.lane.b32.xlu0 %v5764, 48
      %v5904 = vpop.permute.xlu0 %5903
      %5905 = vrot.lane.b32.xlu0 %v5765, 48
      %v5906 = vpop.permute.xlu0 %5905
      %5907 = vrot.lane.b32.xlu0 %v5766, 48
      %v5908 = vpop.permute.xlu0 %5907
      %5909 = vrot.lane.b32.xlu0 %v5767, 48
      %v5910 = vpop.permute.xlu0 %5909
      %5911 = vrot.lane.b32.xlu0 %v5769, 48
      %v5912 = vpop.permute.xlu0 %5911
      %5913 = vrot.lane.b32.xlu0 %v5770, 48
      %v5914 = vpop.permute.xlu0 %5913
      %5935 = vrot.lane.b32.xlu0 %v5771, 64
      %v5936 = vpop.permute.xlu0 %5935
      %5937 = vrot.lane.b32.xlu0 %v5772, 64
      %v5938 = vpop.permute.xlu0 %5937
      %5939 = vrot.lane.b32.xlu0 %v5773, 64
      %v5940 = vpop.permute.xlu0 %5939
      %5941 = vrot.lane.b32.xlu0 %v5774, 64
      %v5942 = vpop.permute.xlu0 %5941
      %5943 = vrot.lane.b32.xlu0 %v5775, 64
      %v5944 = vpop.permute.xlu0 %5943
      %5945 = vrot.lane.b32.xlu0 %v5776, 64
      %v5946 = vpop.permute.xlu0 %5945
      %5947 = vrot.lane.b32.xlu0 %v5777, 64
      %v5948 = vpop.permute.xlu0 %5947
      %5949 = vrot.lane.b32.xlu0 %v5778, 64
      %v5950 = vpop.permute.xlu0 %5949
      %5951 = vrot.lane.b32.xlu0 %v5779, 64
      %v5952 = vpop.permute.xlu0 %5951
      %5953 = vrot.lane.b32.xlu0 %v5780, 64
      %v5954 = vpop.permute.xlu0 %5953
      %5975 = vrot.lane.b32.xlu0 %v5781, 80
      %v5976 = vpop.permute.xlu0 %5975
      %5977 = vrot.lane.b32.xlu0 %v5782, 80
      %v5978 = vpop.permute.xlu0 %5977
      %5979 = vrot.lane.b32.xlu0 %v5783, 80
      %v5980 = vpop.permute.xlu0 %5979
      %5981 = vrot.lane.b32.xlu0 %v5784, 80
      %v5982 = vpop.permute.xlu0 %5981
      %5983 = vrot.lane.b32.xlu0 %v5785, 80
      %v5984 = vpop.permute.xlu0 %5983
      %5985 = vrot.lane.b32.xlu0 %v5786, 80
      %v5986 = vpop.permute.xlu0 %5985
      %5987 = vrot.lane.b32.xlu0 %v5787, 80
      %v5988 = vpop.permute.xlu0 %5987
      %5989 = vrot.lane.b32.xlu0 %v5788, 80
      %v5990 = vpop.permute.xlu0 %5989
      %5991 = vrot.lane.b32.xlu0 %v5789, 80
      %v5992 = vpop.permute.xlu0 %5991
      %5993 = vrot.lane.b32.xlu0 %v5790, 80
      %v5994 = vpop.permute.xlu0 %5993
      %6007 = vrot.lane.b32.xlu0 %v5782, 96
      %v6008 = vpop.permute.xlu0 %6007
      %6009 = vrot.lane.b32.xlu0 %v5783, 96
      %v6010 = vpop.permute.xlu0 %6009
      %6011 = vrot.lane.b32.xlu0 %v5784, 96
      %v6012 = vpop.permute.xlu0 %6011
      %6013 = vrot.lane.b32.xlu0 %v5785, 96
      %v6014 = vpop.permute.xlu0 %6013
      %6015 = vrot.lane.b32.xlu0 %v5786, 96
      %v6016 = vpop.permute.xlu0 %6015
      %6017 = vrot.lane.b32.xlu0 %v5787, 96
      %v6018 = vpop.permute.xlu0 %6017
      %6019 = vrot.lane.b32.xlu0 %v5788, 96
      %v6020 = vpop.permute.xlu0 %6019
      %6021 = vrot.lane.b32.xlu0 %v5789, 96
      %v6022 = vpop.permute.xlu0 %6021
      %6023 = vrot.lane.b32.xlu0 %v5791, 96
      %v6024 = vpop.permute.xlu0 %6023
      %6025 = vrot.lane.b32.xlu0 %v5792, 96
      %v6026 = vpop.permute.xlu0 %6025
      %6047 = vrot.lane.b32.xlu0 %v5793, 112
      %v6048 = vpop.permute.xlu0 %6047
      %6049 = vrot.lane.b32.xlu0 %v5794, 112
      %v6050 = vpop.permute.xlu0 %6049
      %6051 = vrot.lane.b32.xlu0 %v5795, 112
      %v6052 = vpop.permute.xlu0 %6051
      %6053 = vrot.lane.b32.xlu0 %v5796, 112
      %v6054 = vpop.permute.xlu0 %6053
      %6055 = vrot.lane.b32.xlu0 %v5797, 112
      %v6056 = vpop.permute.xlu0 %6055
      %6057 = vrot.lane.b32.xlu0 %v5798, 112
      %v6058 = vpop.permute.xlu0 %6057
      %6059 = vrot.lane.b32.xlu0 %v5799, 112
      %v6060 = vpop.permute.xlu0 %6059
      %6061 = vrot.lane.b32.xlu0 %v5800, 112
      %v6062 = vpop.permute.xlu0 %6061
      %6063 = vrot.lane.b32.xlu0 %v5801, 112
      %v6064 = vpop.permute.xlu0 %6063
      %6065 = vrot.lane.b32.xlu0 %v5802, 112
      %v6066 = vpop.permute.xlu0 %6065
      %v6077 = vsel %vm1935, %v5739, %v5824
      %v6078 = vsel %vm1935, %v5740, %v5826
      %v6079 = vsel %vm1935, %v5741, %v5828
      %v6080 = vsel %vm1935, %v5742, %v5830
      %v6081 = vsel %vm1935, %v5743, %v5832
      %v6082 = vsel %vm1935, %v5744, %v5834
      %v6083 = vsel %vm1935, %v5745, %v5836
      %v6084 = vsel %vm1935, %v5746, %v5838
      %v6085 = vsel %vm1935, %v5747, %v5840
      %v6086 = vsel %vm1935, %v5748, %v5842
      %v6087 = vsel %vm2083, %v6077, %v5864
      %v6088 = vsel %vm2083, %v6078, %v5866
      %v6089 = vsel %vm2083, %v6079, %v5868
      %v6090 = vsel %vm2083, %v6080, %v5870
      %v6091 = vsel %vm2083, %v6081, %v5872
      %v6092 = vsel %vm2083, %v6082, %v5874
      %v6093 = vsel %vm2083, %v6083, %v5876
      %v6094 = vsel %vm2083, %v6084, %v5878
      %v6095 = vsel %vm2083, %v6085, %v5880
      %v6096 = vsel %vm2083, %v6086, %v5882
      %v6097 = vsel %vm4330, %v6087, %v5896
      %v6098 = vsel %vm4330, %v6088, %v5898
      %v6099 = vsel %vm4330, %v6089, %v5900
      %v6100 = vsel %vm4330, %v6090, %v5902
      %v6101 = vsel %vm4330, %v6091, %v5904
      %v6102 = vsel %vm4330, %v6092, %v5906
      %v6103 = vsel %vm4330, %v6093, %v5908
      %v6104 = vsel %vm4330, %v6094, %v5910
      %v6105 = vsel %vm4330, %v6095, %v5912
      %v6106 = vsel %vm4330, %v6096, %v5914
      %v6107 = vsel %vm4404, %v6097, %v5936
      %v6108 = vsel %vm4404, %v6098, %v5938
      %v6109 = vsel %vm4404, %v6099, %v5940
      %v6110 = vsel %vm4404, %v6100, %v5942
      %v6111 = vsel %vm4404, %v6101, %v5944
      %v6112 = vsel %vm4404, %v6102, %v5946
      %v6113 = vsel %vm4404, %v6103, %v5948
      %v6114 = vsel %vm4404, %v6104, %v5950
      %v6115 = vsel %vm4404, %v6105, %v5952
      %v6116 = vsel %vm4404, %v6106, %v5954
      %vm6117 = vcmask 654336
      %v6118 = vsel %vm6117, %v6107, %v5976
      %v6119 = vsel %vm6117, %v6108, %v5978
      %v6120 = vsel %vm6117, %v6109, %v5980
      %v6121 = vsel %vm6117, %v6110, %v5982
      %v6122 = vsel %vm6117, %v6111, %v5984
      %v6123 = vsel %vm6117, %v6112, %v5986
      %v6124 = vsel %vm6117, %v6113, %v5988
      %v6125 = vsel %vm6117, %v6114, %v5990
      %v6126 = vsel %vm6117, %v6115, %v5992
      %v6127 = vsel %vm6117, %v6116, %v5994
      %vm6128 = vcmask 785408
      %v6129 = vsel %vm6128, %v6118, %v6008
      %v6130 = vsel %vm6128, %v6119, %v6010
      %v6131 = vsel %vm6128, %v6120, %v6012
      %v6132 = vsel %vm6128, %v6121, %v6014
      %v6133 = vsel %vm6128, %v6122, %v6016
      %v6134 = vsel %vm6128, %v6123, %v6018
      %v6135 = vsel %vm6128, %v6124, %v6020
      %v6136 = vsel %vm6128, %v6125, %v6022
      %v6137 = vsel %vm6128, %v6126, %v6024
      %v6138 = vsel %vm6128, %v6127, %v6026
      %vm6139 = vcmask 916480
      %v6140 = vsel %vm6139, %v6129, %v6048
      %v6141 = vsel %vm6139, %v6130, %v6050
      %v6142 = vsel %vm6139, %v6131, %v6052
      %v6143 = vsel %vm6139, %v6132, %v6054
      %v6144 = vsel %vm6139, %v6133, %v6056
      %v6145 = vsel %vm6139, %v6134, %v6058
      %v6146 = vsel %vm6139, %v6135, %v6060
      %v6147 = vsel %vm6139, %v6136, %v6062
      %v6148 = vsel %vm6139, %v6137, %v6064
      %v6149 = vsel %vm6139, %v6138, %v6066
      %v6150 = vpack.c.bf16 %v6141, %v6140
      %v6151 = vpack.c.bf16 %v5804, %v5803
      %v6152 = vpack.c.bf16 %v6143, %v6142
      %v6153 = vpack.c.bf16 %v5806, %v5805
      %v6154 = vpack.c.bf16 %v6145, %v6144
      %v6155 = vpack.c.bf16 %v5808, %v5807
      %v6156 = vpack.c.bf16 %v6147, %v6146
      %v6157 = vpack.c.bf16 %v5810, %v5809
      %v6158 = vpack.c.bf16 %v6149, %v6148
      %v6159 = vpack.c.bf16 %v5812, %v5811
      %v6160 = vld [vmem:[%s9] sm:$0xf]
      %v6161 = vld [vmem:[%s9 + $0x4] sm:$0xf]
      %v6162 = vld [vmem:[%s9 + $0x8] sm:$0xf]
      %v6163 = vld [vmem:[%s9 + $0xc] sm:$0xf]
      %v6164 = vld [vmem:[%s9 + $0x10] sm:$0xf]
      %v6165 = vld [vmem:[%s9 + $0x14] sm:$0xf]
      %v6166 = vld [vmem:[%s9 + $0x18] sm:$0xf]
      %v6167 = vld [vmem:[%s9 + $0x1c] sm:$0xf]
      %v6168 = vld [vmem:[%s9 + $0x20] sm:$0xf]
      %v6169 = vld [vmem:[%s9 + $0x24] sm:$0xf]
      %v6170 = vld [vmem:[%s9 + $0x28] sm:$0xf]
      %v6171 = vld [vmem:[%s9 + $0x2c] sm:$0xf]
      %v6172 = vld [vmem:[%s9 + $0x30] sm:$0xf]
      %v6173 = vld [vmem:[%s9 + $0x34] sm:$0xf]
      %v6174 = vld [vmem:[%s9 + $0x38] sm:$0xf]
      %v6175 = vld [vmem:[%s9 + $0x3c] sm:$0xf]
      %v6176 = vld [vmem:[%s9 + $0x40] sm:$0xf]
      %v6177 = vld [vmem:[%s9 + $0x44] sm:$0xf]
      %v6178 = vld [vmem:[%s10] sm:$0x1]
      %v6180 = vlaneseq
      %v6181 = vshrl.u32 %v6180, 7
      %v6182 = vsub.s32 0, %v6181
      %v6183 = vrot.slane %v6178, %v6182
      %v6203 = vunpack.c.l.b16 %v6160
      %v6204 = vunpack.c.l.b16 %v6161
      %v6205 = vunpack.c.l.b16 %v6162
      %v6206 = vunpack.c.l.b16 %v6163
      %v6207 = vunpack.c.l.b16 %v6164
      %v6208 = vunpack.c.l.b16 %v6165
      %v6209 = vunpack.c.l.b16 %v6166
      %v6210 = vunpack.c.l.b16 %v6167
      %v6211 = vunpack.c.l.b16 %v6168
      %v6212 = vunpack.c.l.b16 %v6169
      %v6213 = vunpack.c.l.b16 %v6170
      %v6214 = vunpack.c.l.b16 %v6171
      %v6215 = vunpack.c.l.b16 %v6172
      %v6216 = vunpack.c.l.b16 %v6173
      %v6217 = vunpack.c.l.b16 %v6174
      %v6218 = vunpack.c.l.b16 %v6175
      %v6219 = vunpack.c.l.b16 %v6176
      %v6220 = vunpack.c.l.b16 %v6177
      %v6221 = vpack.c.b16 %v6204, %v6203
      %v6222 = vpack.c.b16 %v6206, %v6205
      %v6223 = vpack.c.b16 %v6208, %v6207
      %v6224 = vpack.c.b16 %v6210, %v6209
      %v6225 = vpack.c.b16 %v6212, %v6211
      %v6226 = vpack.c.b16 %v6214, %v6213
      %v6227 = vpack.c.b16 %v6216, %v6215
      %v6228 = vpack.c.b16 %v6218, %v6217
      %v6229 = vpack.c.b16 %v6220, %v6219
      %v6240 = vsel %vm1935, %v6151, 0
      %v6243 = vsel %vm1935, %v6153, 0
      %v6246 = vsel %vm1935, %v6155, 0
      %v6249 = vsel %vm1935, %v6157, 0
      %v6252 = vsel %vm1935, %v6159, 0
      %6254 = vmatprep.subr.bf16.mxu0 0
      %6255 = vmatpush1.bf16.msra.mxu0 %v6228
      %6256 = vmatprep.subr.bf16.mxu0 0
      %6257 = vmatpush1.bf16.msra.mxu0 %v6227
      %6258 = vmatprep.subr.bf16.mxu0 0
      %6259 = vmatpush1.bf16.msra.mxu0 %v6226
      %6260 = vmatprep.subr.bf16.mxu0 0
      %6261 = vmatpush1.bf16.msra.mxu0 %v6225
      %6262 = vmatprep.subr.bf16.mxu0 0
      %6263 = vmatpush1.bf16.msra.mxu0 %v6224
      %6264 = vmatprep.subr.bf16.mxu0 0
      %6265 = vmatpush1.bf16.msra.mxu0 %v6223
      %6266 = vmatprep.subr.bf16.mxu0 0
      %6267 = vmatpush1.bf16.msra.mxu0 %v6222
      %6268 = vmatprep.subr.bf16.mxu0 0
      %6269 = vmatpush1.bf16.msra.mxu0 %v6221
      %6270 = vmatprep.subr.bf16.mxu0 0
      %6271 = vmatpush2.bf16.msra.mxu0 0
      %6272 = vmatprep.subr.bf16.mxu0 0
      %6273 = vmatpush2.bf16.msra.mxu0 0
      %6274 = vmatprep.subr.bf16.mxu0 0
      %6275 = vmatpush2.bf16.msra.mxu0 0
      %6276 = vmatprep.subr.bf16.mxu0 0
      %6277 = vmatpush2.bf16.msra.mxu0 0
      %6278 = vmatprep.subr.bf16.mxu0 0
      %6279 = vmatpush2.bf16.msra.mxu0 0
      %6280 = vmatprep.subr.bf16.mxu0 0
      %6281 = vmatpush2.bf16.msra.mxu0 0
      %6282 = vmatprep.subr.bf16.mxu0 0
      %6283 = vmatpush2.bf16.msra.mxu0 0
      %6284 = vmatprep.subr.bf16.mxu0 0
      %6285 = vmatpush2.bf16.msra.mxu0 %v6229
      %6286 = vmatprep.mubr.bf16.mxu0 %v6240
      %6287 = vmatmul.mubr.bf16.gmra.mxu0 %v6150
      %v6288 = vpop.f32.mrf.mxu0
      %v6289 = vadd.f32 %v6183, %v6288
      %v6290 = vpop.f32.mrf.mxu0
      %v6291 = vpop.f32.mrf.mxu0
      %v6292 = vadd.f32 %v6183, %v6291
      %v6293 = vpop.f32.mrf.mxu0
      %6294 = vmatprep.mubr.bf16.mxu0 %v6243
      %6295 = vmatmul.mubr.bf16.gmra.mxu0 %v6152
      %v6296 = vpop.f32.mrf.mxu0
      %v6297 = vadd.f32 %v6183, %v6296
      %v6298 = vpop.f32.mrf.mxu0
      %v6299 = vpop.f32.mrf.mxu0
      %v6300 = vadd.f32 %v6183, %v6299
      %v6301 = vpop.f32.mrf.mxu0
      %6302 = vmatprep.mubr.bf16.mxu0 %v6246
      %6303 = vmatmul.mubr.bf16.gmra.mxu0 %v6154
      %v6304 = vpop.f32.mrf.mxu0
      %v6305 = vadd.f32 %v6183, %v6304
      %v6306 = vpop.f32.mrf.mxu0
      %v6307 = vpop.f32.mrf.mxu0
      %v6308 = vadd.f32 %v6183, %v6307
      %v6309 = vpop.f32.mrf.mxu0
      %6310 = vmatprep.mubr.bf16.mxu0 %v6249
      %6311 = vmatmul.mubr.bf16.gmra.mxu0 %v6156
      %v6312 = vpop.f32.mrf.mxu0
      %v6313 = vadd.f32 %v6183, %v6312
      %v6314 = vpop.f32.mrf.mxu0
      %v6315 = vpop.f32.mrf.mxu0
      %v6316 = vadd.f32 %v6183, %v6315
      %v6317 = vpop.f32.mrf.mxu0
      %6318 = vmatprep.mubr.bf16.mxu0 %v6252
      %6319 = vmatmul.mubr.bf16.gmra.mxu0 %v6158
      %v6320 = vpop.f32.mrf.mxu0
      %v6321 = vadd.f32 %v6183, %v6320
      %v6322 = vpop.f32.mrf.mxu0
      %v6323 = vpop.f32.mrf.mxu0
      %v6324 = vadd.f32 %v6183, %v6323
      %v6325 = vpop.f32.mrf.mxu0
      %6326 = vdwg.mxu0
      %vm6327 = vcmp.ge.f32.partialorder %v6289, 0.0
      %vm6328 = vcmp.ge.f32.partialorder %v6292, 0.0
      %vm6329 = vcmp.ge.f32.partialorder %v6297, 0.0
      %vm6330 = vcmp.ge.f32.partialorder %v6300, 0.0
      %vm6331 = vcmp.ge.f32.partialorder %v6305, 0.0
      %vm6332 = vcmp.ge.f32.partialorder %v6308, 0.0
      %vm6333 = vcmp.ge.f32.partialorder %v6313, 0.0
      %vm6334 = vcmp.ge.f32.partialorder %v6316, 0.0
      %vm6335 = vcmp.ge.f32.partialorder %v6321, 0.0
      %vm6336 = vcmp.ge.f32.partialorder %v6324, 0.0
      %v6337 = vmul.f32 %v6289, 0.1
      %v6338 = vmul.f32 %v6292, 0.1
      %v6339 = vmul.f32 %v6297, 0.1
      %v6340 = vmul.f32 %v6300, 0.1
      %v6341 = vmul.f32 %v6305, 0.1
      %v6342 = vmul.f32 %v6308, 0.1
      %v6343 = vmul.f32 %v6313, 0.1
      %v6344 = vmul.f32 %v6316, 0.1
      %v6345 = vmul.f32 %v6321, 0.1
      %v6346 = vmul.f32 %v6324, 0.1
      %v6347 = vsel %vm6327, %v6289, %v6337
      %v6348 = vsel %vm6328, %v6292, %v6338
      %v6349 = vsel %vm6329, %v6297, %v6339
      %v6350 = vsel %vm6330, %v6300, %v6340
      %v6351 = vsel %vm6331, %v6305, %v6341
      %v6352 = vsel %vm6332, %v6308, %v6342
      %v6353 = vsel %vm6333, %v6313, %v6343
      %v6354 = vsel %vm6334, %v6316, %v6344
      %v6355 = vsel %vm6335, %v6321, %v6345
      %v6356 = vsel %vm6336, %v6324, %v6346
      %6357 = vst.msk [vmem:[#allocation5 + $0x10] sm:$0xff] %vm1935, %v6347
      %6358 = vst.msk [vmem:[#allocation5 + $0x18] sm:$0xff] %vm1935, %v6348
      %6359 = vst.msk [vmem:[#allocation5 + $0x20] sm:$0xff] %vm1935, %v6349
      %6360 = vst.msk [vmem:[#allocation5 + $0x28] sm:$0xff] %vm1935, %v6350
      %6361 = vst.msk [vmem:[#allocation5 + $0x30] sm:$0xff] %vm1935, %v6351
      %6362 = vst.msk [vmem:[#allocation5 + $0x38] sm:$0xff] %vm1935, %v6352
      %6363 = vst.msk [vmem:[#allocation5 + $0x40] sm:$0xff] %vm1935, %v6353
      %6364 = vst.msk [vmem:[#allocation5 + $0x48] sm:$0xff] %vm1935, %v6354
      %6365 = vst.msk [vmem:[#allocation5 + $0x50] sm:$0xff] %vm1935, %v6355
      %6366 = vst.msk [vmem:[#allocation5 + $0x58] sm:$0x3f] %vm5737, %v6356
      %6367 = vst.msk [vmem:[#allocation7] sm:$0xff] %vm1935, 0.0
      %6368 = vst.msk [vmem:[#allocation7 + $0x8] sm:$0xff] %vm1935, 0.0
      %6369 = vst.msk [vmem:[#allocation7 + $0x10] sm:$0xff] %vm1935, 0.0
      %6370 = vst.msk [vmem:[#allocation7 + $0x18] sm:$0xff] %vm1935, 0.0
      %vm6371 = vcmask 126976
      %6372 = vst.msk [vmem:[#allocation7 + $0x20] sm:$0x1f] %vm6371, 0.0
      %s6373 = scalar_lea.vmem [#allocation5], 16
      %v6374 = vld [vmem:[%s6373] ss:$2 sm:$0xf]
      %s6375 = scalar_lea.vmem [#allocation5], 17
      %v6376 = vld [vmem:[%s6375] ss:$2 sm:$0xf]
      %s6377 = scalar_lea.vmem [#allocation5], 26
      %v6378 = vld [vmem:[%s6377] ss:$2 sm:$0xf]
      %s6379 = scalar_lea.vmem [#allocation5], 27
      %v6380 = vld [vmem:[%s6379] ss:$2 sm:$0xf]
      %v6381 = vmax.f32 %v6374, %v6376
      %v6382 = vmax.f32 %v6378, %v6380
      %v6383 = vmax.f32 %v6381, %v6382
      %vm6384 = vcmask 125952
      %6385 = vst.msk [vmem:[#allocation7 + $0x8] sm:$0xf] %vm6384, %v6383
      %s6386 = scalar_lea.vmem [#allocation5], 36
      %v6387 = vld [vmem:[%s6386] ss:$2 sm:$0xf]
      %s6388 = scalar_lea.vmem [#allocation5], 37
      %v6389 = vld [vmem:[%s6388] ss:$2 sm:$0xf]
      %s6390 = scalar_lea.vmem [#allocation5], 46
      %v6391 = vld [vmem:[%s6390] ss:$2 sm:$0xf]
      %s6392 = scalar_lea.vmem [#allocation5], 47
      %v6393 = vld [vmem:[%s6392] ss:$2 sm:$0xf]
      %v6394 = vmax.f32 %v6387, %v6389
      %v6395 = vmax.f32 %v6391, %v6393
      %v6396 = vmax.f32 %v6394, %v6395
      %6397 = vst.msk [vmem:[#allocation7 + $0xe] sm:$0xf] %vm6384, %v6396
      %s6398 = scalar_lea.vmem [#allocation5], 56
      %v6399 = vld [vmem:[%s6398] ss:$2 sm:$0xf]
      %s6400 = scalar_lea.vmem [#allocation5], 57
      %v6401 = vld [vmem:[%s6400] ss:$2 sm:$0xf]
      %s6402 = scalar_lea.vmem [#allocation5], 66
      %v6403 = vld [vmem:[%s6402] ss:$2 sm:$0xf]
      %s6404 = scalar_lea.vmem [#allocation5], 67
      %v6405 = vld [vmem:[%s6404] ss:$2 sm:$0xf]
      %v6406 = vmax.f32 %v6399, %v6401
      %v6407 = vmax.f32 %v6403, %v6405
      %v6408 = vmax.f32 %v6406, %v6407
      %6409 = vst.msk [vmem:[#allocation7 + $0x14] sm:$0xf] %vm6384, %v6408
      %s6410 = scalar_lea.vmem [#allocation5], 76
      %v6411 = vld [vmem:[%s6410] ss:$2 sm:$0xf]
      %s6412 = scalar_lea.vmem [#allocation5], 77
      %v6413 = vld [vmem:[%s6412] ss:$2 sm:$0xf]
      %s6414 = scalar_lea.vmem [#allocation5], 86
      %v6415 = vld [vmem:[%s6414] ss:$2 sm:$0xf]
      %s6416 = scalar_lea.vmem [#allocation5], 87
      %v6417 = vld [vmem:[%s6416] ss:$2 sm:$0xf]
      %v6418 = vmax.f32 %v6411, %v6413
      %v6419 = vmax.f32 %v6415, %v6417
      %v6420 = vmax.f32 %v6418, %v6419
      %6421 = vst.msk [vmem:[#allocation7 + $0x1a] sm:$0xf] %vm6384, %v6420
      %v6422 = vld [vmem:[#allocation7 + $0x1] sm:$0xff]
      %v6423 = vld [vmem:[#allocation7 + $0x9] sm:$0xff]
      %v6424 = vld [vmem:[#allocation7 + $0x11] sm:$0x3f]
      %v6425 = vld [vmem:[#allocation7 + $0x2] sm:$0xff]
      %v6426 = vld [vmem:[#allocation7 + $0xa] sm:$0xff]
      %v6427 = vld [vmem:[#allocation7 + $0x12] sm:$0x3f]
      %v6428 = vld [vmem:[#allocation7 + $0x3] sm:$0xff]
      %v6429 = vld [vmem:[#allocation7 + $0xb] sm:$0xff]
      %v6430 = vld [vmem:[#allocation7 + $0x13] sm:$0x3f]
      %v6431 = vld [vmem:[#allocation7 + $0x7] sm:$0xff]
      %v6432 = vld [vmem:[#allocation7 + $0xf] sm:$0xff]
      %v6433 = vld [vmem:[#allocation7 + $0x17] sm:$0x3f]
      %v6434 = vld [vmem:[#allocation7 + $0x8] sm:$0xff]
      %v6435 = vld [vmem:[#allocation7 + $0x10] sm:$0xff]
      %v6436 = vld [vmem:[#allocation7 + $0x18] sm:$0x3f]
      %v6437 = vld [vmem:[#allocation7 + $0x11] sm:$0xff]
      %v6438 = vld [vmem:[#allocation7 + $0x19] sm:$0x3f]
      %v6439 = vld [vmem:[#allocation7 + $0xd] sm:$0xff]
      %v6440 = vld [vmem:[#allocation7 + $0x15] sm:$0xff]
      %v6441 = vld [vmem:[#allocation7 + $0x1d] sm:$0x3f]
      %v6442 = vld [vmem:[#allocation7 + $0xe] sm:$0xff]
      %v6443 = vld [vmem:[#allocation7 + $0x16] sm:$0xff]
      %v6444 = vld [vmem:[#allocation7 + $0x1e] sm:$0x3f]
      %v6445 = vld [vmem:[#allocation7 + $0x17] sm:$0xff]
      %v6446 = vld [vmem:[#allocation7 + $0x1f] sm:$0x3f]
      %6450 = vrot.lane.b32.xlu0 %v6425, 16
      %v6451 = vpop.permute.xlu0 %6450
      %6452 = vrot.lane.b32.xlu0 %v6426, 16
      %v6453 = vpop.permute.xlu0 %6452
      %6454 = vrot.lane.b32.xlu0 %v6427, 16
      %v6455 = vpop.permute.xlu0 %6454
      %6462 = vrot.lane.b32.xlu0 %v6428, 32
      %v6463 = vpop.permute.xlu0 %6462
      %6464 = vrot.lane.b32.xlu0 %v6429, 32
      %v6465 = vpop.permute.xlu0 %6464
      %6466 = vrot.lane.b32.xlu0 %v6430, 32
      %v6467 = vpop.permute.xlu0 %6466
      %6474 = vrot.lane.b32.xlu0 %v6431, 48
      %v6475 = vpop.permute.xlu0 %6474
      %6476 = vrot.lane.b32.xlu0 %v6432, 48
      %v6477 = vpop.permute.xlu0 %6476
      %6478 = vrot.lane.b32.xlu0 %v6433, 48
      %v6479 = vpop.permute.xlu0 %6478
      %6486 = vrot.lane.b32.xlu0 %v6434, 64
      %v6487 = vpop.permute.xlu0 %6486
      %6488 = vrot.lane.b32.xlu0 %v6435, 64
      %v6489 = vpop.permute.xlu0 %6488
      %6490 = vrot.lane.b32.xlu0 %v6436, 64
      %v6491 = vpop.permute.xlu0 %6490
      %6498 = vrot.lane.b32.xlu0 %v6423, 80
      %v6499 = vpop.permute.xlu0 %6498
      %6500 = vrot.lane.b32.xlu0 %v6437, 80
      %v6501 = vpop.permute.xlu0 %6500
      %6502 = vrot.lane.b32.xlu0 %v6438, 80
      %v6503 = vpop.permute.xlu0 %6502
      %6510 = vrot.lane.b32.xlu0 %v6439, 96
      %v6511 = vpop.permute.xlu0 %6510
      %6512 = vrot.lane.b32.xlu0 %v6440, 96
      %v6513 = vpop.permute.xlu0 %6512
      %6514 = vrot.lane.b32.xlu0 %v6441, 96
      %v6515 = vpop.permute.xlu0 %6514
      %6522 = vrot.lane.b32.xlu0 %v6442, 112
      %v6523 = vpop.permute.xlu0 %6522
      %6524 = vrot.lane.b32.xlu0 %v6443, 112
      %v6525 = vpop.permute.xlu0 %6524
      %6526 = vrot.lane.b32.xlu0 %v6444, 112
      %v6527 = vpop.permute.xlu0 %6526
      %v6531 = vsel %vm1935, %v6422, %v6451
      %v6532 = vsel %vm1935, %v6423, %v6453
      %v6533 = vsel %vm1935, %v6424, %v6455
      %v6534 = vsel %vm2083, %v6531, %v6463
      %v6535 = vsel %vm2083, %v6532, %v6465
      %v6536 = vsel %vm2083, %v6533, %v6467
      %v6537 = vsel %vm4330, %v6534, %v6475
      %v6538 = vsel %vm4330, %v6535, %v6477
      %v6539 = vsel %vm4330, %v6536, %v6479
      %v6540 = vsel %vm4404, %v6537, %v6487
      %v6541 = vsel %vm4404, %v6538, %v6489
      %v6542 = vsel %vm4404, %v6539, %v6491
      %v6543 = vsel %vm6117, %v6540, %v6499
      %v6544 = vsel %vm6117, %v6541, %v6501
      %v6545 = vsel %vm6117, %v6542, %v6503
      %v6546 = vsel %vm6128, %v6543, %v6511
      %v6547 = vsel %vm6128, %v6544, %v6513
      %v6548 = vsel %vm6128, %v6545, %v6515
      %v6549 = vsel %vm6139, %v6546, %v6523
      %v6550 = vsel %vm6139, %v6547, %v6525
      %v6551 = vsel %vm6139, %v6548, %v6527
      %v6552 = vpack.c.bf16 %v6550, %v6549
      %v6553 = vpack.c.bf16 %v6445, %v6432
      %v6554 = vpack.c.bf16 %v6551, %v6551
      %v6555 = vpack.c.bf16 %v6446, %v6446
      %v6556 = vld [vmem:[%s11] sm:$0xf]
      %v6557 = vld [vmem:[%s11 + $0x4] sm:$0xf]
      %v6558 = vld [vmem:[%s11 + $0x8] sm:$0xf]
      %v6559 = vld [vmem:[%s11 + $0xc] sm:$0xf]
      %v6560 = vld [vmem:[%s11 + $0x10] sm:$0xf]
      %v6561 = vld [vmem:[%s11 + $0x14] sm:$0xf]
      %v6562 = vld [vmem:[%s11 + $0x18] sm:$0xf]
      %v6563 = vld [vmem:[%s11 + $0x1c] sm:$0xf]
      %v6564 = vld [vmem:[%s11 + $0x20] sm:$0xf]
      %v6565 = vld [vmem:[%s11 + $0x24] sm:$0xf]
      %v6566 = vld [vmem:[%s11 + $0x28] sm:$0xf]
      %v6567 = vld [vmem:[%s11 + $0x2c] sm:$0xf]
      %v6568 = vld [vmem:[%s11 + $0x30] sm:$0xf]
      %v6569 = vld [vmem:[%s11 + $0x34] sm:$0xf]
      %v6570 = vld [vmem:[%s11 + $0x38] sm:$0xf]
      %v6571 = vld [vmem:[%s11 + $0x3c] sm:$0xf]
      %v6572 = vld [vmem:[%s11 + $0x40] sm:$0xf]
      %v6573 = vld [vmem:[%s11 + $0x44] sm:$0xf]
      %v6574 = vld [vmem:[%s12] sm:$0x1]
      %v6576 = vlaneseq
      %v6577 = vshrl.u32 %v6576, 7
      %v6578 = vsub.s32 0, %v6577
      %v6579 = vrot.slane %v6574, %v6578
      %v6599 = vunpack.c.l.b16 %v6556
      %v6600 = vunpack.c.l.b16 %v6557
      %v6601 = vunpack.c.l.b16 %v6558
      %v6602 = vunpack.c.l.b16 %v6559
      %v6603 = vunpack.c.l.b16 %v6560
      %v6604 = vunpack.c.l.b16 %v6561
      %v6605 = vunpack.c.l.b16 %v6562
      %v6606 = vunpack.c.l.b16 %v6563
      %v6607 = vunpack.c.l.b16 %v6564
      %v6608 = vunpack.c.l.b16 %v6565
      %v6609 = vunpack.c.l.b16 %v6566
      %v6610 = vunpack.c.l.b16 %v6567
      %v6611 = vunpack.c.l.b16 %v6568
      %v6612 = vunpack.c.l.b16 %v6569
      %v6613 = vunpack.c.l.b16 %v6570
      %v6614 = vunpack.c.l.b16 %v6571
      %v6615 = vunpack.c.l.b16 %v6572
      %v6616 = vunpack.c.l.b16 %v6573
      %v6617 = vpack.c.b16 %v6600, %v6599
      %v6618 = vpack.c.b16 %v6602, %v6601
      %v6619 = vpack.c.b16 %v6604, %v6603
      %v6620 = vpack.c.b16 %v6606, %v6605
      %v6621 = vpack.c.b16 %v6608, %v6607
      %v6622 = vpack.c.b16 %v6610, %v6609
      %v6623 = vpack.c.b16 %v6612, %v6611
      %v6624 = vpack.c.b16 %v6614, %v6613
      %v6625 = vpack.c.b16 %v6616, %v6615
      %v6636 = vsel %vm1935, %v6553, 0
      %v6639 = vsel %vm1935, %v6555, 0
      %6641 = vmatprep.subr.bf16.mxu0 0
      %6642 = vmatpush1.bf16.msra.mxu0 %v6624
      %6643 = vmatprep.subr.bf16.mxu0 0
      %6644 = vmatpush1.bf16.msra.mxu0 %v6623
      %6645 = vmatprep.subr.bf16.mxu0 0
      %6646 = vmatpush1.bf16.msra.mxu0 %v6622
      %6647 = vmatprep.subr.bf16.mxu0 0
      %6648 = vmatpush1.bf16.msra.mxu0 %v6621
      %6649 = vmatprep.subr.bf16.mxu0 0
      %6650 = vmatpush1.bf16.msra.mxu0 %v6620
      %6651 = vmatprep.subr.bf16.mxu0 0
      %6652 = vmatpush1.bf16.msra.mxu0 %v6619
      %6653 = vmatprep.subr.bf16.mxu0 0
      %6654 = vmatpush1.bf16.msra.mxu0 %v6618
      %6655 = vmatprep.subr.bf16.mxu0 0
      %6656 = vmatpush1.bf16.msra.mxu0 %v6617
      %6657 = vmatprep.subr.bf16.mxu0 0
      %6658 = vmatpush2.bf16.msra.mxu0 0
      %6659 = vmatprep.subr.bf16.mxu0 0
      %6660 = vmatpush2.bf16.msra.mxu0 0
      %6661 = vmatprep.subr.bf16.mxu0 0
      %6662 = vmatpush2.bf16.msra.mxu0 0
      %6663 = vmatprep.subr.bf16.mxu0 0
      %6664 = vmatpush2.bf16.msra.mxu0 0
      %6665 = vmatprep.subr.bf16.mxu0 0
      %6666 = vmatpush2.bf16.msra.mxu0 0
      %6667 = vmatprep.subr.bf16.mxu0 0
      %6668 = vmatpush2.bf16.msra.mxu0 0
      %6669 = vmatprep.subr.bf16.mxu0 0
      %6670 = vmatpush2.bf16.msra.mxu0 0
      %6671 = vmatprep.subr.bf16.mxu0 0
      %6672 = vmatpush2.bf16.msra.mxu0 %v6625
      %6673 = vmatprep.mubr.bf16.mxu0 %v6636
      %6674 = vmatmul.mubr.bf16.gmra.mxu0 %v6552
      %v6675 = vpop.f32.mrf.mxu0
      %v6676 = vadd.f32 %v6579, %v6675
      %v6677 = vpop.f32.mrf.mxu0
      %v6678 = vpop.f32.mrf.mxu0
      %v6679 = vadd.f32 %v6579, %v6678
      %v6680 = vpop.f32.mrf.mxu0
      %6681 = vmatprep.mubr.bf16.mxu0 %v6639
      %6682 = vmatmul.mubr.bf16.gmra.mxu0 %v6554
      %v6683 = vpop.f32.mrf.mxu0
      %v6684 = vadd.f32 %v6579, %v6683
      %v6685 = vpop.f32.mrf.mxu0
      %v6686 = vpop.f32.mrf.mxu0
      %v6687 = vpop.f32.mrf.mxu0
      %6688 = vdwg.mxu0
      %vm6689 = vcmp.ge.f32.partialorder %v6676, 0.0
      %vm6690 = vcmp.ge.f32.partialorder %v6679, 0.0
      %vm6691 = vcmp.ge.f32.partialorder %v6684, 0.0
      %v6692 = vmul.f32 %v6676, 0.1
      %v6693 = vmul.f32 %v6679, 0.1
      %v6694 = vmul.f32 %v6684, 0.1
      %v6695 = vsel %vm6689, %v6676, %v6692
      %v6696 = vsel %vm6690, %v6679, %v6693
      %v6697 = vsel %vm6691, %v6684, %v6694
      %vm6700 = vcmask 1045504
      %v6701 = vrot.slane %v6695, 2
      %v6702 = vrot.slane %v6696, 2
      %v6703 = vsel %vm6700, %v6701, %v6702
      %v6705 = vrot.slane %v6696, 4
      %v6708 = vrot.slane %v6697, 6
      %v6710 = vsel %vm4557, %v6695, %v6703
      %v6711 = vsel %vm4557, %v6705, %v6708
      %6712 = vxpose.xlu0.b32.start [1/16] %v6710, 128
      %6713 = vxpose.xlu0.b32.cont [2/16] %v6711, 128
      %6714 = vxpose.xlu0.b32.cont [3/16] 0.0, 128
      %6715 = vxpose.xlu0.b32.cont [4/16] 0.0, 128
      %6716 = vxpose.xlu0.b32.cont [5/16] 0.0, 128
      %6717 = vxpose.xlu0.b32.cont [6/16] 0.0, 128
      %6718 = vxpose.xlu0.b32.cont [7/16] 0.0, 128
      %6719 = vxpose.xlu0.b32.cont [8/16] 0.0, 128
      %6720 = vxpose.xlu0.b32.cont [9/16] 0.0, 128
      %6721 = vxpose.xlu0.b32.cont [10/16] 0.0, 128
      %6722 = vxpose.xlu0.b32.cont [11/16] 0.0, 128
      %6723 = vxpose.xlu0.b32.cont [12/16] 0.0, 128
      %6724 = vxpose.xlu0.b32.cont [13/16] 0.0, 128
      %6725 = vxpose.xlu0.b32.cont [14/16] 0.0, 128
      %6726 = vxpose.xlu0.b32.cont [15/16] 0.0, 128
      %6727 = vxpose.xlu0.b32.end [16/16] 0.0, 128
      %v6728 = vpop.trf.xlu0
      %v6729 = vpop.trf.xlu0
      %v6730 = vpop.trf.xlu0
      %v6731 = vpop.trf.xlu0
      %v6732 = vpop.trf.xlu0
      %v6733 = vpop.trf.xlu0
      %v6734 = vpop.trf.xlu0
      %v6735 = vpop.trf.xlu0
      %v6736 = vpop.trf.xlu0
      %v6737 = vpop.trf.xlu0
      %v6738 = vpop.trf.xlu0
      %v6739 = vpop.trf.xlu0
      %v6740 = vpop.trf.xlu0
      %v6741 = vpop.trf.xlu0
      %v6742 = vpop.trf.xlu0
      %v6743 = vpop.trf.xlu0
      %6744 = vst.msk [vmem:[%s478] sm:$0xff] %vm1935, %v6728
      %6745 = vst.msk [vmem:[%s478 + $0x8] sm:$0xff] %vm1935, %v6729
      %p6746 = scmp.lt.s32.totalorder %s26, 1
      %s6747 = scalar_select %p6746, %s26, 1
      %s6748 = smul.addr %s6747, 8
      %s6749 = scalar_lea.vmem %s13, %s6748
      %p6750 = scmp.lt.s32.totalorder %s26, 1
      %s6751 = scalar_select %p6750, %s26, 1
      %s6752 = smul.addr %s6751, 2
      %s6753 = smul.addr %s6752, 8
      %s6754 = scalar_lea.vmem %s14, %s6753
      // Predicated region
      $region73: #{denoiser_encoder_forward.1} parent=71 // pred_check
        %p6755 = pneg %p322
      $region74: #{denoiser_encoder_forward.1} parent=71 // pred_check_branch
        %6757 = sbr.rel (%p6755) target = $region76
      $region75: #{denoiser_encoder_forward.1} parent=71 // pred_region
        _
      $region76: #{denoiser_encoder_forward.1} parent=71 // pred_fallthru
        _
      // Predicated region
      $region77: #{denoiser_encoder_forward.1} parent=71 // pred_check
        %p6758 = pneg %p348
      $region78: #{denoiser_encoder_forward.1} parent=71 // pred_check_branch
        %6760 = sbr.rel (%p6758) target = $region80
      $region79: #{denoiser_encoder_forward.1} parent=71 // pred_region
        _
      $region80: #{denoiser_encoder_forward.1} parent=71 // pred_fallthru
        _
    $region72: #{denoiser_encoder_forward.1} parent=5 // pred_fallthru
      _
    %p6761 = scmp.le.s32.totalorder 2, %s21
    // Predicated region
    $region81: #{denoiser_encoder_forward.1} parent=5 // pred_check
      %p6762 = pneg %p6761
    $region82: #{denoiser_encoder_forward.1} parent=5 // pred_check_branch
      %6764 = sbr.rel (%p6762) target = $region84
    $region83: #{denoiser_encoder_forward.1} parent=5 // pred_region
      %s6765 = ssub.s32 %s21, 2
      // Predicated region
      $region85: #{denoiser_encoder_forward.1} parent=83 // pred_check
        %p6766 = pneg %p328
      $region86: #{denoiser_encoder_forward.1} parent=83 // pred_check_branch
        %6768 = sbr.rel (%p6766) target = $region88
      $region87: #{denoiser_encoder_forward.1} parent=83 // pred_region
        %p6769 = scmp.lt.s32.totalorder %s27, 1
        %s6770 = scalar_select %p6769, %s27, 1
        %s6771 = smul.addr %s6770, 8
        %s6772 = scalar_lea.vmem %s13, %s6771
      $region88: #{denoiser_encoder_forward.1} parent=83 // pred_fallthru
        _
      // Predicated region
      $region89: #{denoiser_encoder_forward.1} parent=83 // pred_check
        %p6773 = pneg %p354
      $region90: #{denoiser_encoder_forward.1} parent=83 // pred_check_branch
        %6775 = sbr.rel (%p6773) target = $region92
      $region91: #{denoiser_encoder_forward.1} parent=83 // pred_region
        %p6776 = scmp.lt.s32.totalorder %s27, 1
        %s6777 = scalar_select %p6776, %s27, 1
        %s6778 = smul.addr %s6777, 2
        %s6779 = smul.addr %s6778, 8
        %s6780 = scalar_lea.vmem %s14, %s6779
      $region92: #{denoiser_encoder_forward.1} parent=83 // pred_fallthru
        _
    $region84: #{denoiser_encoder_forward.1} parent=5 // pred_fallthru
      _
  $region6: #{denoiser_encoder_forward.1} parent=0 // loop_footer
    %s25 = sadd.s32 1, %s21
  $region7: #{denoiser_encoder_forward.1} parent=0 // loop_footer_branch
    %20 = sbr.rel target = $region3
  $region8: #{denoiser_encoder_forward.1} parent=0 // loop_exit
    _

</llo_original>
